<compile_context>
chip_gen: v5e
topology: v5e:2x2
jax: 0.10.0
libtpu: 0.0.40
codegen_flags: <defaults>
</compile_context>

<pallas_src>
import jax
import jax.numpy as jnp
from jax.experimental import pallas as pl
from jax.experimental.pallas import tpu as pltpu

H = W = 28                       # spatial size fixed by Linear(20*28*28, 10)
WP = H + 2                       # padded width (30)
SP = WP * WP                     # 900 flat padded positions
OFF = WP + 1                     # 31: flat index of first interior pixel
C1, C2, NCLS = 10, 20, 10
C1P = 16                         # conv1 channels padded to one bf16 sublane tile
JW = 1024                        # working lane width (900 positions + tail)
XBW = 1152                       # input buffer width: 31 zeros + 900 + tail
DELTAS = tuple((dh - 1) * WP + (dw - 1) for dh in range(3) for dw in range(3))
K9 = len(DELTAS)                 # 9 taps
BBLK = 4                         # images per grid step


# ------------------------------- fused kernel -------------------------------

def fused_mnist_kernel(x_ref, mask_ref, w1_ref, b1_ref, w2_ref, b2_ref,
                       wfc_ref, dsel_ref, ssel_ref, bfc_ref, out_ref):
    mask = mask_ref[...]                      # (1, JW)        f32
    w1 = w1_ref[...]                          # (C1P, 9)       f32
    b1 = b1_ref[...]                          # (C1P, 1)       f32
    w2 = w2_ref[...]                          # (C2, 9*C1P)    bf16
    b2 = b2_ref[...]                          # (C2, 1)        f32
    wfc = wfc_ref[...]                        # (JW, 200)      bf16
    dsel = dsel_ref[...]                      # (C2, 200)      f32
    ssel = ssel_ref[...]                      # (200, NCLS)    f32
    bfc = bfc_ref[...]                        # (1, NCLS)      f32

    zpad = jnp.zeros((C1P, 128), jnp.bfloat16)    # hoisted out of the loop

    for b in range(BBLK):                     # static unroll over batch block
        ximg = x_ref[b]                       # (1, XBW) f32; image at lanes [31, 931)

        # ---- conv1 (1 -> 10) on the VPU: 9 shifted-slice broadcast MACs ----
        # Lane-dense (C1P, JW) f32 accumulator = 16 vregs; ~negligible cost.
        acc1 = jnp.zeros((C1P, JW), jnp.float32)
        for k, d in enumerate(DELTAS):
            sl = ximg[:, OFF + d: OFF + d + JW]            # (1, JW)
            acc1 = acc1 + sl * w1[:, k:k + 1]              # -> (C1P, JW)
        # zero padded columns / tail junk so conv2 sees true zero padding
        h1 = jnp.maximum(acc1 + b1, 0.0) * mask            # (C1P, JW)

        # ---- conv2 (10 -> 20): one bf16 MXU matmul over aligned im2col -----
        h1w = jnp.concatenate(                              # (C1P, JW + 256) bf16
            [zpad, h1.astype(jnp.bfloat16), zpad], axis=1)  # offsets 0/128/1152: aligned
        xcol2 = jnp.concatenate(                            # (9*C1P, JW) bf16
            [h1w[:, 128 + d: 128 + d + JW] for d in DELTAS], axis=0)
        h2 = jnp.dot(w2, xcol2, preferred_element_type=jnp.float32)   # (C2, JW)
        h2 = jnp.maximum(h2 + b2, 0.0)
        # junk at non-valid lane positions of h2 is neutralized by wfc's zeros

        # ---- fully connected (bf16 MXU, f32 accumulation) ------------------
        g = jnp.dot(h2.astype(jnp.bfloat16), wfc,
                    preferred_element_type=jnp.float32)               # (C2, 200)
        t = jnp.dot(g * dsel, ssel, preferred_element_type=jnp.float32)  # (C2, NCLS)
        out_ref[b] = jnp.sum(t, axis=0, keepdims=True) + bfc          # (1, NCLS)


# --------------------------- parameters & prepping ---------------------------

def init_params(key):
    k1, k2, k3, k4, k5, k6 = jax.random.split(key, 6)
    # PyTorch layouts: conv weight (Cout, Cin, 3, 3); linear weight (N, K).
    conv1_w = jax.random.normal(k1, (C1, 1, 3, 3), jnp.float32) * 0.2
    conv1_b = jax.random.normal(k2, (C1,), jnp.float32) * 0.1
    conv2_w = jax.random.normal(k3, (C2, C1, 3, 3), jnp.float32) * 0.05
    conv2_b = jax.random.normal(k4, (C2,), jnp.float32) * 0.05
    fc_w = jax.random.normal(k5, (NCLS, C2 * H * W), jnp.float32) * 0.01
    fc_b = jax.random.normal(k6, (NCLS,), jnp.float32) * 0.01
    return conv1_w, conv1_b, conv2_w, conv2_b, fc_w, fc_b


def prepare_params(conv1_w, conv1_b, conv2_w, conv2_b, fc_w, fc_b):
    """One-time weight re-layouts, bf16 packing and constant selectors."""
    # conv1 (10,1,3,3) -> (16, 9) f32; row = cout (padded), col = tap k=3*dh+dw
    w1 = conv1_w[:, 0].reshape(C1, K9)
    w1 = jnp.pad(w1, ((0, C1P - C1), (0, 0)))
    b1 = jnp.pad(conv1_b, (0, C1P - C1)).reshape(C1P, 1)
    # conv2 (20,10,3,3) -> (20, 144) bf16; col = k*16 + cin (cin padded to 16)
    w2 = jnp.transpose(conv2_w, (0, 2, 3, 1))                 # (cout, kh, kw, cin)
    w2 = jnp.pad(w2, ((0, 0), (0, 0), (0, 0), (0, C1P - C1)))
    w2 = w2.reshape(C2, K9 * C1P).astype(jnp.bfloat16)
    b2 = conv2_b.reshape(C2, 1)
    # fc (10, 20*28*28) -> wfcT (JW, 200) bf16:
    #   wfcT[31 + 30*h + w, c*10 + n] = fc_w[n, c*784 + 28*h + w], zero elsewhere.
    wf = fc_w.reshape(NCLS, C2, H, W)
    wf = jnp.transpose(wf, (2, 3, 1, 0)).reshape(H, W, C2 * NCLS)   # (28,28,200)
    wf = jnp.pad(wf, ((1, 1), (1, 1), (0, 0)))                      # (30,30,200)
    wf = wf.reshape(SP, C2 * NCLS)                                  # (900, 200)
    wfc = jnp.pad(wf, ((0, JW - SP), (0, 0))).astype(jnp.bfloat16)  # (1024, 200)
    bfc = fc_b.reshape(1, NCLS)
    # diagonal-selection constants: logits[n] = sum_c G[c, c*10+n]
    m = jnp.arange(C2 * NCLS)
    dsel = (m[None, :] // NCLS == jnp.arange(C2)[:, None]).astype(jnp.float32)
    ssel = (m[:, None] % NCLS == jnp.arange(NCLS)[None, :]).astype(jnp.float32)
    # validity mask over the JW working lanes (interior 28x28 pixels only)
    p = jnp.arange(JW)
    colm = p % WP
    valid = (p >= OFF) & (p < OFF + (H - 1) * WP + W) & (colm >= 1) & (colm <= W)
    mask = valid.astype(jnp.float32).reshape(1, JW)
    return dict(w1=w1, b1=b1, w2=w2, b2=b2, wfc=wfc, bfc=bfc,
                dsel=dsel, ssel=ssel, mask=mask)


# ---------------------------------- forward ----------------------------------

def mnist_forward(x_nchw, prep):
    B = x_nchw.shape[0]
    pb = -(-B // BBLK) * BBLK
    if pb != B:
        x_nchw = jnp.pad(x_nchw, ((0, pb - B), (0, 0), (0, 0), (0, 0)))
    # zero-pad spatially, flatten to padded-flat coords, embed at lane offset 31
    xp = jnp.pad(x_nchw[:, 0], ((0, 0), (1, 1), (1, 1))).reshape(pb, 1, SP)
    xbuf = jnp.pad(xp, ((0, 0), (0, 0), (OFF, XBW - SP - OFF)))      # (pb,1,XBW)

    grid_spec = pltpu.PrefetchScalarGridSpec(
        num_scalar_prefetch=0,
        grid=(pb // BBLK,),
        in_specs=[
            pl.BlockSpec((BBLK, 1, XBW), lambda i: (i, 0, 0)),        # images
            pl.BlockSpec((1, JW), lambda i: (0, 0)),                  # mask
            pl.BlockSpec((C1P, K9), lambda i: (0, 0)),                # conv1 w
            pl.BlockSpec((C1P, 1), lambda i: (0, 0)),                 # conv1 b
            pl.BlockSpec((C2, K9 * C1P), lambda i: (0, 0)),           # conv2 w
            pl.BlockSpec((C2, 1), lambda i: (0, 0)),                  # conv2 b
            pl.BlockSpec((JW, C2 * NCLS), lambda i: (0, 0)),          # fc wfcT
            pl.BlockSpec((C2, C2 * NCLS), lambda i: (0, 0)),          # dsel
            pl.BlockSpec((C2 * NCLS, NCLS), lambda i: (0, 0)),        # ssel
            pl.BlockSpec((1, NCLS), lambda i: (0, 0)),                # fc bias
        ],
        out_specs=pl.BlockSpec((BBLK, 1, NCLS), lambda i: (i, 0, 0)),
    )
    out = pl.pallas_call(
        fused_mnist_kernel,
        out_shape=jax.ShapeDtypeStruct((pb, 1, NCLS), jnp.float32),
        grid_spec=grid_spec,
        compiler_params=pltpu.CompilerParams(
            dimension_semantics=("parallel",)),
    )(xbuf, prep["mask"], prep["w1"], prep["b1"], prep["w2"], prep["b2"],
      prep["wfc"], prep["dsel"], prep["ssel"], prep["bfc"])
    return out.reshape(pb, NCLS)[:B]


# ------------------------------ pure-JAX reference ---------------------------

def reference_forward(x, params):
    c1w, c1b, c2w, c2b, fcw, fcb = params
    dn = ("NCHW", "OIHW", "NCHW")
    hp = jax.lax.Precision.HIGHEST
    h = jax.lax.conv_general_dilated(x, c1w, (1, 1), ((1, 1), (1, 1)),
                                     dimension_numbers=dn, precision=hp)
    h = jax.nn.relu(h + c1b.reshape(1, C1, 1, 1))
    h = jax.lax.conv_general_dilated(h, c2w, (1, 1), ((1, 1), (1, 1)),
                                     dimension_numbers=dn, precision=hp)
    h = jax.nn.relu(h + c2b.reshape(1, C2, 1, 1))
    flat = h.reshape(x.shape[0], -1)
    return jnp.dot(flat, fcw.T, precision=hp) + fcb


if __name__ == "__main__":
    key = jax.random.PRNGKey(0)
    pkey, xkey = jax.random.split(key)
    params = init_params(pkey)
    prep = prepare_params(*params)          # one-time parameter preprocessing
    # batch=8 (2 grid steps of 4 images), 1 channel, 28x28 (fixed by the Linear)
    BATCH = 8
    x = jax.random.normal(xkey, (BATCH, 1, H, W), jnp.float32)

    out = jax.jit(mnist_forward)(x, prep)
    jax.block_until_ready(out)
    assert out.shape == (BATCH, NCLS) and out.dtype == jnp.float32

    ref = reference_forward(x, params)
    assert jnp.allclose(out, ref, atol=2e-2, rtol=2e-2), (
        "mismatch vs reference, max abs err "
        f"{float(jnp.max(jnp.abs(out - ref)))}")
    print("KERNEL_OK")
</pallas_src>

<mosaic_0001>
module attributes {stable_mosaic.version = 11 : i64} {
  func.func @fused_mnist_kernel(%arg0: i32, %arg1: memref<4x1x1152xf32, #tpu.memory_space<vmem>>, %arg2: memref<1x1024xf32, #tpu.memory_space<vmem>>, %arg3: memref<16x9xf32, #tpu.memory_space<vmem>>, %arg4: memref<16x1xf32, #tpu.memory_space<vmem>>, %arg5: memref<20x144xbf16, #tpu.memory_space<vmem>>, %arg6: memref<20x1xf32, #tpu.memory_space<vmem>>, %arg7: memref<1024x200xbf16, #tpu.memory_space<vmem>>, %arg8: memref<20x200xf32, #tpu.memory_space<vmem>>, %arg9: memref<200x10xf32, #tpu.memory_space<vmem>>, %arg10: memref<1x10xf32, #tpu.memory_space<vmem>>, %arg11: memref<4x1x10xf32, #tpu.memory_space<vmem>>) attributes {dimension_semantics = [#tpu.dimension_semantics<parallel>], iteration_bounds = array<i64: 2>, scalar_prefetch = 0 : i64, scratch_operands = 0 : i64, tpu.core_type = #tpu.core_type<tc>, window_params = [{transform_indices = @transform_0, window_bounds = array<i64: 4, 1, 1152>}, {pipeline_mode = #tpu.pipeline_mode<synchronous>, transform_indices = @transform_1, window_bounds = array<i64: 1, 1024>}, {pipeline_mode = #tpu.pipeline_mode<synchronous>, transform_indices = @transform_2, window_bounds = array<i64: 16, 9>}, {pipeline_mode = #tpu.pipeline_mode<synchronous>, transform_indices = @transform_3, window_bounds = array<i64: 16, 1>}, {pipeline_mode = #tpu.pipeline_mode<synchronous>, transform_indices = @transform_4, window_bounds = array<i64: 20, 144>}, {pipeline_mode = #tpu.pipeline_mode<synchronous>, transform_indices = @transform_5, window_bounds = array<i64: 20, 1>}, {pipeline_mode = #tpu.pipeline_mode<synchronous>, transform_indices = @transform_6, window_bounds = array<i64: 1024, 200>}, {pipeline_mode = #tpu.pipeline_mode<synchronous>, transform_indices = @transform_7, window_bounds = array<i64: 20, 200>}, {pipeline_mode = #tpu.pipeline_mode<synchronous>, transform_indices = @transform_8, window_bounds = array<i64: 200, 10>}, {pipeline_mode = #tpu.pipeline_mode<synchronous>, transform_indices = @transform_9, window_bounds = array<i64: 1, 10>}, {transform_indices = @transform_10, window_bounds = array<i64: 4, 1, 10>}]} {
    %c0 = arith.constant 0 : index
    %c0_0 = arith.constant 0 : index
    %0 = vector.load %arg2[%c0, %c0_0] : memref<1x1024xf32, #tpu.memory_space<vmem>>, vector<1x1024xf32>
    %c0_1 = arith.constant 0 : index
    %c0_2 = arith.constant 0 : index
    %1 = vector.load %arg3[%c0_1, %c0_2] : memref<16x9xf32, #tpu.memory_space<vmem>>, vector<16x9xf32>
    %c0_3 = arith.constant 0 : index
    %c0_4 = arith.constant 0 : index
    %2 = vector.load %arg4[%c0_3, %c0_4] : memref<16x1xf32, #tpu.memory_space<vmem>>, vector<16x1xf32>
    %c0_5 = arith.constant 0 : index
    %c0_6 = arith.constant 0 : index
    %3 = vector.load %arg5[%c0_5, %c0_6] : memref<20x144xbf16, #tpu.memory_space<vmem>>, vector<20x144xbf16>
    %c0_7 = arith.constant 0 : index
    %c0_8 = arith.constant 0 : index
    %4 = vector.load %arg6[%c0_7, %c0_8] : memref<20x1xf32, #tpu.memory_space<vmem>>, vector<20x1xf32>
    %c0_9 = arith.constant 0 : index
    %c0_10 = arith.constant 0 : index
    %5 = vector.load %arg7[%c0_9, %c0_10] : memref<1024x200xbf16, #tpu.memory_space<vmem>>, vector<1024x200xbf16>
    %c0_11 = arith.constant 0 : index
    %c0_12 = arith.constant 0 : index
    %6 = vector.load %arg8[%c0_11, %c0_12] : memref<20x200xf32, #tpu.memory_space<vmem>>, vector<20x200xf32>
    %c0_13 = arith.constant 0 : index
    %c0_14 = arith.constant 0 : index
    %7 = vector.load %arg9[%c0_13, %c0_14] : memref<200x10xf32, #tpu.memory_space<vmem>>, vector<200x10xf32>
    %c0_15 = arith.constant 0 : index
    %c0_16 = arith.constant 0 : index
    %8 = vector.load %arg10[%c0_15, %c0_16] : memref<1x10xf32, #tpu.memory_space<vmem>>, vector<1x10xf32>
    %cst = arith.constant 0.000000e+00 : bf16
    %9 = vector.broadcast %cst : bf16 to vector<16x128xbf16>
    %c0_17 = arith.constant 0 : index
    %c0_18 = arith.constant 0 : index
    %c0_19 = arith.constant 0 : index
    %10 = vector.load %arg1[%c0_17, %c0_18, %c0_19] : memref<4x1x1152xf32, #tpu.memory_space<vmem>>, vector<1x1x1152xf32>
    %11 = vector.shape_cast %10 : vector<1x1x1152xf32> to vector<1x1152xf32>
    %cst_20 = arith.constant 0.000000e+00 : f32
    %12 = vector.broadcast %cst_20 : f32 to vector<16x1024xf32>
    %13 = vector.extract_strided_slice %11 {offsets = [0, 0], sizes = [1, 1024], strides = [1, 1]} : vector<1x1152xf32> to vector<1x1024xf32>
    %14 = vector.extract_strided_slice %1 {offsets = [0, 0], sizes = [16, 1], strides = [1, 1]} : vector<16x9xf32> to vector<16x1xf32>
    %15 = vector.broadcast %13 : vector<1x1024xf32> to vector<16x1024xf32>
    %16 = vector.broadcast %14 : vector<16x1xf32> to vector<16x1024xf32>
    %17 = arith.mulf %15, %16 : vector<16x1024xf32>
    %18 = arith.addf %12, %17 : vector<16x1024xf32>
    %19 = vector.extract_strided_slice %11 {offsets = [0, 1], sizes = [1, 1024], strides = [1, 1]} : vector<1x1152xf32> to vector<1x1024xf32>
    %20 = vector.extract_strided_slice %1 {offsets = [0, 1], sizes = [16, 1], strides = [1, 1]} : vector<16x9xf32> to vector<16x1xf32>
    %21 = vector.broadcast %19 : vector<1x1024xf32> to vector<16x1024xf32>
    %22 = vector.broadcast %20 : vector<16x1xf32> to vector<16x1024xf32>
    %23 = arith.mulf %21, %22 : vector<16x1024xf32>
    %24 = arith.addf %18, %23 : vector<16x1024xf32>
    %25 = vector.extract_strided_slice %11 {offsets = [0, 2], sizes = [1, 1024], strides = [1, 1]} : vector<1x1152xf32> to vector<1x1024xf32>
    %26 = vector.extract_strided_slice %1 {offsets = [0, 2], sizes = [16, 1], strides = [1, 1]} : vector<16x9xf32> to vector<16x1xf32>
    %27 = vector.broadcast %25 : vector<1x1024xf32> to vector<16x1024xf32>
    %28 = vector.broadcast %26 : vector<16x1xf32> to vector<16x1024xf32>
    %29 = arith.mulf %27, %28 : vector<16x1024xf32>
    %30 = arith.addf %24, %29 : vector<16x1024xf32>
    %31 = vector.extract_strided_slice %11 {offsets = [0, 30], sizes = [1, 1024], strides = [1, 1]} : vector<1x1152xf32> to vector<1x1024xf32>
    %32 = vector.extract_strided_slice %1 {offsets = [0, 3], sizes = [16, 1], strides = [1, 1]} : vector<16x9xf32> to vector<16x1xf32>
    %33 = vector.broadcast %31 : vector<1x1024xf32> to vector<16x1024xf32>
    %34 = vector.broadcast %32 : vector<16x1xf32> to vector<16x1024xf32>
    %35 = arith.mulf %33, %34 : vector<16x1024xf32>
    %36 = arith.addf %30, %35 : vector<16x1024xf32>
    %37 = vector.extract_strided_slice %11 {offsets = [0, 31], sizes = [1, 1024], strides = [1, 1]} : vector<1x1152xf32> to vector<1x1024xf32>
    %38 = vector.extract_strided_slice %1 {offsets = [0, 4], sizes = [16, 1], strides = [1, 1]} : vector<16x9xf32> to vector<16x1xf32>
    %39 = vector.broadcast %37 : vector<1x1024xf32> to vector<16x1024xf32>
    %40 = vector.broadcast %38 : vector<16x1xf32> to vector<16x1024xf32>
    %41 = arith.mulf %39, %40 : vector<16x1024xf32>
    %42 = arith.addf %36, %41 : vector<16x1024xf32>
    %43 = vector.extract_strided_slice %11 {offsets = [0, 32], sizes = [1, 1024], strides = [1, 1]} : vector<1x1152xf32> to vector<1x1024xf32>
    %44 = vector.extract_strided_slice %1 {offsets = [0, 5], sizes = [16, 1], strides = [1, 1]} : vector<16x9xf32> to vector<16x1xf32>
    %45 = vector.broadcast %43 : vector<1x1024xf32> to vector<16x1024xf32>
    %46 = vector.broadcast %44 : vector<16x1xf32> to vector<16x1024xf32>
    %47 = arith.mulf %45, %46 : vector<16x1024xf32>
    %48 = arith.addf %42, %47 : vector<16x1024xf32>
    %49 = vector.extract_strided_slice %11 {offsets = [0, 60], sizes = [1, 1024], strides = [1, 1]} : vector<1x1152xf32> to vector<1x1024xf32>
    %50 = vector.extract_strided_slice %1 {offsets = [0, 6], sizes = [16, 1], strides = [1, 1]} : vector<16x9xf32> to vector<16x1xf32>
    %51 = vector.broadcast %49 : vector<1x1024xf32> to vector<16x1024xf32>
    %52 = vector.broadcast %50 : vector<16x1xf32> to vector<16x1024xf32>
    %53 = arith.mulf %51, %52 : vector<16x1024xf32>
    %54 = arith.addf %48, %53 : vector<16x1024xf32>
    %55 = vector.extract_strided_slice %11 {offsets = [0, 61], sizes = [1, 1024], strides = [1, 1]} : vector<1x1152xf32> to vector<1x1024xf32>
    %56 = vector.extract_strided_slice %1 {offsets = [0, 7], sizes = [16, 1], strides = [1, 1]} : vector<16x9xf32> to vector<16x1xf32>
    %57 = vector.broadcast %55 : vector<1x1024xf32> to vector<16x1024xf32>
    %58 = vector.broadcast %56 : vector<16x1xf32> to vector<16x1024xf32>
    %59 = arith.mulf %57, %58 : vector<16x1024xf32>
    %60 = arith.addf %54, %59 : vector<16x1024xf32>
    %61 = vector.extract_strided_slice %11 {offsets = [0, 62], sizes = [1, 1024], strides = [1, 1]} : vector<1x1152xf32> to vector<1x1024xf32>
    %62 = vector.extract_strided_slice %1 {offsets = [0, 8], sizes = [16, 1], strides = [1, 1]} : vector<16x9xf32> to vector<16x1xf32>
    %63 = vector.broadcast %61 : vector<1x1024xf32> to vector<16x1024xf32>
    %64 = vector.broadcast %62 : vector<16x1xf32> to vector<16x1024xf32>
    %65 = arith.mulf %63, %64 : vector<16x1024xf32>
    %66 = arith.addf %60, %65 : vector<16x1024xf32>
    %67 = vector.broadcast %2 : vector<16x1xf32> to vector<16x1024xf32>
    %68 = arith.addf %66, %67 : vector<16x1024xf32>
    %cst_21 = arith.constant 0.000000e+00 : f32
    %69 = vector.broadcast %cst_21 : f32 to vector<16x1024xf32>
    %70 = arith.maximumf %68, %69 : vector<16x1024xf32>
    %71 = vector.broadcast %0 : vector<1x1024xf32> to vector<16x1024xf32>
    %72 = arith.mulf %70, %71 : vector<16x1024xf32>
    %73 = arith.truncf %72 : vector<16x1024xf32> to vector<16x1024xbf16>
    %74 = tpu.concatenate %9, %73, %9 in 1 : vector<16x128xbf16>, vector<16x1024xbf16>, vector<16x128xbf16> -> vector<16x1280xbf16>
    %75 = vector.extract_strided_slice %74 {offsets = [0, 97], sizes = [16, 1024], strides = [1, 1]} : vector<16x1280xbf16> to vector<16x1024xbf16>
    %76 = vector.extract_strided_slice %74 {offsets = [0, 98], sizes = [16, 1024], strides = [1, 1]} : vector<16x1280xbf16> to vector<16x1024xbf16>
    %77 = vector.extract_strided_slice %74 {offsets = [0, 99], sizes = [16, 1024], strides = [1, 1]} : vector<16x1280xbf16> to vector<16x1024xbf16>
    %78 = vector.extract_strided_slice %74 {offsets = [0, 127], sizes = [16, 1024], strides = [1, 1]} : vector<16x1280xbf16> to vector<16x1024xbf16>
    %79 = vector.extract_strided_slice %74 {offsets = [0, 128], sizes = [16, 1024], strides = [1, 1]} : vector<16x1280xbf16> to vector<16x1024xbf16>
    %80 = vector.extract_strided_slice %74 {offsets = [0, 129], sizes = [16, 1024], strides = [1, 1]} : vector<16x1280xbf16> to vector<16x1024xbf16>
    %81 = vector.extract_strided_slice %74 {offsets = [0, 157], sizes = [16, 1024], strides = [1, 1]} : vector<16x1280xbf16> to vector<16x1024xbf16>
    %82 = vector.extract_strided_slice %74 {offsets = [0, 158], sizes = [16, 1024], strides = [1, 1]} : vector<16x1280xbf16> to vector<16x1024xbf16>
    %83 = vector.extract_strided_slice %74 {offsets = [0, 159], sizes = [16, 1024], strides = [1, 1]} : vector<16x1280xbf16> to vector<16x1024xbf16>
    %84 = tpu.concatenate %75, %76, %77, %78, %79, %80, %81, %82, %83 in 0 : vector<16x1024xbf16>, vector<16x1024xbf16>, vector<16x1024xbf16>, vector<16x1024xbf16>, vector<16x1024xbf16>, vector<16x1024xbf16>, vector<16x1024xbf16>, vector<16x1024xbf16>, vector<16x1024xbf16> -> vector<144x1024xbf16>
    %cst_22 = arith.constant dense<0.000000e+00> : vector<20x1024xf32>
    %85 = tpu.matmul %3, %84, %cst_22 {dimension_numbers = #tpu.dot_dimension_numbers<[1], [0], [0], [1], [0, 0, 1, 1], [], []>} : vector<20x144xbf16>, vector<144x1024xbf16>, vector<20x1024xf32> -> vector<20x1024xf32>
    %86 = vector.broadcast %4 : vector<20x1xf32> to vector<20x1024xf32>
    %87 = arith.addf %85, %86 : vector<20x1024xf32>
    %cst_23 = arith.constant 0.000000e+00 : f32
    %88 = vector.broadcast %cst_23 : f32 to vector<20x1024xf32>
    %89 = arith.maximumf %87, %88 : vector<20x1024xf32>
    %90 = arith.truncf %89 : vector<20x1024xf32> to vector<20x1024xbf16>
    %cst_24 = arith.constant dense<0.000000e+00> : vector<20x200xf32>
    %91 = tpu.matmul %90, %5, %cst_24 {dimension_numbers = #tpu.dot_dimension_numbers<[1], [0], [0], [1], [0, 0, 1, 1], [], []>} : vector<20x1024xbf16>, vector<1024x200xbf16>, vector<20x200xf32> -> vector<20x200xf32>
    %92 = arith.mulf %91, %6 : vector<20x200xf32>
    %cst_25 = arith.constant dense<0.000000e+00> : vector<20x10xf32>
    %93 = tpu.matmul %92, %7, %cst_25 {dimension_numbers = #tpu.dot_dimension_numbers<[1], [0], [0], [1], [0, 0, 1, 1], [], []>} : vector<20x200xf32>, vector<200x10xf32>, vector<20x10xf32> -> vector<20x10xf32>
    %cst_26 = arith.constant dense<0.000000e+00> : vector<10xf32>
    %94 = vector.multi_reduction <add>, %93, %cst_26 [0] : vector<20x10xf32> to vector<10xf32>
    %95 = vector.shape_cast %94 : vector<10xf32> to vector<1x10xf32>
    %96 = arith.addf %95, %8 : vector<1x10xf32>
    %c0_27 = arith.constant 0 : index
    %c0_28 = arith.constant 0 : index
    %c0_29 = arith.constant 0 : index
    %97 = vector.load %arg11[%c0_27, %c0_28, %c0_29] : memref<4x1x10xf32, #tpu.memory_space<vmem>>, vector<1x1x10xf32>
    %98 = vector.shape_cast %97 : vector<1x1x10xf32> to vector<1x10xf32>
    %99 = vector.shape_cast %96 : vector<1x10xf32> to vector<1x1x10xf32>
    tpu.vector_store %arg11[%c0_27, %c0_28, %c0_29], %99 {strides = array<i32>} : memref<4x1x10xf32, #tpu.memory_space<vmem>>, vector<1x1x10xf32>,
    %c1 = arith.constant 1 : index
    %c0_30 = arith.constant 0 : index
    %c0_31 = arith.constant 0 : index
    %100 = vector.load %arg1[%c1, %c0_30, %c0_31] : memref<4x1x1152xf32, #tpu.memory_space<vmem>>, vector<1x1x1152xf32>
    %101 = vector.shape_cast %100 : vector<1x1x1152xf32> to vector<1x1152xf32>
    %cst_32 = arith.constant 0.000000e+00 : f32
    %102 = vector.broadcast %cst_32 : f32 to vector<16x1024xf32>
    %103 = vector.extract_strided_slice %101 {offsets = [0, 0], sizes = [1, 1024], strides = [1, 1]} : vector<1x1152xf32> to vector<1x1024xf32>
    %104 = vector.extract_strided_slice %1 {offsets = [0, 0], sizes = [16, 1], strides = [1, 1]} : vector<16x9xf32> to vector<16x1xf32>
    %105 = vector.broadcast %103 : vector<1x1024xf32> to vector<16x1024xf32>
    %106 = vector.broadcast %104 : vector<16x1xf32> to vector<16x1024xf32>
    %107 = arith.mulf %105, %106 : vector<16x1024xf32>
    %108 = arith.addf %102, %107 : vector<16x1024xf32>
    %109 = vector.extract_strided_slice %101 {offsets = [0, 1], sizes = [1, 1024], strides = [1, 1]} : vector<1x1152xf32> to vector<1x1024xf32>
    %110 = vector.extract_strided_slice %1 {offsets = [0, 1], sizes = [16, 1], strides = [1, 1]} : vector<16x9xf32> to vector<16x1xf32>
    %111 = vector.broadcast %109 : vector<1x1024xf32> to vector<16x1024xf32>
    %112 = vector.broadcast %110 : vector<16x1xf32> to vector<16x1024xf32>
    %113 = arith.mulf %111, %112 : vector<16x1024xf32>
    %114 = arith.addf %108, %113 : vector<16x1024xf32>
    %115 = vector.extract_strided_slice %101 {offsets = [0, 2], sizes = [1, 1024], strides = [1, 1]} : vector<1x1152xf32> to vector<1x1024xf32>
    %116 = vector.extract_strided_slice %1 {offsets = [0, 2], sizes = [16, 1], strides = [1, 1]} : vector<16x9xf32> to vector<16x1xf32>
    %117 = vector.broadcast %115 : vector<1x1024xf32> to vector<16x1024xf32>
    %118 = vector.broadcast %116 : vector<16x1xf32> to vector<16x1024xf32>
    %119 = arith.mulf %117, %118 : vector<16x1024xf32>
    %120 = arith.addf %114, %119 : vector<16x1024xf32>
    %121 = vector.extract_strided_slice %101 {offsets = [0, 30], sizes = [1, 1024], strides = [1, 1]} : vector<1x1152xf32> to vector<1x1024xf32>
    %122 = vector.extract_strided_slice %1 {offsets = [0, 3], sizes = [16, 1], strides = [1, 1]} : vector<16x9xf32> to vector<16x1xf32>
    %123 = vector.broadcast %121 : vector<1x1024xf32> to vector<16x1024xf32>
    %124 = vector.broadcast %122 : vector<16x1xf32> to vector<16x1024xf32>
    %125 = arith.mulf %123, %124 : vector<16x1024xf32>
    %126 = arith.addf %120, %125 : vector<16x1024xf32>
    %127 = vector.extract_strided_slice %101 {offsets = [0, 31], sizes = [1, 1024], strides = [1, 1]} : vector<1x1152xf32> to vector<1x1024xf32>
    %128 = vector.extract_strided_slice %1 {offsets = [0, 4], sizes = [16, 1], strides = [1, 1]} : vector<16x9xf32> to vector<16x1xf32>
    %129 = vector.broadcast %127 : vector<1x1024xf32> to vector<16x1024xf32>
    %130 = vector.broadcast %128 : vector<16x1xf32> to vector<16x1024xf32>
    %131 = arith.mulf %129, %130 : vector<16x1024xf32>
    %132 = arith.addf %126, %131 : vector<16x1024xf32>
    %133 = vector.extract_strided_slice %101 {offsets = [0, 32], sizes = [1, 1024], strides = [1, 1]} : vector<1x1152xf32> to vector<1x1024xf32>
    %134 = vector.extract_strided_slice %1 {offsets = [0, 5], sizes = [16, 1], strides = [1, 1]} : vector<16x9xf32> to vector<16x1xf32>
    %135 = vector.broadcast %133 : vector<1x1024xf32> to vector<16x1024xf32>
    %136 = vector.broadcast %134 : vector<16x1xf32> to vector<16x1024xf32>
    %137 = arith.mulf %135, %136 : vector<16x1024xf32>
    %138 = arith.addf %132, %137 : vector<16x1024xf32>
    %139 = vector.extract_strided_slice %101 {offsets = [0, 60], sizes = [1, 1024], strides = [1, 1]} : vector<1x1152xf32> to vector<1x1024xf32>
    %140 = vector.extract_strided_slice %1 {offsets = [0, 6], sizes = [16, 1], strides = [1, 1]} : vector<16x9xf32> to vector<16x1xf32>
    %141 = vector.broadcast %139 : vector<1x1024xf32> to vector<16x1024xf32>
    %142 = vector.broadcast %140 : vector<16x1xf32> to vector<16x1024xf32>
    %143 = arith.mulf %141, %142 : vector<16x1024xf32>
    %144 = arith.addf %138, %143 : vector<16x1024xf32>
    %145 = vector.extract_strided_slice %101 {offsets = [0, 61], sizes = [1, 1024], strides = [1, 1]} : vector<1x1152xf32> to vector<1x1024xf32>
    %146 = vector.extract_strided_slice %1 {offsets = [0, 7], sizes = [16, 1], strides = [1, 1]} : vector<16x9xf32> to vector<16x1xf32>
    %147 = vector.broadcast %145 : vector<1x1024xf32> to vector<16x1024xf32>
    %148 = vector.broadcast %146 : vector<16x1xf32> to vector<16x1024xf32>
    %149 = arith.mulf %147, %148 : vector<16x1024xf32>
    %150 = arith.addf %144, %149 : vector<16x1024xf32>
    %151 = vector.extract_strided_slice %101 {offsets = [0, 62], sizes = [1, 1024], strides = [1, 1]} : vector<1x1152xf32> to vector<1x1024xf32>
    %152 = vector.extract_strided_slice %1 {offsets = [0, 8], sizes = [16, 1], strides = [1, 1]} : vector<16x9xf32> to vector<16x1xf32>
    %153 = vector.broadcast %151 : vector<1x1024xf32> to vector<16x1024xf32>
    %154 = vector.broadcast %152 : vector<16x1xf32> to vector<16x1024xf32>
    %155 = arith.mulf %153, %154 : vector<16x1024xf32>
    %156 = arith.addf %150, %155 : vector<16x1024xf32>
    %157 = vector.broadcast %2 : vector<16x1xf32> to vector<16x1024xf32>
    %158 = arith.addf %156, %157 : vector<16x1024xf32>
    %cst_33 = arith.constant 0.000000e+00 : f32
    %159 = vector.broadcast %cst_33 : f32 to vector<16x1024xf32>
    %160 = arith.maximumf %158, %159 : vector<16x1024xf32>
    %161 = vector.broadcast %0 : vector<1x1024xf32> to vector<16x1024xf32>
    %162 = arith.mulf %160, %161 : vector<16x1024xf32>
    %163 = arith.truncf %162 : vector<16x1024xf32> to vector<16x1024xbf16>
    %164 = tpu.concatenate %9, %163, %9 in 1 : vector<16x128xbf16>, vector<16x1024xbf16>, vector<16x128xbf16> -> vector<16x1280xbf16>
    %165 = vector.extract_strided_slice %164 {offsets = [0, 97], sizes = [16, 1024], strides = [1, 1]} : vector<16x1280xbf16> to vector<16x1024xbf16>
    %166 = vector.extract_strided_slice %164 {offsets = [0, 98], sizes = [16, 1024], strides = [1, 1]} : vector<16x1280xbf16> to vector<16x1024xbf16>
    %167 = vector.extract_strided_slice %164 {offsets = [0, 99], sizes = [16, 1024], strides = [1, 1]} : vector<16x1280xbf16> to vector<16x1024xbf16>
    %168 = vector.extract_strided_slice %164 {offsets = [0, 127], sizes = [16, 1024], strides = [1, 1]} : vector<16x1280xbf16> to vector<16x1024xbf16>
    %169 = vector.extract_strided_slice %164 {offsets = [0, 128], sizes = [16, 1024], strides = [1, 1]} : vector<16x1280xbf16> to vector<16x1024xbf16>
    %170 = vector.extract_strided_slice %164 {offsets = [0, 129], sizes = [16, 1024], strides = [1, 1]} : vector<16x1280xbf16> to vector<16x1024xbf16>
    %171 = vector.extract_strided_slice %164 {offsets = [0, 157], sizes = [16, 1024], strides = [1, 1]} : vector<16x1280xbf16> to vector<16x1024xbf16>
    %172 = vector.extract_strided_slice %164 {offsets = [0, 158], sizes = [16, 1024], strides = [1, 1]} : vector<16x1280xbf16> to vector<16x1024xbf16>
    %173 = vector.extract_strided_slice %164 {offsets = [0, 159], sizes = [16, 1024], strides = [1, 1]} : vector<16x1280xbf16> to vector<16x1024xbf16>
    %174 = tpu.concatenate %165, %166, %167, %168, %169, %170, %171, %172, %173 in 0 : vector<16x1024xbf16>, vector<16x1024xbf16>, vector<16x1024xbf16>, vector<16x1024xbf16>, vector<16x1024xbf16>, vector<16x1024xbf16>, vector<16x1024xbf16>, vector<16x1024xbf16>, vector<16x1024xbf16> -> vector<144x1024xbf16>
    %cst_34 = arith.constant dense<0.000000e+00> : vector<20x1024xf32>
    %175 = tpu.matmul %3, %174, %cst_34 {dimension_numbers = #tpu.dot_dimension_numbers<[1], [0], [0], [1], [0, 0, 1, 1], [], []>} : vector<20x144xbf16>, vector<144x1024xbf16>, vector<20x1024xf32> -> vector<20x1024xf32>
    %176 = vector.broadcast %4 : vector<20x1xf32> to vector<20x1024xf32>
    %177 = arith.addf %175, %176 : vector<20x1024xf32>
    %cst_35 = arith.constant 0.000000e+00 : f32
    %178 = vector.broadcast %cst_35 : f32 to vector<20x1024xf32>
    %179 = arith.maximumf %177, %178 : vector<20x1024xf32>
    %180 = arith.truncf %179 : vector<20x1024xf32> to vector<20x1024xbf16>
    %cst_36 = arith.constant dense<0.000000e+00> : vector<20x200xf32>
    %181 = tpu.matmul %180, %5, %cst_36 {dimension_numbers = #tpu.dot_dimension_numbers<[1], [0], [0], [1], [0, 0, 1, 1], [], []>} : vector<20x1024xbf16>, vector<1024x200xbf16>, vector<20x200xf32> -> vector<20x200xf32>
    %182 = arith.mulf %181, %6 : vector<20x200xf32>
    %cst_37 = arith.constant dense<0.000000e+00> : vector<20x10xf32>
    %183 = tpu.matmul %182, %7, %cst_37 {dimension_numbers = #tpu.dot_dimension_numbers<[1], [0], [0], [1], [0, 0, 1, 1], [], []>} : vector<20x200xf32>, vector<200x10xf32>, vector<20x10xf32> -> vector<20x10xf32>
    %cst_38 = arith.constant dense<0.000000e+00> : vector<10xf32>
    %184 = vector.multi_reduction <add>, %183, %cst_38 [0] : vector<20x10xf32> to vector<10xf32>
    %185 = vector.shape_cast %184 : vector<10xf32> to vector<1x10xf32>
    %186 = arith.addf %185, %8 : vector<1x10xf32>
    %c1_39 = arith.constant 1 : index
    %c0_40 = arith.constant 0 : index
    %c0_41 = arith.constant 0 : index
    %187 = vector.load %arg11[%c1_39, %c0_40, %c0_41] : memref<4x1x10xf32, #tpu.memory_space<vmem>>, vector<1x1x10xf32>
    %188 = vector.shape_cast %187 : vector<1x1x10xf32> to vector<1x10xf32>
    %189 = vector.shape_cast %186 : vector<1x10xf32> to vector<1x1x10xf32>
    tpu.vector_store %arg11[%c1_39, %c0_40, %c0_41], %189 {strides = array<i32>} : memref<4x1x10xf32, #tpu.memory_space<vmem>>, vector<1x1x10xf32>,
    %c2 = arith.constant 2 : index
    %c0_42 = arith.constant 0 : index
    %c0_43 = arith.constant 0 : index
    %190 = vector.load %arg1[%c2, %c0_42, %c0_43] : memref<4x1x1152xf32, #tpu.memory_space<vmem>>, vector<1x1x1152xf32>
    %191 = vector.shape_cast %190 : vector<1x1x1152xf32> to vector<1x1152xf32>
    %cst_44 = arith.constant 0.000000e+00 : f32
    %192 = vector.broadcast %cst_44 : f32 to vector<16x1024xf32>
    %193 = vector.extract_strided_slice %191 {offsets = [0, 0], sizes = [1, 1024], strides = [1, 1]} : vector<1x1152xf32> to vector<1x1024xf32>
    %194 = vector.extract_strided_slice %1 {offsets = [0, 0], sizes = [16, 1], strides = [1, 1]} : vector<16x9xf32> to vector<16x1xf32>
    %195 = vector.broadcast %193 : vector<1x1024xf32> to vector<16x1024xf32>
    %196 = vector.broadcast %194 : vector<16x1xf32> to vector<16x1024xf32>
    %197 = arith.mulf %195, %196 : vector<16x1024xf32>
    %198 = arith.addf %192, %197 : vector<16x1024xf32>
    %199 = vector.extract_strided_slice %191 {offsets = [0, 1], sizes = [1, 1024], strides = [1, 1]} : vector<1x1152xf32> to vector<1x1024xf32>
    %200 = vector.extract_strided_slice %1 {offsets = [0, 1], sizes = [16, 1], strides = [1, 1]} : vector<16x9xf32> to vector<16x1xf32>
    %201 = vector.broadcast %199 : vector<1x1024xf32> to vector<16x1024xf32>
    %202 = vector.broadcast %200 : vector<16x1xf32> to vector<16x1024xf32>
    %203 = arith.mulf %201, %202 : vector<16x1024xf32>
    %204 = arith.addf %198, %203 : vector<16x1024xf32>
    %205 = vector.extract_strided_slice %191 {offsets = [0, 2], sizes = [1, 1024], strides = [1, 1]} : vector<1x1152xf32> to vector<1x1024xf32>
    %206 = vector.extract_strided_slice %1 {offsets = [0, 2], sizes = [16, 1], strides = [1, 1]} : vector<16x9xf32> to vector<16x1xf32>
    %207 = vector.broadcast %205 : vector<1x1024xf32> to vector<16x1024xf32>
    %208 = vector.broadcast %206 : vector<16x1xf32> to vector<16x1024xf32>
    %209 = arith.mulf %207, %208 : vector<16x1024xf32>
    %210 = arith.addf %204, %209 : vector<16x1024xf32>
    %211 = vector.extract_strided_slice %191 {offsets = [0, 30], sizes = [1, 1024], strides = [1, 1]} : vector<1x1152xf32> to vector<1x1024xf32>
    %212 = vector.extract_strided_slice %1 {offsets = [0, 3], sizes = [16, 1], strides = [1, 1]} : vector<16x9xf32> to vector<16x1xf32>
    %213 = vector.broadcast %211 : vector<1x1024xf32> to vector<16x1024xf32>
    %214 = vector.broadcast %212 : vector<16x1xf32> to vector<16x1024xf32>
    %215 = arith.mulf %213, %214 : vector<16x1024xf32>
    %216 = arith.addf %210, %215 : vector<16x1024xf32>
    %217 = vector.extract_strided_slice %191 {offsets = [0, 31], sizes = [1, 1024], strides = [1, 1]} : vector<1x1152xf32> to vector<1x1024xf32>
    %218 = vector.extract_strided_slice %1 {offsets = [0, 4], sizes = [16, 1], strides = [1, 1]} : vector<16x9xf32> to vector<16x1xf32>
    %219 = vector.broadcast %217 : vector<1x1024xf32> to vector<16x1024xf32>
    %220 = vector.broadcast %218 : vector<16x1xf32> to vector<16x1024xf32>
    %221 = arith.mulf %219, %220 : vector<16x1024xf32>
    %222 = arith.addf %216, %221 : vector<16x1024xf32>
    %223 = vector.extract_strided_slice %191 {offsets = [0, 32], sizes = [1, 1024], strides = [1, 1]} : vector<1x1152xf32> to vector<1x1024xf32>
    %224 = vector.extract_strided_slice %1 {offsets = [0, 5], sizes = [16, 1], strides = [1, 1]} : vector<16x9xf32> to vector<16x1xf32>
    %225 = vector.broadcast %223 : vector<1x1024xf32> to vector<16x1024xf32>
    %226 = vector.broadcast %224 : vector<16x1xf32> to vector<16x1024xf32>
    %227 = arith.mulf %225, %226 : vector<16x1024xf32>
    %228 = arith.addf %222, %227 : vector<16x1024xf32>
    %229 = vector.extract_strided_slice %191 {offsets = [0, 60], sizes = [1, 1024], strides = [1, 1]} : vector<1x1152xf32> to vector<1x1024xf32>
    %230 = vector.extract_strided_slice %1 {offsets = [0, 6], sizes = [16, 1], strides = [1, 1]} : vector<16x9xf32> to vector<16x1xf32>
    %231 = vector.broadcast %229 : vector<1x1024xf32> to vector<16x1024xf32>
    %232 = vector.broadcast %230 : vector<16x1xf32> to vector<16x1024xf32>
    %233 = arith.mulf %231, %232 : vector<16x1024xf32>
    %234 = arith.addf %228, %233 : vector<16x1024xf32>
    %235 = vector.extract_strided_slice %191 {offsets = [0, 61], sizes = [1, 1024], strides = [1, 1]} : vector<1x1152xf32> to vector<1x1024xf32>
    %236 = vector.extract_strided_slice %1 {offsets = [0, 7], sizes = [16, 1], strides = [1, 1]} : vector<16x9xf32> to vector<16x1xf32>
    %237 = vector.broadcast %235 : vector<1x1024xf32> to vector<16x1024xf32>
    %238 = vector.broadcast %236 : vector<16x1xf32> to vector<16x1024xf32>
    %239 = arith.mulf %237, %238 : vector<16x1024xf32>
    %240 = arith.addf %234, %239 : vector<16x1024xf32>
    %241 = vector.extract_strided_slice %191 {offsets = [0, 62], sizes = [1, 1024], strides = [1, 1]} : vector<1x1152xf32> to vector<1x1024xf32>
    %242 = vector.extract_strided_slice %1 {offsets = [0, 8], sizes = [16, 1], strides = [1, 1]} : vector<16x9xf32> to vector<16x1xf32>
    %243 = vector.broadcast %241 : vector<1x1024xf32> to vector<16x1024xf32>
    %244 = vector.broadcast %242 : vector<16x1xf32> to vector<16x1024xf32>
    %245 = arith.mulf %243, %244 : vector<16x1024xf32>
    %246 = arith.addf %240, %245 : vector<16x1024xf32>
    %247 = vector.broadcast %2 : vector<16x1xf32> to vector<16x1024xf32>
    %248 = arith.addf %246, %247 : vector<16x1024xf32>
    %cst_45 = arith.constant 0.000000e+00 : f32
    %249 = vector.broadcast %cst_45 : f32 to vector<16x1024xf32>
    %250 = arith.maximumf %248, %249 : vector<16x1024xf32>
    %251 = vector.broadcast %0 : vector<1x1024xf32> to vector<16x1024xf32>
    %252 = arith.mulf %250, %251 : vector<16x1024xf32>
    %253 = arith.truncf %252 : vector<16x1024xf32> to vector<16x1024xbf16>
    %254 = tpu.concatenate %9, %253, %9 in 1 : vector<16x128xbf16>, vector<16x1024xbf16>, vector<16x128xbf16> -> vector<16x1280xbf16>
    %255 = vector.extract_strided_slice %254 {offsets = [0, 97], sizes = [16, 1024], strides = [1, 1]} : vector<16x1280xbf16> to vector<16x1024xbf16>
    %256 = vector.extract_strided_slice %254 {offsets = [0, 98], sizes = [16, 1024], strides = [1, 1]} : vector<16x1280xbf16> to vector<16x1024xbf16>
    %257 = vector.extract_strided_slice %254 {offsets = [0, 99], sizes = [16, 1024], strides = [1, 1]} : vector<16x1280xbf16> to vector<16x1024xbf16>
    %258 = vector.extract_strided_slice %254 {offsets = [0, 127], sizes = [16, 1024], strides = [1, 1]} : vector<16x1280xbf16> to vector<16x1024xbf16>
    %259 = vector.extract_strided_slice %254 {offsets = [0, 128], sizes = [16, 1024], strides = [1, 1]} : vector<16x1280xbf16> to vector<16x1024xbf16>
    %260 = vector.extract_strided_slice %254 {offsets = [0, 129], sizes = [16, 1024], strides = [1, 1]} : vector<16x1280xbf16> to vector<16x1024xbf16>
    %261 = vector.extract_strided_slice %254 {offsets = [0, 157], sizes = [16, 1024], strides = [1, 1]} : vector<16x1280xbf16> to vector<16x1024xbf16>
    %262 = vector.extract_strided_slice %254 {offsets = [0, 158], sizes = [16, 1024], strides = [1, 1]} : vector<16x1280xbf16> to vector<16x1024xbf16>
    %263 = vector.extract_strided_slice %254 {offsets = [0, 159], sizes = [16, 1024], strides = [1, 1]} : vector<16x1280xbf16> to vector<16x1024xbf16>
    %264 = tpu.concatenate %255, %256, %257, %258, %259, %260, %261, %262, %263 in 0 : vector<16x1024xbf16>, vector<16x1024xbf16>, vector<16x1024xbf16>, vector<16x1024xbf16>, vector<16x1024xbf16>, vector<16x1024xbf16>, vector<16x1024xbf16>, vector<16x1024xbf16>, vector<16x1024xbf16> -> vector<144x1024xbf16>
    %cst_46 = arith.constant dense<0.000000e+00> : vector<20x1024xf32>
    %265 = tpu.matmul %3, %264, %cst_46 {dimension_numbers = #tpu.dot_dimension_numbers<[1], [0], [0], [1], [0, 0, 1, 1], [], []>} : vector<20x144xbf16>, vector<144x1024xbf16>, vector<20x1024xf32> -> vector<20x1024xf32>
    %266 = vector.broadcast %4 : vector<20x1xf32> to vector<20x1024xf32>
    %267 = arith.addf %265, %266 : vector<20x1024xf32>
    %cst_47 = arith.constant 0.000000e+00 : f32
    %268 = vector.broadcast %cst_47 : f32 to vector<20x1024xf32>
    %269 = arith.maximumf %267, %268 : vector<20x1024xf32>
    %270 = arith.truncf %269 : vector<20x1024xf32> to vector<20x1024xbf16>
    %cst_48 = arith.constant dense<0.000000e+00> : vector<20x200xf32>
    %271 = tpu.matmul %270, %5, %cst_48 {dimension_numbers = #tpu.dot_dimension_numbers<[1], [0], [0], [1], [0, 0, 1, 1], [], []>} : vector<20x1024xbf16>, vector<1024x200xbf16>, vector<20x200xf32> -> vector<20x200xf32>
    %272 = arith.mulf %271, %6 : vector<20x200xf32>
    %cst_49 = arith.constant dense<0.000000e+00> : vector<20x10xf32>
    %273 = tpu.matmul %272, %7, %cst_49 {dimension_numbers = #tpu.dot_dimension_numbers<[1], [0], [0], [1], [0, 0, 1, 1], [], []>} : vector<20x200xf32>, vector<200x10xf32>, vector<20x10xf32> -> vector<20x10xf32>
    %cst_50 = arith.constant dense<0.000000e+00> : vector<10xf32>
    %274 = vector.multi_reduction <add>, %273, %cst_50 [0] : vector<20x10xf32> to vector<10xf32>
    %275 = vector.shape_cast %274 : vector<10xf32> to vector<1x10xf32>
    %276 = arith.addf %275, %8 : vector<1x10xf32>
    %c2_51 = arith.constant 2 : index
    %c0_52 = arith.constant 0 : index
    %c0_53 = arith.constant 0 : index
    %277 = vector.load %arg11[%c2_51, %c0_52, %c0_53] : memref<4x1x10xf32, #tpu.memory_space<vmem>>, vector<1x1x10xf32>
    %278 = vector.shape_cast %277 : vector<1x1x10xf32> to vector<1x10xf32>
    %279 = vector.shape_cast %276 : vector<1x10xf32> to vector<1x1x10xf32>
    tpu.vector_store %arg11[%c2_51, %c0_52, %c0_53], %279 {strides = array<i32>} : memref<4x1x10xf32, #tpu.memory_space<vmem>>, vector<1x1x10xf32>,
    %c3 = arith.constant 3 : index
    %c0_54 = arith.constant 0 : index
    %c0_55 = arith.constant 0 : index
    %280 = vector.load %arg1[%c3, %c0_54, %c0_55] : memref<4x1x1152xf32, #tpu.memory_space<vmem>>, vector<1x1x1152xf32>
    %281 = vector.shape_cast %280 : vector<1x1x1152xf32> to vector<1x1152xf32>
    %cst_56 = arith.constant 0.000000e+00 : f32
    %282 = vector.broadcast %cst_56 : f32 to vector<16x1024xf32>
    %283 = vector.extract_strided_slice %281 {offsets = [0, 0], sizes = [1, 1024], strides = [1, 1]} : vector<1x1152xf32> to vector<1x1024xf32>
    %284 = vector.extract_strided_slice %1 {offsets = [0, 0], sizes = [16, 1], strides = [1, 1]} : vector<16x9xf32> to vector<16x1xf32>
    %285 = vector.broadcast %283 : vector<1x1024xf32> to vector<16x1024xf32>
    %286 = vector.broadcast %284 : vector<16x1xf32> to vector<16x1024xf32>
    %287 = arith.mulf %285, %286 : vector<16x1024xf32>
    %288 = arith.addf %282, %287 : vector<16x1024xf32>
    %289 = vector.extract_strided_slice %281 {offsets = [0, 1], sizes = [1, 1024], strides = [1, 1]} : vector<1x1152xf32> to vector<1x1024xf32>
    %290 = vector.extract_strided_slice %1 {offsets = [0, 1], sizes = [16, 1], strides = [1, 1]} : vector<16x9xf32> to vector<16x1xf32>
    %291 = vector.broadcast %289 : vector<1x1024xf32> to vector<16x1024xf32>
    %292 = vector.broadcast %290 : vector<16x1xf32> to vector<16x1024xf32>
    %293 = arith.mulf %291, %292 : vector<16x1024xf32>
    %294 = arith.addf %288, %293 : vector<16x1024xf32>
    %295 = vector.extract_strided_slice %281 {offsets = [0, 2], sizes = [1, 1024], strides = [1, 1]} : vector<1x1152xf32> to vector<1x1024xf32>
    %296 = vector.extract_strided_slice %1 {offsets = [0, 2], sizes = [16, 1], strides = [1, 1]} : vector<16x9xf32> to vector<16x1xf32>
    %297 = vector.broadcast %295 : vector<1x1024xf32> to vector<16x1024xf32>
    %298 = vector.broadcast %296 : vector<16x1xf32> to vector<16x1024xf32>
    %299 = arith.mulf %297, %298 : vector<16x1024xf32>
    %300 = arith.addf %294, %299 : vector<16x1024xf32>
    %301 = vector.extract_strided_slice %281 {offsets = [0, 30], sizes = [1, 1024], strides = [1, 1]} : vector<1x1152xf32> to vector<1x1024xf32>
    %302 = vector.extract_strided_slice %1 {offsets = [0, 3], sizes = [16, 1], strides = [1, 1]} : vector<16x9xf32> to vector<16x1xf32>
    %303 = vector.broadcast %301 : vector<1x1024xf32> to vector<16x1024xf32>
    %304 = vector.broadcast %302 : vector<16x1xf32> to vector<16x1024xf32>
    %305 = arith.mulf %303, %304 : vector<16x1024xf32>
    %306 = arith.addf %300, %305 : vector<16x1024xf32>
    %307 = vector.extract_strided_slice %281 {offsets = [0, 31], sizes = [1, 1024], strides = [1, 1]} : vector<1x1152xf32> to vector<1x1024xf32>
    %308 = vector.extract_strided_slice %1 {offsets = [0, 4], sizes = [16, 1], strides = [1, 1]} : vector<16x9xf32> to vector<16x1xf32>
    %309 = vector.broadcast %307 : vector<1x1024xf32> to vector<16x1024xf32>
    %310 = vector.broadcast %308 : vector<16x1xf32> to vector<16x1024xf32>
    %311 = arith.mulf %309, %310 : vector<16x1024xf32>
    %312 = arith.addf %306, %311 : vector<16x1024xf32>
    %313 = vector.extract_strided_slice %281 {offsets = [0, 32], sizes = [1, 1024], strides = [1, 1]} : vector<1x1152xf32> to vector<1x1024xf32>
    %314 = vector.extract_strided_slice %1 {offsets = [0, 5], sizes = [16, 1], strides = [1, 1]} : vector<16x9xf32> to vector<16x1xf32>
    %315 = vector.broadcast %313 : vector<1x1024xf32> to vector<16x1024xf32>
    %316 = vector.broadcast %314 : vector<16x1xf32> to vector<16x1024xf32>
    %317 = arith.mulf %315, %316 : vector<16x1024xf32>
    %318 = arith.addf %312, %317 : vector<16x1024xf32>
    %319 = vector.extract_strided_slice %281 {offsets = [0, 60], sizes = [1, 1024], strides = [1, 1]} : vector<1x1152xf32> to vector<1x1024xf32>
    %320 = vector.extract_strided_slice %1 {offsets = [0, 6], sizes = [16, 1], strides = [1, 1]} : vector<16x9xf32> to vector<16x1xf32>
    %321 = vector.broadcast %319 : vector<1x1024xf32> to vector<16x1024xf32>
    %322 = vector.broadcast %320 : vector<16x1xf32> to vector<16x1024xf32>
    %323 = arith.mulf %321, %322 : vector<16x1024xf32>
    %324 = arith.addf %318, %323 : vector<16x1024xf32>
    %325 = vector.extract_strided_slice %281 {offsets = [0, 61], sizes = [1, 1024], strides = [1, 1]} : vector<1x1152xf32> to vector<1x1024xf32>
    %326 = vector.extract_strided_slice %1 {offsets = [0, 7], sizes = [16, 1], strides = [1, 1]} : vector<16x9xf32> to vector<16x1xf32>
    %327 = vector.broadcast %325 : vector<1x1024xf32> to vector<16x1024xf32>
    %328 = vector.broadcast %326 : vector<16x1xf32> to vector<16x1024xf32>
    %329 = arith.mulf %327, %328 : vector<16x1024xf32>
    %330 = arith.addf %324, %329 : vector<16x1024xf32>
    %331 = vector.extract_strided_slice %281 {offsets = [0, 62], sizes = [1, 1024], strides = [1, 1]} : vector<1x1152xf32> to vector<1x1024xf32>
    %332 = vector.extract_strided_slice %1 {offsets = [0, 8], sizes = [16, 1], strides = [1, 1]} : vector<16x9xf32> to vector<16x1xf32>
    %333 = vector.broadcast %331 : vector<1x1024xf32> to vector<16x1024xf32>
    %334 = vector.broadcast %332 : vector<16x1xf32> to vector<16x1024xf32>
    %335 = arith.mulf %333, %334 : vector<16x1024xf32>
    %336 = arith.addf %330, %335 : vector<16x1024xf32>
    %337 = vector.broadcast %2 : vector<16x1xf32> to vector<16x1024xf32>
    %338 = arith.addf %336, %337 : vector<16x1024xf32>
    %cst_57 = arith.constant 0.000000e+00 : f32
    %339 = vector.broadcast %cst_57 : f32 to vector<16x1024xf32>
    %340 = arith.maximumf %338, %339 : vector<16x1024xf32>
    %341 = vector.broadcast %0 : vector<1x1024xf32> to vector<16x1024xf32>
    %342 = arith.mulf %340, %341 : vector<16x1024xf32>
    %343 = arith.truncf %342 : vector<16x1024xf32> to vector<16x1024xbf16>
    %344 = tpu.concatenate %9, %343, %9 in 1 : vector<16x128xbf16>, vector<16x1024xbf16>, vector<16x128xbf16> -> vector<16x1280xbf16>
    %345 = vector.extract_strided_slice %344 {offsets = [0, 97], sizes = [16, 1024], strides = [1, 1]} : vector<16x1280xbf16> to vector<16x1024xbf16>
    %346 = vector.extract_strided_slice %344 {offsets = [0, 98], sizes = [16, 1024], strides = [1, 1]} : vector<16x1280xbf16> to vector<16x1024xbf16>
    %347 = vector.extract_strided_slice %344 {offsets = [0, 99], sizes = [16, 1024], strides = [1, 1]} : vector<16x1280xbf16> to vector<16x1024xbf16>
    %348 = vector.extract_strided_slice %344 {offsets = [0, 127], sizes = [16, 1024], strides = [1, 1]} : vector<16x1280xbf16> to vector<16x1024xbf16>
    %349 = vector.extract_strided_slice %344 {offsets = [0, 128], sizes = [16, 1024], strides = [1, 1]} : vector<16x1280xbf16> to vector<16x1024xbf16>
    %350 = vector.extract_strided_slice %344 {offsets = [0, 129], sizes = [16, 1024], strides = [1, 1]} : vector<16x1280xbf16> to vector<16x1024xbf16>
    %351 = vector.extract_strided_slice %344 {offsets = [0, 157], sizes = [16, 1024], strides = [1, 1]} : vector<16x1280xbf16> to vector<16x1024xbf16>
    %352 = vector.extract_strided_slice %344 {offsets = [0, 158], sizes = [16, 1024], strides = [1, 1]} : vector<16x1280xbf16> to vector<16x1024xbf16>
    %353 = vector.extract_strided_slice %344 {offsets = [0, 159], sizes = [16, 1024], strides = [1, 1]} : vector<16x1280xbf16> to vector<16x1024xbf16>
    %354 = tpu.concatenate %345, %346, %347, %348, %349, %350, %351, %352, %353 in 0 : vector<16x1024xbf16>, vector<16x1024xbf16>, vector<16x1024xbf16>, vector<16x1024xbf16>, vector<16x1024xbf16>, vector<16x1024xbf16>, vector<16x1024xbf16>, vector<16x1024xbf16>, vector<16x1024xbf16> -> vector<144x1024xbf16>
    %cst_58 = arith.constant dense<0.000000e+00> : vector<20x1024xf32>
    %355 = tpu.matmul %3, %354, %cst_58 {dimension_numbers = #tpu.dot_dimension_numbers<[1], [0], [0], [1], [0, 0, 1, 1], [], []>} : vector<20x144xbf16>, vector<144x1024xbf16>, vector<20x1024xf32> -> vector<20x1024xf32>
    %356 = vector.broadcast %4 : vector<20x1xf32> to vector<20x1024xf32>
    %357 = arith.addf %355, %356 : vector<20x1024xf32>
    %cst_59 = arith.constant 0.000000e+00 : f32
    %358 = vector.broadcast %cst_59 : f32 to vector<20x1024xf32>
    %359 = arith.maximumf %357, %358 : vector<20x1024xf32>
    %360 = arith.truncf %359 : vector<20x1024xf32> to vector<20x1024xbf16>
    %cst_60 = arith.constant dense<0.000000e+00> : vector<20x200xf32>
    %361 = tpu.matmul %360, %5, %cst_60 {dimension_numbers = #tpu.dot_dimension_numbers<[1], [0], [0], [1], [0, 0, 1, 1], [], []>} : vector<20x1024xbf16>, vector<1024x200xbf16>, vector<20x200xf32> -> vector<20x200xf32>
    %362 = arith.mulf %361, %6 : vector<20x200xf32>
    %cst_61 = arith.constant dense<0.000000e+00> : vector<20x10xf32>
    %363 = tpu.matmul %362, %7, %cst_61 {dimension_numbers = #tpu.dot_dimension_numbers<[1], [0], [0], [1], [0, 0, 1, 1], [], []>} : vector<20x200xf32>, vector<200x10xf32>, vector<20x10xf32> -> vector<20x10xf32>
    %cst_62 = arith.constant dense<0.000000e+00> : vector<10xf32>
    %364 = vector.multi_reduction <add>, %363, %cst_62 [0] : vector<20x10xf32> to vector<10xf32>
    %365 = vector.shape_cast %364 : vector<10xf32> to vector<1x10xf32>
    %366 = arith.addf %365, %8 : vector<1x10xf32>
    %c3_63 = arith.constant 3 : index
    %c0_64 = arith.constant 0 : index
    %c0_65 = arith.constant 0 : index
    %367 = vector.load %arg11[%c3_63, %c0_64, %c0_65] : memref<4x1x10xf32, #tpu.memory_space<vmem>>, vector<1x1x10xf32>
    %368 = vector.shape_cast %367 : vector<1x1x10xf32> to vector<1x10xf32>
    %369 = vector.shape_cast %366 : vector<1x10xf32> to vector<1x1x10xf32>
    tpu.vector_store %arg11[%c3_63, %c0_64, %c0_65], %369 {strides = array<i32>} : memref<4x1x10xf32, #tpu.memory_space<vmem>>, vector<1x1x10xf32>,
    return
  }
  func.func @transform_0(%arg0: i32) -> (i32, i32, i32) {
    %c0_i32 = arith.constant 0 : i32
    %c0_i32_0 = arith.constant 0 : i32
    %c0_i32_1 = arith.constant 0 : i32
    return %arg0, %c0_i32, %c0_i32_0 : i32, i32, i32
  }
  func.func @transform_1(%arg0: i32) -> (i32, i32) {
    %c0_i32 = arith.constant 0 : i32
    %c0_i32_0 = arith.constant 0 : i32
    %c0_i32_1 = arith.constant 0 : i32
    return %c0_i32, %c0_i32_0 : i32, i32
  }
  func.func @transform_2(%arg0: i32) -> (i32, i32) {
    %c0_i32 = arith.constant 0 : i32
    %c0_i32_0 = arith.constant 0 : i32
    %c0_i32_1 = arith.constant 0 : i32
    return %c0_i32, %c0_i32_0 : i32, i32
  }
  func.func @transform_3(%arg0: i32) -> (i32, i32) {
    %c0_i32 = arith.constant 0 : i32
    %c0_i32_0 = arith.constant 0 : i32
    %c0_i32_1 = arith.constant 0 : i32
    return %c0_i32, %c0_i32_0 : i32, i32
  }
  func.func @transform_4(%arg0: i32) -> (i32, i32) {
    %c0_i32 = arith.constant 0 : i32
    %c0_i32_0 = arith.constant 0 : i32
    %c0_i32_1 = arith.constant 0 : i32
    return %c0_i32, %c0_i32_0 : i32, i32
  }
  func.func @transform_5(%arg0: i32) -> (i32, i32) {
    %c0_i32 = arith.constant 0 : i32
    %c0_i32_0 = arith.constant 0 : i32
    %c0_i32_1 = arith.constant 0 : i32
    return %c0_i32, %c0_i32_0 : i32, i32
  }
  func.func @transform_6(%arg0: i32) -> (i32, i32) {
    %c0_i32 = arith.constant 0 : i32
    %c0_i32_0 = arith.constant 0 : i32
    %c0_i32_1 = arith.constant 0 : i32
    return %c0_i32, %c0_i32_0 : i32, i32
  }
  func.func @transform_7(%arg0: i32) -> (i32, i32) {
    %c0_i32 = arith.constant 0 : i32
    %c0_i32_0 = arith.constant 0 : i32
    %c0_i32_1 = arith.constant 0 : i32
    return %c0_i32, %c0_i32_0 : i32, i32
  }
  func.func @transform_8(%arg0: i32) -> (i32, i32) {
    %c0_i32 = arith.constant 0 : i32
    %c0_i32_0 = arith.constant 0 : i32
    %c0_i32_1 = arith.constant 0 : i32
    return %c0_i32, %c0_i32_0 : i32, i32
  }
  func.func @transform_9(%arg0: i32) -> (i32, i32) {
    %c0_i32 = arith.constant 0 : i32
    %c0_i32_0 = arith.constant 0 : i32
    %c0_i32_1 = arith.constant 0 : i32
    return %c0_i32, %c0_i32_0 : i32, i32
  }
  func.func @transform_10(%arg0: i32) -> (i32, i32, i32) {
    %c0_i32 = arith.constant 0 : i32
    %c0_i32_0 = arith.constant 0 : i32
    %c0_i32_1 = arith.constant 0 : i32
    return %arg0, %c0_i32, %c0_i32_0 : i32, i32, i32
  }
}

</mosaic_0001>

<llo_original>
// kernel: mnist_forward.1
$region0: #{mnist_forward.1}
  #allocation0 [shape = 'u32[]', space=smem, size = 0x4, offset = 0x4, fixed_abs, tag = 'smem constant byte address 0x4 - core index']
  #allocation1 [shape = 'u32[72,128]{1,0:T(1,128)}', space=vmem, size = 0x9000, scoped, tag = 'internal scratch']
  %s0 = inlined_call_operand.vmem [shape: f32[8,1,1152], index: 0, kind: input, shape index: {}]
  %s1 = inlined_call_operand.vmem [shape: f32[1,1024], index: 1, kind: input, shape index: {}]
  %s2 = inlined_call_operand.vmem [shape: f32[16,9], index: 2, kind: input, shape index: {}]
  %s3 = inlined_call_operand.vmem [shape: f32[16,1], index: 3, kind: input, shape index: {}]
  %s4 = inlined_call_operand.vmem [shape: bf16[20,144], index: 4, kind: input, shape index: {}]
  %s5 = inlined_call_operand.vmem [shape: f32[20,1], index: 5, kind: input, shape index: {}]
  %s6 = inlined_call_operand.vmem [shape: bf16[1024,200], index: 6, kind: input, shape index: {}]
  %s7 = inlined_call_operand.vmem [shape: f32[20,200], index: 7, kind: input, shape index: {}]
  %s8 = inlined_call_operand.vmem [shape: f32[200,10], index: 8, kind: input, shape index: {}]
  %s9 = inlined_call_operand.vmem [shape: f32[1,10], index: 9, kind: input, shape index: {}]
  %s10 = inlined_call_operand.hbm [shape: f32[8,1,10], index: 10, kind: output, shape index: {}]
  %s11 = sld [smem:[#allocation0]]
  $region73: #{mnist_forward.1} parent=0
    _
  %s13 = ssub.s32 1, %s11
  %s14 = scalar_select 0, %s13, %s11
  $region1: #{mnist_forward.1} parent=0
    #allocation2 [shape = 'u8[4096]{0}', space=vmem, size = 0x1000, scoped, tag = 'output window, operand 0']
    #allocation3 [shape = 's32[2]{0}', space=sflag, size = 0x8, scoped, tag = 'scoped memory for mnist_forward.1']
    %15 = vsyncpa [#allocation3], 0
    %s16 = scalar_lea.sflag [#allocation3], 1
    %17 = vsyncpa %s16, 0
    loop: start=0, step=1, limit=4
    $region2: #{mnist_forward.1} parent=1 // loop_pre_header
      _
    $region3: #{mnist_forward.1} parent=1 // loop_header
      %s19 = sphi 0, %s23
      %p20 = scmp.ge.s32.totalorder %s19, 4
      %s29 = sphi 0, %s31
      %s32 = sphi 0, %s29
      %s33 = sphi 0, %s32
      %s49 = sphi 0, %s33
      %s53 = sphi 0, %s53
      %s55 = sphi 0, %s53
      %s56 = sphi 0, %s55
      %s70 = sphi 0, %s56
      %s74 = sphi 0, %s74
      %s76 = sphi 0, %s74
      %s77 = sphi 0, %s76
      %s91 = sphi 0, %s77
      %s95 = sphi 0, %s95
      %s97 = sphi 0, %s95
      %s98 = sphi 0, %s97
      %s112 = sphi 0, %s98
      %s116 = sphi 0, %s116
      %s118 = sphi 0, %s116
      %s119 = sphi 0, %s118
      %s133 = sphi 0, %s119
      %s137 = sphi 0, %s137
      %s139 = sphi 0, %s137
      %s140 = sphi 0, %s139
      %s154 = sphi 0, %s140
      %s158 = sphi 0, %s158
      %s160 = sphi 0, %s158
      %s161 = sphi 0, %s160
      %s175 = sphi 0, %s161
      %s179 = sphi 0, %s179
      %s181 = sphi 0, %s179
      %s182 = sphi 0, %s181
      %s196 = sphi 0, %s182
      %s200 = sphi 0, %s200
      %s202 = sphi 0, %s200
      %s203 = sphi 0, %s202
      %s217 = sphi 0, %s203
      %s221 = sphi 0, %s221
      %s223 = sphi 0, %s221
      %s224 = sphi 0, %s223
      %s238 = sphi 0, %s224
      %s244 = sphi 0, %s246
      %s247 = sphi 0, %s244
      %s248 = sphi 0, %s247
      %s264 = sphi 0, %s248
    $region4: #{mnist_forward.1} parent=1 // loop_header_branch
      %22 = sbr.rel (%p20) target = $region8
    $region5: #{mnist_forward.1} parent=1 // loop_body
      %s24 = ssub.s32 %s19, 1
      %s25 = ssub.s32 %s19, 2
      %s26 = sadd.s32 %s19, 1
      %s27 = ssub.s32 %s19, %s26
      %p28 = scmp.eq.s32.totalorder %s27, 0
      %s30 = sadd.s32 %s29, 1
      %s31 = scalar_select %p28, %s29, %s30
      %p34 = pneg %p28
      %p35 = scmp.eq.s32.totalorder %s19, 1
      %p36 = por %p34, %p35
      %p37 = scmp.ne.s32.totalorder %s29, %s32
      %p38 = scmp.eq.s32.totalorder %s19, 0
      %p39 = por %p37, %p38
      %p40 = scmp.ne.s32.totalorder %s29, %s32
      %p41 = scmp.eq.s32.totalorder %s24, 1
      %p42 = por %p40, %p41
      %p43 = scmp.ne.s32.totalorder %s32, %s33
      %p44 = scmp.eq.s32.totalorder %s24, 0
      %p45 = por %p43, %p44
      %p46 = scmp.ne.s32.totalorder %s32, %s33
      %p47 = scmp.eq.s32.totalorder %s25, 1
      %p48 = por %p46, %p47
      %p50 = scmp.ne.s32.totalorder %s33, %s49
      %p51 = scmp.eq.s32.totalorder %s25, 0
      %p52 = por %p50, %p51
      %s54 = sadd.s32 %s53, 1
      %p57 = scmp.eq.s32.totalorder %s19, 1
      %p58 = scmp.ne.s32.totalorder %s53, %s55
      %p59 = scmp.eq.s32.totalorder %s19, 0
      %p60 = por %p58, %p59
      %p61 = scmp.ne.s32.totalorder %s53, %s55
      %p62 = scmp.eq.s32.totalorder %s24, 1
      %p63 = por %p61, %p62
      %p64 = scmp.ne.s32.totalorder %s55, %s56
      %p65 = scmp.eq.s32.totalorder %s24, 0
      %p66 = por %p64, %p65
      %p67 = scmp.ne.s32.totalorder %s55, %s56
      %p68 = scmp.eq.s32.totalorder %s25, 1
      %p69 = por %p67, %p68
      %p71 = scmp.ne.s32.totalorder %s56, %s70
      %p72 = scmp.eq.s32.totalorder %s25, 0
      %p73 = por %p71, %p72
      %s75 = sadd.s32 %s74, 1
      %p78 = scmp.eq.s32.totalorder %s19, 1
      %p79 = scmp.ne.s32.totalorder %s74, %s76
      %p80 = scmp.eq.s32.totalorder %s19, 0
      %p81 = por %p79, %p80
      %p82 = scmp.ne.s32.totalorder %s74, %s76
      %p83 = scmp.eq.s32.totalorder %s24, 1
      %p84 = por %p82, %p83
      %p85 = scmp.ne.s32.totalorder %s76, %s77
      %p86 = scmp.eq.s32.totalorder %s24, 0
      %p87 = por %p85, %p86
      %p88 = scmp.ne.s32.totalorder %s76, %s77
      %p89 = scmp.eq.s32.totalorder %s25, 1
      %p90 = por %p88, %p89
      %p92 = scmp.ne.s32.totalorder %s77, %s91
      %p93 = scmp.eq.s32.totalorder %s25, 0
      %p94 = por %p92, %p93
      %s96 = sadd.s32 %s95, 1
      %p99 = scmp.eq.s32.totalorder %s19, 1
      %p100 = scmp.ne.s32.totalorder %s95, %s97
      %p101 = scmp.eq.s32.totalorder %s19, 0
      %p102 = por %p100, %p101
      %p103 = scmp.ne.s32.totalorder %s95, %s97
      %p104 = scmp.eq.s32.totalorder %s24, 1
      %p105 = por %p103, %p104
      %p106 = scmp.ne.s32.totalorder %s97, %s98
      %p107 = scmp.eq.s32.totalorder %s24, 0
      %p108 = por %p106, %p107
      %p109 = scmp.ne.s32.totalorder %s97, %s98
      %p110 = scmp.eq.s32.totalorder %s25, 1
      %p111 = por %p109, %p110
      %p113 = scmp.ne.s32.totalorder %s98, %s112
      %p114 = scmp.eq.s32.totalorder %s25, 0
      %p115 = por %p113, %p114
      %s117 = sadd.s32 %s116, 1
      %p120 = scmp.eq.s32.totalorder %s19, 1
      %p121 = scmp.ne.s32.totalorder %s116, %s118
      %p122 = scmp.eq.s32.totalorder %s19, 0
      %p123 = por %p121, %p122
      %p124 = scmp.ne.s32.totalorder %s116, %s118
      %p125 = scmp.eq.s32.totalorder %s24, 1
      %p126 = por %p124, %p125
      %p127 = scmp.ne.s32.totalorder %s118, %s119
      %p128 = scmp.eq.s32.totalorder %s24, 0
      %p129 = por %p127, %p128
      %p130 = scmp.ne.s32.totalorder %s118, %s119
      %p131 = scmp.eq.s32.totalorder %s25, 1
      %p132 = por %p130, %p131
      %p134 = scmp.ne.s32.totalorder %s119, %s133
      %p135 = scmp.eq.s32.totalorder %s25, 0
      %p136 = por %p134, %p135
      %s138 = sadd.s32 %s137, 1
      %p141 = scmp.eq.s32.totalorder %s19, 1
      %p142 = scmp.ne.s32.totalorder %s137, %s139
      %p143 = scmp.eq.s32.totalorder %s19, 0
      %p144 = por %p142, %p143
      %p145 = scmp.ne.s32.totalorder %s137, %s139
      %p146 = scmp.eq.s32.totalorder %s24, 1
      %p147 = por %p145, %p146
      %p148 = scmp.ne.s32.totalorder %s139, %s140
      %p149 = scmp.eq.s32.totalorder %s24, 0
      %p150 = por %p148, %p149
      %p151 = scmp.ne.s32.totalorder %s139, %s140
      %p152 = scmp.eq.s32.totalorder %s25, 1
      %p153 = por %p151, %p152
      %p155 = scmp.ne.s32.totalorder %s140, %s154
      %p156 = scmp.eq.s32.totalorder %s25, 0
      %p157 = por %p155, %p156
      %s159 = sadd.s32 %s158, 1
      %p162 = scmp.eq.s32.totalorder %s19, 1
      %p163 = scmp.ne.s32.totalorder %s158, %s160
      %p164 = scmp.eq.s32.totalorder %s19, 0
      %p165 = por %p163, %p164
      %p166 = scmp.ne.s32.totalorder %s158, %s160
      %p167 = scmp.eq.s32.totalorder %s24, 1
      %p168 = por %p166, %p167
      %p169 = scmp.ne.s32.totalorder %s160, %s161
      %p170 = scmp.eq.s32.totalorder %s24, 0
      %p171 = por %p169, %p170
      %p172 = scmp.ne.s32.totalorder %s160, %s161
      %p173 = scmp.eq.s32.totalorder %s25, 1
      %p174 = por %p172, %p173
      %p176 = scmp.ne.s32.totalorder %s161, %s175
      %p177 = scmp.eq.s32.totalorder %s25, 0
      %p178 = por %p176, %p177
      %s180 = sadd.s32 %s179, 1
      %p183 = scmp.eq.s32.totalorder %s19, 1
      %p184 = scmp.ne.s32.totalorder %s179, %s181
      %p185 = scmp.eq.s32.totalorder %s19, 0
      %p186 = por %p184, %p185
      %p187 = scmp.ne.s32.totalorder %s179, %s181
      %p188 = scmp.eq.s32.totalorder %s24, 1
      %p189 = por %p187, %p188
      %p190 = scmp.ne.s32.totalorder %s181, %s182
      %p191 = scmp.eq.s32.totalorder %s24, 0
      %p192 = por %p190, %p191
      %p193 = scmp.ne.s32.totalorder %s181, %s182
      %p194 = scmp.eq.s32.totalorder %s25, 1
      %p195 = por %p193, %p194
      %p197 = scmp.ne.s32.totalorder %s182, %s196
      %p198 = scmp.eq.s32.totalorder %s25, 0
      %p199 = por %p197, %p198
      %s201 = sadd.s32 %s200, 1
      %p204 = scmp.eq.s32.totalorder %s19, 1
      %p205 = scmp.ne.s32.totalorder %s200, %s202
      %p206 = scmp.eq.s32.totalorder %s19, 0
      %p207 = por %p205, %p206
      %p208 = scmp.ne.s32.totalorder %s200, %s202
      %p209 = scmp.eq.s32.totalorder %s24, 1
      %p210 = por %p208, %p209
      %p211 = scmp.ne.s32.totalorder %s202, %s203
      %p212 = scmp.eq.s32.totalorder %s24, 0
      %p213 = por %p211, %p212
      %p214 = scmp.ne.s32.totalorder %s202, %s203
      %p215 = scmp.eq.s32.totalorder %s25, 1
      %p216 = por %p214, %p215
      %p218 = scmp.ne.s32.totalorder %s203, %s217
      %p219 = scmp.eq.s32.totalorder %s25, 0
      %p220 = por %p218, %p219
      %s222 = sadd.s32 %s221, 1
      %p225 = scmp.eq.s32.totalorder %s19, 1
      %p226 = scmp.ne.s32.totalorder %s221, %s223
      %p227 = scmp.eq.s32.totalorder %s19, 0
      %p228 = por %p226, %p227
      %p229 = scmp.ne.s32.totalorder %s221, %s223
      %p230 = scmp.eq.s32.totalorder %s24, 1
      %p231 = por %p229, %p230
      %p232 = scmp.ne.s32.totalorder %s223, %s224
      %p233 = scmp.eq.s32.totalorder %s24, 0
      %p234 = por %p232, %p233
      %p235 = scmp.ne.s32.totalorder %s223, %s224
      %p236 = scmp.eq.s32.totalorder %s25, 1
      %p237 = por %p235, %p236
      %p239 = scmp.ne.s32.totalorder %s224, %s238
      %p240 = scmp.eq.s32.totalorder %s25, 0
      %p241 = por %p239, %p240
      %s242 = ssub.s32 %s19, %s26
      %p243 = scmp.eq.s32.totalorder %s242, 0
      %s245 = sadd.s32 %s244, 1
      %s246 = scalar_select %p243, %s244, %s245
      %p249 = pneg %p243
      %p250 = scmp.eq.s32.totalorder %s19, 1
      %p251 = por %p249, %p250
      %p252 = scmp.ne.s32.totalorder %s244, %s247
      %p253 = scmp.eq.s32.totalorder %s19, 0
      %p254 = por %p252, %p253
      %p255 = scmp.ne.s32.totalorder %s244, %s247
      %p256 = scmp.eq.s32.totalorder %s24, 1
      %p257 = por %p255, %p256
      %p258 = scmp.ne.s32.totalorder %s247, %s248
      %p259 = scmp.eq.s32.totalorder %s24, 0
      %p260 = por %p258, %p259
      %p261 = scmp.ne.s32.totalorder %s247, %s248
      %p262 = scmp.eq.s32.totalorder %s25, 1
      %p263 = por %p261, %p262
      %p265 = scmp.ne.s32.totalorder %s248, %s264
      %p266 = scmp.eq.s32.totalorder %s25, 0
      %p267 = por %p265, %p266
      %p268 = scmp.le.s32.totalorder 1, %s19
      %p269 = scmp.lt.s32.totalorder %s19, 3
      %p270 = pnand %p268, %p269
      %p271 = pneg %p270
      // Predicated region
      $region9: #{mnist_forward.1} parent=5 // pred_check
        _
      $region10: #{mnist_forward.1} parent=5 // pred_check_branch
        %273 = sbr.rel (%p270) target = $region12
      $region11: #{mnist_forward.1} parent=5 // pred_region
        %s274 = ssub.s32 %s19, 1
        // Predicated region
        $region13: #{mnist_forward.1} parent=11 // pred_check
          %p275 = pneg %p66
        $region14: #{mnist_forward.1} parent=11 // pred_check_branch
          %277 = sbr.rel (%p275) target = $region16
        $region15: #{mnist_forward.1} parent=11 // pred_region
          _
        $region16: #{mnist_forward.1} parent=11 // pred_fallthru
          _
        // Predicated region
        $region17: #{mnist_forward.1} parent=11 // pred_check
          %p278 = pneg %p87
        $region18: #{mnist_forward.1} parent=11 // pred_check_branch
          %280 = sbr.rel (%p278) target = $region20
        $region19: #{mnist_forward.1} parent=11 // pred_region
          _
        $region20: #{mnist_forward.1} parent=11 // pred_fallthru
          _
        // Predicated region
        $region21: #{mnist_forward.1} parent=11 // pred_check
          %p281 = pneg %p108
        $region22: #{mnist_forward.1} parent=11 // pred_check_branch
          %283 = sbr.rel (%p281) target = $region24
        $region23: #{mnist_forward.1} parent=11 // pred_region
          _
        $region24: #{mnist_forward.1} parent=11 // pred_fallthru
          _
        // Predicated region
        $region25: #{mnist_forward.1} parent=11 // pred_check
          %p284 = pneg %p129
        $region26: #{mnist_forward.1} parent=11 // pred_check_branch
          %286 = sbr.rel (%p284) target = $region28
        $region27: #{mnist_forward.1} parent=11 // pred_region
          _
        $region28: #{mnist_forward.1} parent=11 // pred_fallthru
          _
        // Predicated region
        $region29: #{mnist_forward.1} parent=11 // pred_check
          %p287 = pneg %p150
        $region30: #{mnist_forward.1} parent=11 // pred_check_branch
          %289 = sbr.rel (%p287) target = $region32
        $region31: #{mnist_forward.1} parent=11 // pred_region
          _
        $region32: #{mnist_forward.1} parent=11 // pred_fallthru
          _
        // Predicated region
        $region33: #{mnist_forward.1} parent=11 // pred_check
          %p290 = pneg %p171
        $region34: #{mnist_forward.1} parent=11 // pred_check_branch
          %292 = sbr.rel (%p290) target = $region36
        $region35: #{mnist_forward.1} parent=11 // pred_region
          _
        $region36: #{mnist_forward.1} parent=11 // pred_fallthru
          _
        // Predicated region
        $region37: #{mnist_forward.1} parent=11 // pred_check
          %p293 = pneg %p192
        $region38: #{mnist_forward.1} parent=11 // pred_check_branch
          %295 = sbr.rel (%p293) target = $region40
        $region39: #{mnist_forward.1} parent=11 // pred_region
          _
        $region40: #{mnist_forward.1} parent=11 // pred_fallthru
          _
        // Predicated region
        $region41: #{mnist_forward.1} parent=11 // pred_check
          %p296 = pneg %p213
        $region42: #{mnist_forward.1} parent=11 // pred_check_branch
          %298 = sbr.rel (%p296) target = $region44
        $region43: #{mnist_forward.1} parent=11 // pred_region
          _
        $region44: #{mnist_forward.1} parent=11 // pred_fallthru
          _
        // Predicated region
        $region45: #{mnist_forward.1} parent=11 // pred_check
          %p299 = pneg %p234
        $region46: #{mnist_forward.1} parent=11 // pred_check_branch
          %301 = sbr.rel (%p299) target = $region48
        $region47: #{mnist_forward.1} parent=11 // pred_region
          _
        $region48: #{mnist_forward.1} parent=11 // pred_fallthru
          _
      $region12: #{mnist_forward.1} parent=5 // pred_fallthru
        _
      %p302 = scmp.lt.s32.totalorder %s19, 2
      // Predicated region
      $region49: #{mnist_forward.1} parent=5 // pred_check
        %p303 = pneg %p302
      $region50: #{mnist_forward.1} parent=5 // pred_check_branch
        %305 = sbr.rel (%p303) target = $region52
      $region51: #{mnist_forward.1} parent=5 // pred_region
        // Predicated region
        $region53: #{mnist_forward.1} parent=51 // pred_check
          %p306 = pneg %p39
        $region54: #{mnist_forward.1} parent=51 // pred_check_branch
          %308 = sbr.rel (%p306) target = $region56
        $region55: #{mnist_forward.1} parent=51 // pred_region
          %s309 = smul.u32 4, %s19
          %p310 = scmp.lt.s32.totalorder %s309, 7
          %s311 = scalar_select %p310, %s309, 7
          %s312 = smul.addr %s311, 9
          %s313 = scalar_lea.vmem %s0, %s312
          %s314 = smul.u32 4, %s19
        $region56: #{mnist_forward.1} parent=51 // pred_fallthru
          _
      $region52: #{mnist_forward.1} parent=5 // pred_fallthru
        _
      %p315 = scmp.le.s32.totalorder 1, %s19
      %p316 = scmp.lt.s32.totalorder %s19, 3
      %p317 = pnand %p315, %p316
      %p318 = pneg %p317
      // Predicated region
      $region57: #{mnist_forward.1} parent=5 // pred_check
        _
      $region58: #{mnist_forward.1} parent=5 // pred_check_branch
        %320 = sbr.rel (%p317) target = $region60
      $region59: #{mnist_forward.1} parent=5 // pred_region
        %s321 = ssub.s32 %s19, 1
        %s322 = smul.u32 4, %s24
        %p323 = scmp.lt.s32.totalorder %s322, 7
        %s324 = scalar_select %p323, %s322, 7
        %s325 = smul.addr %s324, 9
        %s326 = scalar_lea.vmem %s0, %s325
        %p327 = pneg %p45
        %p328 = pneg %p42
        %p329 = pneg %p66
        %p330 = pneg %p63
        %p331 = pneg %p87
        %p332 = pneg %p84
        %p333 = pneg %p108
        %p334 = pneg %p105
        %p335 = pneg %p129
        %p336 = pneg %p126
        %p337 = pneg %p150
        %p338 = pneg %p147
        %p339 = pneg %p171
        %p340 = pneg %p168
        %p341 = pneg %p192
        %p342 = pneg %p189
        %p343 = pneg %p213
        %p344 = pneg %p210
        %p345 = pneg %p234
        %p346 = pneg %p231
        %p347 = pneg %p260
        %p348 = pneg %p257
        %s349 = sand.u32 %s247, 1
        %s350 = scalar_lea.sflag [#allocation3], %s349
        %s351 = sand.u32 %s247, 1
        %s352 = smul.addr %s351, 4
        %s353 = scalar_lea.vmem [#allocation2], %s352
        %s354 = smul.u32 4, %s24
        %p355 = scmp.lt.s32.totalorder %s354, 7
        %s356 = scalar_select %p355, %s354, 7
        %s357 = smul.addr %s356, 9
        %s358 = scalar_lea.vmem %s0, %s357
        %s359 = smul.u32 4, %s24
        %s360 = smul.u32 4, %s24
        %v362 = vld [vmem:[%s1] sm:$0xff]
        %v363 = vld [vmem:[%s2] sm:$0xff]
        %v364 = vld [vmem:[%s2 + $0x8] sm:$0xff]
        %v365 = vld [vmem:[%s3] sm:$0xff]
        %v366 = vld [vmem:[%s3 + $0x8] sm:$0xff]
        %v367 = vld [vmem:[%s4] sm:$0xff]
        %v368 = vld [vmem:[%s4 + $0x8] sm:$0xff]
        %v369 = vld [vmem:[%s4 + $0x10] sm:$0x33]
        %v370 = vld [vmem:[%s5] sm:$0xff]
        %v371 = vld [vmem:[%s5 + $0x8] sm:$0xff]
        %v372 = vld [vmem:[%s5 + $0x10] sm:$0xf]
        %v373 = vld [vmem:[%s6] sm:$0xff]
        %v374 = vld [vmem:[%s6 + $0x8] sm:$0xff]
        %v375 = vld [vmem:[%s6 + $0x10] sm:$0xff]
        %v376 = vld [vmem:[%s6 + $0x18] sm:$0xff]
        %v377 = vld [vmem:[%s6 + $0x20] sm:$0xff]
        %v378 = vld [vmem:[%s6 + $0x28] sm:$0xff]
        %v379 = vld [vmem:[%s6 + $0x30] sm:$0xff]
        %v380 = vld [vmem:[%s6 + $0x38] sm:$0xff]
        %v381 = vld [vmem:[%s6 + $0x40] sm:$0xff]
        %v382 = vld [vmem:[%s6 + $0x48] sm:$0xff]
        %v383 = vld [vmem:[%s6 + $0x50] sm:$0xff]
        %v384 = vld [vmem:[%s6 + $0x58] sm:$0xff]
        %v385 = vld [vmem:[%s6 + $0x60] sm:$0xff]
        %v386 = vld [vmem:[%s6 + $0x68] sm:$0xff]
        %v387 = vld [vmem:[%s6 + $0x70] sm:$0xff]
        %v388 = vld [vmem:[%s6 + $0x78] sm:$0xff]
        %v389 = vld [vmem:[%s6 + $0x80] sm:$0xff]
        %v390 = vld [vmem:[%s6 + $0x88] sm:$0xff]
        %v391 = vld [vmem:[%s6 + $0x90] sm:$0xff]
        %v392 = vld [vmem:[%s6 + $0x98] sm:$0xff]
        %v393 = vld [vmem:[%s6 + $0xa0] sm:$0xff]
        %v394 = vld [vmem:[%s6 + $0xa8] sm:$0xff]
        %v395 = vld [vmem:[%s6 + $0xb0] sm:$0xff]
        %v396 = vld [vmem:[%s6 + $0xb8] sm:$0xff]
        %v397 = vld [vmem:[%s6 + $0xc0] sm:$0xff]
        %v398 = vld [vmem:[%s6 + $0xc8] sm:$0xff]
        %v399 = vld [vmem:[%s6 + $0xd0] sm:$0xff]
        %v400 = vld [vmem:[%s6 + $0xd8] sm:$0xff]
        %v401 = vld [vmem:[%s6 + $0xe0] sm:$0xff]
        %v402 = vld [vmem:[%s6 + $0xe8] sm:$0xff]
        %v403 = vld [vmem:[%s6 + $0xf0] sm:$0xff]
        %v404 = vld [vmem:[%s6 + $0xf8] sm:$0xff]
        %v405 = vld [vmem:[%s6 + $0x100] sm:$0xff]
        %v406 = vld [vmem:[%s6 + $0x108] sm:$0xff]
        %v407 = vld [vmem:[%s6 + $0x110] sm:$0xff]
        %v408 = vld [vmem:[%s6 + $0x118] sm:$0xff]
        %v409 = vld [vmem:[%s6 + $0x120] sm:$0xff]
        %v410 = vld [vmem:[%s6 + $0x128] sm:$0xff]
        %v411 = vld [vmem:[%s6 + $0x130] sm:$0xff]
        %v412 = vld [vmem:[%s6 + $0x138] sm:$0xff]
        %v413 = vld [vmem:[%s6 + $0x140] sm:$0xff]
        %v414 = vld [vmem:[%s6 + $0x148] sm:$0xff]
        %v415 = vld [vmem:[%s6 + $0x150] sm:$0xff]
        %v416 = vld [vmem:[%s6 + $0x158] sm:$0xff]
        %v417 = vld [vmem:[%s6 + $0x160] sm:$0xff]
        %v418 = vld [vmem:[%s6 + $0x168] sm:$0xff]
        %v419 = vld [vmem:[%s6 + $0x170] sm:$0xff]
        %v420 = vld [vmem:[%s6 + $0x178] sm:$0xff]
        %v421 = vld [vmem:[%s6 + $0x180] sm:$0xff]
        %v422 = vld [vmem:[%s6 + $0x188] sm:$0xff]
        %v423 = vld [vmem:[%s6 + $0x190] sm:$0xff]
        %v424 = vld [vmem:[%s6 + $0x198] sm:$0xff]
        %v425 = vld [vmem:[%s6 + $0x1a0] sm:$0xff]
        %v426 = vld [vmem:[%s6 + $0x1a8] sm:$0xff]
        %v427 = vld [vmem:[%s6 + $0x1b0] sm:$0xff]
        %v428 = vld [vmem:[%s6 + $0x1b8] sm:$0xff]
        %v429 = vld [vmem:[%s6 + $0x1c0] sm:$0xff]
        %v430 = vld [vmem:[%s6 + $0x1c8] sm:$0xff]
        %v431 = vld [vmem:[%s6 + $0x1d0] sm:$0xff]
        %v432 = vld [vmem:[%s6 + $0x1d8] sm:$0xff]
        %v433 = vld [vmem:[%s6 + $0x1e0] sm:$0xff]
        %v434 = vld [vmem:[%s6 + $0x1e8] sm:$0xff]
        %v435 = vld [vmem:[%s6 + $0x1f0] sm:$0xff]
        %v436 = vld [vmem:[%s6 + $0x1f8] sm:$0xff]
        %v437 = vld [vmem:[%s6 + $0x200] sm:$0xff]
        %v438 = vld [vmem:[%s6 + $0x208] sm:$0xff]
        %v439 = vld [vmem:[%s6 + $0x210] sm:$0xff]
        %v440 = vld [vmem:[%s6 + $0x218] sm:$0xff]
        %v441 = vld [vmem:[%s6 + $0x220] sm:$0xff]
        %v442 = vld [vmem:[%s6 + $0x228] sm:$0xff]
        %v443 = vld [vmem:[%s6 + $0x230] sm:$0xff]
        %v444 = vld [vmem:[%s6 + $0x238] sm:$0xff]
        %v445 = vld [vmem:[%s6 + $0x240] sm:$0xff]
        %v446 = vld [vmem:[%s6 + $0x248] sm:$0xff]
        %v447 = vld [vmem:[%s6 + $0x250] sm:$0xff]
        %v448 = vld [vmem:[%s6 + $0x258] sm:$0xff]
        %v449 = vld [vmem:[%s6 + $0x260] sm:$0xff]
        %v450 = vld [vmem:[%s6 + $0x268] sm:$0xff]
        %v451 = vld [vmem:[%s6 + $0x270] sm:$0xff]
        %v452 = vld [vmem:[%s6 + $0x278] sm:$0xff]
        %v453 = vld [vmem:[%s6 + $0x280] sm:$0xff]
        %v454 = vld [vmem:[%s6 + $0x288] sm:$0xff]
        %v455 = vld [vmem:[%s6 + $0x290] sm:$0xff]
        %v456 = vld [vmem:[%s6 + $0x298] sm:$0xff]
        %v457 = vld [vmem:[%s6 + $0x2a0] sm:$0xff]
        %v458 = vld [vmem:[%s6 + $0x2a8] sm:$0xff]
        %v459 = vld [vmem:[%s6 + $0x2b0] sm:$0xff]
        %v460 = vld [vmem:[%s6 + $0x2b8] sm:$0xff]
        %v461 = vld [vmem:[%s6 + $0x2c0] sm:$0xff]
        %v462 = vld [vmem:[%s6 + $0x2c8] sm:$0xff]
        %v463 = vld [vmem:[%s6 + $0x2d0] sm:$0xff]
        %v464 = vld [vmem:[%s6 + $0x2d8] sm:$0xff]
        %v465 = vld [vmem:[%s6 + $0x2e0] sm:$0xff]
        %v466 = vld [vmem:[%s6 + $0x2e8] sm:$0xff]
        %v467 = vld [vmem:[%s6 + $0x2f0] sm:$0xff]
        %v468 = vld [vmem:[%s6 + $0x2f8] sm:$0xff]
        %v469 = vld [vmem:[%s6 + $0x300] sm:$0xff]
        %v470 = vld [vmem:[%s6 + $0x308] sm:$0xff]
        %v471 = vld [vmem:[%s6 + $0x310] sm:$0xff]
        %v472 = vld [vmem:[%s6 + $0x318] sm:$0xff]
        %v473 = vld [vmem:[%s6 + $0x320] sm:$0xff]
        %v474 = vld [vmem:[%s6 + $0x328] sm:$0xff]
        %v475 = vld [vmem:[%s6 + $0x330] sm:$0xff]
        %v476 = vld [vmem:[%s6 + $0x338] sm:$0xff]
        %v477 = vld [vmem:[%s6 + $0x340] sm:$0xff]
        %v478 = vld [vmem:[%s6 + $0x348] sm:$0xff]
        %v479 = vld [vmem:[%s6 + $0x350] sm:$0xff]
        %v480 = vld [vmem:[%s6 + $0x358] sm:$0xff]
        %v481 = vld [vmem:[%s6 + $0x360] sm:$0xff]
        %v482 = vld [vmem:[%s6 + $0x368] sm:$0xff]
        %v483 = vld [vmem:[%s6 + $0x370] sm:$0xff]
        %v484 = vld [vmem:[%s6 + $0x378] sm:$0xff]
        %v485 = vld [vmem:[%s6 + $0x380] sm:$0xff]
        %v486 = vld [vmem:[%s6 + $0x388] sm:$0xff]
        %v487 = vld [vmem:[%s6 + $0x390] sm:$0xff]
        %v488 = vld [vmem:[%s6 + $0x398] sm:$0xff]
        %v489 = vld [vmem:[%s6 + $0x3a0] sm:$0xff]
        %v490 = vld [vmem:[%s6 + $0x3a8] sm:$0xff]
        %v491 = vld [vmem:[%s6 + $0x3b0] sm:$0xff]
        %v492 = vld [vmem:[%s6 + $0x3b8] sm:$0xff]
        %v493 = vld [vmem:[%s6 + $0x3c0] sm:$0xff]
        %v494 = vld [vmem:[%s6 + $0x3c8] sm:$0xff]
        %v495 = vld [vmem:[%s6 + $0x3d0] sm:$0xff]
        %v496 = vld [vmem:[%s6 + $0x3d8] sm:$0xff]
        %v497 = vld [vmem:[%s6 + $0x3e0] sm:$0xff]
        %v498 = vld [vmem:[%s6 + $0x3e8] sm:$0xff]
        %v499 = vld [vmem:[%s6 + $0x3f0] sm:$0xff]
        %v500 = vld [vmem:[%s6 + $0x3f8] sm:$0xff]
        %v501 = vld [vmem:[%s7] sm:$0xff]
        %v502 = vld [vmem:[%s7 + $0x8] sm:$0xff]
        %v503 = vld [vmem:[%s7 + $0x10] sm:$0xff]
        %v504 = vld [vmem:[%s7 + $0x18] sm:$0xff]
        %v505 = vld [vmem:[%s7 + $0x20] sm:$0xf]
        %v506 = vld [vmem:[%s7 + $0x28] sm:$0xf]
        %v507 = vld [vmem:[%s8] sm:$0xff]
        %v508 = vld [vmem:[%s8 + $0x8] sm:$0xff]
        %v509 = vld [vmem:[%s8 + $0x10] sm:$0xff]
        %v510 = vld [vmem:[%s8 + $0x18] sm:$0xff]
        %v511 = vld [vmem:[%s8 + $0x20] sm:$0xff]
        %v512 = vld [vmem:[%s8 + $0x28] sm:$0xff]
        %v513 = vld [vmem:[%s8 + $0x30] sm:$0xff]
        %v514 = vld [vmem:[%s8 + $0x38] sm:$0xff]
        %v515 = vld [vmem:[%s8 + $0x40] sm:$0xff]
        %v516 = vld [vmem:[%s8 + $0x48] sm:$0xff]
        %v517 = vld [vmem:[%s8 + $0x50] sm:$0xff]
        %v518 = vld [vmem:[%s8 + $0x58] sm:$0xff]
        %v519 = vld [vmem:[%s8 + $0x60] sm:$0xff]
        %v520 = vld [vmem:[%s8 + $0x68] sm:$0xff]
        %v521 = vld [vmem:[%s8 + $0x70] sm:$0xff]
        %v522 = vld [vmem:[%s8 + $0x78] sm:$0xff]
        %v523 = vld [vmem:[%s8 + $0x80] sm:$0xff]
        %v524 = vld [vmem:[%s8 + $0x88] sm:$0xff]
        %v525 = vld [vmem:[%s8 + $0x90] sm:$0xff]
        %v526 = vld [vmem:[%s8 + $0x98] sm:$0xff]
        %v527 = vld [vmem:[%s8 + $0xa0] sm:$0xff]
        %v528 = vld [vmem:[%s8 + $0xa8] sm:$0xff]
        %v529 = vld [vmem:[%s8 + $0xb0] sm:$0xff]
        %v530 = vld [vmem:[%s8 + $0xb8] sm:$0xff]
        %v531 = vld [vmem:[%s8 + $0xc0] sm:$0xff]
        %v532 = vld [vmem:[%s9] sm:$0x1]
        %v533 = vld [vmem:[%s358] sm:$0xff]
        %v534 = vld [vmem:[%s358 + $0x8] sm:$0x1]
        %v536 = vperm.slane %v533, 0
        %v537 = vperm.slane %v533, 1
        %v538 = vperm.slane %v533, 2
        %v539 = vperm.slane %v533, 3
        %v540 = vperm.slane %v533, 4
        %v541 = vperm.slane %v533, 5
        %v542 = vperm.slane %v533, 6
        %v543 = vperm.slane %v533, 7
        %553 = vset.pattern.permute.xlu0 0
        %554 = vperm.xlu0 %553, %v363
        %v555 = vpop.permute.xlu0 %554
        %558 = vset.pattern.permute.xlu0 0
        %559 = vperm.xlu0 %558, %v364
        %v560 = vpop.permute.xlu0 %559
        %v562 = vmul.f32 %v536, %v555
        %v563 = vmul.f32 %v537, %v555
        %v564 = vmul.f32 %v538, %v555
        %v565 = vmul.f32 %v539, %v555
        %v566 = vmul.f32 %v540, %v555
        %v567 = vmul.f32 %v541, %v555
        %v568 = vmul.f32 %v542, %v555
        %v569 = vmul.f32 %v543, %v555
        %v570 = vmul.f32 %v536, %v560
        %v571 = vmul.f32 %v537, %v560
        %v572 = vmul.f32 %v538, %v560
        %v573 = vmul.f32 %v539, %v560
        %v574 = vmul.f32 %v540, %v560
        %v575 = vmul.f32 %v541, %v560
        %v576 = vmul.f32 %v542, %v560
        %v577 = vmul.f32 %v543, %v560
        %v578 = vadd.f32 %v562, 0.0
        %v579 = vadd.f32 %v563, 0.0
        %v580 = vadd.f32 %v564, 0.0
        %v581 = vadd.f32 %v565, 0.0
        %v582 = vadd.f32 %v566, 0.0
        %v583 = vadd.f32 %v567, 0.0
        %v584 = vadd.f32 %v568, 0.0
        %v585 = vadd.f32 %v569, 0.0
        %v586 = vadd.f32 %v570, 0.0
        %v587 = vadd.f32 %v571, 0.0
        %v588 = vadd.f32 %v572, 0.0
        %v589 = vadd.f32 %v573, 0.0
        %v590 = vadd.f32 %v574, 0.0
        %v591 = vadd.f32 %v575, 0.0
        %v592 = vadd.f32 %v576, 0.0
        %v593 = vadd.f32 %v577, 0.0
        %v595 = vperm.slane %v534, 0
        %597 = vset.pattern.permute.xlu0 1
        %598 = vperm.xlu0 %597, %v363
        %v599 = vpop.permute.xlu0 %598
        %601 = vset.pattern.permute.xlu0 1
        %602 = vperm.xlu0 %601, %v364
        %v603 = vpop.permute.xlu0 %602
        %v605 = vmul.f32 %v536, %v599
        %v606 = vmul.f32 %v537, %v599
        %v607 = vmul.f32 %v538, %v599
        %v608 = vmul.f32 %v539, %v599
        %v609 = vmul.f32 %v540, %v599
        %v610 = vmul.f32 %v541, %v599
        %v611 = vmul.f32 %v542, %v599
        %v612 = vmul.f32 %v543, %v599
        %v613 = vmul.f32 %v595, %v599
        %v614 = vmul.f32 %v536, %v603
        %v615 = vmul.f32 %v537, %v603
        %v616 = vmul.f32 %v538, %v603
        %v617 = vmul.f32 %v539, %v603
        %v618 = vmul.f32 %v540, %v603
        %v619 = vmul.f32 %v541, %v603
        %v620 = vmul.f32 %v542, %v603
        %v621 = vmul.f32 %v543, %v603
        %v622 = vmul.f32 %v595, %v603
        %641 = vrot.lane.b32.xlu0 %v605, 127
        %v642 = vpop.permute.xlu0 %641
        %643 = vrot.lane.b32.xlu0 %v606, 127
        %v644 = vpop.permute.xlu0 %643
        %645 = vrot.lane.b32.xlu0 %v607, 127
        %v646 = vpop.permute.xlu0 %645
        %647 = vrot.lane.b32.xlu0 %v608, 127
        %v648 = vpop.permute.xlu0 %647
        %649 = vrot.lane.b32.xlu0 %v609, 127
        %v650 = vpop.permute.xlu0 %649
        %651 = vrot.lane.b32.xlu0 %v610, 127
        %v652 = vpop.permute.xlu0 %651
        %653 = vrot.lane.b32.xlu0 %v611, 127
        %v654 = vpop.permute.xlu0 %653
        %655 = vrot.lane.b32.xlu0 %v612, 127
        %v656 = vpop.permute.xlu0 %655
        %657 = vrot.lane.b32.xlu0 %v613, 127
        %v658 = vpop.permute.xlu0 %657
        %659 = vrot.lane.b32.xlu0 %v614, 127
        %v660 = vpop.permute.xlu0 %659
        %661 = vrot.lane.b32.xlu0 %v615, 127
        %v662 = vpop.permute.xlu0 %661
        %663 = vrot.lane.b32.xlu0 %v616, 127
        %v664 = vpop.permute.xlu0 %663
        %665 = vrot.lane.b32.xlu0 %v617, 127
        %v666 = vpop.permute.xlu0 %665
        %667 = vrot.lane.b32.xlu0 %v618, 127
        %v668 = vpop.permute.xlu0 %667
        %669 = vrot.lane.b32.xlu0 %v619, 127
        %v670 = vpop.permute.xlu0 %669
        %671 = vrot.lane.b32.xlu0 %v620, 127
        %v672 = vpop.permute.xlu0 %671
        %673 = vrot.lane.b32.xlu0 %v621, 127
        %v674 = vpop.permute.xlu0 %673
        %675 = vrot.lane.b32.xlu0 %v622, 127
        %v676 = vpop.permute.xlu0 %675
        %vm677 = vcmask 1039360
        %v678 = vsel %vm677, %v642, %v644
        %v679 = vsel %vm677, %v644, %v646
        %v680 = vsel %vm677, %v646, %v648
        %v681 = vsel %vm677, %v648, %v650
        %v682 = vsel %vm677, %v650, %v652
        %v683 = vsel %vm677, %v652, %v654
        %v684 = vsel %vm677, %v654, %v656
        %v685 = vsel %vm677, %v656, %v658
        %v686 = vsel %vm677, %v660, %v662
        %v687 = vsel %vm677, %v662, %v664
        %v688 = vsel %vm677, %v664, %v666
        %v689 = vsel %vm677, %v666, %v668
        %v690 = vsel %vm677, %v668, %v670
        %v691 = vsel %vm677, %v670, %v672
        %v692 = vsel %vm677, %v672, %v674
        %v693 = vsel %vm677, %v674, %v676
        %v710 = vadd.f32 %v578, %v678
        %v711 = vadd.f32 %v579, %v679
        %v712 = vadd.f32 %v580, %v680
        %v713 = vadd.f32 %v581, %v681
        %v714 = vadd.f32 %v582, %v682
        %v715 = vadd.f32 %v583, %v683
        %v716 = vadd.f32 %v584, %v684
        %v717 = vadd.f32 %v585, %v685
        %v718 = vadd.f32 %v586, %v686
        %v719 = vadd.f32 %v587, %v687
        %v720 = vadd.f32 %v588, %v688
        %v721 = vadd.f32 %v589, %v689
        %v722 = vadd.f32 %v590, %v690
        %v723 = vadd.f32 %v591, %v691
        %v724 = vadd.f32 %v592, %v692
        %v725 = vadd.f32 %v593, %v693
        %726 = vset.pattern.permute.xlu0 2
        %727 = vperm.xlu0 %726, %v363
        %v728 = vpop.permute.xlu0 %727
        %730 = vset.pattern.permute.xlu0 2
        %731 = vperm.xlu0 %730, %v364
        %v732 = vpop.permute.xlu0 %731
        %v734 = vmul.f32 %v536, %v728
        %v735 = vmul.f32 %v537, %v728
        %v736 = vmul.f32 %v538, %v728
        %v737 = vmul.f32 %v539, %v728
        %v738 = vmul.f32 %v540, %v728
        %v739 = vmul.f32 %v541, %v728
        %v740 = vmul.f32 %v542, %v728
        %v741 = vmul.f32 %v543, %v728
        %v742 = vmul.f32 %v595, %v728
        %v743 = vmul.f32 %v536, %v732
        %v744 = vmul.f32 %v537, %v732
        %v745 = vmul.f32 %v538, %v732
        %v746 = vmul.f32 %v539, %v732
        %v747 = vmul.f32 %v540, %v732
        %v748 = vmul.f32 %v541, %v732
        %v749 = vmul.f32 %v542, %v732
        %v750 = vmul.f32 %v543, %v732
        %v751 = vmul.f32 %v595, %v732
        %770 = vrot.lane.b32.xlu0 %v734, 126
        %v771 = vpop.permute.xlu0 %770
        %772 = vrot.lane.b32.xlu0 %v735, 126
        %v773 = vpop.permute.xlu0 %772
        %774 = vrot.lane.b32.xlu0 %v736, 126
        %v775 = vpop.permute.xlu0 %774
        %776 = vrot.lane.b32.xlu0 %v737, 126
        %v777 = vpop.permute.xlu0 %776
        %778 = vrot.lane.b32.xlu0 %v738, 126
        %v779 = vpop.permute.xlu0 %778
        %780 = vrot.lane.b32.xlu0 %v739, 126
        %v781 = vpop.permute.xlu0 %780
        %782 = vrot.lane.b32.xlu0 %v740, 126
        %v783 = vpop.permute.xlu0 %782
        %784 = vrot.lane.b32.xlu0 %v741, 126
        %v785 = vpop.permute.xlu0 %784
        %786 = vrot.lane.b32.xlu0 %v742, 126
        %v787 = vpop.permute.xlu0 %786
        %788 = vrot.lane.b32.xlu0 %v743, 126
        %v789 = vpop.permute.xlu0 %788
        %790 = vrot.lane.b32.xlu0 %v744, 126
        %v791 = vpop.permute.xlu0 %790
        %792 = vrot.lane.b32.xlu0 %v745, 126
        %v793 = vpop.permute.xlu0 %792
        %794 = vrot.lane.b32.xlu0 %v746, 126
        %v795 = vpop.permute.xlu0 %794
        %796 = vrot.lane.b32.xlu0 %v747, 126
        %v797 = vpop.permute.xlu0 %796
        %798 = vrot.lane.b32.xlu0 %v748, 126
        %v799 = vpop.permute.xlu0 %798
        %800 = vrot.lane.b32.xlu0 %v749, 126
        %v801 = vpop.permute.xlu0 %800
        %802 = vrot.lane.b32.xlu0 %v750, 126
        %v803 = vpop.permute.xlu0 %802
        %804 = vrot.lane.b32.xlu0 %v751, 126
        %v805 = vpop.permute.xlu0 %804
        %vm806 = vcmask 1031168
        %v807 = vsel %vm806, %v771, %v773
        %v808 = vsel %vm806, %v773, %v775
        %v809 = vsel %vm806, %v775, %v777
        %v810 = vsel %vm806, %v777, %v779
        %v811 = vsel %vm806, %v779, %v781
        %v812 = vsel %vm806, %v781, %v783
        %v813 = vsel %vm806, %v783, %v785
        %v814 = vsel %vm806, %v785, %v787
        %v815 = vsel %vm806, %v789, %v791
        %v816 = vsel %vm806, %v791, %v793
        %v817 = vsel %vm806, %v793, %v795
        %v818 = vsel %vm806, %v795, %v797
        %v819 = vsel %vm806, %v797, %v799
        %v820 = vsel %vm806, %v799, %v801
        %v821 = vsel %vm806, %v801, %v803
        %v822 = vsel %vm806, %v803, %v805
        %v839 = vadd.f32 %v710, %v807
        %v840 = vadd.f32 %v711, %v808
        %v841 = vadd.f32 %v712, %v809
        %v842 = vadd.f32 %v713, %v810
        %v843 = vadd.f32 %v714, %v811
        %v844 = vadd.f32 %v715, %v812
        %v845 = vadd.f32 %v716, %v813
        %v846 = vadd.f32 %v717, %v814
        %v847 = vadd.f32 %v718, %v815
        %v848 = vadd.f32 %v719, %v816
        %v849 = vadd.f32 %v720, %v817
        %v850 = vadd.f32 %v721, %v818
        %v851 = vadd.f32 %v722, %v819
        %v852 = vadd.f32 %v723, %v820
        %v853 = vadd.f32 %v724, %v821
        %v854 = vadd.f32 %v725, %v822
        %855 = vset.pattern.permute.xlu0 3
        %856 = vperm.xlu0 %855, %v363
        %v857 = vpop.permute.xlu0 %856
        %859 = vset.pattern.permute.xlu0 3
        %860 = vperm.xlu0 %859, %v364
        %v861 = vpop.permute.xlu0 %860
        %v863 = vmul.f32 %v536, %v857
        %v864 = vmul.f32 %v537, %v857
        %v865 = vmul.f32 %v538, %v857
        %v866 = vmul.f32 %v539, %v857
        %v867 = vmul.f32 %v540, %v857
        %v868 = vmul.f32 %v541, %v857
        %v869 = vmul.f32 %v542, %v857
        %v870 = vmul.f32 %v543, %v857
        %v871 = vmul.f32 %v595, %v857
        %v872 = vmul.f32 %v536, %v861
        %v873 = vmul.f32 %v537, %v861
        %v874 = vmul.f32 %v538, %v861
        %v875 = vmul.f32 %v539, %v861
        %v876 = vmul.f32 %v540, %v861
        %v877 = vmul.f32 %v541, %v861
        %v878 = vmul.f32 %v542, %v861
        %v879 = vmul.f32 %v543, %v861
        %v880 = vmul.f32 %v595, %v861
        %899 = vrot.lane.b32.xlu0 %v863, 98
        %v900 = vpop.permute.xlu0 %899
        %901 = vrot.lane.b32.xlu0 %v864, 98
        %v902 = vpop.permute.xlu0 %901
        %903 = vrot.lane.b32.xlu0 %v865, 98
        %v904 = vpop.permute.xlu0 %903
        %905 = vrot.lane.b32.xlu0 %v866, 98
        %v906 = vpop.permute.xlu0 %905
        %907 = vrot.lane.b32.xlu0 %v867, 98
        %v908 = vpop.permute.xlu0 %907
        %909 = vrot.lane.b32.xlu0 %v868, 98
        %v910 = vpop.permute.xlu0 %909
        %911 = vrot.lane.b32.xlu0 %v869, 98
        %v912 = vpop.permute.xlu0 %911
        %913 = vrot.lane.b32.xlu0 %v870, 98
        %v914 = vpop.permute.xlu0 %913
        %915 = vrot.lane.b32.xlu0 %v871, 98
        %v916 = vpop.permute.xlu0 %915
        %917 = vrot.lane.b32.xlu0 %v872, 98
        %v918 = vpop.permute.xlu0 %917
        %919 = vrot.lane.b32.xlu0 %v873, 98
        %v920 = vpop.permute.xlu0 %919
        %921 = vrot.lane.b32.xlu0 %v874, 98
        %v922 = vpop.permute.xlu0 %921
        %923 = vrot.lane.b32.xlu0 %v875, 98
        %v924 = vpop.permute.xlu0 %923
        %925 = vrot.lane.b32.xlu0 %v876, 98
        %v926 = vpop.permute.xlu0 %925
        %927 = vrot.lane.b32.xlu0 %v877, 98
        %v928 = vpop.permute.xlu0 %927
        %929 = vrot.lane.b32.xlu0 %v878, 98
        %v930 = vpop.permute.xlu0 %929
        %931 = vrot.lane.b32.xlu0 %v879, 98
        %v932 = vpop.permute.xlu0 %931
        %933 = vrot.lane.b32.xlu0 %v880, 98
        %v934 = vpop.permute.xlu0 %933
        %vm935 = vcmask 801792
        %v936 = vsel %vm935, %v900, %v902
        %v937 = vsel %vm935, %v902, %v904
        %v938 = vsel %vm935, %v904, %v906
        %v939 = vsel %vm935, %v906, %v908
        %v940 = vsel %vm935, %v908, %v910
        %v941 = vsel %vm935, %v910, %v912
        %v942 = vsel %vm935, %v912, %v914
        %v943 = vsel %vm935, %v914, %v916
        %v944 = vsel %vm935, %v918, %v920
        %v945 = vsel %vm935, %v920, %v922
        %v946 = vsel %vm935, %v922, %v924
        %v947 = vsel %vm935, %v924, %v926
        %v948 = vsel %vm935, %v926, %v928
        %v949 = vsel %vm935, %v928, %v930
        %v950 = vsel %vm935, %v930, %v932
        %v951 = vsel %vm935, %v932, %v934
        %v968 = vadd.f32 %v839, %v936
        %v969 = vadd.f32 %v840, %v937
        %v970 = vadd.f32 %v841, %v938
        %v971 = vadd.f32 %v842, %v939
        %v972 = vadd.f32 %v843, %v940
        %v973 = vadd.f32 %v844, %v941
        %v974 = vadd.f32 %v845, %v942
        %v975 = vadd.f32 %v846, %v943
        %v976 = vadd.f32 %v847, %v944
        %v977 = vadd.f32 %v848, %v945
        %v978 = vadd.f32 %v849, %v946
        %v979 = vadd.f32 %v850, %v947
        %v980 = vadd.f32 %v851, %v948
        %v981 = vadd.f32 %v852, %v949
        %v982 = vadd.f32 %v853, %v950
        %v983 = vadd.f32 %v854, %v951
        %984 = vset.pattern.permute.xlu0 4
        %985 = vperm.xlu0 %984, %v363
        %v986 = vpop.permute.xlu0 %985
        %988 = vset.pattern.permute.xlu0 4
        %989 = vperm.xlu0 %988, %v364
        %v990 = vpop.permute.xlu0 %989
        %v992 = vmul.f32 %v536, %v986
        %v993 = vmul.f32 %v537, %v986
        %v994 = vmul.f32 %v538, %v986
        %v995 = vmul.f32 %v539, %v986
        %v996 = vmul.f32 %v540, %v986
        %v997 = vmul.f32 %v541, %v986
        %v998 = vmul.f32 %v542, %v986
        %v999 = vmul.f32 %v543, %v986
        %v1000 = vmul.f32 %v595, %v986
        %v1001 = vmul.f32 %v536, %v990
        %v1002 = vmul.f32 %v537, %v990
        %v1003 = vmul.f32 %v538, %v990
        %v1004 = vmul.f32 %v539, %v990
        %v1005 = vmul.f32 %v540, %v990
        %v1006 = vmul.f32 %v541, %v990
        %v1007 = vmul.f32 %v542, %v990
        %v1008 = vmul.f32 %v543, %v990
        %v1009 = vmul.f32 %v595, %v990
        %1028 = vrot.lane.b32.xlu0 %v992, 97
        %v1029 = vpop.permute.xlu0 %1028
        %1030 = vrot.lane.b32.xlu0 %v993, 97
        %v1031 = vpop.permute.xlu0 %1030
        %1032 = vrot.lane.b32.xlu0 %v994, 97
        %v1033 = vpop.permute.xlu0 %1032
        %1034 = vrot.lane.b32.xlu0 %v995, 97
        %v1035 = vpop.permute.xlu0 %1034
        %1036 = vrot.lane.b32.xlu0 %v996, 97
        %v1037 = vpop.permute.xlu0 %1036
        %1038 = vrot.lane.b32.xlu0 %v997, 97
        %v1039 = vpop.permute.xlu0 %1038
        %1040 = vrot.lane.b32.xlu0 %v998, 97
        %v1041 = vpop.permute.xlu0 %1040
        %1042 = vrot.lane.b32.xlu0 %v999, 97
        %v1043 = vpop.permute.xlu0 %1042
        %1044 = vrot.lane.b32.xlu0 %v1000, 97
        %v1045 = vpop.permute.xlu0 %1044
        %1046 = vrot.lane.b32.xlu0 %v1001, 97
        %v1047 = vpop.permute.xlu0 %1046
        %1048 = vrot.lane.b32.xlu0 %v1002, 97
        %v1049 = vpop.permute.xlu0 %1048
        %1050 = vrot.lane.b32.xlu0 %v1003, 97
        %v1051 = vpop.permute.xlu0 %1050
        %1052 = vrot.lane.b32.xlu0 %v1004, 97
        %v1053 = vpop.permute.xlu0 %1052
        %1054 = vrot.lane.b32.xlu0 %v1005, 97
        %v1055 = vpop.permute.xlu0 %1054
        %1056 = vrot.lane.b32.xlu0 %v1006, 97
        %v1057 = vpop.permute.xlu0 %1056
        %1058 = vrot.lane.b32.xlu0 %v1007, 97
        %v1059 = vpop.permute.xlu0 %1058
        %1060 = vrot.lane.b32.xlu0 %v1008, 97
        %v1061 = vpop.permute.xlu0 %1060
        %1062 = vrot.lane.b32.xlu0 %v1009, 97
        %v1063 = vpop.permute.xlu0 %1062
        %vm1064 = vcmask 793600
        %v1065 = vsel %vm1064, %v1029, %v1031
        %v1066 = vsel %vm1064, %v1031, %v1033
        %v1067 = vsel %vm1064, %v1033, %v1035
        %v1068 = vsel %vm1064, %v1035, %v1037
        %v1069 = vsel %vm1064, %v1037, %v1039
        %v1070 = vsel %vm1064, %v1039, %v1041
        %v1071 = vsel %vm1064, %v1041, %v1043
        %v1072 = vsel %vm1064, %v1043, %v1045
        %v1073 = vsel %vm1064, %v1047, %v1049
        %v1074 = vsel %vm1064, %v1049, %v1051
        %v1075 = vsel %vm1064, %v1051, %v1053
        %v1076 = vsel %vm1064, %v1053, %v1055
        %v1077 = vsel %vm1064, %v1055, %v1057
        %v1078 = vsel %vm1064, %v1057, %v1059
        %v1079 = vsel %vm1064, %v1059, %v1061
        %v1080 = vsel %vm1064, %v1061, %v1063
        %v1097 = vadd.f32 %v968, %v1065
        %v1098 = vadd.f32 %v969, %v1066
        %v1099 = vadd.f32 %v970, %v1067
        %v1100 = vadd.f32 %v971, %v1068
        %v1101 = vadd.f32 %v972, %v1069
        %v1102 = vadd.f32 %v973, %v1070
        %v1103 = vadd.f32 %v974, %v1071
        %v1104 = vadd.f32 %v975, %v1072
        %v1105 = vadd.f32 %v976, %v1073
        %v1106 = vadd.f32 %v977, %v1074
        %v1107 = vadd.f32 %v978, %v1075
        %v1108 = vadd.f32 %v979, %v1076
        %v1109 = vadd.f32 %v980, %v1077
        %v1110 = vadd.f32 %v981, %v1078
        %v1111 = vadd.f32 %v982, %v1079
        %v1112 = vadd.f32 %v983, %v1080
        %1113 = vset.pattern.permute.xlu0 5
        %1114 = vperm.xlu0 %1113, %v363
        %v1115 = vpop.permute.xlu0 %1114
        %1117 = vset.pattern.permute.xlu0 5
        %1118 = vperm.xlu0 %1117, %v364
        %v1119 = vpop.permute.xlu0 %1118
        %v1121 = vmul.f32 %v536, %v1115
        %v1122 = vmul.f32 %v537, %v1115
        %v1123 = vmul.f32 %v538, %v1115
        %v1124 = vmul.f32 %v539, %v1115
        %v1125 = vmul.f32 %v540, %v1115
        %v1126 = vmul.f32 %v541, %v1115
        %v1127 = vmul.f32 %v542, %v1115
        %v1128 = vmul.f32 %v543, %v1115
        %v1129 = vmul.f32 %v595, %v1115
        %v1130 = vmul.f32 %v536, %v1119
        %v1131 = vmul.f32 %v537, %v1119
        %v1132 = vmul.f32 %v538, %v1119
        %v1133 = vmul.f32 %v539, %v1119
        %v1134 = vmul.f32 %v540, %v1119
        %v1135 = vmul.f32 %v541, %v1119
        %v1136 = vmul.f32 %v542, %v1119
        %v1137 = vmul.f32 %v543, %v1119
        %v1138 = vmul.f32 %v595, %v1119
        %1157 = vrot.lane.b32.xlu0 %v1121, 96
        %v1158 = vpop.permute.xlu0 %1157
        %1159 = vrot.lane.b32.xlu0 %v1122, 96
        %v1160 = vpop.permute.xlu0 %1159
        %1161 = vrot.lane.b32.xlu0 %v1123, 96
        %v1162 = vpop.permute.xlu0 %1161
        %1163 = vrot.lane.b32.xlu0 %v1124, 96
        %v1164 = vpop.permute.xlu0 %1163
        %1165 = vrot.lane.b32.xlu0 %v1125, 96
        %v1166 = vpop.permute.xlu0 %1165
        %1167 = vrot.lane.b32.xlu0 %v1126, 96
        %v1168 = vpop.permute.xlu0 %1167
        %1169 = vrot.lane.b32.xlu0 %v1127, 96
        %v1170 = vpop.permute.xlu0 %1169
        %1171 = vrot.lane.b32.xlu0 %v1128, 96
        %v1172 = vpop.permute.xlu0 %1171
        %1173 = vrot.lane.b32.xlu0 %v1129, 96
        %v1174 = vpop.permute.xlu0 %1173
        %1175 = vrot.lane.b32.xlu0 %v1130, 96
        %v1176 = vpop.permute.xlu0 %1175
        %1177 = vrot.lane.b32.xlu0 %v1131, 96
        %v1178 = vpop.permute.xlu0 %1177
        %1179 = vrot.lane.b32.xlu0 %v1132, 96
        %v1180 = vpop.permute.xlu0 %1179
        %1181 = vrot.lane.b32.xlu0 %v1133, 96
        %v1182 = vpop.permute.xlu0 %1181
        %1183 = vrot.lane.b32.xlu0 %v1134, 96
        %v1184 = vpop.permute.xlu0 %1183
        %1185 = vrot.lane.b32.xlu0 %v1135, 96
        %v1186 = vpop.permute.xlu0 %1185
        %1187 = vrot.lane.b32.xlu0 %v1136, 96
        %v1188 = vpop.permute.xlu0 %1187
        %1189 = vrot.lane.b32.xlu0 %v1137, 96
        %v1190 = vpop.permute.xlu0 %1189
        %1191 = vrot.lane.b32.xlu0 %v1138, 96
        %v1192 = vpop.permute.xlu0 %1191
        %vm1193 = vcmask 785408
        %v1194 = vsel %vm1193, %v1158, %v1160
        %v1195 = vsel %vm1193, %v1160, %v1162
        %v1196 = vsel %vm1193, %v1162, %v1164
        %v1197 = vsel %vm1193, %v1164, %v1166
        %v1198 = vsel %vm1193, %v1166, %v1168
        %v1199 = vsel %vm1193, %v1168, %v1170
        %v1200 = vsel %vm1193, %v1170, %v1172
        %v1201 = vsel %vm1193, %v1172, %v1174
        %v1202 = vsel %vm1193, %v1176, %v1178
        %v1203 = vsel %vm1193, %v1178, %v1180
        %v1204 = vsel %vm1193, %v1180, %v1182
        %v1205 = vsel %vm1193, %v1182, %v1184
        %v1206 = vsel %vm1193, %v1184, %v1186
        %v1207 = vsel %vm1193, %v1186, %v1188
        %v1208 = vsel %vm1193, %v1188, %v1190
        %v1209 = vsel %vm1193, %v1190, %v1192
        %v1226 = vadd.f32 %v1097, %v1194
        %v1227 = vadd.f32 %v1098, %v1195
        %v1228 = vadd.f32 %v1099, %v1196
        %v1229 = vadd.f32 %v1100, %v1197
        %v1230 = vadd.f32 %v1101, %v1198
        %v1231 = vadd.f32 %v1102, %v1199
        %v1232 = vadd.f32 %v1103, %v1200
        %v1233 = vadd.f32 %v1104, %v1201
        %v1234 = vadd.f32 %v1105, %v1202
        %v1235 = vadd.f32 %v1106, %v1203
        %v1236 = vadd.f32 %v1107, %v1204
        %v1237 = vadd.f32 %v1108, %v1205
        %v1238 = vadd.f32 %v1109, %v1206
        %v1239 = vadd.f32 %v1110, %v1207
        %v1240 = vadd.f32 %v1111, %v1208
        %v1241 = vadd.f32 %v1112, %v1209
        %1242 = vset.pattern.permute.xlu0 6
        %1243 = vperm.xlu0 %1242, %v363
        %v1244 = vpop.permute.xlu0 %1243
        %1246 = vset.pattern.permute.xlu0 6
        %1247 = vperm.xlu0 %1246, %v364
        %v1248 = vpop.permute.xlu0 %1247
        %v1250 = vmul.f32 %v536, %v1244
        %v1251 = vmul.f32 %v537, %v1244
        %v1252 = vmul.f32 %v538, %v1244
        %v1253 = vmul.f32 %v539, %v1244
        %v1254 = vmul.f32 %v540, %v1244
        %v1255 = vmul.f32 %v541, %v1244
        %v1256 = vmul.f32 %v542, %v1244
        %v1257 = vmul.f32 %v543, %v1244
        %v1258 = vmul.f32 %v595, %v1244
        %v1259 = vmul.f32 %v536, %v1248
        %v1260 = vmul.f32 %v537, %v1248
        %v1261 = vmul.f32 %v538, %v1248
        %v1262 = vmul.f32 %v539, %v1248
        %v1263 = vmul.f32 %v540, %v1248
        %v1264 = vmul.f32 %v541, %v1248
        %v1265 = vmul.f32 %v542, %v1248
        %v1266 = vmul.f32 %v543, %v1248
        %v1267 = vmul.f32 %v595, %v1248
        %1286 = vrot.lane.b32.xlu0 %v1250, 68
        %v1287 = vpop.permute.xlu0 %1286
        %1288 = vrot.lane.b32.xlu0 %v1251, 68
        %v1289 = vpop.permute.xlu0 %1288
        %1290 = vrot.lane.b32.xlu0 %v1252, 68
        %v1291 = vpop.permute.xlu0 %1290
        %1292 = vrot.lane.b32.xlu0 %v1253, 68
        %v1293 = vpop.permute.xlu0 %1292
        %1294 = vrot.lane.b32.xlu0 %v1254, 68
        %v1295 = vpop.permute.xlu0 %1294
        %1296 = vrot.lane.b32.xlu0 %v1255, 68
        %v1297 = vpop.permute.xlu0 %1296
        %1298 = vrot.lane.b32.xlu0 %v1256, 68
        %v1299 = vpop.permute.xlu0 %1298
        %1300 = vrot.lane.b32.xlu0 %v1257, 68
        %v1301 = vpop.permute.xlu0 %1300
        %1302 = vrot.lane.b32.xlu0 %v1258, 68
        %v1303 = vpop.permute.xlu0 %1302
        %1304 = vrot.lane.b32.xlu0 %v1259, 68
        %v1305 = vpop.permute.xlu0 %1304
        %1306 = vrot.lane.b32.xlu0 %v1260, 68
        %v1307 = vpop.permute.xlu0 %1306
        %1308 = vrot.lane.b32.xlu0 %v1261, 68
        %v1309 = vpop.permute.xlu0 %1308
        %1310 = vrot.lane.b32.xlu0 %v1262, 68
        %v1311 = vpop.permute.xlu0 %1310
        %1312 = vrot.lane.b32.xlu0 %v1263, 68
        %v1313 = vpop.permute.xlu0 %1312
        %1314 = vrot.lane.b32.xlu0 %v1264, 68
        %v1315 = vpop.permute.xlu0 %1314
        %1316 = vrot.lane.b32.xlu0 %v1265, 68
        %v1317 = vpop.permute.xlu0 %1316
        %1318 = vrot.lane.b32.xlu0 %v1266, 68
        %v1319 = vpop.permute.xlu0 %1318
        %1320 = vrot.lane.b32.xlu0 %v1267, 68
        %v1321 = vpop.permute.xlu0 %1320
        %vm1322 = vcmask 556032
        %v1323 = vsel %vm1322, %v1287, %v1289
        %v1324 = vsel %vm1322, %v1289, %v1291
        %v1325 = vsel %vm1322, %v1291, %v1293
        %v1326 = vsel %vm1322, %v1293, %v1295
        %v1327 = vsel %vm1322, %v1295, %v1297
        %v1328 = vsel %vm1322, %v1297, %v1299
        %v1329 = vsel %vm1322, %v1299, %v1301
        %v1330 = vsel %vm1322, %v1301, %v1303
        %v1331 = vsel %vm1322, %v1305, %v1307
        %v1332 = vsel %vm1322, %v1307, %v1309
        %v1333 = vsel %vm1322, %v1309, %v1311
        %v1334 = vsel %vm1322, %v1311, %v1313
        %v1335 = vsel %vm1322, %v1313, %v1315
        %v1336 = vsel %vm1322, %v1315, %v1317
        %v1337 = vsel %vm1322, %v1317, %v1319
        %v1338 = vsel %vm1322, %v1319, %v1321
        %v1355 = vadd.f32 %v1226, %v1323
        %v1356 = vadd.f32 %v1227, %v1324
        %v1357 = vadd.f32 %v1228, %v1325
        %v1358 = vadd.f32 %v1229, %v1326
        %v1359 = vadd.f32 %v1230, %v1327
        %v1360 = vadd.f32 %v1231, %v1328
        %v1361 = vadd.f32 %v1232, %v1329
        %v1362 = vadd.f32 %v1233, %v1330
        %v1363 = vadd.f32 %v1234, %v1331
        %v1364 = vadd.f32 %v1235, %v1332
        %v1365 = vadd.f32 %v1236, %v1333
        %v1366 = vadd.f32 %v1237, %v1334
        %v1367 = vadd.f32 %v1238, %v1335
        %v1368 = vadd.f32 %v1239, %v1336
        %v1369 = vadd.f32 %v1240, %v1337
        %v1370 = vadd.f32 %v1241, %v1338
        %1371 = vset.pattern.permute.xlu0 7
        %1372 = vperm.xlu0 %1371, %v363
        %v1373 = vpop.permute.xlu0 %1372
        %1375 = vset.pattern.permute.xlu0 7
        %1376 = vperm.xlu0 %1375, %v364
        %v1377 = vpop.permute.xlu0 %1376
        %v1379 = vmul.f32 %v536, %v1373
        %v1380 = vmul.f32 %v537, %v1373
        %v1381 = vmul.f32 %v538, %v1373
        %v1382 = vmul.f32 %v539, %v1373
        %v1383 = vmul.f32 %v540, %v1373
        %v1384 = vmul.f32 %v541, %v1373
        %v1385 = vmul.f32 %v542, %v1373
        %v1386 = vmul.f32 %v543, %v1373
        %v1387 = vmul.f32 %v595, %v1373
        %v1388 = vmul.f32 %v536, %v1377
        %v1389 = vmul.f32 %v537, %v1377
        %v1390 = vmul.f32 %v538, %v1377
        %v1391 = vmul.f32 %v539, %v1377
        %v1392 = vmul.f32 %v540, %v1377
        %v1393 = vmul.f32 %v541, %v1377
        %v1394 = vmul.f32 %v542, %v1377
        %v1395 = vmul.f32 %v543, %v1377
        %v1396 = vmul.f32 %v595, %v1377
        %1415 = vrot.lane.b32.xlu0 %v1379, 67
        %v1416 = vpop.permute.xlu0 %1415
        %1417 = vrot.lane.b32.xlu0 %v1380, 67
        %v1418 = vpop.permute.xlu0 %1417
        %1419 = vrot.lane.b32.xlu0 %v1381, 67
        %v1420 = vpop.permute.xlu0 %1419
        %1421 = vrot.lane.b32.xlu0 %v1382, 67
        %v1422 = vpop.permute.xlu0 %1421
        %1423 = vrot.lane.b32.xlu0 %v1383, 67
        %v1424 = vpop.permute.xlu0 %1423
        %1425 = vrot.lane.b32.xlu0 %v1384, 67
        %v1426 = vpop.permute.xlu0 %1425
        %1427 = vrot.lane.b32.xlu0 %v1385, 67
        %v1428 = vpop.permute.xlu0 %1427
        %1429 = vrot.lane.b32.xlu0 %v1386, 67
        %v1430 = vpop.permute.xlu0 %1429
        %1431 = vrot.lane.b32.xlu0 %v1387, 67
        %v1432 = vpop.permute.xlu0 %1431
        %1433 = vrot.lane.b32.xlu0 %v1388, 67
        %v1434 = vpop.permute.xlu0 %1433
        %1435 = vrot.lane.b32.xlu0 %v1389, 67
        %v1436 = vpop.permute.xlu0 %1435
        %1437 = vrot.lane.b32.xlu0 %v1390, 67
        %v1438 = vpop.permute.xlu0 %1437
        %1439 = vrot.lane.b32.xlu0 %v1391, 67
        %v1440 = vpop.permute.xlu0 %1439
        %1441 = vrot.lane.b32.xlu0 %v1392, 67
        %v1442 = vpop.permute.xlu0 %1441
        %1443 = vrot.lane.b32.xlu0 %v1393, 67
        %v1444 = vpop.permute.xlu0 %1443
        %1445 = vrot.lane.b32.xlu0 %v1394, 67
        %v1446 = vpop.permute.xlu0 %1445
        %1447 = vrot.lane.b32.xlu0 %v1395, 67
        %v1448 = vpop.permute.xlu0 %1447
        %1449 = vrot.lane.b32.xlu0 %v1396, 67
        %v1450 = vpop.permute.xlu0 %1449
        %vm1451 = vcmask 547840
        %v1452 = vsel %vm1451, %v1416, %v1418
        %v1453 = vsel %vm1451, %v1418, %v1420
        %v1454 = vsel %vm1451, %v1420, %v1422
        %v1455 = vsel %vm1451, %v1422, %v1424
        %v1456 = vsel %vm1451, %v1424, %v1426
        %v1457 = vsel %vm1451, %v1426, %v1428
        %v1458 = vsel %vm1451, %v1428, %v1430
        %v1459 = vsel %vm1451, %v1430, %v1432
        %v1460 = vsel %vm1451, %v1434, %v1436
        %v1461 = vsel %vm1451, %v1436, %v1438
        %v1462 = vsel %vm1451, %v1438, %v1440
        %v1463 = vsel %vm1451, %v1440, %v1442
        %v1464 = vsel %vm1451, %v1442, %v1444
        %v1465 = vsel %vm1451, %v1444, %v1446
        %v1466 = vsel %vm1451, %v1446, %v1448
        %v1467 = vsel %vm1451, %v1448, %v1450
        %v1484 = vadd.f32 %v1355, %v1452
        %v1485 = vadd.f32 %v1356, %v1453
        %v1486 = vadd.f32 %v1357, %v1454
        %v1487 = vadd.f32 %v1358, %v1455
        %v1488 = vadd.f32 %v1359, %v1456
        %v1489 = vadd.f32 %v1360, %v1457
        %v1490 = vadd.f32 %v1361, %v1458
        %v1491 = vadd.f32 %v1362, %v1459
        %v1492 = vadd.f32 %v1363, %v1460
        %v1493 = vadd.f32 %v1364, %v1461
        %v1494 = vadd.f32 %v1365, %v1462
        %v1495 = vadd.f32 %v1366, %v1463
        %v1496 = vadd.f32 %v1367, %v1464
        %v1497 = vadd.f32 %v1368, %v1465
        %v1498 = vadd.f32 %v1369, %v1466
        %v1499 = vadd.f32 %v1370, %v1467
        %1500 = vset.pattern.permute.xlu0 8
        %1501 = vperm.xlu0 %1500, %v363
        %v1502 = vpop.permute.xlu0 %1501
        %1504 = vset.pattern.permute.xlu0 8
        %1505 = vperm.xlu0 %1504, %v364
        %v1506 = vpop.permute.xlu0 %1505
        %v1508 = vmul.f32 %v536, %v1502
        %v1509 = vmul.f32 %v537, %v1502
        %v1510 = vmul.f32 %v538, %v1502
        %v1511 = vmul.f32 %v539, %v1502
        %v1512 = vmul.f32 %v540, %v1502
        %v1513 = vmul.f32 %v541, %v1502
        %v1514 = vmul.f32 %v542, %v1502
        %v1515 = vmul.f32 %v543, %v1502
        %v1516 = vmul.f32 %v595, %v1502
        %v1517 = vmul.f32 %v536, %v1506
        %v1518 = vmul.f32 %v537, %v1506
        %v1519 = vmul.f32 %v538, %v1506
        %v1520 = vmul.f32 %v539, %v1506
        %v1521 = vmul.f32 %v540, %v1506
        %v1522 = vmul.f32 %v541, %v1506
        %v1523 = vmul.f32 %v542, %v1506
        %v1524 = vmul.f32 %v543, %v1506
        %v1525 = vmul.f32 %v595, %v1506
        %1544 = vrot.lane.b32.xlu0 %v1508, 66
        %v1545 = vpop.permute.xlu0 %1544
        %1546 = vrot.lane.b32.xlu0 %v1509, 66
        %v1547 = vpop.permute.xlu0 %1546
        %1548 = vrot.lane.b32.xlu0 %v1510, 66
        %v1549 = vpop.permute.xlu0 %1548
        %1550 = vrot.lane.b32.xlu0 %v1511, 66
        %v1551 = vpop.permute.xlu0 %1550
        %1552 = vrot.lane.b32.xlu0 %v1512, 66
        %v1553 = vpop.permute.xlu0 %1552
        %1554 = vrot.lane.b32.xlu0 %v1513, 66
        %v1555 = vpop.permute.xlu0 %1554
        %1556 = vrot.lane.b32.xlu0 %v1514, 66
        %v1557 = vpop.permute.xlu0 %1556
        %1558 = vrot.lane.b32.xlu0 %v1515, 66
        %v1559 = vpop.permute.xlu0 %1558
        %1560 = vrot.lane.b32.xlu0 %v1516, 66
        %v1561 = vpop.permute.xlu0 %1560
        %1562 = vrot.lane.b32.xlu0 %v1517, 66
        %v1563 = vpop.permute.xlu0 %1562
        %1564 = vrot.lane.b32.xlu0 %v1518, 66
        %v1565 = vpop.permute.xlu0 %1564
        %1566 = vrot.lane.b32.xlu0 %v1519, 66
        %v1567 = vpop.permute.xlu0 %1566
        %1568 = vrot.lane.b32.xlu0 %v1520, 66
        %v1569 = vpop.permute.xlu0 %1568
        %1570 = vrot.lane.b32.xlu0 %v1521, 66
        %v1571 = vpop.permute.xlu0 %1570
        %1572 = vrot.lane.b32.xlu0 %v1522, 66
        %v1573 = vpop.permute.xlu0 %1572
        %1574 = vrot.lane.b32.xlu0 %v1523, 66
        %v1575 = vpop.permute.xlu0 %1574
        %1576 = vrot.lane.b32.xlu0 %v1524, 66
        %v1577 = vpop.permute.xlu0 %1576
        %1578 = vrot.lane.b32.xlu0 %v1525, 66
        %v1579 = vpop.permute.xlu0 %1578
        %vm1580 = vcmask 539648
        %v1581 = vsel %vm1580, %v1545, %v1547
        %v1582 = vsel %vm1580, %v1547, %v1549
        %v1583 = vsel %vm1580, %v1549, %v1551
        %v1584 = vsel %vm1580, %v1551, %v1553
        %v1585 = vsel %vm1580, %v1553, %v1555
        %v1586 = vsel %vm1580, %v1555, %v1557
        %v1587 = vsel %vm1580, %v1557, %v1559
        %v1588 = vsel %vm1580, %v1559, %v1561
        %v1589 = vsel %vm1580, %v1563, %v1565
        %v1590 = vsel %vm1580, %v1565, %v1567
        %v1591 = vsel %vm1580, %v1567, %v1569
        %v1592 = vsel %vm1580, %v1569, %v1571
        %v1593 = vsel %vm1580, %v1571, %v1573
        %v1594 = vsel %vm1580, %v1573, %v1575
        %v1595 = vsel %vm1580, %v1575, %v1577
        %v1596 = vsel %vm1580, %v1577, %v1579
        %v1613 = vadd.f32 %v1484, %v1581
        %v1614 = vadd.f32 %v1485, %v1582
        %v1615 = vadd.f32 %v1486, %v1583
        %v1616 = vadd.f32 %v1487, %v1584
        %v1617 = vadd.f32 %v1488, %v1585
        %v1618 = vadd.f32 %v1489, %v1586
        %v1619 = vadd.f32 %v1490, %v1587
        %v1620 = vadd.f32 %v1491, %v1588
        %v1621 = vadd.f32 %v1492, %v1589
        %v1622 = vadd.f32 %v1493, %v1590
        %v1623 = vadd.f32 %v1494, %v1591
        %v1624 = vadd.f32 %v1495, %v1592
        %v1625 = vadd.f32 %v1496, %v1593
        %v1626 = vadd.f32 %v1497, %v1594
        %v1627 = vadd.f32 %v1498, %v1595
        %v1628 = vadd.f32 %v1499, %v1596
        %1630 = vset.pattern.permute.xlu0 0
        %1631 = vperm.xlu0 %1630, %v365
        %v1632 = vpop.permute.xlu0 %1631
        %1635 = vset.pattern.permute.xlu0 0
        %1636 = vperm.xlu0 %1635, %v366
        %v1637 = vpop.permute.xlu0 %1636
        %v1639 = vadd.f32 %v1613, %v1632
        %v1640 = vadd.f32 %v1614, %v1632
        %v1641 = vadd.f32 %v1615, %v1632
        %v1642 = vadd.f32 %v1616, %v1632
        %v1643 = vadd.f32 %v1617, %v1632
        %v1644 = vadd.f32 %v1618, %v1632
        %v1645 = vadd.f32 %v1619, %v1632
        %v1646 = vadd.f32 %v1620, %v1632
        %v1647 = vadd.f32 %v1621, %v1637
        %v1648 = vadd.f32 %v1622, %v1637
        %v1649 = vadd.f32 %v1623, %v1637
        %v1650 = vadd.f32 %v1624, %v1637
        %v1651 = vadd.f32 %v1625, %v1637
        %v1652 = vadd.f32 %v1626, %v1637
        %v1653 = vadd.f32 %v1627, %v1637
        %v1654 = vadd.f32 %v1628, %v1637
        %v1655 = vmax.f32 %v1639, 0.0
        %v1656 = vmax.f32 %v1640, 0.0
        %v1657 = vmax.f32 %v1641, 0.0
        %v1658 = vmax.f32 %v1642, 0.0
        %v1659 = vmax.f32 %v1643, 0.0
        %v1660 = vmax.f32 %v1644, 0.0
        %v1661 = vmax.f32 %v1645, 0.0
        %v1662 = vmax.f32 %v1646, 0.0
        %v1663 = vmax.f32 %v1647, 0.0
        %v1664 = vmax.f32 %v1648, 0.0
        %v1665 = vmax.f32 %v1649, 0.0
        %v1666 = vmax.f32 %v1650, 0.0
        %v1667 = vmax.f32 %v1651, 0.0
        %v1668 = vmax.f32 %v1652, 0.0
        %v1669 = vmax.f32 %v1653, 0.0
        %v1670 = vmax.f32 %v1654, 0.0
        %v1672 = vperm.slane %v362, 0
        %v1673 = vperm.slane %v362, 1
        %v1674 = vperm.slane %v362, 2
        %v1675 = vperm.slane %v362, 3
        %v1676 = vperm.slane %v362, 4
        %v1677 = vperm.slane %v362, 5
        %v1678 = vperm.slane %v362, 6
        %v1679 = vperm.slane %v362, 7
        %v1688 = vmul.f32 %v1655, %v1672
        %v1689 = vmul.f32 %v1656, %v1673
        %v1690 = vmul.f32 %v1657, %v1674
        %v1691 = vmul.f32 %v1658, %v1675
        %v1692 = vmul.f32 %v1659, %v1676
        %v1693 = vmul.f32 %v1660, %v1677
        %v1694 = vmul.f32 %v1661, %v1678
        %v1695 = vmul.f32 %v1662, %v1679
        %v1696 = vmul.f32 %v1663, %v1672
        %v1697 = vmul.f32 %v1664, %v1673
        %v1698 = vmul.f32 %v1665, %v1674
        %v1699 = vmul.f32 %v1666, %v1675
        %v1700 = vmul.f32 %v1667, %v1676
        %v1701 = vmul.f32 %v1668, %v1677
        %v1702 = vmul.f32 %v1669, %v1678
        %v1703 = vmul.f32 %v1670, %v1679
        %v1704 = vpack.c.bf16 %v1689, %v1688
        %v1705 = vpack.c.bf16 %v1691, %v1690
        %v1706 = vpack.c.bf16 %v1693, %v1692
        %v1707 = vpack.c.bf16 %v1695, %v1694
        %v1708 = vpack.c.bf16 %v1697, %v1696
        %v1709 = vpack.c.bf16 %v1699, %v1698
        %v1710 = vpack.c.bf16 %v1701, %v1700
        %v1711 = vpack.c.bf16 %v1703, %v1702
        %v1720 = vunpack.c.l.b16 %v1704
        %v1721 = vunpack.c.h.b16 %v1704
        %v1722 = vunpack.c.l.b16 %v1705
        %v1723 = vunpack.c.h.b16 %v1705
        %v1724 = vunpack.c.l.b16 %v1706
        %v1725 = vunpack.c.h.b16 %v1706
        %v1726 = vunpack.c.l.b16 %v1707
        %v1727 = vunpack.c.h.b16 %v1707
        %v1728 = vunpack.c.l.b16 %v1708
        %v1729 = vunpack.c.h.b16 %v1708
        %v1730 = vunpack.c.l.b16 %v1709
        %v1731 = vunpack.c.h.b16 %v1709
        %v1732 = vunpack.c.l.b16 %v1710
        %v1733 = vunpack.c.h.b16 %v1710
        %v1734 = vunpack.c.l.b16 %v1711
        %v1735 = vunpack.c.h.b16 %v1711
        %v1736 = vpack.c.b16 %v1728, %v1720
        %v1737 = vpack.c.b16 %v1729, %v1721
        %v1738 = vpack.c.b16 %v1730, %v1722
        %v1739 = vpack.c.b16 %v1731, %v1723
        %v1740 = vpack.c.b16 %v1732, %v1724
        %v1741 = vpack.c.b16 %v1733, %v1725
        %v1742 = vpack.c.b16 %v1734, %v1726
        %v1743 = vpack.c.b16 %v1735, %v1727
        %1745 = vrot.lane.b32.xlu0 0, 127
        %v1746 = vpop.permute.xlu0 %1745
        %1747 = vrot.lane.b32.xlu0 %v1736, 127
        %v1748 = vpop.permute.xlu0 %1747
        %1749 = vrot.lane.b32.xlu0 %v1737, 127
        %v1750 = vpop.permute.xlu0 %1749
        %1751 = vrot.lane.b32.xlu0 %v1738, 127
        %v1752 = vpop.permute.xlu0 %1751
        %1753 = vrot.lane.b32.xlu0 %v1739, 127
        %v1754 = vpop.permute.xlu0 %1753
        %1755 = vrot.lane.b32.xlu0 %v1740, 127
        %v1756 = vpop.permute.xlu0 %1755
        %1757 = vrot.lane.b32.xlu0 %v1741, 127
        %v1758 = vpop.permute.xlu0 %1757
        %1759 = vrot.lane.b32.xlu0 %v1742, 127
        %v1760 = vpop.permute.xlu0 %1759
        %1761 = vrot.lane.b32.xlu0 %v1743, 127
        %v1762 = vpop.permute.xlu0 %1761
        %vm1763 = vcmask 1039360
        %v1764 = vsel %vm1763, %v1746, %v1748
        %v1765 = vsel %vm1763, %v1748, %v1750
        %v1766 = vsel %vm1763, %v1750, %v1752
        %v1767 = vsel %vm1763, %v1752, %v1754
        %v1768 = vsel %vm1763, %v1754, %v1756
        %v1769 = vsel %vm1763, %v1756, %v1758
        %v1770 = vsel %vm1763, %v1758, %v1760
        %v1771 = vsel %vm1763, %v1760, %v1762
        %1772 = vrot.lane.b32.xlu0 0, 126
        %v1773 = vpop.permute.xlu0 %1772
        %1774 = vrot.lane.b32.xlu0 %v1736, 126
        %v1775 = vpop.permute.xlu0 %1774
        %1776 = vrot.lane.b32.xlu0 %v1737, 126
        %v1777 = vpop.permute.xlu0 %1776
        %1778 = vrot.lane.b32.xlu0 %v1738, 126
        %v1779 = vpop.permute.xlu0 %1778
        %1780 = vrot.lane.b32.xlu0 %v1739, 126
        %v1781 = vpop.permute.xlu0 %1780
        %1782 = vrot.lane.b32.xlu0 %v1740, 126
        %v1783 = vpop.permute.xlu0 %1782
        %1784 = vrot.lane.b32.xlu0 %v1741, 126
        %v1785 = vpop.permute.xlu0 %1784
        %1786 = vrot.lane.b32.xlu0 %v1742, 126
        %v1787 = vpop.permute.xlu0 %1786
        %1788 = vrot.lane.b32.xlu0 %v1743, 126
        %v1789 = vpop.permute.xlu0 %1788
        %vm1790 = vcmask 1031168
        %v1791 = vsel %vm1790, %v1773, %v1775
        %v1792 = vsel %vm1790, %v1775, %v1777
        %v1793 = vsel %vm1790, %v1777, %v1779
        %v1794 = vsel %vm1790, %v1779, %v1781
        %v1795 = vsel %vm1790, %v1781, %v1783
        %v1796 = vsel %vm1790, %v1783, %v1785
        %v1797 = vsel %vm1790, %v1785, %v1787
        %v1798 = vsel %vm1790, %v1787, %v1789
        %1799 = vrot.lane.b32.xlu0 0, 98
        %v1800 = vpop.permute.xlu0 %1799
        %1801 = vrot.lane.b32.xlu0 %v1736, 98
        %v1802 = vpop.permute.xlu0 %1801
        %1803 = vrot.lane.b32.xlu0 %v1737, 98
        %v1804 = vpop.permute.xlu0 %1803
        %1805 = vrot.lane.b32.xlu0 %v1738, 98
        %v1806 = vpop.permute.xlu0 %1805
        %1807 = vrot.lane.b32.xlu0 %v1739, 98
        %v1808 = vpop.permute.xlu0 %1807
        %1809 = vrot.lane.b32.xlu0 %v1740, 98
        %v1810 = vpop.permute.xlu0 %1809
        %1811 = vrot.lane.b32.xlu0 %v1741, 98
        %v1812 = vpop.permute.xlu0 %1811
        %1813 = vrot.lane.b32.xlu0 %v1742, 98
        %v1814 = vpop.permute.xlu0 %1813
        %1815 = vrot.lane.b32.xlu0 %v1743, 98
        %v1816 = vpop.permute.xlu0 %1815
        %vm1817 = vcmask 801792
        %v1818 = vsel %vm1817, %v1800, %v1802
        %v1819 = vsel %vm1817, %v1802, %v1804
        %v1820 = vsel %vm1817, %v1804, %v1806
        %v1821 = vsel %vm1817, %v1806, %v1808
        %v1822 = vsel %vm1817, %v1808, %v1810
        %v1823 = vsel %vm1817, %v1810, %v1812
        %v1824 = vsel %vm1817, %v1812, %v1814
        %v1825 = vsel %vm1817, %v1814, %v1816
        %1826 = vrot.lane.b32.xlu0 %v1736, 97
        %v1827 = vpop.permute.xlu0 %1826
        %1828 = vrot.lane.b32.xlu0 %v1737, 97
        %v1829 = vpop.permute.xlu0 %1828
        %1830 = vrot.lane.b32.xlu0 %v1738, 97
        %v1831 = vpop.permute.xlu0 %1830
        %1832 = vrot.lane.b32.xlu0 %v1739, 97
        %v1833 = vpop.permute.xlu0 %1832
        %1834 = vrot.lane.b32.xlu0 %v1740, 97
        %v1835 = vpop.permute.xlu0 %1834
        %1836 = vrot.lane.b32.xlu0 %v1741, 97
        %v1837 = vpop.permute.xlu0 %1836
        %1838 = vrot.lane.b32.xlu0 %v1742, 97
        %v1839 = vpop.permute.xlu0 %1838
        %1840 = vrot.lane.b32.xlu0 %v1743, 97
        %v1841 = vpop.permute.xlu0 %1840
        %vm1842 = vcmask 793600
        %v1843 = vsel %vm1842, %v1827, %v1829
        %v1844 = vsel %vm1842, %v1829, %v1831
        %v1845 = vsel %vm1842, %v1831, %v1833
        %v1846 = vsel %vm1842, %v1833, %v1835
        %v1847 = vsel %vm1842, %v1835, %v1837
        %v1848 = vsel %vm1842, %v1837, %v1839
        %v1849 = vsel %vm1842, %v1839, %v1841
        %1850 = vrot.lane.b32.xlu0 %v1736, 96
        %v1851 = vpop.permute.xlu0 %1850
        %1852 = vrot.lane.b32.xlu0 %v1737, 96
        %v1853 = vpop.permute.xlu0 %1852
        %1854 = vrot.lane.b32.xlu0 %v1738, 96
        %v1855 = vpop.permute.xlu0 %1854
        %1856 = vrot.lane.b32.xlu0 %v1739, 96
        %v1857 = vpop.permute.xlu0 %1856
        %1858 = vrot.lane.b32.xlu0 %v1740, 96
        %v1859 = vpop.permute.xlu0 %1858
        %1860 = vrot.lane.b32.xlu0 %v1741, 96
        %v1861 = vpop.permute.xlu0 %1860
        %1862 = vrot.lane.b32.xlu0 %v1742, 96
        %v1863 = vpop.permute.xlu0 %1862
        %1864 = vrot.lane.b32.xlu0 %v1743, 96
        %v1865 = vpop.permute.xlu0 %1864
        %1866 = vrot.lane.b32.xlu0 0, 96
        %v1867 = vpop.permute.xlu0 %1866
        %vm1868 = vcmask 785408
        %v1869 = vsel %vm1868, %v1851, %v1853
        %v1870 = vsel %vm1868, %v1853, %v1855
        %v1871 = vsel %vm1868, %v1855, %v1857
        %v1872 = vsel %vm1868, %v1857, %v1859
        %v1873 = vsel %vm1868, %v1859, %v1861
        %v1874 = vsel %vm1868, %v1861, %v1863
        %v1875 = vsel %vm1868, %v1863, %v1865
        %v1876 = vsel %vm1868, %v1865, %v1867
        %1877 = vrot.lane.b32.xlu0 %v1736, 68
        %v1878 = vpop.permute.xlu0 %1877
        %1879 = vrot.lane.b32.xlu0 %v1737, 68
        %v1880 = vpop.permute.xlu0 %1879
        %1881 = vrot.lane.b32.xlu0 %v1738, 68
        %v1882 = vpop.permute.xlu0 %1881
        %1883 = vrot.lane.b32.xlu0 %v1739, 68
        %v1884 = vpop.permute.xlu0 %1883
        %1885 = vrot.lane.b32.xlu0 %v1740, 68
        %v1886 = vpop.permute.xlu0 %1885
        %1887 = vrot.lane.b32.xlu0 %v1741, 68
        %v1888 = vpop.permute.xlu0 %1887
        %1889 = vrot.lane.b32.xlu0 %v1742, 68
        %v1890 = vpop.permute.xlu0 %1889
        %1891 = vrot.lane.b32.xlu0 %v1743, 68
        %v1892 = vpop.permute.xlu0 %1891
        %1893 = vrot.lane.b32.xlu0 0, 68
        %v1894 = vpop.permute.xlu0 %1893
        %vm1895 = vcmask 556032
        %v1896 = vsel %vm1895, %v1878, %v1880
        %v1897 = vsel %vm1895, %v1880, %v1882
        %v1898 = vsel %vm1895, %v1882, %v1884
        %v1899 = vsel %vm1895, %v1884, %v1886
        %v1900 = vsel %vm1895, %v1886, %v1888
        %v1901 = vsel %vm1895, %v1888, %v1890
        %v1902 = vsel %vm1895, %v1890, %v1892
        %v1903 = vsel %vm1895, %v1892, %v1894
        %1904 = vrot.lane.b32.xlu0 %v1736, 67
        %v1905 = vpop.permute.xlu0 %1904
        %1906 = vrot.lane.b32.xlu0 %v1737, 67
        %v1907 = vpop.permute.xlu0 %1906
        %1908 = vrot.lane.b32.xlu0 %v1738, 67
        %v1909 = vpop.permute.xlu0 %1908
        %1910 = vrot.lane.b32.xlu0 %v1739, 67
        %v1911 = vpop.permute.xlu0 %1910
        %1912 = vrot.lane.b32.xlu0 %v1740, 67
        %v1913 = vpop.permute.xlu0 %1912
        %1914 = vrot.lane.b32.xlu0 %v1741, 67
        %v1915 = vpop.permute.xlu0 %1914
        %1916 = vrot.lane.b32.xlu0 %v1742, 67
        %v1917 = vpop.permute.xlu0 %1916
        %1918 = vrot.lane.b32.xlu0 %v1743, 67
        %v1919 = vpop.permute.xlu0 %1918
        %1920 = vrot.lane.b32.xlu0 0, 67
        %v1921 = vpop.permute.xlu0 %1920
        %vm1922 = vcmask 547840
        %v1923 = vsel %vm1922, %v1905, %v1907
        %v1924 = vsel %vm1922, %v1907, %v1909
        %v1925 = vsel %vm1922, %v1909, %v1911
        %v1926 = vsel %vm1922, %v1911, %v1913
        %v1927 = vsel %vm1922, %v1913, %v1915
        %v1928 = vsel %vm1922, %v1915, %v1917
        %v1929 = vsel %vm1922, %v1917, %v1919
        %v1930 = vsel %vm1922, %v1919, %v1921
        %1931 = vrot.lane.b32.xlu0 %v1736, 66
        %v1932 = vpop.permute.xlu0 %1931
        %1933 = vrot.lane.b32.xlu0 %v1737, 66
        %v1934 = vpop.permute.xlu0 %1933
        %1935 = vrot.lane.b32.xlu0 %v1738, 66
        %v1936 = vpop.permute.xlu0 %1935
        %1937 = vrot.lane.b32.xlu0 %v1739, 66
        %v1938 = vpop.permute.xlu0 %1937
        %1939 = vrot.lane.b32.xlu0 %v1740, 66
        %v1940 = vpop.permute.xlu0 %1939
        %1941 = vrot.lane.b32.xlu0 %v1741, 66
        %v1942 = vpop.permute.xlu0 %1941
        %1943 = vrot.lane.b32.xlu0 %v1742, 66
        %v1944 = vpop.permute.xlu0 %1943
        %1945 = vrot.lane.b32.xlu0 %v1743, 66
        %v1946 = vpop.permute.xlu0 %1945
        %1947 = vrot.lane.b32.xlu0 0, 66
        %v1948 = vpop.permute.xlu0 %1947
        %vm1949 = vcmask 539648
        %v1950 = vsel %vm1949, %v1932, %v1934
        %v1951 = vsel %vm1949, %v1934, %v1936
        %v1952 = vsel %vm1949, %v1936, %v1938
        %v1953 = vsel %vm1949, %v1938, %v1940
        %v1954 = vsel %vm1949, %v1940, %v1942
        %v1955 = vsel %vm1949, %v1942, %v1944
        %v1956 = vsel %vm1949, %v1944, %v1946
        %v1957 = vsel %vm1949, %v1946, %v1948
        %1959 = vset.pattern.permute.xlu0 0
        %1960 = vperm.xlu0 %1959, %v370
        %v1961 = vpop.permute.xlu0 %1960
        %1964 = vset.pattern.permute.xlu0 0
        %1965 = vperm.xlu0 %1964, %v371
        %v1966 = vpop.permute.xlu0 %1965
        %1969 = vset.pattern.permute.xlu0 0
        %1970 = vperm.xlu0 %1969, %v372
        %v1971 = vpop.permute.xlu0 %1970
        %v1976 = vunpack.c.l.b16 %v367
        %v1977 = vunpack.c.h.b16 %v367
        %v1978 = vunpack.c.l.b16 %v368
        %v1979 = vunpack.c.h.b16 %v368
        %v1980 = vunpack.c.l.b16 %v369
        %v1981 = vunpack.c.h.b16 %v369
        %v1982 = vpack.c.b16 %v1978, %v1976
        %v1983 = vpack.c.b16 %v1979, %v1977
        %v1984 = vpack.c.b16 %v1980, %v1980
        %v1985 = vpack.c.b16 %v1981, %v1981
        %1988 = vrot.lane.b32.xlu0 0, 31
        %v1989 = vpop.permute.xlu0 %1988
        %1990 = vrot.lane.b32.xlu0 %v1736, 31
        %v1991 = vpop.permute.xlu0 %1990
        %1992 = vrot.lane.b32.xlu0 %v1737, 31
        %v1993 = vpop.permute.xlu0 %1992
        %1994 = vrot.lane.b32.xlu0 %v1738, 31
        %v1995 = vpop.permute.xlu0 %1994
        %1996 = vrot.lane.b32.xlu0 %v1739, 31
        %v1997 = vpop.permute.xlu0 %1996
        %1998 = vrot.lane.b32.xlu0 %v1740, 31
        %v1999 = vpop.permute.xlu0 %1998
        %2000 = vrot.lane.b32.xlu0 %v1741, 31
        %v2001 = vpop.permute.xlu0 %2000
        %2002 = vrot.lane.b32.xlu0 %v1742, 31
        %v2003 = vpop.permute.xlu0 %2002
        %2004 = vrot.lane.b32.xlu0 %v1743, 31
        %v2005 = vpop.permute.xlu0 %2004
        %2006 = vrot.lane.b32.xlu0 %v1764, 31
        %v2007 = vpop.permute.xlu0 %2006
        %2008 = vrot.lane.b32.xlu0 %v1765, 31
        %v2009 = vpop.permute.xlu0 %2008
        %2010 = vrot.lane.b32.xlu0 %v1766, 31
        %v2011 = vpop.permute.xlu0 %2010
        %2012 = vrot.lane.b32.xlu0 %v1767, 31
        %v2013 = vpop.permute.xlu0 %2012
        %2014 = vrot.lane.b32.xlu0 %v1768, 31
        %v2015 = vpop.permute.xlu0 %2014
        %2016 = vrot.lane.b32.xlu0 %v1769, 31
        %v2017 = vpop.permute.xlu0 %2016
        %2018 = vrot.lane.b32.xlu0 %v1770, 31
        %v2019 = vpop.permute.xlu0 %2018
        %2020 = vrot.lane.b32.xlu0 %v1771, 31
        %v2021 = vpop.permute.xlu0 %2020
        %2022 = vrot.lane.b32.xlu0 %v1762, 31
        %v2023 = vpop.permute.xlu0 %2022
        %2024 = vrot.lane.b32.xlu0 %v1791, 31
        %v2025 = vpop.permute.xlu0 %2024
        %2026 = vrot.lane.b32.xlu0 %v1792, 31
        %v2027 = vpop.permute.xlu0 %2026
        %2028 = vrot.lane.b32.xlu0 %v1793, 31
        %v2029 = vpop.permute.xlu0 %2028
        %2030 = vrot.lane.b32.xlu0 %v1794, 31
        %v2031 = vpop.permute.xlu0 %2030
        %2032 = vrot.lane.b32.xlu0 %v1795, 31
        %v2033 = vpop.permute.xlu0 %2032
        %2034 = vrot.lane.b32.xlu0 %v1796, 31
        %v2035 = vpop.permute.xlu0 %2034
        %2036 = vrot.lane.b32.xlu0 %v1797, 31
        %v2037 = vpop.permute.xlu0 %2036
        %2038 = vrot.lane.b32.xlu0 %v1798, 31
        %v2039 = vpop.permute.xlu0 %2038
        %2040 = vrot.lane.b32.xlu0 %v1789, 31
        %v2041 = vpop.permute.xlu0 %2040
        %2042 = vrot.lane.b32.xlu0 %v1818, 31
        %v2043 = vpop.permute.xlu0 %2042
        %2044 = vrot.lane.b32.xlu0 %v1819, 31
        %v2045 = vpop.permute.xlu0 %2044
        %2046 = vrot.lane.b32.xlu0 %v1820, 31
        %v2047 = vpop.permute.xlu0 %2046
        %2048 = vrot.lane.b32.xlu0 %v1821, 31
        %v2049 = vpop.permute.xlu0 %2048
        %2050 = vrot.lane.b32.xlu0 %v1822, 31
        %v2051 = vpop.permute.xlu0 %2050
        %2052 = vrot.lane.b32.xlu0 %v1823, 31
        %v2053 = vpop.permute.xlu0 %2052
        %2054 = vrot.lane.b32.xlu0 %v1824, 31
        %v2055 = vpop.permute.xlu0 %2054
        %2056 = vrot.lane.b32.xlu0 %v1825, 31
        %v2057 = vpop.permute.xlu0 %2056
        %2058 = vrot.lane.b32.xlu0 %v1816, 31
        %v2059 = vpop.permute.xlu0 %2058
        %2060 = vrot.lane.b32.xlu0 %v1827, 31
        %v2061 = vpop.permute.xlu0 %2060
        %2062 = vrot.lane.b32.xlu0 %v1843, 31
        %v2063 = vpop.permute.xlu0 %2062
        %2064 = vrot.lane.b32.xlu0 %v1844, 31
        %v2065 = vpop.permute.xlu0 %2064
        %2066 = vrot.lane.b32.xlu0 %v1845, 31
        %v2067 = vpop.permute.xlu0 %2066
        %2068 = vrot.lane.b32.xlu0 %v1846, 31
        %v2069 = vpop.permute.xlu0 %2068
        %2070 = vrot.lane.b32.xlu0 %v1847, 31
        %v2071 = vpop.permute.xlu0 %2070
        %2072 = vrot.lane.b32.xlu0 %v1848, 31
        %v2073 = vpop.permute.xlu0 %2072
        %2074 = vrot.lane.b32.xlu0 %v1849, 31
        %v2075 = vpop.permute.xlu0 %2074
        %2076 = vrot.lane.b32.xlu0 %v1841, 31
        %v2077 = vpop.permute.xlu0 %2076
        %2078 = vrot.lane.b32.xlu0 %v1851, 31
        %v2079 = vpop.permute.xlu0 %2078
        %2080 = vrot.lane.b32.xlu0 %v1869, 31
        %v2081 = vpop.permute.xlu0 %2080
        %2082 = vrot.lane.b32.xlu0 %v1870, 31
        %v2083 = vpop.permute.xlu0 %2082
        %2084 = vrot.lane.b32.xlu0 %v1871, 31
        %v2085 = vpop.permute.xlu0 %2084
        %2086 = vrot.lane.b32.xlu0 %v1872, 31
        %v2087 = vpop.permute.xlu0 %2086
        %2088 = vrot.lane.b32.xlu0 %v1873, 31
        %v2089 = vpop.permute.xlu0 %2088
        %2090 = vrot.lane.b32.xlu0 %v1874, 31
        %v2091 = vpop.permute.xlu0 %2090
        %2092 = vrot.lane.b32.xlu0 %v1875, 31
        %v2093 = vpop.permute.xlu0 %2092
        %2094 = vrot.lane.b32.xlu0 %v1876, 31
        %v2095 = vpop.permute.xlu0 %2094
        %2096 = vrot.lane.b32.xlu0 %v1878, 31
        %v2097 = vpop.permute.xlu0 %2096
        %2098 = vrot.lane.b32.xlu0 %v1896, 31
        %v2099 = vpop.permute.xlu0 %2098
        %2100 = vrot.lane.b32.xlu0 %v1897, 31
        %v2101 = vpop.permute.xlu0 %2100
        %2102 = vrot.lane.b32.xlu0 %v1898, 31
        %v2103 = vpop.permute.xlu0 %2102
        %2104 = vrot.lane.b32.xlu0 %v1899, 31
        %v2105 = vpop.permute.xlu0 %2104
        %2106 = vrot.lane.b32.xlu0 %v1900, 31
        %v2107 = vpop.permute.xlu0 %2106
        %2108 = vrot.lane.b32.xlu0 %v1901, 31
        %v2109 = vpop.permute.xlu0 %2108
        %2110 = vrot.lane.b32.xlu0 %v1902, 31
        %v2111 = vpop.permute.xlu0 %2110
        %2112 = vrot.lane.b32.xlu0 %v1903, 31
        %v2113 = vpop.permute.xlu0 %2112
        %2114 = vrot.lane.b32.xlu0 %v1905, 31
        %v2115 = vpop.permute.xlu0 %2114
        %2116 = vrot.lane.b32.xlu0 %v1923, 31
        %v2117 = vpop.permute.xlu0 %2116
        %2118 = vrot.lane.b32.xlu0 %v1924, 31
        %v2119 = vpop.permute.xlu0 %2118
        %2120 = vrot.lane.b32.xlu0 %v1925, 31
        %v2121 = vpop.permute.xlu0 %2120
        %2122 = vrot.lane.b32.xlu0 %v1926, 31
        %v2123 = vpop.permute.xlu0 %2122
        %2124 = vrot.lane.b32.xlu0 %v1927, 31
        %v2125 = vpop.permute.xlu0 %2124
        %2126 = vrot.lane.b32.xlu0 %v1928, 31
        %v2127 = vpop.permute.xlu0 %2126
        %2128 = vrot.lane.b32.xlu0 %v1929, 31
        %v2129 = vpop.permute.xlu0 %2128
        %2130 = vrot.lane.b32.xlu0 %v1930, 31
        %v2131 = vpop.permute.xlu0 %2130
        %2132 = vrot.lane.b32.xlu0 %v1932, 31
        %v2133 = vpop.permute.xlu0 %2132
        %2134 = vrot.lane.b32.xlu0 %v1950, 31
        %v2135 = vpop.permute.xlu0 %2134
        %2136 = vrot.lane.b32.xlu0 %v1951, 31
        %v2137 = vpop.permute.xlu0 %2136
        %2138 = vrot.lane.b32.xlu0 %v1952, 31
        %v2139 = vpop.permute.xlu0 %2138
        %2140 = vrot.lane.b32.xlu0 %v1953, 31
        %v2141 = vpop.permute.xlu0 %2140
        %2142 = vrot.lane.b32.xlu0 %v1954, 31
        %v2143 = vpop.permute.xlu0 %2142
        %2144 = vrot.lane.b32.xlu0 %v1955, 31
        %v2145 = vpop.permute.xlu0 %2144
        %2146 = vrot.lane.b32.xlu0 %v1956, 31
        %v2147 = vpop.permute.xlu0 %2146
        %2148 = vrot.lane.b32.xlu0 %v1957, 31
        %v2149 = vpop.permute.xlu0 %2148
        %vm2150 = vcmask 252928
        %v2151 = vsel %vm2150, %v1989, %v1991
        %v2152 = vsel %vm2150, %v1991, %v1993
        %v2153 = vsel %vm2150, %v1993, %v1995
        %v2154 = vsel %vm2150, %v1995, %v1997
        %v2155 = vsel %vm2150, %v1997, %v1999
        %v2156 = vsel %vm2150, %v1999, %v2001
        %v2157 = vsel %vm2150, %v2001, %v2003
        %v2158 = vsel %vm2150, %v2003, %v2005
        %v2159 = vsel %vm2150, %v2007, %v2009
        %v2160 = vsel %vm2150, %v2009, %v2011
        %v2161 = vsel %vm2150, %v2011, %v2013
        %v2162 = vsel %vm2150, %v2013, %v2015
        %v2163 = vsel %vm2150, %v2015, %v2017
        %v2164 = vsel %vm2150, %v2017, %v2019
        %v2165 = vsel %vm2150, %v2019, %v2021
        %v2166 = vsel %vm2150, %v2021, %v2023
        %v2167 = vsel %vm2150, %v2025, %v2027
        %v2168 = vsel %vm2150, %v2027, %v2029
        %v2169 = vsel %vm2150, %v2029, %v2031
        %v2170 = vsel %vm2150, %v2031, %v2033
        %v2171 = vsel %vm2150, %v2033, %v2035
        %v2172 = vsel %vm2150, %v2035, %v2037
        %v2173 = vsel %vm2150, %v2037, %v2039
        %v2174 = vsel %vm2150, %v2039, %v2041
        %v2175 = vsel %vm2150, %v2043, %v2045
        %v2176 = vsel %vm2150, %v2045, %v2047
        %v2177 = vsel %vm2150, %v2047, %v2049
        %v2178 = vsel %vm2150, %v2049, %v2051
        %v2179 = vsel %vm2150, %v2051, %v2053
        %v2180 = vsel %vm2150, %v2053, %v2055
        %v2181 = vsel %vm2150, %v2055, %v2057
        %v2182 = vsel %vm2150, %v2057, %v2059
        %v2183 = vsel %vm2150, %v2061, %v2063
        %v2184 = vsel %vm2150, %v2063, %v2065
        %v2185 = vsel %vm2150, %v2065, %v2067
        %v2186 = vsel %vm2150, %v2067, %v2069
        %v2187 = vsel %vm2150, %v2069, %v2071
        %v2188 = vsel %vm2150, %v2071, %v2073
        %v2189 = vsel %vm2150, %v2073, %v2075
        %v2190 = vsel %vm2150, %v2075, %v2077
        %v2191 = vsel %vm2150, %v2079, %v2081
        %v2192 = vsel %vm2150, %v2081, %v2083
        %v2193 = vsel %vm2150, %v2083, %v2085
        %v2194 = vsel %vm2150, %v2085, %v2087
        %v2195 = vsel %vm2150, %v2087, %v2089
        %v2196 = vsel %vm2150, %v2089, %v2091
        %v2197 = vsel %vm2150, %v2091, %v2093
        %v2198 = vsel %vm2150, %v2093, %v2095
        %v2199 = vsel %vm2150, %v2097, %v2099
        %v2200 = vsel %vm2150, %v2099, %v2101
        %v2201 = vsel %vm2150, %v2101, %v2103
        %v2202 = vsel %vm2150, %v2103, %v2105
        %v2203 = vsel %vm2150, %v2105, %v2107
        %v2204 = vsel %vm2150, %v2107, %v2109
        %v2205 = vsel %vm2150, %v2109, %v2111
        %v2206 = vsel %vm2150, %v2111, %v2113
        %v2207 = vsel %vm2150, %v2115, %v2117
        %v2208 = vsel %vm2150, %v2117, %v2119
        %v2209 = vsel %vm2150, %v2119, %v2121
        %v2210 = vsel %vm2150, %v2121, %v2123
        %v2211 = vsel %vm2150, %v2123, %v2125
        %v2212 = vsel %vm2150, %v2125, %v2127
        %v2213 = vsel %vm2150, %v2127, %v2129
        %v2214 = vsel %vm2150, %v2129, %v2131
        %v2215 = vsel %vm2150, %v2133, %v2135
        %v2216 = vsel %vm2150, %v2135, %v2137
        %v2217 = vsel %vm2150, %v2137, %v2139
        %v2218 = vsel %vm2150, %v2139, %v2141
        %v2219 = vsel %vm2150, %v2141, %v2143
        %v2220 = vsel %vm2150, %v2143, %v2145
        %v2221 = vsel %vm2150, %v2145, %v2147
        %v2222 = vsel %vm2150, %v2147, %v2149
        %vm2295 = vcmask 130048
        %v2297 = vsel %vm2295, %v1983, 0
        %v2300 = vsel %vm2295, %v1985, 0
        %2302 = vmatpush.bf16.msra.mxu0 %v2207
        %2303 = vmatpush.bf16.msra.mxu0 %v2199
        %2304 = vmatpush.bf16.msra.mxu0 %v2191
        %2305 = vmatpush.bf16.msra.mxu0 %v2183
        %2306 = vmatpush.bf16.msra.mxu0 %v2175
        %2307 = vmatpush.bf16.msra.mxu0 %v2167
        %2308 = vmatpush.bf16.msra.mxu0 %v2159
        %2309 = vmatpush.bf16.msra.mxu0 %v2151
        %2310 = vmatmul.bf16.gmra.mxu0 %v1982
        %v2311 = vpop.f32.mrf.mxu0
        %v2312 = vadd.f32 %v1961, %v2311
        %v2313 = vpop.f32.mrf.mxu0
        %v2314 = vadd.f32 %v1966, %v2313
        %2315 = vmatmul.bf16.gmra.mxu0 %v1984
        %v2316 = vpop.f32.mrf.mxu0
        %v2317 = vadd.f32 %v1971, %v2316
        %v2318 = vpop.f32.mrf.mxu0
        %2319 = vdwg.mxu0
        %2320 = vmatpush.bf16.msra.mxu0 0
        %2321 = vmatpush.bf16.msra.mxu0 0
        %2322 = vmatpush.bf16.msra.mxu0 0
        %2323 = vmatpush.bf16.msra.mxu0 0
        %2324 = vmatpush.bf16.msra.mxu0 0
        %2325 = vmatpush.bf16.msra.mxu0 0
        %2326 = vmatpush.bf16.msra.mxu0 0
        %2327 = vmatpush.bf16.msra.mxu0 %v2215
        %2328 = vmatmul.bf16.gmra.mxu0 %v2297
        %v2329 = vpop.f32.mrf.mxu0
        %v2330 = vadd.f32 %v2312, %v2329
        %v2331 = vpop.f32.mrf.mxu0
        %v2332 = vadd.f32 %v2314, %v2331
        %2333 = vmatmul.bf16.gmra.mxu0 %v2300
        %v2334 = vpop.f32.mrf.mxu0
        %v2335 = vadd.f32 %v2317, %v2334
        %v2336 = vpop.f32.mrf.mxu0
        %2337 = vdwg.mxu0
        %2338 = vmatpush.bf16.msra.mxu0 %v2208
        %2339 = vmatpush.bf16.msra.mxu0 %v2200
        %2340 = vmatpush.bf16.msra.mxu0 %v2192
        %2341 = vmatpush.bf16.msra.mxu0 %v2184
        %2342 = vmatpush.bf16.msra.mxu0 %v2176
        %2343 = vmatpush.bf16.msra.mxu0 %v2168
        %2344 = vmatpush.bf16.msra.mxu0 %v2160
        %2345 = vmatpush.bf16.msra.mxu0 %v2152
        %2346 = vmatmul.bf16.gmra.mxu0 %v1982
        %v2347 = vpop.f32.mrf.mxu0
        %v2348 = vadd.f32 %v1961, %v2347
        %v2349 = vpop.f32.mrf.mxu0
        %v2350 = vadd.f32 %v1966, %v2349
        %2351 = vmatmul.bf16.gmra.mxu0 %v1984
        %v2352 = vpop.f32.mrf.mxu0
        %v2353 = vadd.f32 %v1971, %v2352
        %v2354 = vpop.f32.mrf.mxu0
        %2355 = vdwg.mxu0
        %2356 = vmatpush.bf16.msra.mxu0 0
        %2357 = vmatpush.bf16.msra.mxu0 0
        %2358 = vmatpush.bf16.msra.mxu0 0
        %2359 = vmatpush.bf16.msra.mxu0 0
        %2360 = vmatpush.bf16.msra.mxu0 0
        %2361 = vmatpush.bf16.msra.mxu0 0
        %2362 = vmatpush.bf16.msra.mxu0 0
        %2363 = vmatpush.bf16.msra.mxu0 %v2216
        %2364 = vmatmul.bf16.gmra.mxu0 %v2297
        %v2365 = vpop.f32.mrf.mxu0
        %v2366 = vadd.f32 %v2348, %v2365
        %v2367 = vpop.f32.mrf.mxu0
        %v2368 = vadd.f32 %v2350, %v2367
        %2369 = vmatmul.bf16.gmra.mxu0 %v2300
        %v2370 = vpop.f32.mrf.mxu0
        %v2371 = vadd.f32 %v2353, %v2370
        %v2372 = vpop.f32.mrf.mxu0
        %2373 = vdwg.mxu0
        %2374 = vmatpush.bf16.msra.mxu0 %v2209
        %2375 = vmatpush.bf16.msra.mxu0 %v2201
        %2376 = vmatpush.bf16.msra.mxu0 %v2193
        %2377 = vmatpush.bf16.msra.mxu0 %v2185
        %2378 = vmatpush.bf16.msra.mxu0 %v2177
        %2379 = vmatpush.bf16.msra.mxu0 %v2169
        %2380 = vmatpush.bf16.msra.mxu0 %v2161
        %2381 = vmatpush.bf16.msra.mxu0 %v2153
        %2382 = vmatmul.bf16.gmra.mxu0 %v1982
        %v2383 = vpop.f32.mrf.mxu0
        %v2384 = vadd.f32 %v1961, %v2383
        %v2385 = vpop.f32.mrf.mxu0
        %v2386 = vadd.f32 %v1966, %v2385
        %2387 = vmatmul.bf16.gmra.mxu0 %v1984
        %v2388 = vpop.f32.mrf.mxu0
        %v2389 = vadd.f32 %v1971, %v2388
        %v2390 = vpop.f32.mrf.mxu0
        %2391 = vdwg.mxu0
        %2392 = vmatpush.bf16.msra.mxu0 0
        %2393 = vmatpush.bf16.msra.mxu0 0
        %2394 = vmatpush.bf16.msra.mxu0 0
        %2395 = vmatpush.bf16.msra.mxu0 0
        %2396 = vmatpush.bf16.msra.mxu0 0
        %2397 = vmatpush.bf16.msra.mxu0 0
        %2398 = vmatpush.bf16.msra.mxu0 0
        %2399 = vmatpush.bf16.msra.mxu0 %v2217
        %2400 = vmatmul.bf16.gmra.mxu0 %v2297
        %v2401 = vpop.f32.mrf.mxu0
        %v2402 = vadd.f32 %v2384, %v2401
        %v2403 = vpop.f32.mrf.mxu0
        %v2404 = vadd.f32 %v2386, %v2403
        %2405 = vmatmul.bf16.gmra.mxu0 %v2300
        %v2406 = vpop.f32.mrf.mxu0
        %v2407 = vadd.f32 %v2389, %v2406
        %v2408 = vpop.f32.mrf.mxu0
        %2409 = vdwg.mxu0
        %2410 = vmatpush.bf16.msra.mxu0 %v2210
        %2411 = vmatpush.bf16.msra.mxu0 %v2202
        %2412 = vmatpush.bf16.msra.mxu0 %v2194
        %2413 = vmatpush.bf16.msra.mxu0 %v2186
        %2414 = vmatpush.bf16.msra.mxu0 %v2178
        %2415 = vmatpush.bf16.msra.mxu0 %v2170
        %2416 = vmatpush.bf16.msra.mxu0 %v2162
        %2417 = vmatpush.bf16.msra.mxu0 %v2154
        %2418 = vmatmul.bf16.gmra.mxu0 %v1982
        %v2419 = vpop.f32.mrf.mxu0
        %v2420 = vadd.f32 %v1961, %v2419
        %v2421 = vpop.f32.mrf.mxu0
        %v2422 = vadd.f32 %v1966, %v2421
        %2423 = vmatmul.bf16.gmra.mxu0 %v1984
        %v2424 = vpop.f32.mrf.mxu0
        %v2425 = vadd.f32 %v1971, %v2424
        %v2426 = vpop.f32.mrf.mxu0
        %2427 = vdwg.mxu0
        %2428 = vmatpush.bf16.msra.mxu0 0
        %2429 = vmatpush.bf16.msra.mxu0 0
        %2430 = vmatpush.bf16.msra.mxu0 0
        %2431 = vmatpush.bf16.msra.mxu0 0
        %2432 = vmatpush.bf16.msra.mxu0 0
        %2433 = vmatpush.bf16.msra.mxu0 0
        %2434 = vmatpush.bf16.msra.mxu0 0
        %2435 = vmatpush.bf16.msra.mxu0 %v2218
        %2436 = vmatmul.bf16.gmra.mxu0 %v2297
        %v2437 = vpop.f32.mrf.mxu0
        %v2438 = vadd.f32 %v2420, %v2437
        %v2439 = vpop.f32.mrf.mxu0
        %v2440 = vadd.f32 %v2422, %v2439
        %2441 = vmatmul.bf16.gmra.mxu0 %v2300
        %v2442 = vpop.f32.mrf.mxu0
        %v2443 = vadd.f32 %v2425, %v2442
        %v2444 = vpop.f32.mrf.mxu0
        %2445 = vdwg.mxu0
        %2446 = vmatpush.bf16.msra.mxu0 %v2211
        %2447 = vmatpush.bf16.msra.mxu0 %v2203
        %2448 = vmatpush.bf16.msra.mxu0 %v2195
        %2449 = vmatpush.bf16.msra.mxu0 %v2187
        %2450 = vmatpush.bf16.msra.mxu0 %v2179
        %2451 = vmatpush.bf16.msra.mxu0 %v2171
        %2452 = vmatpush.bf16.msra.mxu0 %v2163
        %2453 = vmatpush.bf16.msra.mxu0 %v2155
        %2454 = vmatmul.bf16.gmra.mxu0 %v1982
        %v2455 = vpop.f32.mrf.mxu0
        %v2456 = vadd.f32 %v1961, %v2455
        %v2457 = vpop.f32.mrf.mxu0
        %v2458 = vadd.f32 %v1966, %v2457
        %2459 = vmatmul.bf16.gmra.mxu0 %v1984
        %v2460 = vpop.f32.mrf.mxu0
        %v2461 = vadd.f32 %v1971, %v2460
        %v2462 = vpop.f32.mrf.mxu0
        %2463 = vdwg.mxu0
        %2464 = vmatpush.bf16.msra.mxu0 0
        %2465 = vmatpush.bf16.msra.mxu0 0
        %2466 = vmatpush.bf16.msra.mxu0 0
        %2467 = vmatpush.bf16.msra.mxu0 0
        %2468 = vmatpush.bf16.msra.mxu0 0
        %2469 = vmatpush.bf16.msra.mxu0 0
        %2470 = vmatpush.bf16.msra.mxu0 0
        %2471 = vmatpush.bf16.msra.mxu0 %v2219
        %2472 = vmatmul.bf16.gmra.mxu0 %v2297
        %v2473 = vpop.f32.mrf.mxu0
        %v2474 = vadd.f32 %v2456, %v2473
        %v2475 = vpop.f32.mrf.mxu0
        %v2476 = vadd.f32 %v2458, %v2475
        %2477 = vmatmul.bf16.gmra.mxu0 %v2300
        %v2478 = vpop.f32.mrf.mxu0
        %v2479 = vadd.f32 %v2461, %v2478
        %v2480 = vpop.f32.mrf.mxu0
        %2481 = vdwg.mxu0
        %2482 = vmatpush.bf16.msra.mxu0 %v2212
        %2483 = vmatpush.bf16.msra.mxu0 %v2204
        %2484 = vmatpush.bf16.msra.mxu0 %v2196
        %2485 = vmatpush.bf16.msra.mxu0 %v2188
        %2486 = vmatpush.bf16.msra.mxu0 %v2180
        %2487 = vmatpush.bf16.msra.mxu0 %v2172
        %2488 = vmatpush.bf16.msra.mxu0 %v2164
        %2489 = vmatpush.bf16.msra.mxu0 %v2156
        %2490 = vmatmul.bf16.gmra.mxu0 %v1982
        %v2491 = vpop.f32.mrf.mxu0
        %v2492 = vadd.f32 %v1961, %v2491
        %v2493 = vpop.f32.mrf.mxu0
        %v2494 = vadd.f32 %v1966, %v2493
        %2495 = vmatmul.bf16.gmra.mxu0 %v1984
        %v2496 = vpop.f32.mrf.mxu0
        %v2497 = vadd.f32 %v1971, %v2496
        %v2498 = vpop.f32.mrf.mxu0
        %2499 = vdwg.mxu0
        %2500 = vmatpush.bf16.msra.mxu0 0
        %2501 = vmatpush.bf16.msra.mxu0 0
        %2502 = vmatpush.bf16.msra.mxu0 0
        %2503 = vmatpush.bf16.msra.mxu0 0
        %2504 = vmatpush.bf16.msra.mxu0 0
        %2505 = vmatpush.bf16.msra.mxu0 0
        %2506 = vmatpush.bf16.msra.mxu0 0
        %2507 = vmatpush.bf16.msra.mxu0 %v2220
        %2508 = vmatmul.bf16.gmra.mxu0 %v2297
        %v2509 = vpop.f32.mrf.mxu0
        %v2510 = vadd.f32 %v2492, %v2509
        %v2511 = vpop.f32.mrf.mxu0
        %v2512 = vadd.f32 %v2494, %v2511
        %2513 = vmatmul.bf16.gmra.mxu0 %v2300
        %v2514 = vpop.f32.mrf.mxu0
        %v2515 = vadd.f32 %v2497, %v2514
        %v2516 = vpop.f32.mrf.mxu0
        %2517 = vdwg.mxu0
        %2518 = vmatpush.bf16.msra.mxu0 %v2213
        %2519 = vmatpush.bf16.msra.mxu0 %v2205
        %2520 = vmatpush.bf16.msra.mxu0 %v2197
        %2521 = vmatpush.bf16.msra.mxu0 %v2189
        %2522 = vmatpush.bf16.msra.mxu0 %v2181
        %2523 = vmatpush.bf16.msra.mxu0 %v2173
        %2524 = vmatpush.bf16.msra.mxu0 %v2165
        %2525 = vmatpush.bf16.msra.mxu0 %v2157
        %2526 = vmatmul.bf16.gmra.mxu0 %v1982
        %v2527 = vpop.f32.mrf.mxu0
        %v2528 = vadd.f32 %v1961, %v2527
        %v2529 = vpop.f32.mrf.mxu0
        %v2530 = vadd.f32 %v1966, %v2529
        %2531 = vmatmul.bf16.gmra.mxu0 %v1984
        %v2532 = vpop.f32.mrf.mxu0
        %v2533 = vadd.f32 %v1971, %v2532
        %v2534 = vpop.f32.mrf.mxu0
        %2535 = vdwg.mxu0
        %2536 = vmatpush.bf16.msra.mxu0 0
        %2537 = vmatpush.bf16.msra.mxu0 0
        %2538 = vmatpush.bf16.msra.mxu0 0
        %2539 = vmatpush.bf16.msra.mxu0 0
        %2540 = vmatpush.bf16.msra.mxu0 0
        %2541 = vmatpush.bf16.msra.mxu0 0
        %2542 = vmatpush.bf16.msra.mxu0 0
        %2543 = vmatpush.bf16.msra.mxu0 %v2221
        %2544 = vmatmul.bf16.gmra.mxu0 %v2297
        %v2545 = vpop.f32.mrf.mxu0
        %v2546 = vadd.f32 %v2528, %v2545
        %v2547 = vpop.f32.mrf.mxu0
        %v2548 = vadd.f32 %v2530, %v2547
        %2549 = vmatmul.bf16.gmra.mxu0 %v2300
        %v2550 = vpop.f32.mrf.mxu0
        %v2551 = vadd.f32 %v2533, %v2550
        %v2552 = vpop.f32.mrf.mxu0
        %2553 = vdwg.mxu0
        %2554 = vmatpush.bf16.msra.mxu0 %v2214
        %2555 = vmatpush.bf16.msra.mxu0 %v2206
        %2556 = vmatpush.bf16.msra.mxu0 %v2198
        %2557 = vmatpush.bf16.msra.mxu0 %v2190
        %2558 = vmatpush.bf16.msra.mxu0 %v2182
        %2559 = vmatpush.bf16.msra.mxu0 %v2174
        %2560 = vmatpush.bf16.msra.mxu0 %v2166
        %2561 = vmatpush.bf16.msra.mxu0 %v2158
        %2562 = vmatmul.bf16.gmra.mxu0 %v1982
        %v2563 = vpop.f32.mrf.mxu0
        %v2564 = vadd.f32 %v1961, %v2563
        %v2565 = vpop.f32.mrf.mxu0
        %v2566 = vadd.f32 %v1966, %v2565
        %2567 = vmatmul.bf16.gmra.mxu0 %v1984
        %v2568 = vpop.f32.mrf.mxu0
        %v2569 = vadd.f32 %v1971, %v2568
        %v2570 = vpop.f32.mrf.mxu0
        %2571 = vdwg.mxu0
        %2572 = vmatpush.bf16.msra.mxu0 0
        %2573 = vmatpush.bf16.msra.mxu0 0
        %2574 = vmatpush.bf16.msra.mxu0 0
        %2575 = vmatpush.bf16.msra.mxu0 0
        %2576 = vmatpush.bf16.msra.mxu0 0
        %2577 = vmatpush.bf16.msra.mxu0 0
        %2578 = vmatpush.bf16.msra.mxu0 0
        %2579 = vmatpush.bf16.msra.mxu0 %v2222
        %2580 = vmatmul.bf16.gmra.mxu0 %v2297
        %v2581 = vpop.f32.mrf.mxu0
        %v2582 = vadd.f32 %v2564, %v2581
        %v2583 = vpop.f32.mrf.mxu0
        %v2584 = vadd.f32 %v2566, %v2583
        %2585 = vmatmul.bf16.gmra.mxu0 %v2300
        %v2586 = vpop.f32.mrf.mxu0
        %v2587 = vadd.f32 %v2569, %v2586
        %v2588 = vpop.f32.mrf.mxu0
        %2589 = vdwg.mxu0
        %v2590 = vmax.f32 %v2330, 0.0
        %v2591 = vmax.f32 %v2366, 0.0
        %v2592 = vmax.f32 %v2402, 0.0
        %v2593 = vmax.f32 %v2438, 0.0
        %v2594 = vmax.f32 %v2474, 0.0
        %v2595 = vmax.f32 %v2510, 0.0
        %v2596 = vmax.f32 %v2546, 0.0
        %v2597 = vmax.f32 %v2582, 0.0
        %v2598 = vmax.f32 %v2332, 0.0
        %v2599 = vmax.f32 %v2368, 0.0
        %v2600 = vmax.f32 %v2404, 0.0
        %v2601 = vmax.f32 %v2440, 0.0
        %v2602 = vmax.f32 %v2476, 0.0
        %v2603 = vmax.f32 %v2512, 0.0
        %v2604 = vmax.f32 %v2548, 0.0
        %v2605 = vmax.f32 %v2584, 0.0
        %v2606 = vmax.f32 %v2335, 0.0
        %v2607 = vmax.f32 %v2371, 0.0
        %v2608 = vmax.f32 %v2407, 0.0
        %v2609 = vmax.f32 %v2443, 0.0
        %v2610 = vmax.f32 %v2479, 0.0
        %v2611 = vmax.f32 %v2515, 0.0
        %v2612 = vmax.f32 %v2551, 0.0
        %v2613 = vmax.f32 %v2587, 0.0
        %v2614 = vpack.c.bf16 %v2598, %v2590
        %v2615 = vpack.c.bf16 %v2599, %v2591
        %v2616 = vpack.c.bf16 %v2600, %v2592
        %v2617 = vpack.c.bf16 %v2601, %v2593
        %v2618 = vpack.c.bf16 %v2602, %v2594
        %v2619 = vpack.c.bf16 %v2603, %v2595
        %v2620 = vpack.c.bf16 %v2604, %v2596
        %v2621 = vpack.c.bf16 %v2605, %v2597
        %v2622 = vpack.c.bf16 %v2606, %v2606
        %v2623 = vpack.c.bf16 %v2607, %v2607
        %v2624 = vpack.c.bf16 %v2608, %v2608
        %v2625 = vpack.c.bf16 %v2609, %v2609
        %v2626 = vpack.c.bf16 %v2610, %v2610
        %v2627 = vpack.c.bf16 %v2611, %v2611
        %v2628 = vpack.c.bf16 %v2612, %v2612
        %v2629 = vpack.c.bf16 %v2613, %v2613
        %v2758 = vunpack.c.l.b16 %v373
        %v2759 = vunpack.c.h.b16 %v373
        %v2760 = vunpack.c.l.b16 %v374
        %v2761 = vunpack.c.h.b16 %v374
        %v2762 = vunpack.c.l.b16 %v375
        %v2763 = vunpack.c.h.b16 %v375
        %v2764 = vunpack.c.l.b16 %v376
        %v2765 = vunpack.c.h.b16 %v376
        %v2766 = vunpack.c.l.b16 %v377
        %v2767 = vunpack.c.h.b16 %v377
        %v2768 = vunpack.c.l.b16 %v378
        %v2769 = vunpack.c.h.b16 %v378
        %v2770 = vunpack.c.l.b16 %v379
        %v2771 = vunpack.c.h.b16 %v379
        %v2772 = vunpack.c.l.b16 %v380
        %v2773 = vunpack.c.h.b16 %v380
        %v2774 = vunpack.c.l.b16 %v381
        %v2775 = vunpack.c.h.b16 %v381
        %v2776 = vunpack.c.l.b16 %v382
        %v2777 = vunpack.c.h.b16 %v382
        %v2778 = vunpack.c.l.b16 %v383
        %v2779 = vunpack.c.h.b16 %v383
        %v2780 = vunpack.c.l.b16 %v384
        %v2781 = vunpack.c.h.b16 %v384
        %v2782 = vunpack.c.l.b16 %v385
        %v2783 = vunpack.c.h.b16 %v385
        %v2784 = vunpack.c.l.b16 %v386
        %v2785 = vunpack.c.h.b16 %v386
        %v2786 = vunpack.c.l.b16 %v387
        %v2787 = vunpack.c.h.b16 %v387
        %v2788 = vunpack.c.l.b16 %v388
        %v2789 = vunpack.c.h.b16 %v388
        %v2790 = vunpack.c.l.b16 %v389
        %v2791 = vunpack.c.h.b16 %v389
        %v2792 = vunpack.c.l.b16 %v390
        %v2793 = vunpack.c.h.b16 %v390
        %v2794 = vunpack.c.l.b16 %v391
        %v2795 = vunpack.c.h.b16 %v391
        %v2796 = vunpack.c.l.b16 %v392
        %v2797 = vunpack.c.h.b16 %v392
        %v2798 = vunpack.c.l.b16 %v393
        %v2799 = vunpack.c.h.b16 %v393
        %v2800 = vunpack.c.l.b16 %v394
        %v2801 = vunpack.c.h.b16 %v394
        %v2802 = vunpack.c.l.b16 %v395
        %v2803 = vunpack.c.h.b16 %v395
        %v2804 = vunpack.c.l.b16 %v396
        %v2805 = vunpack.c.h.b16 %v396
        %v2806 = vunpack.c.l.b16 %v397
        %v2807 = vunpack.c.h.b16 %v397
        %v2808 = vunpack.c.l.b16 %v398
        %v2809 = vunpack.c.h.b16 %v398
        %v2810 = vunpack.c.l.b16 %v399
        %v2811 = vunpack.c.h.b16 %v399
        %v2812 = vunpack.c.l.b16 %v400
        %v2813 = vunpack.c.h.b16 %v400
        %v2814 = vunpack.c.l.b16 %v401
        %v2815 = vunpack.c.h.b16 %v401
        %v2816 = vunpack.c.l.b16 %v402
        %v2817 = vunpack.c.h.b16 %v402
        %v2818 = vunpack.c.l.b16 %v403
        %v2819 = vunpack.c.h.b16 %v403
        %v2820 = vunpack.c.l.b16 %v404
        %v2821 = vunpack.c.h.b16 %v404
        %v2822 = vunpack.c.l.b16 %v405
        %v2823 = vunpack.c.h.b16 %v405
        %v2824 = vunpack.c.l.b16 %v406
        %v2825 = vunpack.c.h.b16 %v406
        %v2826 = vunpack.c.l.b16 %v407
        %v2827 = vunpack.c.h.b16 %v407
        %v2828 = vunpack.c.l.b16 %v408
        %v2829 = vunpack.c.h.b16 %v408
        %v2830 = vunpack.c.l.b16 %v409
        %v2831 = vunpack.c.h.b16 %v409
        %v2832 = vunpack.c.l.b16 %v410
        %v2833 = vunpack.c.h.b16 %v410
        %v2834 = vunpack.c.l.b16 %v411
        %v2835 = vunpack.c.h.b16 %v411
        %v2836 = vunpack.c.l.b16 %v412
        %v2837 = vunpack.c.h.b16 %v412
        %v2838 = vunpack.c.l.b16 %v413
        %v2839 = vunpack.c.h.b16 %v413
        %v2840 = vunpack.c.l.b16 %v414
        %v2841 = vunpack.c.h.b16 %v414
        %v2842 = vunpack.c.l.b16 %v415
        %v2843 = vunpack.c.h.b16 %v415
        %v2844 = vunpack.c.l.b16 %v416
        %v2845 = vunpack.c.h.b16 %v416
        %v2846 = vunpack.c.l.b16 %v417
        %v2847 = vunpack.c.h.b16 %v417
        %v2848 = vunpack.c.l.b16 %v418
        %v2849 = vunpack.c.h.b16 %v418
        %v2850 = vunpack.c.l.b16 %v419
        %v2851 = vunpack.c.h.b16 %v419
        %v2852 = vunpack.c.l.b16 %v420
        %v2853 = vunpack.c.h.b16 %v420
        %v2854 = vunpack.c.l.b16 %v421
        %v2855 = vunpack.c.h.b16 %v421
        %v2856 = vunpack.c.l.b16 %v422
        %v2857 = vunpack.c.h.b16 %v422
        %v2858 = vunpack.c.l.b16 %v423
        %v2859 = vunpack.c.h.b16 %v423
        %v2860 = vunpack.c.l.b16 %v424
        %v2861 = vunpack.c.h.b16 %v424
        %v2862 = vunpack.c.l.b16 %v425
        %v2863 = vunpack.c.h.b16 %v425
        %v2864 = vunpack.c.l.b16 %v426
        %v2865 = vunpack.c.h.b16 %v426
        %v2866 = vunpack.c.l.b16 %v427
        %v2867 = vunpack.c.h.b16 %v427
        %v2868 = vunpack.c.l.b16 %v428
        %v2869 = vunpack.c.h.b16 %v428
        %v2870 = vunpack.c.l.b16 %v429
        %v2871 = vunpack.c.h.b16 %v429
        %v2872 = vunpack.c.l.b16 %v430
        %v2873 = vunpack.c.h.b16 %v430
        %v2874 = vunpack.c.l.b16 %v431
        %v2875 = vunpack.c.h.b16 %v431
        %v2876 = vunpack.c.l.b16 %v432
        %v2877 = vunpack.c.h.b16 %v432
        %v2878 = vunpack.c.l.b16 %v433
        %v2879 = vunpack.c.h.b16 %v433
        %v2880 = vunpack.c.l.b16 %v434
        %v2881 = vunpack.c.h.b16 %v434
        %v2882 = vunpack.c.l.b16 %v435
        %v2883 = vunpack.c.h.b16 %v435
        %v2884 = vunpack.c.l.b16 %v436
        %v2885 = vunpack.c.h.b16 %v436
        %v2886 = vunpack.c.l.b16 %v437
        %v2887 = vunpack.c.h.b16 %v437
        %v2888 = vunpack.c.l.b16 %v438
        %v2889 = vunpack.c.h.b16 %v438
        %v2890 = vunpack.c.l.b16 %v439
        %v2891 = vunpack.c.h.b16 %v439
        %v2892 = vunpack.c.l.b16 %v440
        %v2893 = vunpack.c.h.b16 %v440
        %v2894 = vunpack.c.l.b16 %v441
        %v2895 = vunpack.c.h.b16 %v441
        %v2896 = vunpack.c.l.b16 %v442
        %v2897 = vunpack.c.h.b16 %v442
        %v2898 = vunpack.c.l.b16 %v443
        %v2899 = vunpack.c.h.b16 %v443
        %v2900 = vunpack.c.l.b16 %v444
        %v2901 = vunpack.c.h.b16 %v444
        %v2902 = vunpack.c.l.b16 %v445
        %v2903 = vunpack.c.h.b16 %v445
        %v2904 = vunpack.c.l.b16 %v446
        %v2905 = vunpack.c.h.b16 %v446
        %v2906 = vunpack.c.l.b16 %v447
        %v2907 = vunpack.c.h.b16 %v447
        %v2908 = vunpack.c.l.b16 %v448
        %v2909 = vunpack.c.h.b16 %v448
        %v2910 = vunpack.c.l.b16 %v449
        %v2911 = vunpack.c.h.b16 %v449
        %v2912 = vunpack.c.l.b16 %v450
        %v2913 = vunpack.c.h.b16 %v450
        %v2914 = vunpack.c.l.b16 %v451
        %v2915 = vunpack.c.h.b16 %v451
        %v2916 = vunpack.c.l.b16 %v452
        %v2917 = vunpack.c.h.b16 %v452
        %v2918 = vunpack.c.l.b16 %v453
        %v2919 = vunpack.c.h.b16 %v453
        %v2920 = vunpack.c.l.b16 %v454
        %v2921 = vunpack.c.h.b16 %v454
        %v2922 = vunpack.c.l.b16 %v455
        %v2923 = vunpack.c.h.b16 %v455
        %v2924 = vunpack.c.l.b16 %v456
        %v2925 = vunpack.c.h.b16 %v456
        %v2926 = vunpack.c.l.b16 %v457
        %v2927 = vunpack.c.h.b16 %v457
        %v2928 = vunpack.c.l.b16 %v458
        %v2929 = vunpack.c.h.b16 %v458
        %v2930 = vunpack.c.l.b16 %v459
        %v2931 = vunpack.c.h.b16 %v459
        %v2932 = vunpack.c.l.b16 %v460
        %v2933 = vunpack.c.h.b16 %v460
        %v2934 = vunpack.c.l.b16 %v461
        %v2935 = vunpack.c.h.b16 %v461
        %v2936 = vunpack.c.l.b16 %v462
        %v2937 = vunpack.c.h.b16 %v462
        %v2938 = vunpack.c.l.b16 %v463
        %v2939 = vunpack.c.h.b16 %v463
        %v2940 = vunpack.c.l.b16 %v464
        %v2941 = vunpack.c.h.b16 %v464
        %v2942 = vunpack.c.l.b16 %v465
        %v2943 = vunpack.c.h.b16 %v465
        %v2944 = vunpack.c.l.b16 %v466
        %v2945 = vunpack.c.h.b16 %v466
        %v2946 = vunpack.c.l.b16 %v467
        %v2947 = vunpack.c.h.b16 %v467
        %v2948 = vunpack.c.l.b16 %v468
        %v2949 = vunpack.c.h.b16 %v468
        %v2950 = vunpack.c.l.b16 %v469
        %v2951 = vunpack.c.h.b16 %v469
        %v2952 = vunpack.c.l.b16 %v470
        %v2953 = vunpack.c.h.b16 %v470
        %v2954 = vunpack.c.l.b16 %v471
        %v2955 = vunpack.c.h.b16 %v471
        %v2956 = vunpack.c.l.b16 %v472
        %v2957 = vunpack.c.h.b16 %v472
        %v2958 = vunpack.c.l.b16 %v473
        %v2959 = vunpack.c.h.b16 %v473
        %v2960 = vunpack.c.l.b16 %v474
        %v2961 = vunpack.c.h.b16 %v474
        %v2962 = vunpack.c.l.b16 %v475
        %v2963 = vunpack.c.h.b16 %v475
        %v2964 = vunpack.c.l.b16 %v476
        %v2965 = vunpack.c.h.b16 %v476
        %v2966 = vunpack.c.l.b16 %v477
        %v2967 = vunpack.c.h.b16 %v477
        %v2968 = vunpack.c.l.b16 %v478
        %v2969 = vunpack.c.h.b16 %v478
        %v2970 = vunpack.c.l.b16 %v479
        %v2971 = vunpack.c.h.b16 %v479
        %v2972 = vunpack.c.l.b16 %v480
        %v2973 = vunpack.c.h.b16 %v480
        %v2974 = vunpack.c.l.b16 %v481
        %v2975 = vunpack.c.h.b16 %v481
        %v2976 = vunpack.c.l.b16 %v482
        %v2977 = vunpack.c.h.b16 %v482
        %v2978 = vunpack.c.l.b16 %v483
        %v2979 = vunpack.c.h.b16 %v483
        %v2980 = vunpack.c.l.b16 %v484
        %v2981 = vunpack.c.h.b16 %v484
        %v2982 = vunpack.c.l.b16 %v485
        %v2983 = vunpack.c.h.b16 %v485
        %v2984 = vunpack.c.l.b16 %v486
        %v2985 = vunpack.c.h.b16 %v486
        %v2986 = vunpack.c.l.b16 %v487
        %v2987 = vunpack.c.h.b16 %v487
        %v2988 = vunpack.c.l.b16 %v488
        %v2989 = vunpack.c.h.b16 %v488
        %v2990 = vunpack.c.l.b16 %v489
        %v2991 = vunpack.c.h.b16 %v489
        %v2992 = vunpack.c.l.b16 %v490
        %v2993 = vunpack.c.h.b16 %v490
        %v2994 = vunpack.c.l.b16 %v491
        %v2995 = vunpack.c.h.b16 %v491
        %v2996 = vunpack.c.l.b16 %v492
        %v2997 = vunpack.c.h.b16 %v492
        %v2998 = vunpack.c.l.b16 %v493
        %v2999 = vunpack.c.h.b16 %v493
        %v3000 = vunpack.c.l.b16 %v494
        %v3001 = vunpack.c.h.b16 %v494
        %v3002 = vunpack.c.l.b16 %v495
        %v3003 = vunpack.c.h.b16 %v495
        %v3004 = vunpack.c.l.b16 %v496
        %v3005 = vunpack.c.h.b16 %v496
        %v3006 = vunpack.c.l.b16 %v497
        %v3007 = vunpack.c.h.b16 %v497
        %v3008 = vunpack.c.l.b16 %v498
        %v3009 = vunpack.c.h.b16 %v498
        %v3010 = vunpack.c.l.b16 %v499
        %v3011 = vunpack.c.h.b16 %v499
        %v3012 = vunpack.c.l.b16 %v500
        %v3013 = vunpack.c.h.b16 %v500
        %v3014 = vpack.c.b16 %v2760, %v2758
        %v3015 = vpack.c.b16 %v2761, %v2759
        %v3016 = vpack.c.b16 %v2764, %v2762
        %v3017 = vpack.c.b16 %v2765, %v2763
        %v3018 = vpack.c.b16 %v2768, %v2766
        %v3019 = vpack.c.b16 %v2769, %v2767
        %v3020 = vpack.c.b16 %v2772, %v2770
        %v3021 = vpack.c.b16 %v2773, %v2771
        %v3022 = vpack.c.b16 %v2776, %v2774
        %v3023 = vpack.c.b16 %v2777, %v2775
        %v3024 = vpack.c.b16 %v2780, %v2778
        %v3025 = vpack.c.b16 %v2781, %v2779
        %v3026 = vpack.c.b16 %v2784, %v2782
        %v3027 = vpack.c.b16 %v2785, %v2783
        %v3028 = vpack.c.b16 %v2788, %v2786
        %v3029 = vpack.c.b16 %v2789, %v2787
        %v3030 = vpack.c.b16 %v2792, %v2790
        %v3031 = vpack.c.b16 %v2793, %v2791
        %v3032 = vpack.c.b16 %v2796, %v2794
        %v3033 = vpack.c.b16 %v2797, %v2795
        %v3034 = vpack.c.b16 %v2800, %v2798
        %v3035 = vpack.c.b16 %v2801, %v2799
        %v3036 = vpack.c.b16 %v2804, %v2802
        %v3037 = vpack.c.b16 %v2805, %v2803
        %v3038 = vpack.c.b16 %v2808, %v2806
        %v3039 = vpack.c.b16 %v2809, %v2807
        %v3040 = vpack.c.b16 %v2812, %v2810
        %v3041 = vpack.c.b16 %v2813, %v2811
        %v3042 = vpack.c.b16 %v2816, %v2814
        %v3043 = vpack.c.b16 %v2817, %v2815
        %v3044 = vpack.c.b16 %v2820, %v2818
        %v3045 = vpack.c.b16 %v2821, %v2819
        %v3046 = vpack.c.b16 %v2824, %v2822
        %v3047 = vpack.c.b16 %v2825, %v2823
        %v3048 = vpack.c.b16 %v2828, %v2826
        %v3049 = vpack.c.b16 %v2829, %v2827
        %v3050 = vpack.c.b16 %v2832, %v2830
        %v3051 = vpack.c.b16 %v2833, %v2831
        %v3052 = vpack.c.b16 %v2836, %v2834
        %v3053 = vpack.c.b16 %v2837, %v2835
        %v3054 = vpack.c.b16 %v2840, %v2838
        %v3055 = vpack.c.b16 %v2841, %v2839
        %v3056 = vpack.c.b16 %v2844, %v2842
        %v3057 = vpack.c.b16 %v2845, %v2843
        %v3058 = vpack.c.b16 %v2848, %v2846
        %v3059 = vpack.c.b16 %v2849, %v2847
        %v3060 = vpack.c.b16 %v2852, %v2850
        %v3061 = vpack.c.b16 %v2853, %v2851
        %v3062 = vpack.c.b16 %v2856, %v2854
        %v3063 = vpack.c.b16 %v2857, %v2855
        %v3064 = vpack.c.b16 %v2860, %v2858
        %v3065 = vpack.c.b16 %v2861, %v2859
        %v3066 = vpack.c.b16 %v2864, %v2862
        %v3067 = vpack.c.b16 %v2865, %v2863
        %v3068 = vpack.c.b16 %v2868, %v2866
        %v3069 = vpack.c.b16 %v2869, %v2867
        %v3070 = vpack.c.b16 %v2872, %v2870
        %v3071 = vpack.c.b16 %v2873, %v2871
        %v3072 = vpack.c.b16 %v2876, %v2874
        %v3073 = vpack.c.b16 %v2877, %v2875
        %v3074 = vpack.c.b16 %v2880, %v2878
        %v3075 = vpack.c.b16 %v2881, %v2879
        %v3076 = vpack.c.b16 %v2884, %v2882
        %v3077 = vpack.c.b16 %v2885, %v2883
        %v3078 = vpack.c.b16 %v2888, %v2886
        %v3079 = vpack.c.b16 %v2889, %v2887
        %v3080 = vpack.c.b16 %v2892, %v2890
        %v3081 = vpack.c.b16 %v2893, %v2891
        %v3082 = vpack.c.b16 %v2896, %v2894
        %v3083 = vpack.c.b16 %v2897, %v2895
        %v3084 = vpack.c.b16 %v2900, %v2898
        %v3085 = vpack.c.b16 %v2901, %v2899
        %v3086 = vpack.c.b16 %v2904, %v2902
        %v3087 = vpack.c.b16 %v2905, %v2903
        %v3088 = vpack.c.b16 %v2908, %v2906
        %v3089 = vpack.c.b16 %v2909, %v2907
        %v3090 = vpack.c.b16 %v2912, %v2910
        %v3091 = vpack.c.b16 %v2913, %v2911
        %v3092 = vpack.c.b16 %v2916, %v2914
        %v3093 = vpack.c.b16 %v2917, %v2915
        %v3094 = vpack.c.b16 %v2920, %v2918
        %v3095 = vpack.c.b16 %v2921, %v2919
        %v3096 = vpack.c.b16 %v2924, %v2922
        %v3097 = vpack.c.b16 %v2925, %v2923
        %v3098 = vpack.c.b16 %v2928, %v2926
        %v3099 = vpack.c.b16 %v2929, %v2927
        %v3100 = vpack.c.b16 %v2932, %v2930
        %v3101 = vpack.c.b16 %v2933, %v2931
        %v3102 = vpack.c.b16 %v2936, %v2934
        %v3103 = vpack.c.b16 %v2937, %v2935
        %v3104 = vpack.c.b16 %v2940, %v2938
        %v3105 = vpack.c.b16 %v2941, %v2939
        %v3106 = vpack.c.b16 %v2944, %v2942
        %v3107 = vpack.c.b16 %v2945, %v2943
        %v3108 = vpack.c.b16 %v2948, %v2946
        %v3109 = vpack.c.b16 %v2949, %v2947
        %v3110 = vpack.c.b16 %v2952, %v2950
        %v3111 = vpack.c.b16 %v2953, %v2951
        %v3112 = vpack.c.b16 %v2956, %v2954
        %v3113 = vpack.c.b16 %v2957, %v2955
        %v3114 = vpack.c.b16 %v2960, %v2958
        %v3115 = vpack.c.b16 %v2961, %v2959
        %v3116 = vpack.c.b16 %v2964, %v2962
        %v3117 = vpack.c.b16 %v2965, %v2963
        %v3118 = vpack.c.b16 %v2968, %v2966
        %v3119 = vpack.c.b16 %v2969, %v2967
        %v3120 = vpack.c.b16 %v2972, %v2970
        %v3121 = vpack.c.b16 %v2973, %v2971
        %v3122 = vpack.c.b16 %v2976, %v2974
        %v3123 = vpack.c.b16 %v2977, %v2975
        %v3124 = vpack.c.b16 %v2980, %v2978
        %v3125 = vpack.c.b16 %v2981, %v2979
        %v3126 = vpack.c.b16 %v2984, %v2982
        %v3127 = vpack.c.b16 %v2985, %v2983
        %v3128 = vpack.c.b16 %v2988, %v2986
        %v3129 = vpack.c.b16 %v2989, %v2987
        %v3130 = vpack.c.b16 %v2992, %v2990
        %v3131 = vpack.c.b16 %v2993, %v2991
        %v3132 = vpack.c.b16 %v2996, %v2994
        %v3133 = vpack.c.b16 %v2997, %v2995
        %v3134 = vpack.c.b16 %v3000, %v2998
        %v3135 = vpack.c.b16 %v3001, %v2999
        %v3136 = vpack.c.b16 %v3004, %v3002
        %v3137 = vpack.c.b16 %v3005, %v3003
        %v3138 = vpack.c.b16 %v3008, %v3006
        %v3139 = vpack.c.b16 %v3009, %v3007
        %v3140 = vpack.c.b16 %v3012, %v3010
        %v3141 = vpack.c.b16 %v3013, %v3011
        %3270 = vmatpush.bf16.msra.mxu0 %v3028
        %3271 = vmatpush.bf16.msra.mxu0 %v3026
        %3272 = vmatpush.bf16.msra.mxu0 %v3024
        %3273 = vmatpush.bf16.msra.mxu0 %v3022
        %3274 = vmatpush.bf16.msra.mxu0 %v3020
        %3275 = vmatpush.bf16.msra.mxu0 %v3018
        %3276 = vmatpush.bf16.msra.mxu0 %v3016
        %3277 = vmatpush.bf16.msra.mxu0 %v3014
        %3278 = vmatmul.bf16.gmra.mxu0 %v2614
        %v3279 = vpop.f32.mrf.mxu0
        %v3280 = vadd.f32 0.0, %v3279
        %v3281 = vpop.f32.mrf.mxu0
        %v3282 = vadd.f32 0.0, %v3281
        %3283 = vmatmul.bf16.gmra.mxu0 %v2622
        %v3284 = vpop.f32.mrf.mxu0
        %v3285 = vadd.f32 0.0, %v3284
        %v3286 = vpop.f32.mrf.mxu0
        %3287 = vdwg.mxu0
        %3288 = vmatpush.bf16.msra.mxu0 %v3044
        %3289 = vmatpush.bf16.msra.mxu0 %v3042
        %3290 = vmatpush.bf16.msra.mxu0 %v3040
        %3291 = vmatpush.bf16.msra.mxu0 %v3038
        %3292 = vmatpush.bf16.msra.mxu0 %v3036
        %3293 = vmatpush.bf16.msra.mxu0 %v3034
        %3294 = vmatpush.bf16.msra.mxu0 %v3032
        %3295 = vmatpush.bf16.msra.mxu0 %v3030
        %3296 = vmatmul.bf16.gmra.mxu0 %v2615
        %v3297 = vpop.f32.mrf.mxu0
        %v3298 = vadd.f32 %v3280, %v3297
        %v3299 = vpop.f32.mrf.mxu0
        %v3300 = vadd.f32 %v3282, %v3299
        %3301 = vmatmul.bf16.gmra.mxu0 %v2623
        %v3302 = vpop.f32.mrf.mxu0
        %v3303 = vadd.f32 %v3285, %v3302
        %v3304 = vpop.f32.mrf.mxu0
        %3305 = vdwg.mxu0
        %3306 = vmatpush.bf16.msra.mxu0 %v3060
        %3307 = vmatpush.bf16.msra.mxu0 %v3058
        %3308 = vmatpush.bf16.msra.mxu0 %v3056
        %3309 = vmatpush.bf16.msra.mxu0 %v3054
        %3310 = vmatpush.bf16.msra.mxu0 %v3052
        %3311 = vmatpush.bf16.msra.mxu0 %v3050
        %3312 = vmatpush.bf16.msra.mxu0 %v3048
        %3313 = vmatpush.bf16.msra.mxu0 %v3046
        %3314 = vmatmul.bf16.gmra.mxu0 %v2616
        %v3315 = vpop.f32.mrf.mxu0
        %v3316 = vadd.f32 %v3298, %v3315
        %v3317 = vpop.f32.mrf.mxu0
        %v3318 = vadd.f32 %v3300, %v3317
        %3319 = vmatmul.bf16.gmra.mxu0 %v2624
        %v3320 = vpop.f32.mrf.mxu0
        %v3321 = vadd.f32 %v3303, %v3320
        %v3322 = vpop.f32.mrf.mxu0
        %3323 = vdwg.mxu0
        %3324 = vmatpush.bf16.msra.mxu0 %v3076
        %3325 = vmatpush.bf16.msra.mxu0 %v3074
        %3326 = vmatpush.bf16.msra.mxu0 %v3072
        %3327 = vmatpush.bf16.msra.mxu0 %v3070
        %3328 = vmatpush.bf16.msra.mxu0 %v3068
        %3329 = vmatpush.bf16.msra.mxu0 %v3066
        %3330 = vmatpush.bf16.msra.mxu0 %v3064
        %3331 = vmatpush.bf16.msra.mxu0 %v3062
        %3332 = vmatmul.bf16.gmra.mxu0 %v2617
        %v3333 = vpop.f32.mrf.mxu0
        %v3334 = vadd.f32 %v3316, %v3333
        %v3335 = vpop.f32.mrf.mxu0
        %v3336 = vadd.f32 %v3318, %v3335
        %3337 = vmatmul.bf16.gmra.mxu0 %v2625
        %v3338 = vpop.f32.mrf.mxu0
        %v3339 = vadd.f32 %v3321, %v3338
        %v3340 = vpop.f32.mrf.mxu0
        %3341 = vdwg.mxu0
        %3342 = vmatpush.bf16.msra.mxu0 %v3092
        %3343 = vmatpush.bf16.msra.mxu0 %v3090
        %3344 = vmatpush.bf16.msra.mxu0 %v3088
        %3345 = vmatpush.bf16.msra.mxu0 %v3086
        %3346 = vmatpush.bf16.msra.mxu0 %v3084
        %3347 = vmatpush.bf16.msra.mxu0 %v3082
        %3348 = vmatpush.bf16.msra.mxu0 %v3080
        %3349 = vmatpush.bf16.msra.mxu0 %v3078
        %3350 = vmatmul.bf16.gmra.mxu0 %v2618
        %v3351 = vpop.f32.mrf.mxu0
        %v3352 = vadd.f32 %v3334, %v3351
        %v3353 = vpop.f32.mrf.mxu0
        %v3354 = vadd.f32 %v3336, %v3353
        %3355 = vmatmul.bf16.gmra.mxu0 %v2626
        %v3356 = vpop.f32.mrf.mxu0
        %v3357 = vadd.f32 %v3339, %v3356
        %v3358 = vpop.f32.mrf.mxu0
        %3359 = vdwg.mxu0
        %3360 = vmatpush.bf16.msra.mxu0 %v3108
        %3361 = vmatpush.bf16.msra.mxu0 %v3106
        %3362 = vmatpush.bf16.msra.mxu0 %v3104
        %3363 = vmatpush.bf16.msra.mxu0 %v3102
        %3364 = vmatpush.bf16.msra.mxu0 %v3100
        %3365 = vmatpush.bf16.msra.mxu0 %v3098
        %3366 = vmatpush.bf16.msra.mxu0 %v3096
        %3367 = vmatpush.bf16.msra.mxu0 %v3094
        %3368 = vmatmul.bf16.gmra.mxu0 %v2619
        %v3369 = vpop.f32.mrf.mxu0
        %v3370 = vadd.f32 %v3352, %v3369
        %v3371 = vpop.f32.mrf.mxu0
        %v3372 = vadd.f32 %v3354, %v3371
        %3373 = vmatmul.bf16.gmra.mxu0 %v2627
        %v3374 = vpop.f32.mrf.mxu0
        %v3375 = vadd.f32 %v3357, %v3374
        %v3376 = vpop.f32.mrf.mxu0
        %3377 = vdwg.mxu0
        %3378 = vmatpush.bf16.msra.mxu0 %v3124
        %3379 = vmatpush.bf16.msra.mxu0 %v3122
        %3380 = vmatpush.bf16.msra.mxu0 %v3120
        %3381 = vmatpush.bf16.msra.mxu0 %v3118
        %3382 = vmatpush.bf16.msra.mxu0 %v3116
        %3383 = vmatpush.bf16.msra.mxu0 %v3114
        %3384 = vmatpush.bf16.msra.mxu0 %v3112
        %3385 = vmatpush.bf16.msra.mxu0 %v3110
        %3386 = vmatmul.bf16.gmra.mxu0 %v2620
        %v3387 = vpop.f32.mrf.mxu0
        %v3388 = vadd.f32 %v3370, %v3387
        %v3389 = vpop.f32.mrf.mxu0
        %v3390 = vadd.f32 %v3372, %v3389
        %3391 = vmatmul.bf16.gmra.mxu0 %v2628
        %v3392 = vpop.f32.mrf.mxu0
        %v3393 = vadd.f32 %v3375, %v3392
        %v3394 = vpop.f32.mrf.mxu0
        %3395 = vdwg.mxu0
        %3396 = vmatpush.bf16.msra.mxu0 %v3140
        %3397 = vmatpush.bf16.msra.mxu0 %v3138
        %3398 = vmatpush.bf16.msra.mxu0 %v3136
        %3399 = vmatpush.bf16.msra.mxu0 %v3134
        %3400 = vmatpush.bf16.msra.mxu0 %v3132
        %3401 = vmatpush.bf16.msra.mxu0 %v3130
        %3402 = vmatpush.bf16.msra.mxu0 %v3128
        %3403 = vmatpush.bf16.msra.mxu0 %v3126
        %3404 = vmatmul.bf16.gmra.mxu0 %v2621
        %v3405 = vpop.f32.mrf.mxu0
        %v3406 = vadd.f32 %v3388, %v3405
        %v3407 = vpop.f32.mrf.mxu0
        %v3408 = vadd.f32 %v3390, %v3407
        %3409 = vmatmul.bf16.gmra.mxu0 %v2629
        %v3410 = vpop.f32.mrf.mxu0
        %v3411 = vadd.f32 %v3393, %v3410
        %v3412 = vpop.f32.mrf.mxu0
        %3413 = vdwg.mxu0
        %3414 = vmatpush.bf16.msra.mxu0 %v3029
        %3415 = vmatpush.bf16.msra.mxu0 %v3027
        %3416 = vmatpush.bf16.msra.mxu0 %v3025
        %3417 = vmatpush.bf16.msra.mxu0 %v3023
        %3418 = vmatpush.bf16.msra.mxu0 %v3021
        %3419 = vmatpush.bf16.msra.mxu0 %v3019
        %3420 = vmatpush.bf16.msra.mxu0 %v3017
        %3421 = vmatpush.bf16.msra.mxu0 %v3015
        %3422 = vmatmul.bf16.gmra.mxu0 %v2614
        %v3423 = vpop.f32.mrf.mxu0
        %v3424 = vadd.f32 0.0, %v3423
        %v3425 = vpop.f32.mrf.mxu0
        %v3426 = vadd.f32 0.0, %v3425
        %3427 = vmatmul.bf16.gmra.mxu0 %v2622
        %v3428 = vpop.f32.mrf.mxu0
        %v3429 = vadd.f32 0.0, %v3428
        %v3430 = vpop.f32.mrf.mxu0
        %3431 = vdwg.mxu0
        %3432 = vmatpush.bf16.msra.mxu0 %v3045
        %3433 = vmatpush.bf16.msra.mxu0 %v3043
        %3434 = vmatpush.bf16.msra.mxu0 %v3041
        %3435 = vmatpush.bf16.msra.mxu0 %v3039
        %3436 = vmatpush.bf16.msra.mxu0 %v3037
        %3437 = vmatpush.bf16.msra.mxu0 %v3035
        %3438 = vmatpush.bf16.msra.mxu0 %v3033
        %3439 = vmatpush.bf16.msra.mxu0 %v3031
        %3440 = vmatmul.bf16.gmra.mxu0 %v2615
        %v3441 = vpop.f32.mrf.mxu0
        %v3442 = vadd.f32 %v3424, %v3441
        %v3443 = vpop.f32.mrf.mxu0
        %v3444 = vadd.f32 %v3426, %v3443
        %3445 = vmatmul.bf16.gmra.mxu0 %v2623
        %v3446 = vpop.f32.mrf.mxu0
        %v3447 = vadd.f32 %v3429, %v3446
        %v3448 = vpop.f32.mrf.mxu0
        %3449 = vdwg.mxu0
        %3450 = vmatpush.bf16.msra.mxu0 %v3061
        %3451 = vmatpush.bf16.msra.mxu0 %v3059
        %3452 = vmatpush.bf16.msra.mxu0 %v3057
        %3453 = vmatpush.bf16.msra.mxu0 %v3055
        %3454 = vmatpush.bf16.msra.mxu0 %v3053
        %3455 = vmatpush.bf16.msra.mxu0 %v3051
        %3456 = vmatpush.bf16.msra.mxu0 %v3049
        %3457 = vmatpush.bf16.msra.mxu0 %v3047
        %3458 = vmatmul.bf16.gmra.mxu0 %v2616
        %v3459 = vpop.f32.mrf.mxu0
        %v3460 = vadd.f32 %v3442, %v3459
        %v3461 = vpop.f32.mrf.mxu0
        %v3462 = vadd.f32 %v3444, %v3461
        %3463 = vmatmul.bf16.gmra.mxu0 %v2624
        %v3464 = vpop.f32.mrf.mxu0
        %v3465 = vadd.f32 %v3447, %v3464
        %v3466 = vpop.f32.mrf.mxu0
        %3467 = vdwg.mxu0
        %3468 = vmatpush.bf16.msra.mxu0 %v3077
        %3469 = vmatpush.bf16.msra.mxu0 %v3075
        %3470 = vmatpush.bf16.msra.mxu0 %v3073
        %3471 = vmatpush.bf16.msra.mxu0 %v3071
        %3472 = vmatpush.bf16.msra.mxu0 %v3069
        %3473 = vmatpush.bf16.msra.mxu0 %v3067
        %3474 = vmatpush.bf16.msra.mxu0 %v3065
        %3475 = vmatpush.bf16.msra.mxu0 %v3063
        %3476 = vmatmul.bf16.gmra.mxu0 %v2617
        %v3477 = vpop.f32.mrf.mxu0
        %v3478 = vadd.f32 %v3460, %v3477
        %v3479 = vpop.f32.mrf.mxu0
        %v3480 = vadd.f32 %v3462, %v3479
        %3481 = vmatmul.bf16.gmra.mxu0 %v2625
        %v3482 = vpop.f32.mrf.mxu0
        %v3483 = vadd.f32 %v3465, %v3482
        %v3484 = vpop.f32.mrf.mxu0
        %3485 = vdwg.mxu0
        %3486 = vmatpush.bf16.msra.mxu0 %v3093
        %3487 = vmatpush.bf16.msra.mxu0 %v3091
        %3488 = vmatpush.bf16.msra.mxu0 %v3089
        %3489 = vmatpush.bf16.msra.mxu0 %v3087
        %3490 = vmatpush.bf16.msra.mxu0 %v3085
        %3491 = vmatpush.bf16.msra.mxu0 %v3083
        %3492 = vmatpush.bf16.msra.mxu0 %v3081
        %3493 = vmatpush.bf16.msra.mxu0 %v3079
        %3494 = vmatmul.bf16.gmra.mxu0 %v2618
        %v3495 = vpop.f32.mrf.mxu0
        %v3496 = vadd.f32 %v3478, %v3495
        %v3497 = vpop.f32.mrf.mxu0
        %v3498 = vadd.f32 %v3480, %v3497
        %3499 = vmatmul.bf16.gmra.mxu0 %v2626
        %v3500 = vpop.f32.mrf.mxu0
        %v3501 = vadd.f32 %v3483, %v3500
        %v3502 = vpop.f32.mrf.mxu0
        %3503 = vdwg.mxu0
        %3504 = vmatpush.bf16.msra.mxu0 %v3109
        %3505 = vmatpush.bf16.msra.mxu0 %v3107
        %3506 = vmatpush.bf16.msra.mxu0 %v3105
        %3507 = vmatpush.bf16.msra.mxu0 %v3103
        %3508 = vmatpush.bf16.msra.mxu0 %v3101
        %3509 = vmatpush.bf16.msra.mxu0 %v3099
        %3510 = vmatpush.bf16.msra.mxu0 %v3097
        %3511 = vmatpush.bf16.msra.mxu0 %v3095
        %3512 = vmatmul.bf16.gmra.mxu0 %v2619
        %v3513 = vpop.f32.mrf.mxu0
        %v3514 = vadd.f32 %v3496, %v3513
        %v3515 = vpop.f32.mrf.mxu0
        %v3516 = vadd.f32 %v3498, %v3515
        %3517 = vmatmul.bf16.gmra.mxu0 %v2627
        %v3518 = vpop.f32.mrf.mxu0
        %v3519 = vadd.f32 %v3501, %v3518
        %v3520 = vpop.f32.mrf.mxu0
        %3521 = vdwg.mxu0
        %3522 = vmatpush.bf16.msra.mxu0 %v3125
        %3523 = vmatpush.bf16.msra.mxu0 %v3123
        %3524 = vmatpush.bf16.msra.mxu0 %v3121
        %3525 = vmatpush.bf16.msra.mxu0 %v3119
        %3526 = vmatpush.bf16.msra.mxu0 %v3117
        %3527 = vmatpush.bf16.msra.mxu0 %v3115
        %3528 = vmatpush.bf16.msra.mxu0 %v3113
        %3529 = vmatpush.bf16.msra.mxu0 %v3111
        %3530 = vmatmul.bf16.gmra.mxu0 %v2620
        %v3531 = vpop.f32.mrf.mxu0
        %v3532 = vadd.f32 %v3514, %v3531
        %v3533 = vpop.f32.mrf.mxu0
        %v3534 = vadd.f32 %v3516, %v3533
        %3535 = vmatmul.bf16.gmra.mxu0 %v2628
        %v3536 = vpop.f32.mrf.mxu0
        %v3537 = vadd.f32 %v3519, %v3536
        %v3538 = vpop.f32.mrf.mxu0
        %3539 = vdwg.mxu0
        %3540 = vmatpush.bf16.msra.mxu0 %v3141
        %3541 = vmatpush.bf16.msra.mxu0 %v3139
        %3542 = vmatpush.bf16.msra.mxu0 %v3137
        %3543 = vmatpush.bf16.msra.mxu0 %v3135
        %3544 = vmatpush.bf16.msra.mxu0 %v3133
        %3545 = vmatpush.bf16.msra.mxu0 %v3131
        %3546 = vmatpush.bf16.msra.mxu0 %v3129
        %3547 = vmatpush.bf16.msra.mxu0 %v3127
        %3548 = vmatmul.bf16.gmra.mxu0 %v2621
        %v3549 = vpop.f32.mrf.mxu0
        %v3550 = vadd.f32 %v3532, %v3549
        %v3551 = vpop.f32.mrf.mxu0
        %v3552 = vadd.f32 %v3534, %v3551
        %3553 = vmatmul.bf16.gmra.mxu0 %v2629
        %v3554 = vpop.f32.mrf.mxu0
        %v3555 = vadd.f32 %v3537, %v3554
        %v3556 = vpop.f32.mrf.mxu0
        %3557 = vdwg.mxu0
        %v3558 = vmul.f32 %v3406, %v501
        %v3559 = vmul.f32 %v3550, %v502
        %v3560 = vmul.f32 %v3408, %v503
        %v3561 = vmul.f32 %v3552, %v504
        %v3562 = vmul.f32 %v3411, %v505
        %v3563 = vmul.f32 %v3555, %v506
        %vm3564 = vcmask 588800
        %v3566 = vsel %vm3564, %v3559, 0
        %v3569 = vsel %vm3564, %v3561, 0
        %v3572 = vsel %vm3564, %v3563, 0
        %3574 = vmatpush.msra.mxu0 %v522
        %3575 = vmatpush.msra.mxu0 %v521
        %3576 = vmatpush.msra.mxu0 %v520
        %3577 = vmatpush.msra.mxu0 %v519
        %3578 = vmatpush.msra.mxu0 %v518
        %3579 = vmatpush.msra.mxu0 %v517
        %3580 = vmatpush.msra.mxu0 %v516
        %3581 = vmatpush.msra.mxu0 %v515
        %3582 = vmatpush.msra.mxu0 %v514
        %3583 = vmatpush.msra.mxu0 %v513
        %3584 = vmatpush.msra.mxu0 %v512
        %3585 = vmatpush.msra.mxu0 %v511
        %3586 = vmatpush.msra.mxu0 %v510
        %3587 = vmatpush.msra.mxu0 %v509
        %3588 = vmatpush.msra.mxu0 %v508
        %3589 = vmatpush.msra.mxu0 %v507
        %3590 = vmatmul.f32.gmra.mxu0 %v3558
        %v3591 = vpop.f32.mrf.mxu0
        %v3592 = vadd.f32 0.0, %v3591
        %3593 = vmatmul.f32.gmra.mxu0 %v3560
        %v3594 = vpop.f32.mrf.mxu0
        %v3595 = vadd.f32 0.0, %v3594
        %3596 = vmatmul.f32.gmra.mxu0 %v3562
        %v3597 = vpop.f32.mrf.mxu0
        %v3598 = vadd.f32 0.0, %v3597
        %3599 = vdwg.mxu0
        %3600 = vmatpush.msra.mxu0 0.0
        %3601 = vmatpush.msra.mxu0 0.0
        %3602 = vmatpush.msra.mxu0 0.0
        %3603 = vmatpush.msra.mxu0 0.0
        %3604 = vmatpush.msra.mxu0 0.0
        %3605 = vmatpush.msra.mxu0 0.0
        %3606 = vmatpush.msra.mxu0 0.0
        %3607 = vmatpush.msra.mxu0 %v531
        %3608 = vmatpush.msra.mxu0 %v530
        %3609 = vmatpush.msra.mxu0 %v529
        %3610 = vmatpush.msra.mxu0 %v528
        %3611 = vmatpush.msra.mxu0 %v527
        %3612 = vmatpush.msra.mxu0 %v526
        %3613 = vmatpush.msra.mxu0 %v525
        %3614 = vmatpush.msra.mxu0 %v524
        %3615 = vmatpush.msra.mxu0 %v523
        %3616 = vmatmul.f32.gmra.mxu0 %v3566
        %v3617 = vpop.f32.mrf.mxu0
        %v3618 = vadd.f32 %v3592, %v3617
        %3619 = vmatmul.f32.gmra.mxu0 %v3569
        %v3620 = vpop.f32.mrf.mxu0
        %v3621 = vadd.f32 %v3595, %v3620
        %3622 = vmatmul.f32.gmra.mxu0 %v3572
        %v3623 = vpop.f32.mrf.mxu0
        %v3624 = vadd.f32 %v3598, %v3623
        %3625 = vdwg.mxu0
        %vm3626 = vcmask 80896
        %v3627 = vsel %vm3626, %v3618, 0.0
        %v3628 = vsel %vm3626, %v3621, 0.0
        %v3629 = vadd.f32 %v3627, %v3628
        %vm3630 = vcmask 76800
        %v3631 = vsel %vm3630, %v3624, 0.0
        %v3632 = vadd.f32 %v3629, %v3631
        %v3633 = vrot.slane %v3632, 4
        %v3634 = vadd.f32 %v3632, %v3633
        %v3635 = vrot.slane %v3634, 2
        %v3636 = vadd.f32 %v3634, %v3635
        %v3637 = vrot.slane %v3636, 1
        %v3638 = vadd.f32 %v3636, %v3637
        %v3639 = vadd.f32 %v3638, %v532
        %vm3640 = vcmask 73728
        %3641 = vst.msk [vmem:[%s353] sm:$0x1] %vm3640, %v3639
        %s3642 = scalar_lea.vmem %s358, 9
        %v3643 = vld [vmem:[%s3642] sm:$0xff]
        %v3644 = vld [vmem:[%s3642 + $0x8] sm:$0x1]
        %v3646 = vperm.slane %v3643, 0
        %v3647 = vperm.slane %v3643, 1
        %v3648 = vperm.slane %v3643, 2
        %v3649 = vperm.slane %v3643, 3
        %v3650 = vperm.slane %v3643, 4
        %v3651 = vperm.slane %v3643, 5
        %v3652 = vperm.slane %v3643, 6
        %v3653 = vperm.slane %v3643, 7
        %v3662 = vmul.f32 %v3646, %v555
        %v3663 = vmul.f32 %v3647, %v555
        %v3664 = vmul.f32 %v3648, %v555
        %v3665 = vmul.f32 %v3649, %v555
        %v3666 = vmul.f32 %v3650, %v555
        %v3667 = vmul.f32 %v3651, %v555
        %v3668 = vmul.f32 %v3652, %v555
        %v3669 = vmul.f32 %v3653, %v555
        %v3670 = vmul.f32 %v3646, %v560
        %v3671 = vmul.f32 %v3647, %v560
        %v3672 = vmul.f32 %v3648, %v560
        %v3673 = vmul.f32 %v3649, %v560
        %v3674 = vmul.f32 %v3650, %v560
        %v3675 = vmul.f32 %v3651, %v560
        %v3676 = vmul.f32 %v3652, %v560
        %v3677 = vmul.f32 %v3653, %v560
        %v3678 = vadd.f32 %v3662, 0.0
        %v3679 = vadd.f32 %v3663, 0.0
        %v3680 = vadd.f32 %v3664, 0.0
        %v3681 = vadd.f32 %v3665, 0.0
        %v3682 = vadd.f32 %v3666, 0.0
        %v3683 = vadd.f32 %v3667, 0.0
        %v3684 = vadd.f32 %v3668, 0.0
        %v3685 = vadd.f32 %v3669, 0.0
        %v3686 = vadd.f32 %v3670, 0.0
        %v3687 = vadd.f32 %v3671, 0.0
        %v3688 = vadd.f32 %v3672, 0.0
        %v3689 = vadd.f32 %v3673, 0.0
        %v3690 = vadd.f32 %v3674, 0.0
        %v3691 = vadd.f32 %v3675, 0.0
        %v3692 = vadd.f32 %v3676, 0.0
        %v3693 = vadd.f32 %v3677, 0.0
        %v3695 = vperm.slane %v3644, 0
        %v3697 = vmul.f32 %v3646, %v599
        %v3698 = vmul.f32 %v3647, %v599
        %v3699 = vmul.f32 %v3648, %v599
        %v3700 = vmul.f32 %v3649, %v599
        %v3701 = vmul.f32 %v3650, %v599
        %v3702 = vmul.f32 %v3651, %v599
        %v3703 = vmul.f32 %v3652, %v599
        %v3704 = vmul.f32 %v3653, %v599
        %v3705 = vmul.f32 %v3695, %v599
        %v3706 = vmul.f32 %v3646, %v603
        %v3707 = vmul.f32 %v3647, %v603
        %v3708 = vmul.f32 %v3648, %v603
        %v3709 = vmul.f32 %v3649, %v603
        %v3710 = vmul.f32 %v3650, %v603
        %v3711 = vmul.f32 %v3651, %v603
        %v3712 = vmul.f32 %v3652, %v603
        %v3713 = vmul.f32 %v3653, %v603
        %v3714 = vmul.f32 %v3695, %v603
        %3733 = vrot.lane.b32.xlu0 %v3697, 127
        %v3734 = vpop.permute.xlu0 %3733
        %3735 = vrot.lane.b32.xlu0 %v3698, 127
        %v3736 = vpop.permute.xlu0 %3735
        %3737 = vrot.lane.b32.xlu0 %v3699, 127
        %v3738 = vpop.permute.xlu0 %3737
        %3739 = vrot.lane.b32.xlu0 %v3700, 127
        %v3740 = vpop.permute.xlu0 %3739
        %3741 = vrot.lane.b32.xlu0 %v3701, 127
        %v3742 = vpop.permute.xlu0 %3741
        %3743 = vrot.lane.b32.xlu0 %v3702, 127
        %v3744 = vpop.permute.xlu0 %3743
        %3745 = vrot.lane.b32.xlu0 %v3703, 127
        %v3746 = vpop.permute.xlu0 %3745
        %3747 = vrot.lane.b32.xlu0 %v3704, 127
        %v3748 = vpop.permute.xlu0 %3747
        %3749 = vrot.lane.b32.xlu0 %v3705, 127
        %v3750 = vpop.permute.xlu0 %3749
        %3751 = vrot.lane.b32.xlu0 %v3706, 127
        %v3752 = vpop.permute.xlu0 %3751
        %3753 = vrot.lane.b32.xlu0 %v3707, 127
        %v3754 = vpop.permute.xlu0 %3753
        %3755 = vrot.lane.b32.xlu0 %v3708, 127
        %v3756 = vpop.permute.xlu0 %3755
        %3757 = vrot.lane.b32.xlu0 %v3709, 127
        %v3758 = vpop.permute.xlu0 %3757
        %3759 = vrot.lane.b32.xlu0 %v3710, 127
        %v3760 = vpop.permute.xlu0 %3759
        %3761 = vrot.lane.b32.xlu0 %v3711, 127
        %v3762 = vpop.permute.xlu0 %3761
        %3763 = vrot.lane.b32.xlu0 %v3712, 127
        %v3764 = vpop.permute.xlu0 %3763
        %3765 = vrot.lane.b32.xlu0 %v3713, 127
        %v3766 = vpop.permute.xlu0 %3765
        %3767 = vrot.lane.b32.xlu0 %v3714, 127
        %v3768 = vpop.permute.xlu0 %3767
        %v3769 = vsel %vm677, %v3734, %v3736
        %v3770 = vsel %vm677, %v3736, %v3738
        %v3771 = vsel %vm677, %v3738, %v3740
        %v3772 = vsel %vm677, %v3740, %v3742
        %v3773 = vsel %vm677, %v3742, %v3744
        %v3774 = vsel %vm677, %v3744, %v3746
        %v3775 = vsel %vm677, %v3746, %v3748
        %v3776 = vsel %vm677, %v3748, %v3750
        %v3777 = vsel %vm677, %v3752, %v3754
        %v3778 = vsel %vm677, %v3754, %v3756
        %v3779 = vsel %vm677, %v3756, %v3758
        %v3780 = vsel %vm677, %v3758, %v3760
        %v3781 = vsel %vm677, %v3760, %v3762
        %v3782 = vsel %vm677, %v3762, %v3764
        %v3783 = vsel %vm677, %v3764, %v3766
        %v3784 = vsel %vm677, %v3766, %v3768
        %v3801 = vadd.f32 %v3678, %v3769
        %v3802 = vadd.f32 %v3679, %v3770
        %v3803 = vadd.f32 %v3680, %v3771
        %v3804 = vadd.f32 %v3681, %v3772
        %v3805 = vadd.f32 %v3682, %v3773
        %v3806 = vadd.f32 %v3683, %v3774
        %v3807 = vadd.f32 %v3684, %v3775
        %v3808 = vadd.f32 %v3685, %v3776
        %v3809 = vadd.f32 %v3686, %v3777
        %v3810 = vadd.f32 %v3687, %v3778
        %v3811 = vadd.f32 %v3688, %v3779
        %v3812 = vadd.f32 %v3689, %v3780
        %v3813 = vadd.f32 %v3690, %v3781
        %v3814 = vadd.f32 %v3691, %v3782
        %v3815 = vadd.f32 %v3692, %v3783
        %v3816 = vadd.f32 %v3693, %v3784
        %v3817 = vmul.f32 %v3646, %v728
        %v3818 = vmul.f32 %v3647, %v728
        %v3819 = vmul.f32 %v3648, %v728
        %v3820 = vmul.f32 %v3649, %v728
        %v3821 = vmul.f32 %v3650, %v728
        %v3822 = vmul.f32 %v3651, %v728
        %v3823 = vmul.f32 %v3652, %v728
        %v3824 = vmul.f32 %v3653, %v728
        %v3825 = vmul.f32 %v3695, %v728
        %v3826 = vmul.f32 %v3646, %v732
        %v3827 = vmul.f32 %v3647, %v732
        %v3828 = vmul.f32 %v3648, %v732
        %v3829 = vmul.f32 %v3649, %v732
        %v3830 = vmul.f32 %v3650, %v732
        %v3831 = vmul.f32 %v3651, %v732
        %v3832 = vmul.f32 %v3652, %v732
        %v3833 = vmul.f32 %v3653, %v732
        %v3834 = vmul.f32 %v3695, %v732
        %3853 = vrot.lane.b32.xlu0 %v3817, 126
        %v3854 = vpop.permute.xlu0 %3853
        %3855 = vrot.lane.b32.xlu0 %v3818, 126
        %v3856 = vpop.permute.xlu0 %3855
        %3857 = vrot.lane.b32.xlu0 %v3819, 126
        %v3858 = vpop.permute.xlu0 %3857
        %3859 = vrot.lane.b32.xlu0 %v3820, 126
        %v3860 = vpop.permute.xlu0 %3859
        %3861 = vrot.lane.b32.xlu0 %v3821, 126
        %v3862 = vpop.permute.xlu0 %3861
        %3863 = vrot.lane.b32.xlu0 %v3822, 126
        %v3864 = vpop.permute.xlu0 %3863
        %3865 = vrot.lane.b32.xlu0 %v3823, 126
        %v3866 = vpop.permute.xlu0 %3865
        %3867 = vrot.lane.b32.xlu0 %v3824, 126
        %v3868 = vpop.permute.xlu0 %3867
        %3869 = vrot.lane.b32.xlu0 %v3825, 126
        %v3870 = vpop.permute.xlu0 %3869
        %3871 = vrot.lane.b32.xlu0 %v3826, 126
        %v3872 = vpop.permute.xlu0 %3871
        %3873 = vrot.lane.b32.xlu0 %v3827, 126
        %v3874 = vpop.permute.xlu0 %3873
        %3875 = vrot.lane.b32.xlu0 %v3828, 126
        %v3876 = vpop.permute.xlu0 %3875
        %3877 = vrot.lane.b32.xlu0 %v3829, 126
        %v3878 = vpop.permute.xlu0 %3877
        %3879 = vrot.lane.b32.xlu0 %v3830, 126
        %v3880 = vpop.permute.xlu0 %3879
        %3881 = vrot.lane.b32.xlu0 %v3831, 126
        %v3882 = vpop.permute.xlu0 %3881
        %3883 = vrot.lane.b32.xlu0 %v3832, 126
        %v3884 = vpop.permute.xlu0 %3883
        %3885 = vrot.lane.b32.xlu0 %v3833, 126
        %v3886 = vpop.permute.xlu0 %3885
        %3887 = vrot.lane.b32.xlu0 %v3834, 126
        %v3888 = vpop.permute.xlu0 %3887
        %v3889 = vsel %vm806, %v3854, %v3856
        %v3890 = vsel %vm806, %v3856, %v3858
        %v3891 = vsel %vm806, %v3858, %v3860
        %v3892 = vsel %vm806, %v3860, %v3862
        %v3893 = vsel %vm806, %v3862, %v3864
        %v3894 = vsel %vm806, %v3864, %v3866
        %v3895 = vsel %vm806, %v3866, %v3868
        %v3896 = vsel %vm806, %v3868, %v3870
        %v3897 = vsel %vm806, %v3872, %v3874
        %v3898 = vsel %vm806, %v3874, %v3876
        %v3899 = vsel %vm806, %v3876, %v3878
        %v3900 = vsel %vm806, %v3878, %v3880
        %v3901 = vsel %vm806, %v3880, %v3882
        %v3902 = vsel %vm806, %v3882, %v3884
        %v3903 = vsel %vm806, %v3884, %v3886
        %v3904 = vsel %vm806, %v3886, %v3888
        %v3921 = vadd.f32 %v3801, %v3889
        %v3922 = vadd.f32 %v3802, %v3890
        %v3923 = vadd.f32 %v3803, %v3891
        %v3924 = vadd.f32 %v3804, %v3892
        %v3925 = vadd.f32 %v3805, %v3893
        %v3926 = vadd.f32 %v3806, %v3894
        %v3927 = vadd.f32 %v3807, %v3895
        %v3928 = vadd.f32 %v3808, %v3896
        %v3929 = vadd.f32 %v3809, %v3897
        %v3930 = vadd.f32 %v3810, %v3898
        %v3931 = vadd.f32 %v3811, %v3899
        %v3932 = vadd.f32 %v3812, %v3900
        %v3933 = vadd.f32 %v3813, %v3901
        %v3934 = vadd.f32 %v3814, %v3902
        %v3935 = vadd.f32 %v3815, %v3903
        %v3936 = vadd.f32 %v3816, %v3904
        %v3937 = vmul.f32 %v3646, %v857
        %v3938 = vmul.f32 %v3647, %v857
        %v3939 = vmul.f32 %v3648, %v857
        %v3940 = vmul.f32 %v3649, %v857
        %v3941 = vmul.f32 %v3650, %v857
        %v3942 = vmul.f32 %v3651, %v857
        %v3943 = vmul.f32 %v3652, %v857
        %v3944 = vmul.f32 %v3653, %v857
        %v3945 = vmul.f32 %v3695, %v857
        %v3946 = vmul.f32 %v3646, %v861
        %v3947 = vmul.f32 %v3647, %v861
        %v3948 = vmul.f32 %v3648, %v861
        %v3949 = vmul.f32 %v3649, %v861
        %v3950 = vmul.f32 %v3650, %v861
        %v3951 = vmul.f32 %v3651, %v861
        %v3952 = vmul.f32 %v3652, %v861
        %v3953 = vmul.f32 %v3653, %v861
        %v3954 = vmul.f32 %v3695, %v861
        %3973 = vrot.lane.b32.xlu0 %v3937, 98
        %v3974 = vpop.permute.xlu0 %3973
        %3975 = vrot.lane.b32.xlu0 %v3938, 98
        %v3976 = vpop.permute.xlu0 %3975
        %3977 = vrot.lane.b32.xlu0 %v3939, 98
        %v3978 = vpop.permute.xlu0 %3977
        %3979 = vrot.lane.b32.xlu0 %v3940, 98
        %v3980 = vpop.permute.xlu0 %3979
        %3981 = vrot.lane.b32.xlu0 %v3941, 98
        %v3982 = vpop.permute.xlu0 %3981
        %3983 = vrot.lane.b32.xlu0 %v3942, 98
        %v3984 = vpop.permute.xlu0 %3983
        %3985 = vrot.lane.b32.xlu0 %v3943, 98
        %v3986 = vpop.permute.xlu0 %3985
        %3987 = vrot.lane.b32.xlu0 %v3944, 98
        %v3988 = vpop.permute.xlu0 %3987
        %3989 = vrot.lane.b32.xlu0 %v3945, 98
        %v3990 = vpop.permute.xlu0 %3989
        %3991 = vrot.lane.b32.xlu0 %v3946, 98
        %v3992 = vpop.permute.xlu0 %3991
        %3993 = vrot.lane.b32.xlu0 %v3947, 98
        %v3994 = vpop.permute.xlu0 %3993
        %3995 = vrot.lane.b32.xlu0 %v3948, 98
        %v3996 = vpop.permute.xlu0 %3995
        %3997 = vrot.lane.b32.xlu0 %v3949, 98
        %v3998 = vpop.permute.xlu0 %3997
        %3999 = vrot.lane.b32.xlu0 %v3950, 98
        %v4000 = vpop.permute.xlu0 %3999
        %4001 = vrot.lane.b32.xlu0 %v3951, 98
        %v4002 = vpop.permute.xlu0 %4001
        %4003 = vrot.lane.b32.xlu0 %v3952, 98
        %v4004 = vpop.permute.xlu0 %4003
        %4005 = vrot.lane.b32.xlu0 %v3953, 98
        %v4006 = vpop.permute.xlu0 %4005
        %4007 = vrot.lane.b32.xlu0 %v3954, 98
        %v4008 = vpop.permute.xlu0 %4007
        %v4009 = vsel %vm935, %v3974, %v3976
        %v4010 = vsel %vm935, %v3976, %v3978
        %v4011 = vsel %vm935, %v3978, %v3980
        %v4012 = vsel %vm935, %v3980, %v3982
        %v4013 = vsel %vm935, %v3982, %v3984
        %v4014 = vsel %vm935, %v3984, %v3986
        %v4015 = vsel %vm935, %v3986, %v3988
        %v4016 = vsel %vm935, %v3988, %v3990
        %v4017 = vsel %vm935, %v3992, %v3994
        %v4018 = vsel %vm935, %v3994, %v3996
        %v4019 = vsel %vm935, %v3996, %v3998
        %v4020 = vsel %vm935, %v3998, %v4000
        %v4021 = vsel %vm935, %v4000, %v4002
        %v4022 = vsel %vm935, %v4002, %v4004
        %v4023 = vsel %vm935, %v4004, %v4006
        %v4024 = vsel %vm935, %v4006, %v4008
        %v4041 = vadd.f32 %v3921, %v4009
        %v4042 = vadd.f32 %v3922, %v4010
        %v4043 = vadd.f32 %v3923, %v4011
        %v4044 = vadd.f32 %v3924, %v4012
        %v4045 = vadd.f32 %v3925, %v4013
        %v4046 = vadd.f32 %v3926, %v4014
        %v4047 = vadd.f32 %v3927, %v4015
        %v4048 = vadd.f32 %v3928, %v4016
        %v4049 = vadd.f32 %v3929, %v4017
        %v4050 = vadd.f32 %v3930, %v4018
        %v4051 = vadd.f32 %v3931, %v4019
        %v4052 = vadd.f32 %v3932, %v4020
        %v4053 = vadd.f32 %v3933, %v4021
        %v4054 = vadd.f32 %v3934, %v4022
        %v4055 = vadd.f32 %v3935, %v4023
        %v4056 = vadd.f32 %v3936, %v4024
        %v4057 = vmul.f32 %v3646, %v986
        %v4058 = vmul.f32 %v3647, %v986
        %v4059 = vmul.f32 %v3648, %v986
        %v4060 = vmul.f32 %v3649, %v986
        %v4061 = vmul.f32 %v3650, %v986
        %v4062 = vmul.f32 %v3651, %v986
        %v4063 = vmul.f32 %v3652, %v986
        %v4064 = vmul.f32 %v3653, %v986
        %v4065 = vmul.f32 %v3695, %v986
        %v4066 = vmul.f32 %v3646, %v990
        %v4067 = vmul.f32 %v3647, %v990
        %v4068 = vmul.f32 %v3648, %v990
        %v4069 = vmul.f32 %v3649, %v990
        %v4070 = vmul.f32 %v3650, %v990
        %v4071 = vmul.f32 %v3651, %v990
        %v4072 = vmul.f32 %v3652, %v990
        %v4073 = vmul.f32 %v3653, %v990
        %v4074 = vmul.f32 %v3695, %v990
        %4093 = vrot.lane.b32.xlu0 %v4057, 97
        %v4094 = vpop.permute.xlu0 %4093
        %4095 = vrot.lane.b32.xlu0 %v4058, 97
        %v4096 = vpop.permute.xlu0 %4095
        %4097 = vrot.lane.b32.xlu0 %v4059, 97
        %v4098 = vpop.permute.xlu0 %4097
        %4099 = vrot.lane.b32.xlu0 %v4060, 97
        %v4100 = vpop.permute.xlu0 %4099
        %4101 = vrot.lane.b32.xlu0 %v4061, 97
        %v4102 = vpop.permute.xlu0 %4101
        %4103 = vrot.lane.b32.xlu0 %v4062, 97
        %v4104 = vpop.permute.xlu0 %4103
        %4105 = vrot.lane.b32.xlu0 %v4063, 97
        %v4106 = vpop.permute.xlu0 %4105
        %4107 = vrot.lane.b32.xlu0 %v4064, 97
        %v4108 = vpop.permute.xlu0 %4107
        %4109 = vrot.lane.b32.xlu0 %v4065, 97
        %v4110 = vpop.permute.xlu0 %4109
        %4111 = vrot.lane.b32.xlu0 %v4066, 97
        %v4112 = vpop.permute.xlu0 %4111
        %4113 = vrot.lane.b32.xlu0 %v4067, 97
        %v4114 = vpop.permute.xlu0 %4113
        %4115 = vrot.lane.b32.xlu0 %v4068, 97
        %v4116 = vpop.permute.xlu0 %4115
        %4117 = vrot.lane.b32.xlu0 %v4069, 97
        %v4118 = vpop.permute.xlu0 %4117
        %4119 = vrot.lane.b32.xlu0 %v4070, 97
        %v4120 = vpop.permute.xlu0 %4119
        %4121 = vrot.lane.b32.xlu0 %v4071, 97
        %v4122 = vpop.permute.xlu0 %4121
        %4123 = vrot.lane.b32.xlu0 %v4072, 97
        %v4124 = vpop.permute.xlu0 %4123
        %4125 = vrot.lane.b32.xlu0 %v4073, 97
        %v4126 = vpop.permute.xlu0 %4125
        %4127 = vrot.lane.b32.xlu0 %v4074, 97
        %v4128 = vpop.permute.xlu0 %4127
        %v4129 = vsel %vm1064, %v4094, %v4096
        %v4130 = vsel %vm1064, %v4096, %v4098
        %v4131 = vsel %vm1064, %v4098, %v4100
        %v4132 = vsel %vm1064, %v4100, %v4102
        %v4133 = vsel %vm1064, %v4102, %v4104
        %v4134 = vsel %vm1064, %v4104, %v4106
        %v4135 = vsel %vm1064, %v4106, %v4108
        %v4136 = vsel %vm1064, %v4108, %v4110
        %v4137 = vsel %vm1064, %v4112, %v4114
        %v4138 = vsel %vm1064, %v4114, %v4116
        %v4139 = vsel %vm1064, %v4116, %v4118
        %v4140 = vsel %vm1064, %v4118, %v4120
        %v4141 = vsel %vm1064, %v4120, %v4122
        %v4142 = vsel %vm1064, %v4122, %v4124
        %v4143 = vsel %vm1064, %v4124, %v4126
        %v4144 = vsel %vm1064, %v4126, %v4128
        %v4161 = vadd.f32 %v4041, %v4129
        %v4162 = vadd.f32 %v4042, %v4130
        %v4163 = vadd.f32 %v4043, %v4131
        %v4164 = vadd.f32 %v4044, %v4132
        %v4165 = vadd.f32 %v4045, %v4133
        %v4166 = vadd.f32 %v4046, %v4134
        %v4167 = vadd.f32 %v4047, %v4135
        %v4168 = vadd.f32 %v4048, %v4136
        %v4169 = vadd.f32 %v4049, %v4137
        %v4170 = vadd.f32 %v4050, %v4138
        %v4171 = vadd.f32 %v4051, %v4139
        %v4172 = vadd.f32 %v4052, %v4140
        %v4173 = vadd.f32 %v4053, %v4141
        %v4174 = vadd.f32 %v4054, %v4142
        %v4175 = vadd.f32 %v4055, %v4143
        %v4176 = vadd.f32 %v4056, %v4144
        %v4177 = vmul.f32 %v3646, %v1115
        %v4178 = vmul.f32 %v3647, %v1115
        %v4179 = vmul.f32 %v3648, %v1115
        %v4180 = vmul.f32 %v3649, %v1115
        %v4181 = vmul.f32 %v3650, %v1115
        %v4182 = vmul.f32 %v3651, %v1115
        %v4183 = vmul.f32 %v3652, %v1115
        %v4184 = vmul.f32 %v3653, %v1115
        %v4185 = vmul.f32 %v3695, %v1115
        %v4186 = vmul.f32 %v3646, %v1119
        %v4187 = vmul.f32 %v3647, %v1119
        %v4188 = vmul.f32 %v3648, %v1119
        %v4189 = vmul.f32 %v3649, %v1119
        %v4190 = vmul.f32 %v3650, %v1119
        %v4191 = vmul.f32 %v3651, %v1119
        %v4192 = vmul.f32 %v3652, %v1119
        %v4193 = vmul.f32 %v3653, %v1119
        %v4194 = vmul.f32 %v3695, %v1119
        %4213 = vrot.lane.b32.xlu0 %v4177, 96
        %v4214 = vpop.permute.xlu0 %4213
        %4215 = vrot.lane.b32.xlu0 %v4178, 96
        %v4216 = vpop.permute.xlu0 %4215
        %4217 = vrot.lane.b32.xlu0 %v4179, 96
        %v4218 = vpop.permute.xlu0 %4217
        %4219 = vrot.lane.b32.xlu0 %v4180, 96
        %v4220 = vpop.permute.xlu0 %4219
        %4221 = vrot.lane.b32.xlu0 %v4181, 96
        %v4222 = vpop.permute.xlu0 %4221
        %4223 = vrot.lane.b32.xlu0 %v4182, 96
        %v4224 = vpop.permute.xlu0 %4223
        %4225 = vrot.lane.b32.xlu0 %v4183, 96
        %v4226 = vpop.permute.xlu0 %4225
        %4227 = vrot.lane.b32.xlu0 %v4184, 96
        %v4228 = vpop.permute.xlu0 %4227
        %4229 = vrot.lane.b32.xlu0 %v4185, 96
        %v4230 = vpop.permute.xlu0 %4229
        %4231 = vrot.lane.b32.xlu0 %v4186, 96
        %v4232 = vpop.permute.xlu0 %4231
        %4233 = vrot.lane.b32.xlu0 %v4187, 96
        %v4234 = vpop.permute.xlu0 %4233
        %4235 = vrot.lane.b32.xlu0 %v4188, 96
        %v4236 = vpop.permute.xlu0 %4235
        %4237 = vrot.lane.b32.xlu0 %v4189, 96
        %v4238 = vpop.permute.xlu0 %4237
        %4239 = vrot.lane.b32.xlu0 %v4190, 96
        %v4240 = vpop.permute.xlu0 %4239
        %4241 = vrot.lane.b32.xlu0 %v4191, 96
        %v4242 = vpop.permute.xlu0 %4241
        %4243 = vrot.lane.b32.xlu0 %v4192, 96
        %v4244 = vpop.permute.xlu0 %4243
        %4245 = vrot.lane.b32.xlu0 %v4193, 96
        %v4246 = vpop.permute.xlu0 %4245
        %4247 = vrot.lane.b32.xlu0 %v4194, 96
        %v4248 = vpop.permute.xlu0 %4247
        %v4249 = vsel %vm1193, %v4214, %v4216
        %v4250 = vsel %vm1193, %v4216, %v4218
        %v4251 = vsel %vm1193, %v4218, %v4220
        %v4252 = vsel %vm1193, %v4220, %v4222
        %v4253 = vsel %vm1193, %v4222, %v4224
        %v4254 = vsel %vm1193, %v4224, %v4226
        %v4255 = vsel %vm1193, %v4226, %v4228
        %v4256 = vsel %vm1193, %v4228, %v4230
        %v4257 = vsel %vm1193, %v4232, %v4234
        %v4258 = vsel %vm1193, %v4234, %v4236
        %v4259 = vsel %vm1193, %v4236, %v4238
        %v4260 = vsel %vm1193, %v4238, %v4240
        %v4261 = vsel %vm1193, %v4240, %v4242
        %v4262 = vsel %vm1193, %v4242, %v4244
        %v4263 = vsel %vm1193, %v4244, %v4246
        %v4264 = vsel %vm1193, %v4246, %v4248
        %v4281 = vadd.f32 %v4161, %v4249
        %v4282 = vadd.f32 %v4162, %v4250
        %v4283 = vadd.f32 %v4163, %v4251
        %v4284 = vadd.f32 %v4164, %v4252
        %v4285 = vadd.f32 %v4165, %v4253
        %v4286 = vadd.f32 %v4166, %v4254
        %v4287 = vadd.f32 %v4167, %v4255
        %v4288 = vadd.f32 %v4168, %v4256
        %v4289 = vadd.f32 %v4169, %v4257
        %v4290 = vadd.f32 %v4170, %v4258
        %v4291 = vadd.f32 %v4171, %v4259
        %v4292 = vadd.f32 %v4172, %v4260
        %v4293 = vadd.f32 %v4173, %v4261
        %v4294 = vadd.f32 %v4174, %v4262
        %v4295 = vadd.f32 %v4175, %v4263
        %v4296 = vadd.f32 %v4176, %v4264
        %v4297 = vmul.f32 %v3646, %v1244
        %v4298 = vmul.f32 %v3647, %v1244
        %v4299 = vmul.f32 %v3648, %v1244
        %v4300 = vmul.f32 %v3649, %v1244
        %v4301 = vmul.f32 %v3650, %v1244
        %v4302 = vmul.f32 %v3651, %v1244
        %v4303 = vmul.f32 %v3652, %v1244
        %v4304 = vmul.f32 %v3653, %v1244
        %v4305 = vmul.f32 %v3695, %v1244
        %v4306 = vmul.f32 %v3646, %v1248
        %v4307 = vmul.f32 %v3647, %v1248
        %v4308 = vmul.f32 %v3648, %v1248
        %v4309 = vmul.f32 %v3649, %v1248
        %v4310 = vmul.f32 %v3650, %v1248
        %v4311 = vmul.f32 %v3651, %v1248
        %v4312 = vmul.f32 %v3652, %v1248
        %v4313 = vmul.f32 %v3653, %v1248
        %v4314 = vmul.f32 %v3695, %v1248
        %4333 = vrot.lane.b32.xlu0 %v4297, 68
        %v4334 = vpop.permute.xlu0 %4333
        %4335 = vrot.lane.b32.xlu0 %v4298, 68
        %v4336 = vpop.permute.xlu0 %4335
        %4337 = vrot.lane.b32.xlu0 %v4299, 68
        %v4338 = vpop.permute.xlu0 %4337
        %4339 = vrot.lane.b32.xlu0 %v4300, 68
        %v4340 = vpop.permute.xlu0 %4339
        %4341 = vrot.lane.b32.xlu0 %v4301, 68
        %v4342 = vpop.permute.xlu0 %4341
        %4343 = vrot.lane.b32.xlu0 %v4302, 68
        %v4344 = vpop.permute.xlu0 %4343
        %4345 = vrot.lane.b32.xlu0 %v4303, 68
        %v4346 = vpop.permute.xlu0 %4345
        %4347 = vrot.lane.b32.xlu0 %v4304, 68
        %v4348 = vpop.permute.xlu0 %4347
        %4349 = vrot.lane.b32.xlu0 %v4305, 68
        %v4350 = vpop.permute.xlu0 %4349
        %4351 = vrot.lane.b32.xlu0 %v4306, 68
        %v4352 = vpop.permute.xlu0 %4351
        %4353 = vrot.lane.b32.xlu0 %v4307, 68
        %v4354 = vpop.permute.xlu0 %4353
        %4355 = vrot.lane.b32.xlu0 %v4308, 68
        %v4356 = vpop.permute.xlu0 %4355
        %4357 = vrot.lane.b32.xlu0 %v4309, 68
        %v4358 = vpop.permute.xlu0 %4357
        %4359 = vrot.lane.b32.xlu0 %v4310, 68
        %v4360 = vpop.permute.xlu0 %4359
        %4361 = vrot.lane.b32.xlu0 %v4311, 68
        %v4362 = vpop.permute.xlu0 %4361
        %4363 = vrot.lane.b32.xlu0 %v4312, 68
        %v4364 = vpop.permute.xlu0 %4363
        %4365 = vrot.lane.b32.xlu0 %v4313, 68
        %v4366 = vpop.permute.xlu0 %4365
        %4367 = vrot.lane.b32.xlu0 %v4314, 68
        %v4368 = vpop.permute.xlu0 %4367
        %v4369 = vsel %vm1322, %v4334, %v4336
        %v4370 = vsel %vm1322, %v4336, %v4338
        %v4371 = vsel %vm1322, %v4338, %v4340
        %v4372 = vsel %vm1322, %v4340, %v4342
        %v4373 = vsel %vm1322, %v4342, %v4344
        %v4374 = vsel %vm1322, %v4344, %v4346
        %v4375 = vsel %vm1322, %v4346, %v4348
        %v4376 = vsel %vm1322, %v4348, %v4350
        %v4377 = vsel %vm1322, %v4352, %v4354
        %v4378 = vsel %vm1322, %v4354, %v4356
        %v4379 = vsel %vm1322, %v4356, %v4358
        %v4380 = vsel %vm1322, %v4358, %v4360
        %v4381 = vsel %vm1322, %v4360, %v4362
        %v4382 = vsel %vm1322, %v4362, %v4364
        %v4383 = vsel %vm1322, %v4364, %v4366
        %v4384 = vsel %vm1322, %v4366, %v4368
        %v4401 = vadd.f32 %v4281, %v4369
        %v4402 = vadd.f32 %v4282, %v4370
        %v4403 = vadd.f32 %v4283, %v4371
        %v4404 = vadd.f32 %v4284, %v4372
        %v4405 = vadd.f32 %v4285, %v4373
        %v4406 = vadd.f32 %v4286, %v4374
        %v4407 = vadd.f32 %v4287, %v4375
        %v4408 = vadd.f32 %v4288, %v4376
        %v4409 = vadd.f32 %v4289, %v4377
        %v4410 = vadd.f32 %v4290, %v4378
        %v4411 = vadd.f32 %v4291, %v4379
        %v4412 = vadd.f32 %v4292, %v4380
        %v4413 = vadd.f32 %v4293, %v4381
        %v4414 = vadd.f32 %v4294, %v4382
        %v4415 = vadd.f32 %v4295, %v4383
        %v4416 = vadd.f32 %v4296, %v4384
        %v4417 = vmul.f32 %v3646, %v1373
        %v4418 = vmul.f32 %v3647, %v1373
        %v4419 = vmul.f32 %v3648, %v1373
        %v4420 = vmul.f32 %v3649, %v1373
        %v4421 = vmul.f32 %v3650, %v1373
        %v4422 = vmul.f32 %v3651, %v1373
        %v4423 = vmul.f32 %v3652, %v1373
        %v4424 = vmul.f32 %v3653, %v1373
        %v4425 = vmul.f32 %v3695, %v1373
        %v4426 = vmul.f32 %v3646, %v1377
        %v4427 = vmul.f32 %v3647, %v1377
        %v4428 = vmul.f32 %v3648, %v1377
        %v4429 = vmul.f32 %v3649, %v1377
        %v4430 = vmul.f32 %v3650, %v1377
        %v4431 = vmul.f32 %v3651, %v1377
        %v4432 = vmul.f32 %v3652, %v1377
        %v4433 = vmul.f32 %v3653, %v1377
        %v4434 = vmul.f32 %v3695, %v1377
        %4453 = vrot.lane.b32.xlu0 %v4417, 67
        %v4454 = vpop.permute.xlu0 %4453
        %4455 = vrot.lane.b32.xlu0 %v4418, 67
        %v4456 = vpop.permute.xlu0 %4455
        %4457 = vrot.lane.b32.xlu0 %v4419, 67
        %v4458 = vpop.permute.xlu0 %4457
        %4459 = vrot.lane.b32.xlu0 %v4420, 67
        %v4460 = vpop.permute.xlu0 %4459
        %4461 = vrot.lane.b32.xlu0 %v4421, 67
        %v4462 = vpop.permute.xlu0 %4461
        %4463 = vrot.lane.b32.xlu0 %v4422, 67
        %v4464 = vpop.permute.xlu0 %4463
        %4465 = vrot.lane.b32.xlu0 %v4423, 67
        %v4466 = vpop.permute.xlu0 %4465
        %4467 = vrot.lane.b32.xlu0 %v4424, 67
        %v4468 = vpop.permute.xlu0 %4467
        %4469 = vrot.lane.b32.xlu0 %v4425, 67
        %v4470 = vpop.permute.xlu0 %4469
        %4471 = vrot.lane.b32.xlu0 %v4426, 67
        %v4472 = vpop.permute.xlu0 %4471
        %4473 = vrot.lane.b32.xlu0 %v4427, 67
        %v4474 = vpop.permute.xlu0 %4473
        %4475 = vrot.lane.b32.xlu0 %v4428, 67
        %v4476 = vpop.permute.xlu0 %4475
        %4477 = vrot.lane.b32.xlu0 %v4429, 67
        %v4478 = vpop.permute.xlu0 %4477
        %4479 = vrot.lane.b32.xlu0 %v4430, 67
        %v4480 = vpop.permute.xlu0 %4479
        %4481 = vrot.lane.b32.xlu0 %v4431, 67
        %v4482 = vpop.permute.xlu0 %4481
        %4483 = vrot.lane.b32.xlu0 %v4432, 67
        %v4484 = vpop.permute.xlu0 %4483
        %4485 = vrot.lane.b32.xlu0 %v4433, 67
        %v4486 = vpop.permute.xlu0 %4485
        %4487 = vrot.lane.b32.xlu0 %v4434, 67
        %v4488 = vpop.permute.xlu0 %4487
        %v4489 = vsel %vm1451, %v4454, %v4456
        %v4490 = vsel %vm1451, %v4456, %v4458
        %v4491 = vsel %vm1451, %v4458, %v4460
        %v4492 = vsel %vm1451, %v4460, %v4462
        %v4493 = vsel %vm1451, %v4462, %v4464
        %v4494 = vsel %vm1451, %v4464, %v4466
        %v4495 = vsel %vm1451, %v4466, %v4468
        %v4496 = vsel %vm1451, %v4468, %v4470
        %v4497 = vsel %vm1451, %v4472, %v4474
        %v4498 = vsel %vm1451, %v4474, %v4476
        %v4499 = vsel %vm1451, %v4476, %v4478
        %v4500 = vsel %vm1451, %v4478, %v4480
        %v4501 = vsel %vm1451, %v4480, %v4482
        %v4502 = vsel %vm1451, %v4482, %v4484
        %v4503 = vsel %vm1451, %v4484, %v4486
        %v4504 = vsel %vm1451, %v4486, %v4488
        %v4521 = vadd.f32 %v4401, %v4489
        %v4522 = vadd.f32 %v4402, %v4490
        %v4523 = vadd.f32 %v4403, %v4491
        %v4524 = vadd.f32 %v4404, %v4492
        %v4525 = vadd.f32 %v4405, %v4493
        %v4526 = vadd.f32 %v4406, %v4494
        %v4527 = vadd.f32 %v4407, %v4495
        %v4528 = vadd.f32 %v4408, %v4496
        %v4529 = vadd.f32 %v4409, %v4497
        %v4530 = vadd.f32 %v4410, %v4498
        %v4531 = vadd.f32 %v4411, %v4499
        %v4532 = vadd.f32 %v4412, %v4500
        %v4533 = vadd.f32 %v4413, %v4501
        %v4534 = vadd.f32 %v4414, %v4502
        %v4535 = vadd.f32 %v4415, %v4503
        %v4536 = vadd.f32 %v4416, %v4504
        %v4537 = vmul.f32 %v3646, %v1502
        %v4538 = vmul.f32 %v3647, %v1502
        %v4539 = vmul.f32 %v3648, %v1502
        %v4540 = vmul.f32 %v3649, %v1502
        %v4541 = vmul.f32 %v3650, %v1502
        %v4542 = vmul.f32 %v3651, %v1502
        %v4543 = vmul.f32 %v3652, %v1502
        %v4544 = vmul.f32 %v3653, %v1502
        %v4545 = vmul.f32 %v3695, %v1502
        %v4546 = vmul.f32 %v3646, %v1506
        %v4547 = vmul.f32 %v3647, %v1506
        %v4548 = vmul.f32 %v3648, %v1506
        %v4549 = vmul.f32 %v3649, %v1506
        %v4550 = vmul.f32 %v3650, %v1506
        %v4551 = vmul.f32 %v3651, %v1506
        %v4552 = vmul.f32 %v3652, %v1506
        %v4553 = vmul.f32 %v3653, %v1506
        %v4554 = vmul.f32 %v3695, %v1506
        %4573 = vrot.lane.b32.xlu0 %v4537, 66
        %v4574 = vpop.permute.xlu0 %4573
        %4575 = vrot.lane.b32.xlu0 %v4538, 66
        %v4576 = vpop.permute.xlu0 %4575
        %4577 = vrot.lane.b32.xlu0 %v4539, 66
        %v4578 = vpop.permute.xlu0 %4577
        %4579 = vrot.lane.b32.xlu0 %v4540, 66
        %v4580 = vpop.permute.xlu0 %4579
        %4581 = vrot.lane.b32.xlu0 %v4541, 66
        %v4582 = vpop.permute.xlu0 %4581
        %4583 = vrot.lane.b32.xlu0 %v4542, 66
        %v4584 = vpop.permute.xlu0 %4583
        %4585 = vrot.lane.b32.xlu0 %v4543, 66
        %v4586 = vpop.permute.xlu0 %4585
        %4587 = vrot.lane.b32.xlu0 %v4544, 66
        %v4588 = vpop.permute.xlu0 %4587
        %4589 = vrot.lane.b32.xlu0 %v4545, 66
        %v4590 = vpop.permute.xlu0 %4589
        %4591 = vrot.lane.b32.xlu0 %v4546, 66
        %v4592 = vpop.permute.xlu0 %4591
        %4593 = vrot.lane.b32.xlu0 %v4547, 66
        %v4594 = vpop.permute.xlu0 %4593
        %4595 = vrot.lane.b32.xlu0 %v4548, 66
        %v4596 = vpop.permute.xlu0 %4595
        %4597 = vrot.lane.b32.xlu0 %v4549, 66
        %v4598 = vpop.permute.xlu0 %4597
        %4599 = vrot.lane.b32.xlu0 %v4550, 66
        %v4600 = vpop.permute.xlu0 %4599
        %4601 = vrot.lane.b32.xlu0 %v4551, 66
        %v4602 = vpop.permute.xlu0 %4601
        %4603 = vrot.lane.b32.xlu0 %v4552, 66
        %v4604 = vpop.permute.xlu0 %4603
        %4605 = vrot.lane.b32.xlu0 %v4553, 66
        %v4606 = vpop.permute.xlu0 %4605
        %4607 = vrot.lane.b32.xlu0 %v4554, 66
        %v4608 = vpop.permute.xlu0 %4607
        %v4609 = vsel %vm1580, %v4574, %v4576
        %v4610 = vsel %vm1580, %v4576, %v4578
        %v4611 = vsel %vm1580, %v4578, %v4580
        %v4612 = vsel %vm1580, %v4580, %v4582
        %v4613 = vsel %vm1580, %v4582, %v4584
        %v4614 = vsel %vm1580, %v4584, %v4586
        %v4615 = vsel %vm1580, %v4586, %v4588
        %v4616 = vsel %vm1580, %v4588, %v4590
        %v4617 = vsel %vm1580, %v4592, %v4594
        %v4618 = vsel %vm1580, %v4594, %v4596
        %v4619 = vsel %vm1580, %v4596, %v4598
        %v4620 = vsel %vm1580, %v4598, %v4600
        %v4621 = vsel %vm1580, %v4600, %v4602
        %v4622 = vsel %vm1580, %v4602, %v4604
        %v4623 = vsel %vm1580, %v4604, %v4606
        %v4624 = vsel %vm1580, %v4606, %v4608
        %v4641 = vadd.f32 %v4521, %v4609
        %v4642 = vadd.f32 %v4522, %v4610
        %v4643 = vadd.f32 %v4523, %v4611
        %v4644 = vadd.f32 %v4524, %v4612
        %v4645 = vadd.f32 %v4525, %v4613
        %v4646 = vadd.f32 %v4526, %v4614
        %v4647 = vadd.f32 %v4527, %v4615
        %v4648 = vadd.f32 %v4528, %v4616
        %v4649 = vadd.f32 %v4529, %v4617
        %v4650 = vadd.f32 %v4530, %v4618
        %v4651 = vadd.f32 %v4531, %v4619
        %v4652 = vadd.f32 %v4532, %v4620
        %v4653 = vadd.f32 %v4533, %v4621
        %v4654 = vadd.f32 %v4534, %v4622
        %v4655 = vadd.f32 %v4535, %v4623
        %v4656 = vadd.f32 %v4536, %v4624
        %v4657 = vadd.f32 %v4641, %v1632
        %v4658 = vadd.f32 %v4642, %v1632
        %v4659 = vadd.f32 %v4643, %v1632
        %v4660 = vadd.f32 %v4644, %v1632
        %v4661 = vadd.f32 %v4645, %v1632
        %v4662 = vadd.f32 %v4646, %v1632
        %v4663 = vadd.f32 %v4647, %v1632
        %v4664 = vadd.f32 %v4648, %v1632
        %v4665 = vadd.f32 %v4649, %v1637
        %v4666 = vadd.f32 %v4650, %v1637
        %v4667 = vadd.f32 %v4651, %v1637
        %v4668 = vadd.f32 %v4652, %v1637
        %v4669 = vadd.f32 %v4653, %v1637
        %v4670 = vadd.f32 %v4654, %v1637
        %v4671 = vadd.f32 %v4655, %v1637
        %v4672 = vadd.f32 %v4656, %v1637
        %v4673 = vmax.f32 %v4657, 0.0
        %v4674 = vmax.f32 %v4658, 0.0
        %v4675 = vmax.f32 %v4659, 0.0
        %v4676 = vmax.f32 %v4660, 0.0
        %v4677 = vmax.f32 %v4661, 0.0
        %v4678 = vmax.f32 %v4662, 0.0
        %v4679 = vmax.f32 %v4663, 0.0
        %v4680 = vmax.f32 %v4664, 0.0
        %v4681 = vmax.f32 %v4665, 0.0
        %v4682 = vmax.f32 %v4666, 0.0
        %v4683 = vmax.f32 %v4667, 0.0
        %v4684 = vmax.f32 %v4668, 0.0
        %v4685 = vmax.f32 %v4669, 0.0
        %v4686 = vmax.f32 %v4670, 0.0
        %v4687 = vmax.f32 %v4671, 0.0
        %v4688 = vmax.f32 %v4672, 0.0
        %v4689 = vmul.f32 %v4673, %v1672
        %v4690 = vmul.f32 %v4674, %v1673
        %v4691 = vmul.f32 %v4675, %v1674
        %v4692 = vmul.f32 %v4676, %v1675
        %v4693 = vmul.f32 %v4677, %v1676
        %v4694 = vmul.f32 %v4678, %v1677
        %v4695 = vmul.f32 %v4679, %v1678
        %v4696 = vmul.f32 %v4680, %v1679
        %v4697 = vmul.f32 %v4681, %v1672
        %v4698 = vmul.f32 %v4682, %v1673
        %v4699 = vmul.f32 %v4683, %v1674
        %v4700 = vmul.f32 %v4684, %v1675
        %v4701 = vmul.f32 %v4685, %v1676
        %v4702 = vmul.f32 %v4686, %v1677
        %v4703 = vmul.f32 %v4687, %v1678
        %v4704 = vmul.f32 %v4688, %v1679
        %v4705 = vpack.c.bf16 %v4690, %v4689
        %v4706 = vpack.c.bf16 %v4692, %v4691
        %v4707 = vpack.c.bf16 %v4694, %v4693
        %v4708 = vpack.c.bf16 %v4696, %v4695
        %v4709 = vpack.c.bf16 %v4698, %v4697
        %v4710 = vpack.c.bf16 %v4700, %v4699
        %v4711 = vpack.c.bf16 %v4702, %v4701
        %v4712 = vpack.c.bf16 %v4704, %v4703
        %v4721 = vunpack.c.l.b16 %v4705
        %v4722 = vunpack.c.h.b16 %v4705
        %v4723 = vunpack.c.l.b16 %v4706
        %v4724 = vunpack.c.h.b16 %v4706
        %v4725 = vunpack.c.l.b16 %v4707
        %v4726 = vunpack.c.h.b16 %v4707
        %v4727 = vunpack.c.l.b16 %v4708
        %v4728 = vunpack.c.h.b16 %v4708
        %v4729 = vunpack.c.l.b16 %v4709
        %v4730 = vunpack.c.h.b16 %v4709
        %v4731 = vunpack.c.l.b16 %v4710
        %v4732 = vunpack.c.h.b16 %v4710
        %v4733 = vunpack.c.l.b16 %v4711
        %v4734 = vunpack.c.h.b16 %v4711
        %v4735 = vunpack.c.l.b16 %v4712
        %v4736 = vunpack.c.h.b16 %v4712
        %v4737 = vpack.c.b16 %v4729, %v4721
        %v4738 = vpack.c.b16 %v4730, %v4722
        %v4739 = vpack.c.b16 %v4731, %v4723
        %v4740 = vpack.c.b16 %v4732, %v4724
        %v4741 = vpack.c.b16 %v4733, %v4725
        %v4742 = vpack.c.b16 %v4734, %v4726
        %v4743 = vpack.c.b16 %v4735, %v4727
        %v4744 = vpack.c.b16 %v4736, %v4728
        %4745 = vrot.lane.b32.xlu0 %v4737, 127
        %v4746 = vpop.permute.xlu0 %4745
        %4747 = vrot.lane.b32.xlu0 %v4738, 127
        %v4748 = vpop.permute.xlu0 %4747
        %4749 = vrot.lane.b32.xlu0 %v4739, 127
        %v4750 = vpop.permute.xlu0 %4749
        %4751 = vrot.lane.b32.xlu0 %v4740, 127
        %v4752 = vpop.permute.xlu0 %4751
        %4753 = vrot.lane.b32.xlu0 %v4741, 127
        %v4754 = vpop.permute.xlu0 %4753
        %4755 = vrot.lane.b32.xlu0 %v4742, 127
        %v4756 = vpop.permute.xlu0 %4755
        %4757 = vrot.lane.b32.xlu0 %v4743, 127
        %v4758 = vpop.permute.xlu0 %4757
        %4759 = vrot.lane.b32.xlu0 %v4744, 127
        %v4760 = vpop.permute.xlu0 %4759
        %v4761 = vsel %vm1763, %v1746, %v4746
        %v4762 = vsel %vm1763, %v4746, %v4748
        %v4763 = vsel %vm1763, %v4748, %v4750
        %v4764 = vsel %vm1763, %v4750, %v4752
        %v4765 = vsel %vm1763, %v4752, %v4754
        %v4766 = vsel %vm1763, %v4754, %v4756
        %v4767 = vsel %vm1763, %v4756, %v4758
        %v4768 = vsel %vm1763, %v4758, %v4760
        %4769 = vrot.lane.b32.xlu0 %v4737, 126
        %v4770 = vpop.permute.xlu0 %4769
        %4771 = vrot.lane.b32.xlu0 %v4738, 126
        %v4772 = vpop.permute.xlu0 %4771
        %4773 = vrot.lane.b32.xlu0 %v4739, 126
        %v4774 = vpop.permute.xlu0 %4773
        %4775 = vrot.lane.b32.xlu0 %v4740, 126
        %v4776 = vpop.permute.xlu0 %4775
        %4777 = vrot.lane.b32.xlu0 %v4741, 126
        %v4778 = vpop.permute.xlu0 %4777
        %4779 = vrot.lane.b32.xlu0 %v4742, 126
        %v4780 = vpop.permute.xlu0 %4779
        %4781 = vrot.lane.b32.xlu0 %v4743, 126
        %v4782 = vpop.permute.xlu0 %4781
        %4783 = vrot.lane.b32.xlu0 %v4744, 126
        %v4784 = vpop.permute.xlu0 %4783
        %v4785 = vsel %vm1790, %v1773, %v4770
        %v4786 = vsel %vm1790, %v4770, %v4772
        %v4787 = vsel %vm1790, %v4772, %v4774
        %v4788 = vsel %vm1790, %v4774, %v4776
        %v4789 = vsel %vm1790, %v4776, %v4778
        %v4790 = vsel %vm1790, %v4778, %v4780
        %v4791 = vsel %vm1790, %v4780, %v4782
        %v4792 = vsel %vm1790, %v4782, %v4784
        %4793 = vrot.lane.b32.xlu0 %v4737, 98
        %v4794 = vpop.permute.xlu0 %4793
        %4795 = vrot.lane.b32.xlu0 %v4738, 98
        %v4796 = vpop.permute.xlu0 %4795
        %4797 = vrot.lane.b32.xlu0 %v4739, 98
        %v4798 = vpop.permute.xlu0 %4797
        %4799 = vrot.lane.b32.xlu0 %v4740, 98
        %v4800 = vpop.permute.xlu0 %4799
        %4801 = vrot.lane.b32.xlu0 %v4741, 98
        %v4802 = vpop.permute.xlu0 %4801
        %4803 = vrot.lane.b32.xlu0 %v4742, 98
        %v4804 = vpop.permute.xlu0 %4803
        %4805 = vrot.lane.b32.xlu0 %v4743, 98
        %v4806 = vpop.permute.xlu0 %4805
        %4807 = vrot.lane.b32.xlu0 %v4744, 98
        %v4808 = vpop.permute.xlu0 %4807
        %v4809 = vsel %vm1817, %v1800, %v4794
        %v4810 = vsel %vm1817, %v4794, %v4796
        %v4811 = vsel %vm1817, %v4796, %v4798
        %v4812 = vsel %vm1817, %v4798, %v4800
        %v4813 = vsel %vm1817, %v4800, %v4802
        %v4814 = vsel %vm1817, %v4802, %v4804
        %v4815 = vsel %vm1817, %v4804, %v4806
        %v4816 = vsel %vm1817, %v4806, %v4808
        %4817 = vrot.lane.b32.xlu0 %v4737, 97
        %v4818 = vpop.permute.xlu0 %4817
        %4819 = vrot.lane.b32.xlu0 %v4738, 97
        %v4820 = vpop.permute.xlu0 %4819
        %4821 = vrot.lane.b32.xlu0 %v4739, 97
        %v4822 = vpop.permute.xlu0 %4821
        %4823 = vrot.lane.b32.xlu0 %v4740, 97
        %v4824 = vpop.permute.xlu0 %4823
        %4825 = vrot.lane.b32.xlu0 %v4741, 97
        %v4826 = vpop.permute.xlu0 %4825
        %4827 = vrot.lane.b32.xlu0 %v4742, 97
        %v4828 = vpop.permute.xlu0 %4827
        %4829 = vrot.lane.b32.xlu0 %v4743, 97
        %v4830 = vpop.permute.xlu0 %4829
        %4831 = vrot.lane.b32.xlu0 %v4744, 97
        %v4832 = vpop.permute.xlu0 %4831
        %v4833 = vsel %vm1842, %v4818, %v4820
        %v4834 = vsel %vm1842, %v4820, %v4822
        %v4835 = vsel %vm1842, %v4822, %v4824
        %v4836 = vsel %vm1842, %v4824, %v4826
        %v4837 = vsel %vm1842, %v4826, %v4828
        %v4838 = vsel %vm1842, %v4828, %v4830
        %v4839 = vsel %vm1842, %v4830, %v4832
        %4840 = vrot.lane.b32.xlu0 %v4737, 96
        %v4841 = vpop.permute.xlu0 %4840
        %4842 = vrot.lane.b32.xlu0 %v4738, 96
        %v4843 = vpop.permute.xlu0 %4842
        %4844 = vrot.lane.b32.xlu0 %v4739, 96
        %v4845 = vpop.permute.xlu0 %4844
        %4846 = vrot.lane.b32.xlu0 %v4740, 96
        %v4847 = vpop.permute.xlu0 %4846
        %4848 = vrot.lane.b32.xlu0 %v4741, 96
        %v4849 = vpop.permute.xlu0 %4848
        %4850 = vrot.lane.b32.xlu0 %v4742, 96
        %v4851 = vpop.permute.xlu0 %4850
        %4852 = vrot.lane.b32.xlu0 %v4743, 96
        %v4853 = vpop.permute.xlu0 %4852
        %4854 = vrot.lane.b32.xlu0 %v4744, 96
        %v4855 = vpop.permute.xlu0 %4854
        %v4856 = vsel %vm1868, %v4841, %v4843
        %v4857 = vsel %vm1868, %v4843, %v4845
        %v4858 = vsel %vm1868, %v4845, %v4847
        %v4859 = vsel %vm1868, %v4847, %v4849
        %v4860 = vsel %vm1868, %v4849, %v4851
        %v4861 = vsel %vm1868, %v4851, %v4853
        %v4862 = vsel %vm1868, %v4853, %v4855
        %v4863 = vsel %vm1868, %v4855, %v1867
        %4864 = vrot.lane.b32.xlu0 %v4737, 68
        %v4865 = vpop.permute.xlu0 %4864
        %4866 = vrot.lane.b32.xlu0 %v4738, 68
        %v4867 = vpop.permute.xlu0 %4866
        %4868 = vrot.lane.b32.xlu0 %v4739, 68
        %v4869 = vpop.permute.xlu0 %4868
        %4870 = vrot.lane.b32.xlu0 %v4740, 68
        %v4871 = vpop.permute.xlu0 %4870
        %4872 = vrot.lane.b32.xlu0 %v4741, 68
        %v4873 = vpop.permute.xlu0 %4872
        %4874 = vrot.lane.b32.xlu0 %v4742, 68
        %v4875 = vpop.permute.xlu0 %4874
        %4876 = vrot.lane.b32.xlu0 %v4743, 68
        %v4877 = vpop.permute.xlu0 %4876
        %4878 = vrot.lane.b32.xlu0 %v4744, 68
        %v4879 = vpop.permute.xlu0 %4878
        %v4880 = vsel %vm1895, %v4865, %v4867
        %v4881 = vsel %vm1895, %v4867, %v4869
        %v4882 = vsel %vm1895, %v4869, %v4871
        %v4883 = vsel %vm1895, %v4871, %v4873
        %v4884 = vsel %vm1895, %v4873, %v4875
        %v4885 = vsel %vm1895, %v4875, %v4877
        %v4886 = vsel %vm1895, %v4877, %v4879
        %v4887 = vsel %vm1895, %v4879, %v1894
        %4888 = vrot.lane.b32.xlu0 %v4737, 67
        %v4889 = vpop.permute.xlu0 %4888
        %4890 = vrot.lane.b32.xlu0 %v4738, 67
        %v4891 = vpop.permute.xlu0 %4890
        %4892 = vrot.lane.b32.xlu0 %v4739, 67
        %v4893 = vpop.permute.xlu0 %4892
        %4894 = vrot.lane.b32.xlu0 %v4740, 67
        %v4895 = vpop.permute.xlu0 %4894
        %4896 = vrot.lane.b32.xlu0 %v4741, 67
        %v4897 = vpop.permute.xlu0 %4896
        %4898 = vrot.lane.b32.xlu0 %v4742, 67
        %v4899 = vpop.permute.xlu0 %4898
        %4900 = vrot.lane.b32.xlu0 %v4743, 67
        %v4901 = vpop.permute.xlu0 %4900
        %4902 = vrot.lane.b32.xlu0 %v4744, 67
        %v4903 = vpop.permute.xlu0 %4902
        %v4904 = vsel %vm1922, %v4889, %v4891
        %v4905 = vsel %vm1922, %v4891, %v4893
        %v4906 = vsel %vm1922, %v4893, %v4895
        %v4907 = vsel %vm1922, %v4895, %v4897
        %v4908 = vsel %vm1922, %v4897, %v4899
        %v4909 = vsel %vm1922, %v4899, %v4901
        %v4910 = vsel %vm1922, %v4901, %v4903
        %v4911 = vsel %vm1922, %v4903, %v1921
        %4912 = vrot.lane.b32.xlu0 %v4737, 66
        %v4913 = vpop.permute.xlu0 %4912
        %4914 = vrot.lane.b32.xlu0 %v4738, 66
        %v4915 = vpop.permute.xlu0 %4914
        %4916 = vrot.lane.b32.xlu0 %v4739, 66
        %v4917 = vpop.permute.xlu0 %4916
        %4918 = vrot.lane.b32.xlu0 %v4740, 66
        %v4919 = vpop.permute.xlu0 %4918
        %4920 = vrot.lane.b32.xlu0 %v4741, 66
        %v4921 = vpop.permute.xlu0 %4920
        %4922 = vrot.lane.b32.xlu0 %v4742, 66
        %v4923 = vpop.permute.xlu0 %4922
        %4924 = vrot.lane.b32.xlu0 %v4743, 66
        %v4925 = vpop.permute.xlu0 %4924
        %4926 = vrot.lane.b32.xlu0 %v4744, 66
        %v4927 = vpop.permute.xlu0 %4926
        %v4928 = vsel %vm1949, %v4913, %v4915
        %v4929 = vsel %vm1949, %v4915, %v4917
        %v4930 = vsel %vm1949, %v4917, %v4919
        %v4931 = vsel %vm1949, %v4919, %v4921
        %v4932 = vsel %vm1949, %v4921, %v4923
        %v4933 = vsel %vm1949, %v4923, %v4925
        %v4934 = vsel %vm1949, %v4925, %v4927
        %v4935 = vsel %vm1949, %v4927, %v1948
        %4936 = vrot.lane.b32.xlu0 %v4737, 31
        %v4937 = vpop.permute.xlu0 %4936
        %4938 = vrot.lane.b32.xlu0 %v4738, 31
        %v4939 = vpop.permute.xlu0 %4938
        %4940 = vrot.lane.b32.xlu0 %v4739, 31
        %v4941 = vpop.permute.xlu0 %4940
        %4942 = vrot.lane.b32.xlu0 %v4740, 31
        %v4943 = vpop.permute.xlu0 %4942
        %4944 = vrot.lane.b32.xlu0 %v4741, 31
        %v4945 = vpop.permute.xlu0 %4944
        %4946 = vrot.lane.b32.xlu0 %v4742, 31
        %v4947 = vpop.permute.xlu0 %4946
        %4948 = vrot.lane.b32.xlu0 %v4743, 31
        %v4949 = vpop.permute.xlu0 %4948
        %4950 = vrot.lane.b32.xlu0 %v4744, 31
        %v4951 = vpop.permute.xlu0 %4950
        %4952 = vrot.lane.b32.xlu0 %v4761, 31
        %v4953 = vpop.permute.xlu0 %4952
        %4954 = vrot.lane.b32.xlu0 %v4762, 31
        %v4955 = vpop.permute.xlu0 %4954
        %4956 = vrot.lane.b32.xlu0 %v4763, 31
        %v4957 = vpop.permute.xlu0 %4956
        %4958 = vrot.lane.b32.xlu0 %v4764, 31
        %v4959 = vpop.permute.xlu0 %4958
        %4960 = vrot.lane.b32.xlu0 %v4765, 31
        %v4961 = vpop.permute.xlu0 %4960
        %4962 = vrot.lane.b32.xlu0 %v4766, 31
        %v4963 = vpop.permute.xlu0 %4962
        %4964 = vrot.lane.b32.xlu0 %v4767, 31
        %v4965 = vpop.permute.xlu0 %4964
        %4966 = vrot.lane.b32.xlu0 %v4768, 31
        %v4967 = vpop.permute.xlu0 %4966
        %4968 = vrot.lane.b32.xlu0 %v4760, 31
        %v4969 = vpop.permute.xlu0 %4968
        %4970 = vrot.lane.b32.xlu0 %v4785, 31
        %v4971 = vpop.permute.xlu0 %4970
        %4972 = vrot.lane.b32.xlu0 %v4786, 31
        %v4973 = vpop.permute.xlu0 %4972
        %4974 = vrot.lane.b32.xlu0 %v4787, 31
        %v4975 = vpop.permute.xlu0 %4974
        %4976 = vrot.lane.b32.xlu0 %v4788, 31
        %v4977 = vpop.permute.xlu0 %4976
        %4978 = vrot.lane.b32.xlu0 %v4789, 31
        %v4979 = vpop.permute.xlu0 %4978
        %4980 = vrot.lane.b32.xlu0 %v4790, 31
        %v4981 = vpop.permute.xlu0 %4980
        %4982 = vrot.lane.b32.xlu0 %v4791, 31
        %v4983 = vpop.permute.xlu0 %4982
        %4984 = vrot.lane.b32.xlu0 %v4792, 31
        %v4985 = vpop.permute.xlu0 %4984
        %4986 = vrot.lane.b32.xlu0 %v4784, 31
        %v4987 = vpop.permute.xlu0 %4986
        %4988 = vrot.lane.b32.xlu0 %v4809, 31
        %v4989 = vpop.permute.xlu0 %4988
        %4990 = vrot.lane.b32.xlu0 %v4810, 31
        %v4991 = vpop.permute.xlu0 %4990
        %4992 = vrot.lane.b32.xlu0 %v4811, 31
        %v4993 = vpop.permute.xlu0 %4992
        %4994 = vrot.lane.b32.xlu0 %v4812, 31
        %v4995 = vpop.permute.xlu0 %4994
        %4996 = vrot.lane.b32.xlu0 %v4813, 31
        %v4997 = vpop.permute.xlu0 %4996
        %4998 = vrot.lane.b32.xlu0 %v4814, 31
        %v4999 = vpop.permute.xlu0 %4998
        %5000 = vrot.lane.b32.xlu0 %v4815, 31
        %v5001 = vpop.permute.xlu0 %5000
        %5002 = vrot.lane.b32.xlu0 %v4816, 31
        %v5003 = vpop.permute.xlu0 %5002
        %5004 = vrot.lane.b32.xlu0 %v4808, 31
        %v5005 = vpop.permute.xlu0 %5004
        %5006 = vrot.lane.b32.xlu0 %v4818, 31
        %v5007 = vpop.permute.xlu0 %5006
        %5008 = vrot.lane.b32.xlu0 %v4833, 31
        %v5009 = vpop.permute.xlu0 %5008
        %5010 = vrot.lane.b32.xlu0 %v4834, 31
        %v5011 = vpop.permute.xlu0 %5010
        %5012 = vrot.lane.b32.xlu0 %v4835, 31
        %v5013 = vpop.permute.xlu0 %5012
        %5014 = vrot.lane.b32.xlu0 %v4836, 31
        %v5015 = vpop.permute.xlu0 %5014
        %5016 = vrot.lane.b32.xlu0 %v4837, 31
        %v5017 = vpop.permute.xlu0 %5016
        %5018 = vrot.lane.b32.xlu0 %v4838, 31
        %v5019 = vpop.permute.xlu0 %5018
        %5020 = vrot.lane.b32.xlu0 %v4839, 31
        %v5021 = vpop.permute.xlu0 %5020
        %5022 = vrot.lane.b32.xlu0 %v4832, 31
        %v5023 = vpop.permute.xlu0 %5022
        %5024 = vrot.lane.b32.xlu0 %v4841, 31
        %v5025 = vpop.permute.xlu0 %5024
        %5026 = vrot.lane.b32.xlu0 %v4856, 31
        %v5027 = vpop.permute.xlu0 %5026
        %5028 = vrot.lane.b32.xlu0 %v4857, 31
        %v5029 = vpop.permute.xlu0 %5028
        %5030 = vrot.lane.b32.xlu0 %v4858, 31
        %v5031 = vpop.permute.xlu0 %5030
        %5032 = vrot.lane.b32.xlu0 %v4859, 31
        %v5033 = vpop.permute.xlu0 %5032
        %5034 = vrot.lane.b32.xlu0 %v4860, 31
        %v5035 = vpop.permute.xlu0 %5034
        %5036 = vrot.lane.b32.xlu0 %v4861, 31
        %v5037 = vpop.permute.xlu0 %5036
        %5038 = vrot.lane.b32.xlu0 %v4862, 31
        %v5039 = vpop.permute.xlu0 %5038
        %5040 = vrot.lane.b32.xlu0 %v4863, 31
        %v5041 = vpop.permute.xlu0 %5040
        %5042 = vrot.lane.b32.xlu0 %v4865, 31
        %v5043 = vpop.permute.xlu0 %5042
        %5044 = vrot.lane.b32.xlu0 %v4880, 31
        %v5045 = vpop.permute.xlu0 %5044
        %5046 = vrot.lane.b32.xlu0 %v4881, 31
        %v5047 = vpop.permute.xlu0 %5046
        %5048 = vrot.lane.b32.xlu0 %v4882, 31
        %v5049 = vpop.permute.xlu0 %5048
        %5050 = vrot.lane.b32.xlu0 %v4883, 31
        %v5051 = vpop.permute.xlu0 %5050
        %5052 = vrot.lane.b32.xlu0 %v4884, 31
        %v5053 = vpop.permute.xlu0 %5052
        %5054 = vrot.lane.b32.xlu0 %v4885, 31
        %v5055 = vpop.permute.xlu0 %5054
        %5056 = vrot.lane.b32.xlu0 %v4886, 31
        %v5057 = vpop.permute.xlu0 %5056
        %5058 = vrot.lane.b32.xlu0 %v4887, 31
        %v5059 = vpop.permute.xlu0 %5058
        %5060 = vrot.lane.b32.xlu0 %v4889, 31
        %v5061 = vpop.permute.xlu0 %5060
        %5062 = vrot.lane.b32.xlu0 %v4904, 31
        %v5063 = vpop.permute.xlu0 %5062
        %5064 = vrot.lane.b32.xlu0 %v4905, 31
        %v5065 = vpop.permute.xlu0 %5064
        %5066 = vrot.lane.b32.xlu0 %v4906, 31
        %v5067 = vpop.permute.xlu0 %5066
        %5068 = vrot.lane.b32.xlu0 %v4907, 31
        %v5069 = vpop.permute.xlu0 %5068
        %5070 = vrot.lane.b32.xlu0 %v4908, 31
        %v5071 = vpop.permute.xlu0 %5070
        %5072 = vrot.lane.b32.xlu0 %v4909, 31
        %v5073 = vpop.permute.xlu0 %5072
        %5074 = vrot.lane.b32.xlu0 %v4910, 31
        %v5075 = vpop.permute.xlu0 %5074
        %5076 = vrot.lane.b32.xlu0 %v4911, 31
        %v5077 = vpop.permute.xlu0 %5076
        %5078 = vrot.lane.b32.xlu0 %v4913, 31
        %v5079 = vpop.permute.xlu0 %5078
        %5080 = vrot.lane.b32.xlu0 %v4928, 31
        %v5081 = vpop.permute.xlu0 %5080
        %5082 = vrot.lane.b32.xlu0 %v4929, 31
        %v5083 = vpop.permute.xlu0 %5082
        %5084 = vrot.lane.b32.xlu0 %v4930, 31
        %v5085 = vpop.permute.xlu0 %5084
        %5086 = vrot.lane.b32.xlu0 %v4931, 31
        %v5087 = vpop.permute.xlu0 %5086
        %5088 = vrot.lane.b32.xlu0 %v4932, 31
        %v5089 = vpop.permute.xlu0 %5088
        %5090 = vrot.lane.b32.xlu0 %v4933, 31
        %v5091 = vpop.permute.xlu0 %5090
        %5092 = vrot.lane.b32.xlu0 %v4934, 31
        %v5093 = vpop.permute.xlu0 %5092
        %5094 = vrot.lane.b32.xlu0 %v4935, 31
        %v5095 = vpop.permute.xlu0 %5094
        %v5096 = vsel %vm2150, %v1989, %v4937
        %v5097 = vsel %vm2150, %v4937, %v4939
        %v5098 = vsel %vm2150, %v4939, %v4941
        %v5099 = vsel %vm2150, %v4941, %v4943
        %v5100 = vsel %vm2150, %v4943, %v4945
        %v5101 = vsel %vm2150, %v4945, %v4947
        %v5102 = vsel %vm2150, %v4947, %v4949
        %v5103 = vsel %vm2150, %v4949, %v4951
        %v5104 = vsel %vm2150, %v4953, %v4955
        %v5105 = vsel %vm2150, %v4955, %v4957
        %v5106 = vsel %vm2150, %v4957, %v4959
        %v5107 = vsel %vm2150, %v4959, %v4961
        %v5108 = vsel %vm2150, %v4961, %v4963
        %v5109 = vsel %vm2150, %v4963, %v4965
        %v5110 = vsel %vm2150, %v4965, %v4967
        %v5111 = vsel %vm2150, %v4967, %v4969
        %v5112 = vsel %vm2150, %v4971, %v4973
        %v5113 = vsel %vm2150, %v4973, %v4975
        %v5114 = vsel %vm2150, %v4975, %v4977
        %v5115 = vsel %vm2150, %v4977, %v4979
        %v5116 = vsel %vm2150, %v4979, %v4981
        %v5117 = vsel %vm2150, %v4981, %v4983
        %v5118 = vsel %vm2150, %v4983, %v4985
        %v5119 = vsel %vm2150, %v4985, %v4987
        %v5120 = vsel %vm2150, %v4989, %v4991
        %v5121 = vsel %vm2150, %v4991, %v4993
        %v5122 = vsel %vm2150, %v4993, %v4995
        %v5123 = vsel %vm2150, %v4995, %v4997
        %v5124 = vsel %vm2150, %v4997, %v4999
        %v5125 = vsel %vm2150, %v4999, %v5001
        %v5126 = vsel %vm2150, %v5001, %v5003
        %v5127 = vsel %vm2150, %v5003, %v5005
        %v5128 = vsel %vm2150, %v5007, %v5009
        %v5129 = vsel %vm2150, %v5009, %v5011
        %v5130 = vsel %vm2150, %v5011, %v5013
        %v5131 = vsel %vm2150, %v5013, %v5015
        %v5132 = vsel %vm2150, %v5015, %v5017
        %v5133 = vsel %vm2150, %v5017, %v5019
        %v5134 = vsel %vm2150, %v5019, %v5021
        %v5135 = vsel %vm2150, %v5021, %v5023
        %v5136 = vsel %vm2150, %v5025, %v5027
        %v5137 = vsel %vm2150, %v5027, %v5029
        %v5138 = vsel %vm2150, %v5029, %v5031
        %v5139 = vsel %vm2150, %v5031, %v5033
        %v5140 = vsel %vm2150, %v5033, %v5035
        %v5141 = vsel %vm2150, %v5035, %v5037
        %v5142 = vsel %vm2150, %v5037, %v5039
        %v5143 = vsel %vm2150, %v5039, %v5041
        %v5144 = vsel %vm2150, %v5043, %v5045
        %v5145 = vsel %vm2150, %v5045, %v5047
        %v5146 = vsel %vm2150, %v5047, %v5049
        %v5147 = vsel %vm2150, %v5049, %v5051
        %v5148 = vsel %vm2150, %v5051, %v5053
        %v5149 = vsel %vm2150, %v5053, %v5055
        %v5150 = vsel %vm2150, %v5055, %v5057
        %v5151 = vsel %vm2150, %v5057, %v5059
        %v5152 = vsel %vm2150, %v5061, %v5063
        %v5153 = vsel %vm2150, %v5063, %v5065
        %v5154 = vsel %vm2150, %v5065, %v5067
        %v5155 = vsel %vm2150, %v5067, %v5069
        %v5156 = vsel %vm2150, %v5069, %v5071
        %v5157 = vsel %vm2150, %v5071, %v5073
        %v5158 = vsel %vm2150, %v5073, %v5075
        %v5159 = vsel %vm2150, %v5075, %v5077
        %v5160 = vsel %vm2150, %v5079, %v5081
        %v5161 = vsel %vm2150, %v5081, %v5083
        %v5162 = vsel %vm2150, %v5083, %v5085
        %v5163 = vsel %vm2150, %v5085, %v5087
        %v5164 = vsel %vm2150, %v5087, %v5089
        %v5165 = vsel %vm2150, %v5089, %v5091
        %v5166 = vsel %vm2150, %v5091, %v5093
        %v5167 = vsel %vm2150, %v5093, %v5095
        %5240 = vmatpush.bf16.msra.mxu0 %v5152
        %5241 = vmatpush.bf16.msra.mxu0 %v5144
        %5242 = vmatpush.bf16.msra.mxu0 %v5136
        %5243 = vmatpush.bf16.msra.mxu0 %v5128
        %5244 = vmatpush.bf16.msra.mxu0 %v5120
        %5245 = vmatpush.bf16.msra.mxu0 %v5112
        %5246 = vmatpush.bf16.msra.mxu0 %v5104
        %5247 = vmatpush.bf16.msra.mxu0 %v5096
        %5248 = vmatmul.bf16.gmra.mxu0 %v1982
        %v5249 = vpop.f32.mrf.mxu0
        %v5250 = vadd.f32 %v1961, %v5249
        %v5251 = vpop.f32.mrf.mxu0
        %v5252 = vadd.f32 %v1966, %v5251
        %5253 = vmatmul.bf16.gmra.mxu0 %v1984
        %v5254 = vpop.f32.mrf.mxu0
        %v5255 = vadd.f32 %v1971, %v5254
        %v5256 = vpop.f32.mrf.mxu0
        %5257 = vdwg.mxu0
        %5258 = vmatpush.bf16.msra.mxu0 0
        %5259 = vmatpush.bf16.msra.mxu0 0
        %5260 = vmatpush.bf16.msra.mxu0 0
        %5261 = vmatpush.bf16.msra.mxu0 0
        %5262 = vmatpush.bf16.msra.mxu0 0
        %5263 = vmatpush.bf16.msra.mxu0 0
        %5264 = vmatpush.bf16.msra.mxu0 0
        %5265 = vmatpush.bf16.msra.mxu0 %v5160
        %5266 = vmatmul.bf16.gmra.mxu0 %v2297
        %v5267 = vpop.f32.mrf.mxu0
        %v5268 = vadd.f32 %v5250, %v5267
        %v5269 = vpop.f32.mrf.mxu0
        %v5270 = vadd.f32 %v5252, %v5269
        %5271 = vmatmul.bf16.gmra.mxu0 %v2300
        %v5272 = vpop.f32.mrf.mxu0
        %v5273 = vadd.f32 %v5255, %v5272
        %v5274 = vpop.f32.mrf.mxu0
        %5275 = vdwg.mxu0
        %5276 = vmatpush.bf16.msra.mxu0 %v5153
        %5277 = vmatpush.bf16.msra.mxu0 %v5145
        %5278 = vmatpush.bf16.msra.mxu0 %v5137
        %5279 = vmatpush.bf16.msra.mxu0 %v5129
        %5280 = vmatpush.bf16.msra.mxu0 %v5121
        %5281 = vmatpush.bf16.msra.mxu0 %v5113
        %5282 = vmatpush.bf16.msra.mxu0 %v5105
        %5283 = vmatpush.bf16.msra.mxu0 %v5097
        %5284 = vmatmul.bf16.gmra.mxu0 %v1982
        %v5285 = vpop.f32.mrf.mxu0
        %v5286 = vadd.f32 %v1961, %v5285
        %v5287 = vpop.f32.mrf.mxu0
        %v5288 = vadd.f32 %v1966, %v5287
        %5289 = vmatmul.bf16.gmra.mxu0 %v1984
        %v5290 = vpop.f32.mrf.mxu0
        %v5291 = vadd.f32 %v1971, %v5290
        %v5292 = vpop.f32.mrf.mxu0
        %5293 = vdwg.mxu0
        %5294 = vmatpush.bf16.msra.mxu0 0
        %5295 = vmatpush.bf16.msra.mxu0 0
        %5296 = vmatpush.bf16.msra.mxu0 0
        %5297 = vmatpush.bf16.msra.mxu0 0
        %5298 = vmatpush.bf16.msra.mxu0 0
        %5299 = vmatpush.bf16.msra.mxu0 0
        %5300 = vmatpush.bf16.msra.mxu0 0
        %5301 = vmatpush.bf16.msra.mxu0 %v5161
        %5302 = vmatmul.bf16.gmra.mxu0 %v2297
        %v5303 = vpop.f32.mrf.mxu0
        %v5304 = vadd.f32 %v5286, %v5303
        %v5305 = vpop.f32.mrf.mxu0
        %v5306 = vadd.f32 %v5288, %v5305
        %5307 = vmatmul.bf16.gmra.mxu0 %v2300
        %v5308 = vpop.f32.mrf.mxu0
        %v5309 = vadd.f32 %v5291, %v5308
        %v5310 = vpop.f32.mrf.mxu0
        %5311 = vdwg.mxu0
        %5312 = vmatpush.bf16.msra.mxu0 %v5154
        %5313 = vmatpush.bf16.msra.mxu0 %v5146
        %5314 = vmatpush.bf16.msra.mxu0 %v5138
        %5315 = vmatpush.bf16.msra.mxu0 %v5130
        %5316 = vmatpush.bf16.msra.mxu0 %v5122
        %5317 = vmatpush.bf16.msra.mxu0 %v5114
        %5318 = vmatpush.bf16.msra.mxu0 %v5106
        %5319 = vmatpush.bf16.msra.mxu0 %v5098
        %5320 = vmatmul.bf16.gmra.mxu0 %v1982
        %v5321 = vpop.f32.mrf.mxu0
        %v5322 = vadd.f32 %v1961, %v5321
        %v5323 = vpop.f32.mrf.mxu0
        %v5324 = vadd.f32 %v1966, %v5323
        %5325 = vmatmul.bf16.gmra.mxu0 %v1984
        %v5326 = vpop.f32.mrf.mxu0
        %v5327 = vadd.f32 %v1971, %v5326
        %v5328 = vpop.f32.mrf.mxu0
        %5329 = vdwg.mxu0
        %5330 = vmatpush.bf16.msra.mxu0 0
        %5331 = vmatpush.bf16.msra.mxu0 0
        %5332 = vmatpush.bf16.msra.mxu0 0
        %5333 = vmatpush.bf16.msra.mxu0 0
        %5334 = vmatpush.bf16.msra.mxu0 0
        %5335 = vmatpush.bf16.msra.mxu0 0
        %5336 = vmatpush.bf16.msra.mxu0 0
        %5337 = vmatpush.bf16.msra.mxu0 %v5162
        %5338 = vmatmul.bf16.gmra.mxu0 %v2297
        %v5339 = vpop.f32.mrf.mxu0
        %v5340 = vadd.f32 %v5322, %v5339
        %v5341 = vpop.f32.mrf.mxu0
        %v5342 = vadd.f32 %v5324, %v5341
        %5343 = vmatmul.bf16.gmra.mxu0 %v2300
        %v5344 = vpop.f32.mrf.mxu0
        %v5345 = vadd.f32 %v5327, %v5344
        %v5346 = vpop.f32.mrf.mxu0
        %5347 = vdwg.mxu0
        %5348 = vmatpush.bf16.msra.mxu0 %v5155
        %5349 = vmatpush.bf16.msra.mxu0 %v5147
        %5350 = vmatpush.bf16.msra.mxu0 %v5139
        %5351 = vmatpush.bf16.msra.mxu0 %v5131
        %5352 = vmatpush.bf16.msra.mxu0 %v5123
        %5353 = vmatpush.bf16.msra.mxu0 %v5115
        %5354 = vmatpush.bf16.msra.mxu0 %v5107
        %5355 = vmatpush.bf16.msra.mxu0 %v5099
        %5356 = vmatmul.bf16.gmra.mxu0 %v1982
        %v5357 = vpop.f32.mrf.mxu0
        %v5358 = vadd.f32 %v1961, %v5357
        %v5359 = vpop.f32.mrf.mxu0
        %v5360 = vadd.f32 %v1966, %v5359
        %5361 = vmatmul.bf16.gmra.mxu0 %v1984
        %v5362 = vpop.f32.mrf.mxu0
        %v5363 = vadd.f32 %v1971, %v5362
        %v5364 = vpop.f32.mrf.mxu0
        %5365 = vdwg.mxu0
        %5366 = vmatpush.bf16.msra.mxu0 0
        %5367 = vmatpush.bf16.msra.mxu0 0
        %5368 = vmatpush.bf16.msra.mxu0 0
        %5369 = vmatpush.bf16.msra.mxu0 0
        %5370 = vmatpush.bf16.msra.mxu0 0
        %5371 = vmatpush.bf16.msra.mxu0 0
        %5372 = vmatpush.bf16.msra.mxu0 0
        %5373 = vmatpush.bf16.msra.mxu0 %v5163
        %5374 = vmatmul.bf16.gmra.mxu0 %v2297
        %v5375 = vpop.f32.mrf.mxu0
        %v5376 = vadd.f32 %v5358, %v5375
        %v5377 = vpop.f32.mrf.mxu0
        %v5378 = vadd.f32 %v5360, %v5377
        %5379 = vmatmul.bf16.gmra.mxu0 %v2300
        %v5380 = vpop.f32.mrf.mxu0
        %v5381 = vadd.f32 %v5363, %v5380
        %v5382 = vpop.f32.mrf.mxu0
        %5383 = vdwg.mxu0
        %5384 = vmatpush.bf16.msra.mxu0 %v5156
        %5385 = vmatpush.bf16.msra.mxu0 %v5148
        %5386 = vmatpush.bf16.msra.mxu0 %v5140
        %5387 = vmatpush.bf16.msra.mxu0 %v5132
        %5388 = vmatpush.bf16.msra.mxu0 %v5124
        %5389 = vmatpush.bf16.msra.mxu0 %v5116
        %5390 = vmatpush.bf16.msra.mxu0 %v5108
        %5391 = vmatpush.bf16.msra.mxu0 %v5100
        %5392 = vmatmul.bf16.gmra.mxu0 %v1982
        %v5393 = vpop.f32.mrf.mxu0
        %v5394 = vadd.f32 %v1961, %v5393
        %v5395 = vpop.f32.mrf.mxu0
        %v5396 = vadd.f32 %v1966, %v5395
        %5397 = vmatmul.bf16.gmra.mxu0 %v1984
        %v5398 = vpop.f32.mrf.mxu0
        %v5399 = vadd.f32 %v1971, %v5398
        %v5400 = vpop.f32.mrf.mxu0
        %5401 = vdwg.mxu0
        %5402 = vmatpush.bf16.msra.mxu0 0
        %5403 = vmatpush.bf16.msra.mxu0 0
        %5404 = vmatpush.bf16.msra.mxu0 0
        %5405 = vmatpush.bf16.msra.mxu0 0
        %5406 = vmatpush.bf16.msra.mxu0 0
        %5407 = vmatpush.bf16.msra.mxu0 0
        %5408 = vmatpush.bf16.msra.mxu0 0
        %5409 = vmatpush.bf16.msra.mxu0 %v5164
        %5410 = vmatmul.bf16.gmra.mxu0 %v2297
        %v5411 = vpop.f32.mrf.mxu0
        %v5412 = vadd.f32 %v5394, %v5411
        %v5413 = vpop.f32.mrf.mxu0
        %v5414 = vadd.f32 %v5396, %v5413
        %5415 = vmatmul.bf16.gmra.mxu0 %v2300
        %v5416 = vpop.f32.mrf.mxu0
        %v5417 = vadd.f32 %v5399, %v5416
        %v5418 = vpop.f32.mrf.mxu0
        %5419 = vdwg.mxu0
        %5420 = vmatpush.bf16.msra.mxu0 %v5157
        %5421 = vmatpush.bf16.msra.mxu0 %v5149
        %5422 = vmatpush.bf16.msra.mxu0 %v5141
        %5423 = vmatpush.bf16.msra.mxu0 %v5133
        %5424 = vmatpush.bf16.msra.mxu0 %v5125
        %5425 = vmatpush.bf16.msra.mxu0 %v5117
        %5426 = vmatpush.bf16.msra.mxu0 %v5109
        %5427 = vmatpush.bf16.msra.mxu0 %v5101
        %5428 = vmatmul.bf16.gmra.mxu0 %v1982
        %v5429 = vpop.f32.mrf.mxu0
        %v5430 = vadd.f32 %v1961, %v5429
        %v5431 = vpop.f32.mrf.mxu0
        %v5432 = vadd.f32 %v1966, %v5431
        %5433 = vmatmul.bf16.gmra.mxu0 %v1984
        %v5434 = vpop.f32.mrf.mxu0
        %v5435 = vadd.f32 %v1971, %v5434
        %v5436 = vpop.f32.mrf.mxu0
        %5437 = vdwg.mxu0
        %5438 = vmatpush.bf16.msra.mxu0 0
        %5439 = vmatpush.bf16.msra.mxu0 0
        %5440 = vmatpush.bf16.msra.mxu0 0
        %5441 = vmatpush.bf16.msra.mxu0 0
        %5442 = vmatpush.bf16.msra.mxu0 0
        %5443 = vmatpush.bf16.msra.mxu0 0
        %5444 = vmatpush.bf16.msra.mxu0 0
        %5445 = vmatpush.bf16.msra.mxu0 %v5165
        %5446 = vmatmul.bf16.gmra.mxu0 %v2297
        %v5447 = vpop.f32.mrf.mxu0
        %v5448 = vadd.f32 %v5430, %v5447
        %v5449 = vpop.f32.mrf.mxu0
        %v5450 = vadd.f32 %v5432, %v5449
        %5451 = vmatmul.bf16.gmra.mxu0 %v2300
        %v5452 = vpop.f32.mrf.mxu0
        %v5453 = vadd.f32 %v5435, %v5452
        %v5454 = vpop.f32.mrf.mxu0
        %5455 = vdwg.mxu0
        %5456 = vmatpush.bf16.msra.mxu0 %v5158
        %5457 = vmatpush.bf16.msra.mxu0 %v5150
        %5458 = vmatpush.bf16.msra.mxu0 %v5142
        %5459 = vmatpush.bf16.msra.mxu0 %v5134
        %5460 = vmatpush.bf16.msra.mxu0 %v5126
        %5461 = vmatpush.bf16.msra.mxu0 %v5118
        %5462 = vmatpush.bf16.msra.mxu0 %v5110
        %5463 = vmatpush.bf16.msra.mxu0 %v5102
        %5464 = vmatmul.bf16.gmra.mxu0 %v1982
        %v5465 = vpop.f32.mrf.mxu0
        %v5466 = vadd.f32 %v1961, %v5465
        %v5467 = vpop.f32.mrf.mxu0
        %v5468 = vadd.f32 %v1966, %v5467
        %5469 = vmatmul.bf16.gmra.mxu0 %v1984
        %v5470 = vpop.f32.mrf.mxu0
        %v5471 = vadd.f32 %v1971, %v5470
        %v5472 = vpop.f32.mrf.mxu0
        %5473 = vdwg.mxu0
        %5474 = vmatpush.bf16.msra.mxu0 0
        %5475 = vmatpush.bf16.msra.mxu0 0
        %5476 = vmatpush.bf16.msra.mxu0 0
        %5477 = vmatpush.bf16.msra.mxu0 0
        %5478 = vmatpush.bf16.msra.mxu0 0
        %5479 = vmatpush.bf16.msra.mxu0 0
        %5480 = vmatpush.bf16.msra.mxu0 0
        %5481 = vmatpush.bf16.msra.mxu0 %v5166
        %5482 = vmatmul.bf16.gmra.mxu0 %v2297
        %v5483 = vpop.f32.mrf.mxu0
        %v5484 = vadd.f32 %v5466, %v5483
        %v5485 = vpop.f32.mrf.mxu0
        %v5486 = vadd.f32 %v5468, %v5485
        %5487 = vmatmul.bf16.gmra.mxu0 %v2300
        %v5488 = vpop.f32.mrf.mxu0
        %v5489 = vadd.f32 %v5471, %v5488
        %v5490 = vpop.f32.mrf.mxu0
        %5491 = vdwg.mxu0
        %5492 = vmatpush.bf16.msra.mxu0 %v5159
        %5493 = vmatpush.bf16.msra.mxu0 %v5151
        %5494 = vmatpush.bf16.msra.mxu0 %v5143
        %5495 = vmatpush.bf16.msra.mxu0 %v5135
        %5496 = vmatpush.bf16.msra.mxu0 %v5127
        %5497 = vmatpush.bf16.msra.mxu0 %v5119
        %5498 = vmatpush.bf16.msra.mxu0 %v5111
        %5499 = vmatpush.bf16.msra.mxu0 %v5103
        %5500 = vmatmul.bf16.gmra.mxu0 %v1982
        %v5501 = vpop.f32.mrf.mxu0
        %v5502 = vadd.f32 %v1961, %v5501
        %v5503 = vpop.f32.mrf.mxu0
        %v5504 = vadd.f32 %v1966, %v5503
        %5505 = vmatmul.bf16.gmra.mxu0 %v1984
        %v5506 = vpop.f32.mrf.mxu0
        %v5507 = vadd.f32 %v1971, %v5506
        %v5508 = vpop.f32.mrf.mxu0
        %5509 = vdwg.mxu0
        %5510 = vmatpush.bf16.msra.mxu0 0
        %5511 = vmatpush.bf16.msra.mxu0 0
        %5512 = vmatpush.bf16.msra.mxu0 0
        %5513 = vmatpush.bf16.msra.mxu0 0
        %5514 = vmatpush.bf16.msra.mxu0 0
        %5515 = vmatpush.bf16.msra.mxu0 0
        %5516 = vmatpush.bf16.msra.mxu0 0
        %5517 = vmatpush.bf16.msra.mxu0 %v5167
        %5518 = vmatmul.bf16.gmra.mxu0 %v2297
        %v5519 = vpop.f32.mrf.mxu0
        %v5520 = vadd.f32 %v5502, %v5519
        %v5521 = vpop.f32.mrf.mxu0
        %v5522 = vadd.f32 %v5504, %v5521
        %5523 = vmatmul.bf16.gmra.mxu0 %v2300
        %v5524 = vpop.f32.mrf.mxu0
        %v5525 = vadd.f32 %v5507, %v5524
        %v5526 = vpop.f32.mrf.mxu0
        %5527 = vdwg.mxu0
        %v5528 = vmax.f32 %v5268, 0.0
        %v5529 = vmax.f32 %v5304, 0.0
        %v5530 = vmax.f32 %v5340, 0.0
        %v5531 = vmax.f32 %v5376, 0.0
        %v5532 = vmax.f32 %v5412, 0.0
        %v5533 = vmax.f32 %v5448, 0.0
        %v5534 = vmax.f32 %v5484, 0.0
        %v5535 = vmax.f32 %v5520, 0.0
        %v5536 = vmax.f32 %v5270, 0.0
        %v5537 = vmax.f32 %v5306, 0.0
        %v5538 = vmax.f32 %v5342, 0.0
        %v5539 = vmax.f32 %v5378, 0.0
        %v5540 = vmax.f32 %v5414, 0.0
        %v5541 = vmax.f32 %v5450, 0.0
        %v5542 = vmax.f32 %v5486, 0.0
        %v5543 = vmax.f32 %v5522, 0.0
        %v5544 = vmax.f32 %v5273, 0.0
        %v5545 = vmax.f32 %v5309, 0.0
        %v5546 = vmax.f32 %v5345, 0.0
        %v5547 = vmax.f32 %v5381, 0.0
        %v5548 = vmax.f32 %v5417, 0.0
        %v5549 = vmax.f32 %v5453, 0.0
        %v5550 = vmax.f32 %v5489, 0.0
        %v5551 = vmax.f32 %v5525, 0.0
        %v5552 = vpack.c.bf16 %v5536, %v5528
        %v5553 = vpack.c.bf16 %v5537, %v5529
        %v5554 = vpack.c.bf16 %v5538, %v5530
        %v5555 = vpack.c.bf16 %v5539, %v5531
        %v5556 = vpack.c.bf16 %v5540, %v5532
        %v5557 = vpack.c.bf16 %v5541, %v5533
        %v5558 = vpack.c.bf16 %v5542, %v5534
        %v5559 = vpack.c.bf16 %v5543, %v5535
        %v5560 = vpack.c.bf16 %v5544, %v5544
        %v5561 = vpack.c.bf16 %v5545, %v5545
        %v5562 = vpack.c.bf16 %v5546, %v5546
        %v5563 = vpack.c.bf16 %v5547, %v5547
        %v5564 = vpack.c.bf16 %v5548, %v5548
        %v5565 = vpack.c.bf16 %v5549, %v5549
        %v5566 = vpack.c.bf16 %v5550, %v5550
        %v5567 = vpack.c.bf16 %v5551, %v5551
        %5568 = vmatpush.bf16.msra.mxu0 %v3028
        %5569 = vmatpush.bf16.msra.mxu0 %v3026
        %5570 = vmatpush.bf16.msra.mxu0 %v3024
        %5571 = vmatpush.bf16.msra.mxu0 %v3022
        %5572 = vmatpush.bf16.msra.mxu0 %v3020
        %5573 = vmatpush.bf16.msra.mxu0 %v3018
        %5574 = vmatpush.bf16.msra.mxu0 %v3016
        %5575 = vmatpush.bf16.msra.mxu0 %v3014
        %5576 = vmatmul.bf16.gmra.mxu0 %v5552
        %v5577 = vpop.f32.mrf.mxu0
        %v5578 = vadd.f32 0.0, %v5577
        %v5579 = vpop.f32.mrf.mxu0
        %v5580 = vadd.f32 0.0, %v5579
        %5581 = vmatmul.bf16.gmra.mxu0 %v5560
        %v5582 = vpop.f32.mrf.mxu0
        %v5583 = vadd.f32 0.0, %v5582
        %v5584 = vpop.f32.mrf.mxu0
        %5585 = vdwg.mxu0
        %5586 = vmatpush.bf16.msra.mxu0 %v3044
        %5587 = vmatpush.bf16.msra.mxu0 %v3042
        %5588 = vmatpush.bf16.msra.mxu0 %v3040
        %5589 = vmatpush.bf16.msra.mxu0 %v3038
        %5590 = vmatpush.bf16.msra.mxu0 %v3036
        %5591 = vmatpush.bf16.msra.mxu0 %v3034
        %5592 = vmatpush.bf16.msra.mxu0 %v3032
        %5593 = vmatpush.bf16.msra.mxu0 %v3030
        %5594 = vmatmul.bf16.gmra.mxu0 %v5553
        %v5595 = vpop.f32.mrf.mxu0
        %v5596 = vadd.f32 %v5578, %v5595
        %v5597 = vpop.f32.mrf.mxu0
        %v5598 = vadd.f32 %v5580, %v5597
        %5599 = vmatmul.bf16.gmra.mxu0 %v5561
        %v5600 = vpop.f32.mrf.mxu0
        %v5601 = vadd.f32 %v5583, %v5600
        %v5602 = vpop.f32.mrf.mxu0
        %5603 = vdwg.mxu0
        %5604 = vmatpush.bf16.msra.mxu0 %v3060
        %5605 = vmatpush.bf16.msra.mxu0 %v3058
        %5606 = vmatpush.bf16.msra.mxu0 %v3056
        %5607 = vmatpush.bf16.msra.mxu0 %v3054
        %5608 = vmatpush.bf16.msra.mxu0 %v3052
        %5609 = vmatpush.bf16.msra.mxu0 %v3050
        %5610 = vmatpush.bf16.msra.mxu0 %v3048
        %5611 = vmatpush.bf16.msra.mxu0 %v3046
        %5612 = vmatmul.bf16.gmra.mxu0 %v5554
        %v5613 = vpop.f32.mrf.mxu0
        %v5614 = vadd.f32 %v5596, %v5613
        %v5615 = vpop.f32.mrf.mxu0
        %v5616 = vadd.f32 %v5598, %v5615
        %5617 = vmatmul.bf16.gmra.mxu0 %v5562
        %v5618 = vpop.f32.mrf.mxu0
        %v5619 = vadd.f32 %v5601, %v5618
        %v5620 = vpop.f32.mrf.mxu0
        %5621 = vdwg.mxu0
        %5622 = vmatpush.bf16.msra.mxu0 %v3076
        %5623 = vmatpush.bf16.msra.mxu0 %v3074
        %5624 = vmatpush.bf16.msra.mxu0 %v3072
        %5625 = vmatpush.bf16.msra.mxu0 %v3070
        %5626 = vmatpush.bf16.msra.mxu0 %v3068
        %5627 = vmatpush.bf16.msra.mxu0 %v3066
        %5628 = vmatpush.bf16.msra.mxu0 %v3064
        %5629 = vmatpush.bf16.msra.mxu0 %v3062
        %5630 = vmatmul.bf16.gmra.mxu0 %v5555
        %v5631 = vpop.f32.mrf.mxu0
        %v5632 = vadd.f32 %v5614, %v5631
        %v5633 = vpop.f32.mrf.mxu0
        %v5634 = vadd.f32 %v5616, %v5633
        %5635 = vmatmul.bf16.gmra.mxu0 %v5563
        %v5636 = vpop.f32.mrf.mxu0
        %v5637 = vadd.f32 %v5619, %v5636
        %v5638 = vpop.f32.mrf.mxu0
        %5639 = vdwg.mxu0
        %5640 = vmatpush.bf16.msra.mxu0 %v3092
        %5641 = vmatpush.bf16.msra.mxu0 %v3090
        %5642 = vmatpush.bf16.msra.mxu0 %v3088
        %5643 = vmatpush.bf16.msra.mxu0 %v3086
        %5644 = vmatpush.bf16.msra.mxu0 %v3084
        %5645 = vmatpush.bf16.msra.mxu0 %v3082
        %5646 = vmatpush.bf16.msra.mxu0 %v3080
        %5647 = vmatpush.bf16.msra.mxu0 %v3078
        %5648 = vmatmul.bf16.gmra.mxu0 %v5556
        %v5649 = vpop.f32.mrf.mxu0
        %v5650 = vadd.f32 %v5632, %v5649
        %v5651 = vpop.f32.mrf.mxu0
        %v5652 = vadd.f32 %v5634, %v5651
        %5653 = vmatmul.bf16.gmra.mxu0 %v5564
        %v5654 = vpop.f32.mrf.mxu0
        %v5655 = vadd.f32 %v5637, %v5654
        %v5656 = vpop.f32.mrf.mxu0
        %5657 = vdwg.mxu0
        %5658 = vmatpush.bf16.msra.mxu0 %v3108
        %5659 = vmatpush.bf16.msra.mxu0 %v3106
        %5660 = vmatpush.bf16.msra.mxu0 %v3104
        %5661 = vmatpush.bf16.msra.mxu0 %v3102
        %5662 = vmatpush.bf16.msra.mxu0 %v3100
        %5663 = vmatpush.bf16.msra.mxu0 %v3098
        %5664 = vmatpush.bf16.msra.mxu0 %v3096
        %5665 = vmatpush.bf16.msra.mxu0 %v3094
        %5666 = vmatmul.bf16.gmra.mxu0 %v5557
        %v5667 = vpop.f32.mrf.mxu0
        %v5668 = vadd.f32 %v5650, %v5667
        %v5669 = vpop.f32.mrf.mxu0
        %v5670 = vadd.f32 %v5652, %v5669
        %5671 = vmatmul.bf16.gmra.mxu0 %v5565
        %v5672 = vpop.f32.mrf.mxu0
        %v5673 = vadd.f32 %v5655, %v5672
        %v5674 = vpop.f32.mrf.mxu0
        %5675 = vdwg.mxu0
        %5676 = vmatpush.bf16.msra.mxu0 %v3124
        %5677 = vmatpush.bf16.msra.mxu0 %v3122
        %5678 = vmatpush.bf16.msra.mxu0 %v3120
        %5679 = vmatpush.bf16.msra.mxu0 %v3118
        %5680 = vmatpush.bf16.msra.mxu0 %v3116
        %5681 = vmatpush.bf16.msra.mxu0 %v3114
        %5682 = vmatpush.bf16.msra.mxu0 %v3112
        %5683 = vmatpush.bf16.msra.mxu0 %v3110
        %5684 = vmatmul.bf16.gmra.mxu0 %v5558
        %v5685 = vpop.f32.mrf.mxu0
        %v5686 = vadd.f32 %v5668, %v5685
        %v5687 = vpop.f32.mrf.mxu0
        %v5688 = vadd.f32 %v5670, %v5687
        %5689 = vmatmul.bf16.gmra.mxu0 %v5566
        %v5690 = vpop.f32.mrf.mxu0
        %v5691 = vadd.f32 %v5673, %v5690
        %v5692 = vpop.f32.mrf.mxu0
        %5693 = vdwg.mxu0
        %5694 = vmatpush.bf16.msra.mxu0 %v3140
        %5695 = vmatpush.bf16.msra.mxu0 %v3138
        %5696 = vmatpush.bf16.msra.mxu0 %v3136
        %5697 = vmatpush.bf16.msra.mxu0 %v3134
        %5698 = vmatpush.bf16.msra.mxu0 %v3132
        %5699 = vmatpush.bf16.msra.mxu0 %v3130
        %5700 = vmatpush.bf16.msra.mxu0 %v3128
        %5701 = vmatpush.bf16.msra.mxu0 %v3126
        %5702 = vmatmul.bf16.gmra.mxu0 %v5559
        %v5703 = vpop.f32.mrf.mxu0
        %v5704 = vadd.f32 %v5686, %v5703
        %v5705 = vpop.f32.mrf.mxu0
        %v5706 = vadd.f32 %v5688, %v5705
        %5707 = vmatmul.bf16.gmra.mxu0 %v5567
        %v5708 = vpop.f32.mrf.mxu0
        %v5709 = vadd.f32 %v5691, %v5708
        %v5710 = vpop.f32.mrf.mxu0
        %5711 = vdwg.mxu0
        %5712 = vmatpush.bf16.msra.mxu0 %v3029
        %5713 = vmatpush.bf16.msra.mxu0 %v3027
        %5714 = vmatpush.bf16.msra.mxu0 %v3025
        %5715 = vmatpush.bf16.msra.mxu0 %v3023
        %5716 = vmatpush.bf16.msra.mxu0 %v3021
        %5717 = vmatpush.bf16.msra.mxu0 %v3019
        %5718 = vmatpush.bf16.msra.mxu0 %v3017
        %5719 = vmatpush.bf16.msra.mxu0 %v3015
        %5720 = vmatmul.bf16.gmra.mxu0 %v5552
        %v5721 = vpop.f32.mrf.mxu0
        %v5722 = vadd.f32 0.0, %v5721
        %v5723 = vpop.f32.mrf.mxu0
        %v5724 = vadd.f32 0.0, %v5723
        %5725 = vmatmul.bf16.gmra.mxu0 %v5560
        %v5726 = vpop.f32.mrf.mxu0
        %v5727 = vadd.f32 0.0, %v5726
        %v5728 = vpop.f32.mrf.mxu0
        %5729 = vdwg.mxu0
        %5730 = vmatpush.bf16.msra.mxu0 %v3045
        %5731 = vmatpush.bf16.msra.mxu0 %v3043
        %5732 = vmatpush.bf16.msra.mxu0 %v3041
        %5733 = vmatpush.bf16.msra.mxu0 %v3039
        %5734 = vmatpush.bf16.msra.mxu0 %v3037
        %5735 = vmatpush.bf16.msra.mxu0 %v3035
        %5736 = vmatpush.bf16.msra.mxu0 %v3033
        %5737 = vmatpush.bf16.msra.mxu0 %v3031
        %5738 = vmatmul.bf16.gmra.mxu0 %v5553
        %v5739 = vpop.f32.mrf.mxu0
        %v5740 = vadd.f32 %v5722, %v5739
        %v5741 = vpop.f32.mrf.mxu0
        %v5742 = vadd.f32 %v5724, %v5741
        %5743 = vmatmul.bf16.gmra.mxu0 %v5561
        %v5744 = vpop.f32.mrf.mxu0
        %v5745 = vadd.f32 %v5727, %v5744
        %v5746 = vpop.f32.mrf.mxu0
        %5747 = vdwg.mxu0
        %5748 = vmatpush.bf16.msra.mxu0 %v3061
        %5749 = vmatpush.bf16.msra.mxu0 %v3059
        %5750 = vmatpush.bf16.msra.mxu0 %v3057
        %5751 = vmatpush.bf16.msra.mxu0 %v3055
        %5752 = vmatpush.bf16.msra.mxu0 %v3053
        %5753 = vmatpush.bf16.msra.mxu0 %v3051
        %5754 = vmatpush.bf16.msra.mxu0 %v3049
        %5755 = vmatpush.bf16.msra.mxu0 %v3047
        %5756 = vmatmul.bf16.gmra.mxu0 %v5554
        %v5757 = vpop.f32.mrf.mxu0
        %v5758 = vadd.f32 %v5740, %v5757
        %v5759 = vpop.f32.mrf.mxu0
        %v5760 = vadd.f32 %v5742, %v5759
        %5761 = vmatmul.bf16.gmra.mxu0 %v5562
        %v5762 = vpop.f32.mrf.mxu0
        %v5763 = vadd.f32 %v5745, %v5762
        %v5764 = vpop.f32.mrf.mxu0
        %5765 = vdwg.mxu0
        %5766 = vmatpush.bf16.msra.mxu0 %v3077
        %5767 = vmatpush.bf16.msra.mxu0 %v3075
        %5768 = vmatpush.bf16.msra.mxu0 %v3073
        %5769 = vmatpush.bf16.msra.mxu0 %v3071
        %5770 = vmatpush.bf16.msra.mxu0 %v3069
        %5771 = vmatpush.bf16.msra.mxu0 %v3067
        %5772 = vmatpush.bf16.msra.mxu0 %v3065
        %5773 = vmatpush.bf16.msra.mxu0 %v3063
        %5774 = vmatmul.bf16.gmra.mxu0 %v5555
        %v5775 = vpop.f32.mrf.mxu0
        %v5776 = vadd.f32 %v5758, %v5775
        %v5777 = vpop.f32.mrf.mxu0
        %v5778 = vadd.f32 %v5760, %v5777
        %5779 = vmatmul.bf16.gmra.mxu0 %v5563
        %v5780 = vpop.f32.mrf.mxu0
        %v5781 = vadd.f32 %v5763, %v5780
        %v5782 = vpop.f32.mrf.mxu0
        %5783 = vdwg.mxu0
        %5784 = vmatpush.bf16.msra.mxu0 %v3093
        %5785 = vmatpush.bf16.msra.mxu0 %v3091
        %5786 = vmatpush.bf16.msra.mxu0 %v3089
        %5787 = vmatpush.bf16.msra.mxu0 %v3087
        %5788 = vmatpush.bf16.msra.mxu0 %v3085
        %5789 = vmatpush.bf16.msra.mxu0 %v3083
        %5790 = vmatpush.bf16.msra.mxu0 %v3081
        %5791 = vmatpush.bf16.msra.mxu0 %v3079
        %5792 = vmatmul.bf16.gmra.mxu0 %v5556
        %v5793 = vpop.f32.mrf.mxu0
        %v5794 = vadd.f32 %v5776, %v5793
        %v5795 = vpop.f32.mrf.mxu0
        %v5796 = vadd.f32 %v5778, %v5795
        %5797 = vmatmul.bf16.gmra.mxu0 %v5564
        %v5798 = vpop.f32.mrf.mxu0
        %v5799 = vadd.f32 %v5781, %v5798
        %v5800 = vpop.f32.mrf.mxu0
        %5801 = vdwg.mxu0
        %5802 = vmatpush.bf16.msra.mxu0 %v3109
        %5803 = vmatpush.bf16.msra.mxu0 %v3107
        %5804 = vmatpush.bf16.msra.mxu0 %v3105
        %5805 = vmatpush.bf16.msra.mxu0 %v3103
        %5806 = vmatpush.bf16.msra.mxu0 %v3101
        %5807 = vmatpush.bf16.msra.mxu0 %v3099
        %5808 = vmatpush.bf16.msra.mxu0 %v3097
        %5809 = vmatpush.bf16.msra.mxu0 %v3095
        %5810 = vmatmul.bf16.gmra.mxu0 %v5557
        %v5811 = vpop.f32.mrf.mxu0
        %v5812 = vadd.f32 %v5794, %v5811
        %v5813 = vpop.f32.mrf.mxu0
        %v5814 = vadd.f32 %v5796, %v5813
        %5815 = vmatmul.bf16.gmra.mxu0 %v5565
        %v5816 = vpop.f32.mrf.mxu0
        %v5817 = vadd.f32 %v5799, %v5816
        %v5818 = vpop.f32.mrf.mxu0
        %5819 = vdwg.mxu0
        %5820 = vmatpush.bf16.msra.mxu0 %v3125
        %5821 = vmatpush.bf16.msra.mxu0 %v3123
        %5822 = vmatpush.bf16.msra.mxu0 %v3121
        %5823 = vmatpush.bf16.msra.mxu0 %v3119
        %5824 = vmatpush.bf16.msra.mxu0 %v3117
        %5825 = vmatpush.bf16.msra.mxu0 %v3115
        %5826 = vmatpush.bf16.msra.mxu0 %v3113
        %5827 = vmatpush.bf16.msra.mxu0 %v3111
        %5828 = vmatmul.bf16.gmra.mxu0 %v5558
        %v5829 = vpop.f32.mrf.mxu0
        %v5830 = vadd.f32 %v5812, %v5829
        %v5831 = vpop.f32.mrf.mxu0
        %v5832 = vadd.f32 %v5814, %v5831
        %5833 = vmatmul.bf16.gmra.mxu0 %v5566
        %v5834 = vpop.f32.mrf.mxu0
        %v5835 = vadd.f32 %v5817, %v5834
        %v5836 = vpop.f32.mrf.mxu0
        %5837 = vdwg.mxu0
        %5838 = vmatpush.bf16.msra.mxu0 %v3141
        %5839 = vmatpush.bf16.msra.mxu0 %v3139
        %5840 = vmatpush.bf16.msra.mxu0 %v3137
        %5841 = vmatpush.bf16.msra.mxu0 %v3135
        %5842 = vmatpush.bf16.msra.mxu0 %v3133
        %5843 = vmatpush.bf16.msra.mxu0 %v3131
        %5844 = vmatpush.bf16.msra.mxu0 %v3129
        %5845 = vmatpush.bf16.msra.mxu0 %v3127
        %5846 = vmatmul.bf16.gmra.mxu0 %v5559
        %v5847 = vpop.f32.mrf.mxu0
        %v5848 = vadd.f32 %v5830, %v5847
        %v5849 = vpop.f32.mrf.mxu0
        %v5850 = vadd.f32 %v5832, %v5849
        %5851 = vmatmul.bf16.gmra.mxu0 %v5567
        %v5852 = vpop.f32.mrf.mxu0
        %v5853 = vadd.f32 %v5835, %v5852
        %v5854 = vpop.f32.mrf.mxu0
        %5855 = vdwg.mxu0
        %v5856 = vmul.f32 %v5704, %v501
        %v5857 = vmul.f32 %v5848, %v502
        %v5858 = vmul.f32 %v5706, %v503
        %v5859 = vmul.f32 %v5850, %v504
        %v5860 = vmul.f32 %v5709, %v505
        %v5861 = vmul.f32 %v5853, %v506
        %v5863 = vsel %vm3564, %v5857, 0
        %v5866 = vsel %vm3564, %v5859, 0
        %v5869 = vsel %vm3564, %v5861, 0
        %5871 = vmatpush.msra.mxu0 %v522
        %5872 = vmatpush.msra.mxu0 %v521
        %5873 = vmatpush.msra.mxu0 %v520
        %5874 = vmatpush.msra.mxu0 %v519
        %5875 = vmatpush.msra.mxu0 %v518
        %5876 = vmatpush.msra.mxu0 %v517
        %5877 = vmatpush.msra.mxu0 %v516
        %5878 = vmatpush.msra.mxu0 %v515
        %5879 = vmatpush.msra.mxu0 %v514
        %5880 = vmatpush.msra.mxu0 %v513
        %5881 = vmatpush.msra.mxu0 %v512
        %5882 = vmatpush.msra.mxu0 %v511
        %5883 = vmatpush.msra.mxu0 %v510
        %5884 = vmatpush.msra.mxu0 %v509
        %5885 = vmatpush.msra.mxu0 %v508
        %5886 = vmatpush.msra.mxu0 %v507
        %5887 = vmatmul.f32.gmra.mxu0 %v5856
        %v5888 = vpop.f32.mrf.mxu0
        %v5889 = vadd.f32 0.0, %v5888
        %5890 = vmatmul.f32.gmra.mxu0 %v5858
        %v5891 = vpop.f32.mrf.mxu0
        %v5892 = vadd.f32 0.0, %v5891
        %5893 = vmatmul.f32.gmra.mxu0 %v5860
        %v5894 = vpop.f32.mrf.mxu0
        %v5895 = vadd.f32 0.0, %v5894
        %5896 = vdwg.mxu0
        %5897 = vmatpush.msra.mxu0 0.0
        %5898 = vmatpush.msra.mxu0 0.0
        %5899 = vmatpush.msra.mxu0 0.0
        %5900 = vmatpush.msra.mxu0 0.0
        %5901 = vmatpush.msra.mxu0 0.0
        %5902 = vmatpush.msra.mxu0 0.0
        %5903 = vmatpush.msra.mxu0 0.0
        %5904 = vmatpush.msra.mxu0 %v531
        %5905 = vmatpush.msra.mxu0 %v530
        %5906 = vmatpush.msra.mxu0 %v529
        %5907 = vmatpush.msra.mxu0 %v528
        %5908 = vmatpush.msra.mxu0 %v527
        %5909 = vmatpush.msra.mxu0 %v526
        %5910 = vmatpush.msra.mxu0 %v525
        %5911 = vmatpush.msra.mxu0 %v524
        %5912 = vmatpush.msra.mxu0 %v523
        %5913 = vmatmul.f32.gmra.mxu0 %v5863
        %v5914 = vpop.f32.mrf.mxu0
        %v5915 = vadd.f32 %v5889, %v5914
        %5916 = vmatmul.f32.gmra.mxu0 %v5866
        %v5917 = vpop.f32.mrf.mxu0
        %v5918 = vadd.f32 %v5892, %v5917
        %5919 = vmatmul.f32.gmra.mxu0 %v5869
        %v5920 = vpop.f32.mrf.mxu0
        %v5921 = vadd.f32 %v5895, %v5920
        %5922 = vdwg.mxu0
        %v5923 = vsel %vm3626, %v5915, 0.0
        %v5924 = vsel %vm3626, %v5918, 0.0
        %v5925 = vadd.f32 %v5923, %v5924
        %v5926 = vsel %vm3630, %v5921, 0.0
        %v5927 = vadd.f32 %v5925, %v5926
        %v5928 = vrot.slane %v5927, 4
        %v5929 = vadd.f32 %v5927, %v5928
        %v5930 = vrot.slane %v5929, 2
        %v5931 = vadd.f32 %v5929, %v5930
        %v5932 = vrot.slane %v5931, 1
        %v5933 = vadd.f32 %v5931, %v5932
        %v5934 = vadd.f32 %v5933, %v532
        %s5935 = scalar_lea.vmem %s353, 1 [#allocation2]
        %5936 = vst.msk [vmem:[%s5935] sm:$0x1] %vm3640, %v5934
        %s5937 = scalar_lea.vmem %s358, 18
        %v5938 = vld [vmem:[%s5937] sm:$0xff]
        %v5939 = vld [vmem:[%s5937 + $0x8] sm:$0x1]
        %v5941 = vperm.slane %v5938, 0
        %v5942 = vperm.slane %v5938, 1
        %v5943 = vperm.slane %v5938, 2
        %v5944 = vperm.slane %v5938, 3
        %v5945 = vperm.slane %v5938, 4
        %v5946 = vperm.slane %v5938, 5
        %v5947 = vperm.slane %v5938, 6
        %v5948 = vperm.slane %v5938, 7
        %v5957 = vmul.f32 %v5941, %v555
        %v5958 = vmul.f32 %v5942, %v555
        %v5959 = vmul.f32 %v5943, %v555
        %v5960 = vmul.f32 %v5944, %v555
        %v5961 = vmul.f32 %v5945, %v555
        %v5962 = vmul.f32 %v5946, %v555
        %v5963 = vmul.f32 %v5947, %v555
        %v5964 = vmul.f32 %v5948, %v555
        %v5965 = vmul.f32 %v5941, %v560
        %v5966 = vmul.f32 %v5942, %v560
        %v5967 = vmul.f32 %v5943, %v560
        %v5968 = vmul.f32 %v5944, %v560
        %v5969 = vmul.f32 %v5945, %v560
        %v5970 = vmul.f32 %v5946, %v560
        %v5971 = vmul.f32 %v5947, %v560
        %v5972 = vmul.f32 %v5948, %v560
        %v5973 = vadd.f32 %v5957, 0.0
        %v5974 = vadd.f32 %v5958, 0.0
        %v5975 = vadd.f32 %v5959, 0.0
        %v5976 = vadd.f32 %v5960, 0.0
        %v5977 = vadd.f32 %v5961, 0.0
        %v5978 = vadd.f32 %v5962, 0.0
        %v5979 = vadd.f32 %v5963, 0.0
        %v5980 = vadd.f32 %v5964, 0.0
        %v5981 = vadd.f32 %v5965, 0.0
        %v5982 = vadd.f32 %v5966, 0.0
        %v5983 = vadd.f32 %v5967, 0.0
        %v5984 = vadd.f32 %v5968, 0.0
        %v5985 = vadd.f32 %v5969, 0.0
        %v5986 = vadd.f32 %v5970, 0.0
        %v5987 = vadd.f32 %v5971, 0.0
        %v5988 = vadd.f32 %v5972, 0.0
        %v5990 = vperm.slane %v5939, 0
        %v5992 = vmul.f32 %v5941, %v599
        %v5993 = vmul.f32 %v5942, %v599
        %v5994 = vmul.f32 %v5943, %v599
        %v5995 = vmul.f32 %v5944, %v599
        %v5996 = vmul.f32 %v5945, %v599
        %v5997 = vmul.f32 %v5946, %v599
        %v5998 = vmul.f32 %v5947, %v599
        %v5999 = vmul.f32 %v5948, %v599
        %v6000 = vmul.f32 %v5990, %v599
        %v6001 = vmul.f32 %v5941, %v603
        %v6002 = vmul.f32 %v5942, %v603
        %v6003 = vmul.f32 %v5943, %v603
        %v6004 = vmul.f32 %v5944, %v603
        %v6005 = vmul.f32 %v5945, %v603
        %v6006 = vmul.f32 %v5946, %v603
        %v6007 = vmul.f32 %v5947, %v603
        %v6008 = vmul.f32 %v5948, %v603
        %v6009 = vmul.f32 %v5990, %v603
        %6028 = vrot.lane.b32.xlu0 %v5992, 127
        %v6029 = vpop.permute.xlu0 %6028
        %6030 = vrot.lane.b32.xlu0 %v5993, 127
        %v6031 = vpop.permute.xlu0 %6030
        %6032 = vrot.lane.b32.xlu0 %v5994, 127
        %v6033 = vpop.permute.xlu0 %6032
        %6034 = vrot.lane.b32.xlu0 %v5995, 127
        %v6035 = vpop.permute.xlu0 %6034
        %6036 = vrot.lane.b32.xlu0 %v5996, 127
        %v6037 = vpop.permute.xlu0 %6036
        %6038 = vrot.lane.b32.xlu0 %v5997, 127
        %v6039 = vpop.permute.xlu0 %6038
        %6040 = vrot.lane.b32.xlu0 %v5998, 127
        %v6041 = vpop.permute.xlu0 %6040
        %6042 = vrot.lane.b32.xlu0 %v5999, 127
        %v6043 = vpop.permute.xlu0 %6042
        %6044 = vrot.lane.b32.xlu0 %v6000, 127
        %v6045 = vpop.permute.xlu0 %6044
        %6046 = vrot.lane.b32.xlu0 %v6001, 127
        %v6047 = vpop.permute.xlu0 %6046
        %6048 = vrot.lane.b32.xlu0 %v6002, 127
        %v6049 = vpop.permute.xlu0 %6048
        %6050 = vrot.lane.b32.xlu0 %v6003, 127
        %v6051 = vpop.permute.xlu0 %6050
        %6052 = vrot.lane.b32.xlu0 %v6004, 127
        %v6053 = vpop.permute.xlu0 %6052
        %6054 = vrot.lane.b32.xlu0 %v6005, 127
        %v6055 = vpop.permute.xlu0 %6054
        %6056 = vrot.lane.b32.xlu0 %v6006, 127
        %v6057 = vpop.permute.xlu0 %6056
        %6058 = vrot.lane.b32.xlu0 %v6007, 127
        %v6059 = vpop.permute.xlu0 %6058
        %6060 = vrot.lane.b32.xlu0 %v6008, 127
        %v6061 = vpop.permute.xlu0 %6060
        %6062 = vrot.lane.b32.xlu0 %v6009, 127
        %v6063 = vpop.permute.xlu0 %6062
        %v6064 = vsel %vm677, %v6029, %v6031
        %v6065 = vsel %vm677, %v6031, %v6033
        %v6066 = vsel %vm677, %v6033, %v6035
        %v6067 = vsel %vm677, %v6035, %v6037
        %v6068 = vsel %vm677, %v6037, %v6039
        %v6069 = vsel %vm677, %v6039, %v6041
        %v6070 = vsel %vm677, %v6041, %v6043
        %v6071 = vsel %vm677, %v6043, %v6045
        %v6072 = vsel %vm677, %v6047, %v6049
        %v6073 = vsel %vm677, %v6049, %v6051
        %v6074 = vsel %vm677, %v6051, %v6053
        %v6075 = vsel %vm677, %v6053, %v6055
        %v6076 = vsel %vm677, %v6055, %v6057
        %v6077 = vsel %vm677, %v6057, %v6059
        %v6078 = vsel %vm677, %v6059, %v6061
        %v6079 = vsel %vm677, %v6061, %v6063
        %v6096 = vadd.f32 %v5973, %v6064
        %v6097 = vadd.f32 %v5974, %v6065
        %v6098 = vadd.f32 %v5975, %v6066
        %v6099 = vadd.f32 %v5976, %v6067
        %v6100 = vadd.f32 %v5977, %v6068
        %v6101 = vadd.f32 %v5978, %v6069
        %v6102 = vadd.f32 %v5979, %v6070
        %v6103 = vadd.f32 %v5980, %v6071
        %v6104 = vadd.f32 %v5981, %v6072
        %v6105 = vadd.f32 %v5982, %v6073
        %v6106 = vadd.f32 %v5983, %v6074
        %v6107 = vadd.f32 %v5984, %v6075
        %v6108 = vadd.f32 %v5985, %v6076
        %v6109 = vadd.f32 %v5986, %v6077
        %v6110 = vadd.f32 %v5987, %v6078
        %v6111 = vadd.f32 %v5988, %v6079
        %v6112 = vmul.f32 %v5941, %v728
        %v6113 = vmul.f32 %v5942, %v728
        %v6114 = vmul.f32 %v5943, %v728
        %v6115 = vmul.f32 %v5944, %v728
        %v6116 = vmul.f32 %v5945, %v728
        %v6117 = vmul.f32 %v5946, %v728
        %v6118 = vmul.f32 %v5947, %v728
        %v6119 = vmul.f32 %v5948, %v728
        %v6120 = vmul.f32 %v5990, %v728
        %v6121 = vmul.f32 %v5941, %v732
        %v6122 = vmul.f32 %v5942, %v732
        %v6123 = vmul.f32 %v5943, %v732
        %v6124 = vmul.f32 %v5944, %v732
        %v6125 = vmul.f32 %v5945, %v732
        %v6126 = vmul.f32 %v5946, %v732
        %v6127 = vmul.f32 %v5947, %v732
        %v6128 = vmul.f32 %v5948, %v732
        %v6129 = vmul.f32 %v5990, %v732
        %6148 = vrot.lane.b32.xlu0 %v6112, 126
        %v6149 = vpop.permute.xlu0 %6148
        %6150 = vrot.lane.b32.xlu0 %v6113, 126
        %v6151 = vpop.permute.xlu0 %6150
        %6152 = vrot.lane.b32.xlu0 %v6114, 126
        %v6153 = vpop.permute.xlu0 %6152
        %6154 = vrot.lane.b32.xlu0 %v6115, 126
        %v6155 = vpop.permute.xlu0 %6154
        %6156 = vrot.lane.b32.xlu0 %v6116, 126
        %v6157 = vpop.permute.xlu0 %6156
        %6158 = vrot.lane.b32.xlu0 %v6117, 126
        %v6159 = vpop.permute.xlu0 %6158
        %6160 = vrot.lane.b32.xlu0 %v6118, 126
        %v6161 = vpop.permute.xlu0 %6160
        %6162 = vrot.lane.b32.xlu0 %v6119, 126
        %v6163 = vpop.permute.xlu0 %6162
        %6164 = vrot.lane.b32.xlu0 %v6120, 126
        %v6165 = vpop.permute.xlu0 %6164
        %6166 = vrot.lane.b32.xlu0 %v6121, 126
        %v6167 = vpop.permute.xlu0 %6166
        %6168 = vrot.lane.b32.xlu0 %v6122, 126
        %v6169 = vpop.permute.xlu0 %6168
        %6170 = vrot.lane.b32.xlu0 %v6123, 126
        %v6171 = vpop.permute.xlu0 %6170
        %6172 = vrot.lane.b32.xlu0 %v6124, 126
        %v6173 = vpop.permute.xlu0 %6172
        %6174 = vrot.lane.b32.xlu0 %v6125, 126
        %v6175 = vpop.permute.xlu0 %6174
        %6176 = vrot.lane.b32.xlu0 %v6126, 126
        %v6177 = vpop.permute.xlu0 %6176
        %6178 = vrot.lane.b32.xlu0 %v6127, 126
        %v6179 = vpop.permute.xlu0 %6178
        %6180 = vrot.lane.b32.xlu0 %v6128, 126
        %v6181 = vpop.permute.xlu0 %6180
        %6182 = vrot.lane.b32.xlu0 %v6129, 126
        %v6183 = vpop.permute.xlu0 %6182
        %v6184 = vsel %vm806, %v6149, %v6151
        %v6185 = vsel %vm806, %v6151, %v6153
        %v6186 = vsel %vm806, %v6153, %v6155
        %v6187 = vsel %vm806, %v6155, %v6157
        %v6188 = vsel %vm806, %v6157, %v6159
        %v6189 = vsel %vm806, %v6159, %v6161
        %v6190 = vsel %vm806, %v6161, %v6163
        %v6191 = vsel %vm806, %v6163, %v6165
        %v6192 = vsel %vm806, %v6167, %v6169
        %v6193 = vsel %vm806, %v6169, %v6171
        %v6194 = vsel %vm806, %v6171, %v6173
        %v6195 = vsel %vm806, %v6173, %v6175
        %v6196 = vsel %vm806, %v6175, %v6177
        %v6197 = vsel %vm806, %v6177, %v6179
        %v6198 = vsel %vm806, %v6179, %v6181
        %v6199 = vsel %vm806, %v6181, %v6183
        %v6216 = vadd.f32 %v6096, %v6184
        %v6217 = vadd.f32 %v6097, %v6185
        %v6218 = vadd.f32 %v6098, %v6186
        %v6219 = vadd.f32 %v6099, %v6187
        %v6220 = vadd.f32 %v6100, %v6188
        %v6221 = vadd.f32 %v6101, %v6189
        %v6222 = vadd.f32 %v6102, %v6190
        %v6223 = vadd.f32 %v6103, %v6191
        %v6224 = vadd.f32 %v6104, %v6192
        %v6225 = vadd.f32 %v6105, %v6193
        %v6226 = vadd.f32 %v6106, %v6194
        %v6227 = vadd.f32 %v6107, %v6195
        %v6228 = vadd.f32 %v6108, %v6196
        %v6229 = vadd.f32 %v6109, %v6197
        %v6230 = vadd.f32 %v6110, %v6198
        %v6231 = vadd.f32 %v6111, %v6199
        %v6232 = vmul.f32 %v5941, %v857
        %v6233 = vmul.f32 %v5942, %v857
        %v6234 = vmul.f32 %v5943, %v857
        %v6235 = vmul.f32 %v5944, %v857
        %v6236 = vmul.f32 %v5945, %v857
        %v6237 = vmul.f32 %v5946, %v857
        %v6238 = vmul.f32 %v5947, %v857
        %v6239 = vmul.f32 %v5948, %v857
        %v6240 = vmul.f32 %v5990, %v857
        %v6241 = vmul.f32 %v5941, %v861
        %v6242 = vmul.f32 %v5942, %v861
        %v6243 = vmul.f32 %v5943, %v861
        %v6244 = vmul.f32 %v5944, %v861
        %v6245 = vmul.f32 %v5945, %v861
        %v6246 = vmul.f32 %v5946, %v861
        %v6247 = vmul.f32 %v5947, %v861
        %v6248 = vmul.f32 %v5948, %v861
        %v6249 = vmul.f32 %v5990, %v861
        %6268 = vrot.lane.b32.xlu0 %v6232, 98
        %v6269 = vpop.permute.xlu0 %6268
        %6270 = vrot.lane.b32.xlu0 %v6233, 98
        %v6271 = vpop.permute.xlu0 %6270
        %6272 = vrot.lane.b32.xlu0 %v6234, 98
        %v6273 = vpop.permute.xlu0 %6272
        %6274 = vrot.lane.b32.xlu0 %v6235, 98
        %v6275 = vpop.permute.xlu0 %6274
        %6276 = vrot.lane.b32.xlu0 %v6236, 98
        %v6277 = vpop.permute.xlu0 %6276
        %6278 = vrot.lane.b32.xlu0 %v6237, 98
        %v6279 = vpop.permute.xlu0 %6278
        %6280 = vrot.lane.b32.xlu0 %v6238, 98
        %v6281 = vpop.permute.xlu0 %6280
        %6282 = vrot.lane.b32.xlu0 %v6239, 98
        %v6283 = vpop.permute.xlu0 %6282
        %6284 = vrot.lane.b32.xlu0 %v6240, 98
        %v6285 = vpop.permute.xlu0 %6284
        %6286 = vrot.lane.b32.xlu0 %v6241, 98
        %v6287 = vpop.permute.xlu0 %6286
        %6288 = vrot.lane.b32.xlu0 %v6242, 98
        %v6289 = vpop.permute.xlu0 %6288
        %6290 = vrot.lane.b32.xlu0 %v6243, 98
        %v6291 = vpop.permute.xlu0 %6290
        %6292 = vrot.lane.b32.xlu0 %v6244, 98
        %v6293 = vpop.permute.xlu0 %6292
        %6294 = vrot.lane.b32.xlu0 %v6245, 98
        %v6295 = vpop.permute.xlu0 %6294
        %6296 = vrot.lane.b32.xlu0 %v6246, 98
        %v6297 = vpop.permute.xlu0 %6296
        %6298 = vrot.lane.b32.xlu0 %v6247, 98
        %v6299 = vpop.permute.xlu0 %6298
        %6300 = vrot.lane.b32.xlu0 %v6248, 98
        %v6301 = vpop.permute.xlu0 %6300
        %6302 = vrot.lane.b32.xlu0 %v6249, 98
        %v6303 = vpop.permute.xlu0 %6302
        %v6304 = vsel %vm935, %v6269, %v6271
        %v6305 = vsel %vm935, %v6271, %v6273
        %v6306 = vsel %vm935, %v6273, %v6275
        %v6307 = vsel %vm935, %v6275, %v6277
        %v6308 = vsel %vm935, %v6277, %v6279
        %v6309 = vsel %vm935, %v6279, %v6281
        %v6310 = vsel %vm935, %v6281, %v6283
        %v6311 = vsel %vm935, %v6283, %v6285
        %v6312 = vsel %vm935, %v6287, %v6289
        %v6313 = vsel %vm935, %v6289, %v6291
        %v6314 = vsel %vm935, %v6291, %v6293
        %v6315 = vsel %vm935, %v6293, %v6295
        %v6316 = vsel %vm935, %v6295, %v6297
        %v6317 = vsel %vm935, %v6297, %v6299
        %v6318 = vsel %vm935, %v6299, %v6301
        %v6319 = vsel %vm935, %v6301, %v6303
        %v6336 = vadd.f32 %v6216, %v6304
        %v6337 = vadd.f32 %v6217, %v6305
        %v6338 = vadd.f32 %v6218, %v6306
        %v6339 = vadd.f32 %v6219, %v6307
        %v6340 = vadd.f32 %v6220, %v6308
        %v6341 = vadd.f32 %v6221, %v6309
        %v6342 = vadd.f32 %v6222, %v6310
        %v6343 = vadd.f32 %v6223, %v6311
        %v6344 = vadd.f32 %v6224, %v6312
        %v6345 = vadd.f32 %v6225, %v6313
        %v6346 = vadd.f32 %v6226, %v6314
        %v6347 = vadd.f32 %v6227, %v6315
        %v6348 = vadd.f32 %v6228, %v6316
        %v6349 = vadd.f32 %v6229, %v6317
        %v6350 = vadd.f32 %v6230, %v6318
        %v6351 = vadd.f32 %v6231, %v6319
        %v6352 = vmul.f32 %v5941, %v986
        %v6353 = vmul.f32 %v5942, %v986
        %v6354 = vmul.f32 %v5943, %v986
        %v6355 = vmul.f32 %v5944, %v986
        %v6356 = vmul.f32 %v5945, %v986
        %v6357 = vmul.f32 %v5946, %v986
        %v6358 = vmul.f32 %v5947, %v986
        %v6359 = vmul.f32 %v5948, %v986
        %v6360 = vmul.f32 %v5990, %v986
        %v6361 = vmul.f32 %v5941, %v990
        %v6362 = vmul.f32 %v5942, %v990
        %v6363 = vmul.f32 %v5943, %v990
        %v6364 = vmul.f32 %v5944, %v990
        %v6365 = vmul.f32 %v5945, %v990
        %v6366 = vmul.f32 %v5946, %v990
        %v6367 = vmul.f32 %v5947, %v990
        %v6368 = vmul.f32 %v5948, %v990
        %v6369 = vmul.f32 %v5990, %v990
        %6388 = vrot.lane.b32.xlu0 %v6352, 97
        %v6389 = vpop.permute.xlu0 %6388
        %6390 = vrot.lane.b32.xlu0 %v6353, 97
        %v6391 = vpop.permute.xlu0 %6390
        %6392 = vrot.lane.b32.xlu0 %v6354, 97
        %v6393 = vpop.permute.xlu0 %6392
        %6394 = vrot.lane.b32.xlu0 %v6355, 97
        %v6395 = vpop.permute.xlu0 %6394
        %6396 = vrot.lane.b32.xlu0 %v6356, 97
        %v6397 = vpop.permute.xlu0 %6396
        %6398 = vrot.lane.b32.xlu0 %v6357, 97
        %v6399 = vpop.permute.xlu0 %6398
        %6400 = vrot.lane.b32.xlu0 %v6358, 97
        %v6401 = vpop.permute.xlu0 %6400
        %6402 = vrot.lane.b32.xlu0 %v6359, 97
        %v6403 = vpop.permute.xlu0 %6402
        %6404 = vrot.lane.b32.xlu0 %v6360, 97
        %v6405 = vpop.permute.xlu0 %6404
        %6406 = vrot.lane.b32.xlu0 %v6361, 97
        %v6407 = vpop.permute.xlu0 %6406
        %6408 = vrot.lane.b32.xlu0 %v6362, 97
        %v6409 = vpop.permute.xlu0 %6408
        %6410 = vrot.lane.b32.xlu0 %v6363, 97
        %v6411 = vpop.permute.xlu0 %6410
        %6412 = vrot.lane.b32.xlu0 %v6364, 97
        %v6413 = vpop.permute.xlu0 %6412
        %6414 = vrot.lane.b32.xlu0 %v6365, 97
        %v6415 = vpop.permute.xlu0 %6414
        %6416 = vrot.lane.b32.xlu0 %v6366, 97
        %v6417 = vpop.permute.xlu0 %6416
        %6418 = vrot.lane.b32.xlu0 %v6367, 97
        %v6419 = vpop.permute.xlu0 %6418
        %6420 = vrot.lane.b32.xlu0 %v6368, 97
        %v6421 = vpop.permute.xlu0 %6420
        %6422 = vrot.lane.b32.xlu0 %v6369, 97
        %v6423 = vpop.permute.xlu0 %6422
        %v6424 = vsel %vm1064, %v6389, %v6391
        %v6425 = vsel %vm1064, %v6391, %v6393
        %v6426 = vsel %vm1064, %v6393, %v6395
        %v6427 = vsel %vm1064, %v6395, %v6397
        %v6428 = vsel %vm1064, %v6397, %v6399
        %v6429 = vsel %vm1064, %v6399, %v6401
        %v6430 = vsel %vm1064, %v6401, %v6403
        %v6431 = vsel %vm1064, %v6403, %v6405
        %v6432 = vsel %vm1064, %v6407, %v6409
        %v6433 = vsel %vm1064, %v6409, %v6411
        %v6434 = vsel %vm1064, %v6411, %v6413
        %v6435 = vsel %vm1064, %v6413, %v6415
        %v6436 = vsel %vm1064, %v6415, %v6417
        %v6437 = vsel %vm1064, %v6417, %v6419
        %v6438 = vsel %vm1064, %v6419, %v6421
        %v6439 = vsel %vm1064, %v6421, %v6423
        %v6456 = vadd.f32 %v6336, %v6424
        %v6457 = vadd.f32 %v6337, %v6425
        %v6458 = vadd.f32 %v6338, %v6426
        %v6459 = vadd.f32 %v6339, %v6427
        %v6460 = vadd.f32 %v6340, %v6428
        %v6461 = vadd.f32 %v6341, %v6429
        %v6462 = vadd.f32 %v6342, %v6430
        %v6463 = vadd.f32 %v6343, %v6431
        %v6464 = vadd.f32 %v6344, %v6432
        %v6465 = vadd.f32 %v6345, %v6433
        %v6466 = vadd.f32 %v6346, %v6434
        %v6467 = vadd.f32 %v6347, %v6435
        %v6468 = vadd.f32 %v6348, %v6436
        %v6469 = vadd.f32 %v6349, %v6437
        %v6470 = vadd.f32 %v6350, %v6438
        %v6471 = vadd.f32 %v6351, %v6439
        %v6472 = vmul.f32 %v5941, %v1115
        %v6473 = vmul.f32 %v5942, %v1115
        %v6474 = vmul.f32 %v5943, %v1115
        %v6475 = vmul.f32 %v5944, %v1115
        %v6476 = vmul.f32 %v5945, %v1115
        %v6477 = vmul.f32 %v5946, %v1115
        %v6478 = vmul.f32 %v5947, %v1115
        %v6479 = vmul.f32 %v5948, %v1115
        %v6480 = vmul.f32 %v5990, %v1115
        %v6481 = vmul.f32 %v5941, %v1119
        %v6482 = vmul.f32 %v5942, %v1119
        %v6483 = vmul.f32 %v5943, %v1119
        %v6484 = vmul.f32 %v5944, %v1119
        %v6485 = vmul.f32 %v5945, %v1119
        %v6486 = vmul.f32 %v5946, %v1119
        %v6487 = vmul.f32 %v5947, %v1119
        %v6488 = vmul.f32 %v5948, %v1119
        %v6489 = vmul.f32 %v5990, %v1119
        %6508 = vrot.lane.b32.xlu0 %v6472, 96
        %v6509 = vpop.permute.xlu0 %6508
        %6510 = vrot.lane.b32.xlu0 %v6473, 96
        %v6511 = vpop.permute.xlu0 %6510
        %6512 = vrot.lane.b32.xlu0 %v6474, 96
        %v6513 = vpop.permute.xlu0 %6512
        %6514 = vrot.lane.b32.xlu0 %v6475, 96
        %v6515 = vpop.permute.xlu0 %6514
        %6516 = vrot.lane.b32.xlu0 %v6476, 96
        %v6517 = vpop.permute.xlu0 %6516
        %6518 = vrot.lane.b32.xlu0 %v6477, 96
        %v6519 = vpop.permute.xlu0 %6518
        %6520 = vrot.lane.b32.xlu0 %v6478, 96
        %v6521 = vpop.permute.xlu0 %6520
        %6522 = vrot.lane.b32.xlu0 %v6479, 96
        %v6523 = vpop.permute.xlu0 %6522
        %6524 = vrot.lane.b32.xlu0 %v6480, 96
        %v6525 = vpop.permute.xlu0 %6524
        %6526 = vrot.lane.b32.xlu0 %v6481, 96
        %v6527 = vpop.permute.xlu0 %6526
        %6528 = vrot.lane.b32.xlu0 %v6482, 96
        %v6529 = vpop.permute.xlu0 %6528
        %6530 = vrot.lane.b32.xlu0 %v6483, 96
        %v6531 = vpop.permute.xlu0 %6530
        %6532 = vrot.lane.b32.xlu0 %v6484, 96
        %v6533 = vpop.permute.xlu0 %6532
        %6534 = vrot.lane.b32.xlu0 %v6485, 96
        %v6535 = vpop.permute.xlu0 %6534
        %6536 = vrot.lane.b32.xlu0 %v6486, 96
        %v6537 = vpop.permute.xlu0 %6536
        %6538 = vrot.lane.b32.xlu0 %v6487, 96
        %v6539 = vpop.permute.xlu0 %6538
        %6540 = vrot.lane.b32.xlu0 %v6488, 96
        %v6541 = vpop.permute.xlu0 %6540
        %6542 = vrot.lane.b32.xlu0 %v6489, 96
        %v6543 = vpop.permute.xlu0 %6542
        %v6544 = vsel %vm1193, %v6509, %v6511
        %v6545 = vsel %vm1193, %v6511, %v6513
        %v6546 = vsel %vm1193, %v6513, %v6515
        %v6547 = vsel %vm1193, %v6515, %v6517
        %v6548 = vsel %vm1193, %v6517, %v6519
        %v6549 = vsel %vm1193, %v6519, %v6521
        %v6550 = vsel %vm1193, %v6521, %v6523
        %v6551 = vsel %vm1193, %v6523, %v6525
        %v6552 = vsel %vm1193, %v6527, %v6529
        %v6553 = vsel %vm1193, %v6529, %v6531
        %v6554 = vsel %vm1193, %v6531, %v6533
        %v6555 = vsel %vm1193, %v6533, %v6535
        %v6556 = vsel %vm1193, %v6535, %v6537
        %v6557 = vsel %vm1193, %v6537, %v6539
        %v6558 = vsel %vm1193, %v6539, %v6541
        %v6559 = vsel %vm1193, %v6541, %v6543
        %v6576 = vadd.f32 %v6456, %v6544
        %v6577 = vadd.f32 %v6457, %v6545
        %v6578 = vadd.f32 %v6458, %v6546
        %v6579 = vadd.f32 %v6459, %v6547
        %v6580 = vadd.f32 %v6460, %v6548
        %v6581 = vadd.f32 %v6461, %v6549
        %v6582 = vadd.f32 %v6462, %v6550
        %v6583 = vadd.f32 %v6463, %v6551
        %v6584 = vadd.f32 %v6464, %v6552
        %v6585 = vadd.f32 %v6465, %v6553
        %v6586 = vadd.f32 %v6466, %v6554
        %v6587 = vadd.f32 %v6467, %v6555
        %v6588 = vadd.f32 %v6468, %v6556
        %v6589 = vadd.f32 %v6469, %v6557
        %v6590 = vadd.f32 %v6470, %v6558
        %v6591 = vadd.f32 %v6471, %v6559
        %v6592 = vmul.f32 %v5941, %v1244
        %v6593 = vmul.f32 %v5942, %v1244
        %v6594 = vmul.f32 %v5943, %v1244
        %v6595 = vmul.f32 %v5944, %v1244
        %v6596 = vmul.f32 %v5945, %v1244
        %v6597 = vmul.f32 %v5946, %v1244
        %v6598 = vmul.f32 %v5947, %v1244
        %v6599 = vmul.f32 %v5948, %v1244
        %v6600 = vmul.f32 %v5990, %v1244
        %v6601 = vmul.f32 %v5941, %v1248
        %v6602 = vmul.f32 %v5942, %v1248
        %v6603 = vmul.f32 %v5943, %v1248
        %v6604 = vmul.f32 %v5944, %v1248
        %v6605 = vmul.f32 %v5945, %v1248
        %v6606 = vmul.f32 %v5946, %v1248
        %v6607 = vmul.f32 %v5947, %v1248
        %v6608 = vmul.f32 %v5948, %v1248
        %v6609 = vmul.f32 %v5990, %v1248
        %6628 = vrot.lane.b32.xlu0 %v6592, 68
        %v6629 = vpop.permute.xlu0 %6628
        %6630 = vrot.lane.b32.xlu0 %v6593, 68
        %v6631 = vpop.permute.xlu0 %6630
        %6632 = vrot.lane.b32.xlu0 %v6594, 68
        %v6633 = vpop.permute.xlu0 %6632
        %6634 = vrot.lane.b32.xlu0 %v6595, 68
        %v6635 = vpop.permute.xlu0 %6634
        %6636 = vrot.lane.b32.xlu0 %v6596, 68
        %v6637 = vpop.permute.xlu0 %6636
        %6638 = vrot.lane.b32.xlu0 %v6597, 68
        %v6639 = vpop.permute.xlu0 %6638
        %6640 = vrot.lane.b32.xlu0 %v6598, 68
        %v6641 = vpop.permute.xlu0 %6640
        %6642 = vrot.lane.b32.xlu0 %v6599, 68
        %v6643 = vpop.permute.xlu0 %6642
        %6644 = vrot.lane.b32.xlu0 %v6600, 68
        %v6645 = vpop.permute.xlu0 %6644
        %6646 = vrot.lane.b32.xlu0 %v6601, 68
        %v6647 = vpop.permute.xlu0 %6646
        %6648 = vrot.lane.b32.xlu0 %v6602, 68
        %v6649 = vpop.permute.xlu0 %6648
        %6650 = vrot.lane.b32.xlu0 %v6603, 68
        %v6651 = vpop.permute.xlu0 %6650
        %6652 = vrot.lane.b32.xlu0 %v6604, 68
        %v6653 = vpop.permute.xlu0 %6652
        %6654 = vrot.lane.b32.xlu0 %v6605, 68
        %v6655 = vpop.permute.xlu0 %6654
        %6656 = vrot.lane.b32.xlu0 %v6606, 68
        %v6657 = vpop.permute.xlu0 %6656
        %6658 = vrot.lane.b32.xlu0 %v6607, 68
        %v6659 = vpop.permute.xlu0 %6658
        %6660 = vrot.lane.b32.xlu0 %v6608, 68
        %v6661 = vpop.permute.xlu0 %6660
        %6662 = vrot.lane.b32.xlu0 %v6609, 68
        %v6663 = vpop.permute.xlu0 %6662
        %v6664 = vsel %vm1322, %v6629, %v6631
        %v6665 = vsel %vm1322, %v6631, %v6633
        %v6666 = vsel %vm1322, %v6633, %v6635
        %v6667 = vsel %vm1322, %v6635, %v6637
        %v6668 = vsel %vm1322, %v6637, %v6639
        %v6669 = vsel %vm1322, %v6639, %v6641
        %v6670 = vsel %vm1322, %v6641, %v6643
        %v6671 = vsel %vm1322, %v6643, %v6645
        %v6672 = vsel %vm1322, %v6647, %v6649
        %v6673 = vsel %vm1322, %v6649, %v6651
        %v6674 = vsel %vm1322, %v6651, %v6653
        %v6675 = vsel %vm1322, %v6653, %v6655
        %v6676 = vsel %vm1322, %v6655, %v6657
        %v6677 = vsel %vm1322, %v6657, %v6659
        %v6678 = vsel %vm1322, %v6659, %v6661
        %v6679 = vsel %vm1322, %v6661, %v6663
        %v6696 = vadd.f32 %v6576, %v6664
        %v6697 = vadd.f32 %v6577, %v6665
        %v6698 = vadd.f32 %v6578, %v6666
        %v6699 = vadd.f32 %v6579, %v6667
        %v6700 = vadd.f32 %v6580, %v6668
        %v6701 = vadd.f32 %v6581, %v6669
        %v6702 = vadd.f32 %v6582, %v6670
        %v6703 = vadd.f32 %v6583, %v6671
        %v6704 = vadd.f32 %v6584, %v6672
        %v6705 = vadd.f32 %v6585, %v6673
        %v6706 = vadd.f32 %v6586, %v6674
        %v6707 = vadd.f32 %v6587, %v6675
        %v6708 = vadd.f32 %v6588, %v6676
        %v6709 = vadd.f32 %v6589, %v6677
        %v6710 = vadd.f32 %v6590, %v6678
        %v6711 = vadd.f32 %v6591, %v6679
        %v6712 = vmul.f32 %v5941, %v1373
        %v6713 = vmul.f32 %v5942, %v1373
        %v6714 = vmul.f32 %v5943, %v1373
        %v6715 = vmul.f32 %v5944, %v1373
        %v6716 = vmul.f32 %v5945, %v1373
        %v6717 = vmul.f32 %v5946, %v1373
        %v6718 = vmul.f32 %v5947, %v1373
        %v6719 = vmul.f32 %v5948, %v1373
        %v6720 = vmul.f32 %v5990, %v1373
        %v6721 = vmul.f32 %v5941, %v1377
        %v6722 = vmul.f32 %v5942, %v1377
        %v6723 = vmul.f32 %v5943, %v1377
        %v6724 = vmul.f32 %v5944, %v1377
        %v6725 = vmul.f32 %v5945, %v1377
        %v6726 = vmul.f32 %v5946, %v1377
        %v6727 = vmul.f32 %v5947, %v1377
        %v6728 = vmul.f32 %v5948, %v1377
        %v6729 = vmul.f32 %v5990, %v1377
        %6748 = vrot.lane.b32.xlu0 %v6712, 67
        %v6749 = vpop.permute.xlu0 %6748
        %6750 = vrot.lane.b32.xlu0 %v6713, 67
        %v6751 = vpop.permute.xlu0 %6750
        %6752 = vrot.lane.b32.xlu0 %v6714, 67
        %v6753 = vpop.permute.xlu0 %6752
        %6754 = vrot.lane.b32.xlu0 %v6715, 67
        %v6755 = vpop.permute.xlu0 %6754
        %6756 = vrot.lane.b32.xlu0 %v6716, 67
        %v6757 = vpop.permute.xlu0 %6756
        %6758 = vrot.lane.b32.xlu0 %v6717, 67
        %v6759 = vpop.permute.xlu0 %6758
        %6760 = vrot.lane.b32.xlu0 %v6718, 67
        %v6761 = vpop.permute.xlu0 %6760
        %6762 = vrot.lane.b32.xlu0 %v6719, 67
        %v6763 = vpop.permute.xlu0 %6762
        %6764 = vrot.lane.b32.xlu0 %v6720, 67
        %v6765 = vpop.permute.xlu0 %6764
        %6766 = vrot.lane.b32.xlu0 %v6721, 67
        %v6767 = vpop.permute.xlu0 %6766
        %6768 = vrot.lane.b32.xlu0 %v6722, 67
        %v6769 = vpop.permute.xlu0 %6768
        %6770 = vrot.lane.b32.xlu0 %v6723, 67
        %v6771 = vpop.permute.xlu0 %6770
        %6772 = vrot.lane.b32.xlu0 %v6724, 67
        %v6773 = vpop.permute.xlu0 %6772
        %6774 = vrot.lane.b32.xlu0 %v6725, 67
        %v6775 = vpop.permute.xlu0 %6774
        %6776 = vrot.lane.b32.xlu0 %v6726, 67
        %v6777 = vpop.permute.xlu0 %6776
        %6778 = vrot.lane.b32.xlu0 %v6727, 67
        %v6779 = vpop.permute.xlu0 %6778
        %6780 = vrot.lane.b32.xlu0 %v6728, 67
        %v6781 = vpop.permute.xlu0 %6780
        %6782 = vrot.lane.b32.xlu0 %v6729, 67
        %v6783 = vpop.permute.xlu0 %6782
        %v6784 = vsel %vm1451, %v6749, %v6751
        %v6785 = vsel %vm1451, %v6751, %v6753
        %v6786 = vsel %vm1451, %v6753, %v6755
        %v6787 = vsel %vm1451, %v6755, %v6757
        %v6788 = vsel %vm1451, %v6757, %v6759
        %v6789 = vsel %vm1451, %v6759, %v6761
        %v6790 = vsel %vm1451, %v6761, %v6763
        %v6791 = vsel %vm1451, %v6763, %v6765
        %v6792 = vsel %vm1451, %v6767, %v6769
        %v6793 = vsel %vm1451, %v6769, %v6771
        %v6794 = vsel %vm1451, %v6771, %v6773
        %v6795 = vsel %vm1451, %v6773, %v6775
        %v6796 = vsel %vm1451, %v6775, %v6777
        %v6797 = vsel %vm1451, %v6777, %v6779
        %v6798 = vsel %vm1451, %v6779, %v6781
        %v6799 = vsel %vm1451, %v6781, %v6783
        %v6816 = vadd.f32 %v6696, %v6784
        %v6817 = vadd.f32 %v6697, %v6785
        %v6818 = vadd.f32 %v6698, %v6786
        %v6819 = vadd.f32 %v6699, %v6787
        %v6820 = vadd.f32 %v6700, %v6788
        %v6821 = vadd.f32 %v6701, %v6789
        %v6822 = vadd.f32 %v6702, %v6790
        %v6823 = vadd.f32 %v6703, %v6791
        %v6824 = vadd.f32 %v6704, %v6792
        %v6825 = vadd.f32 %v6705, %v6793
        %v6826 = vadd.f32 %v6706, %v6794
        %v6827 = vadd.f32 %v6707, %v6795
        %v6828 = vadd.f32 %v6708, %v6796
        %v6829 = vadd.f32 %v6709, %v6797
        %v6830 = vadd.f32 %v6710, %v6798
        %v6831 = vadd.f32 %v6711, %v6799
        %v6832 = vmul.f32 %v5941, %v1502
        %v6833 = vmul.f32 %v5942, %v1502
        %v6834 = vmul.f32 %v5943, %v1502
        %v6835 = vmul.f32 %v5944, %v1502
        %v6836 = vmul.f32 %v5945, %v1502
        %v6837 = vmul.f32 %v5946, %v1502
        %v6838 = vmul.f32 %v5947, %v1502
        %v6839 = vmul.f32 %v5948, %v1502
        %v6840 = vmul.f32 %v5990, %v1502
        %v6841 = vmul.f32 %v5941, %v1506
        %v6842 = vmul.f32 %v5942, %v1506
        %v6843 = vmul.f32 %v5943, %v1506
        %v6844 = vmul.f32 %v5944, %v1506
        %v6845 = vmul.f32 %v5945, %v1506
        %v6846 = vmul.f32 %v5946, %v1506
        %v6847 = vmul.f32 %v5947, %v1506
        %v6848 = vmul.f32 %v5948, %v1506
        %v6849 = vmul.f32 %v5990, %v1506
        %6868 = vrot.lane.b32.xlu0 %v6832, 66
        %v6869 = vpop.permute.xlu0 %6868
        %6870 = vrot.lane.b32.xlu0 %v6833, 66
        %v6871 = vpop.permute.xlu0 %6870
        %6872 = vrot.lane.b32.xlu0 %v6834, 66
        %v6873 = vpop.permute.xlu0 %6872
        %6874 = vrot.lane.b32.xlu0 %v6835, 66
        %v6875 = vpop.permute.xlu0 %6874
        %6876 = vrot.lane.b32.xlu0 %v6836, 66
        %v6877 = vpop.permute.xlu0 %6876
        %6878 = vrot.lane.b32.xlu0 %v6837, 66
        %v6879 = vpop.permute.xlu0 %6878
        %6880 = vrot.lane.b32.xlu0 %v6838, 66
        %v6881 = vpop.permute.xlu0 %6880
        %6882 = vrot.lane.b32.xlu0 %v6839, 66
        %v6883 = vpop.permute.xlu0 %6882
        %6884 = vrot.lane.b32.xlu0 %v6840, 66
        %v6885 = vpop.permute.xlu0 %6884
        %6886 = vrot.lane.b32.xlu0 %v6841, 66
        %v6887 = vpop.permute.xlu0 %6886
        %6888 = vrot.lane.b32.xlu0 %v6842, 66
        %v6889 = vpop.permute.xlu0 %6888
        %6890 = vrot.lane.b32.xlu0 %v6843, 66
        %v6891 = vpop.permute.xlu0 %6890
        %6892 = vrot.lane.b32.xlu0 %v6844, 66
        %v6893 = vpop.permute.xlu0 %6892
        %6894 = vrot.lane.b32.xlu0 %v6845, 66
        %v6895 = vpop.permute.xlu0 %6894
        %6896 = vrot.lane.b32.xlu0 %v6846, 66
        %v6897 = vpop.permute.xlu0 %6896
        %6898 = vrot.lane.b32.xlu0 %v6847, 66
        %v6899 = vpop.permute.xlu0 %6898
        %6900 = vrot.lane.b32.xlu0 %v6848, 66
        %v6901 = vpop.permute.xlu0 %6900
        %6902 = vrot.lane.b32.xlu0 %v6849, 66
        %v6903 = vpop.permute.xlu0 %6902
        %v6904 = vsel %vm1580, %v6869, %v6871
        %v6905 = vsel %vm1580, %v6871, %v6873
        %v6906 = vsel %vm1580, %v6873, %v6875
        %v6907 = vsel %vm1580, %v6875, %v6877
        %v6908 = vsel %vm1580, %v6877, %v6879
        %v6909 = vsel %vm1580, %v6879, %v6881
        %v6910 = vsel %vm1580, %v6881, %v6883
        %v6911 = vsel %vm1580, %v6883, %v6885
        %v6912 = vsel %vm1580, %v6887, %v6889
        %v6913 = vsel %vm1580, %v6889, %v6891
        %v6914 = vsel %vm1580, %v6891, %v6893
        %v6915 = vsel %vm1580, %v6893, %v6895
        %v6916 = vsel %vm1580, %v6895, %v6897
        %v6917 = vsel %vm1580, %v6897, %v6899
        %v6918 = vsel %vm1580, %v6899, %v6901
        %v6919 = vsel %vm1580, %v6901, %v6903
        %v6936 = vadd.f32 %v6816, %v6904
        %v6937 = vadd.f32 %v6817, %v6905
        %v6938 = vadd.f32 %v6818, %v6906
        %v6939 = vadd.f32 %v6819, %v6907
        %v6940 = vadd.f32 %v6820, %v6908
        %v6941 = vadd.f32 %v6821, %v6909
        %v6942 = vadd.f32 %v6822, %v6910
        %v6943 = vadd.f32 %v6823, %v6911
        %v6944 = vadd.f32 %v6824, %v6912
        %v6945 = vadd.f32 %v6825, %v6913
        %v6946 = vadd.f32 %v6826, %v6914
        %v6947 = vadd.f32 %v6827, %v6915
        %v6948 = vadd.f32 %v6828, %v6916
        %v6949 = vadd.f32 %v6829, %v6917
        %v6950 = vadd.f32 %v6830, %v6918
        %v6951 = vadd.f32 %v6831, %v6919
        %v6952 = vadd.f32 %v6936, %v1632
        %v6953 = vadd.f32 %v6937, %v1632
        %v6954 = vadd.f32 %v6938, %v1632
        %v6955 = vadd.f32 %v6939, %v1632
        %v6956 = vadd.f32 %v6940, %v1632
        %v6957 = vadd.f32 %v6941, %v1632
        %v6958 = vadd.f32 %v6942, %v1632
        %v6959 = vadd.f32 %v6943, %v1632
        %v6960 = vadd.f32 %v6944, %v1637
        %v6961 = vadd.f32 %v6945, %v1637
        %v6962 = vadd.f32 %v6946, %v1637
        %v6963 = vadd.f32 %v6947, %v1637
        %v6964 = vadd.f32 %v6948, %v1637
        %v6965 = vadd.f32 %v6949, %v1637
        %v6966 = vadd.f32 %v6950, %v1637
        %v6967 = vadd.f32 %v6951, %v1637
        %v6968 = vmax.f32 %v6952, 0.0
        %v6969 = vmax.f32 %v6953, 0.0
        %v6970 = vmax.f32 %v6954, 0.0
        %v6971 = vmax.f32 %v6955, 0.0
        %v6972 = vmax.f32 %v6956, 0.0
        %v6973 = vmax.f32 %v6957, 0.0
        %v6974 = vmax.f32 %v6958, 0.0
        %v6975 = vmax.f32 %v6959, 0.0
        %v6976 = vmax.f32 %v6960, 0.0
        %v6977 = vmax.f32 %v6961, 0.0
        %v6978 = vmax.f32 %v6962, 0.0
        %v6979 = vmax.f32 %v6963, 0.0
        %v6980 = vmax.f32 %v6964, 0.0
        %v6981 = vmax.f32 %v6965, 0.0
        %v6982 = vmax.f32 %v6966, 0.0
        %v6983 = vmax.f32 %v6967, 0.0
        %v6984 = vmul.f32 %v6968, %v1672
        %v6985 = vmul.f32 %v6969, %v1673
        %v6986 = vmul.f32 %v6970, %v1674
        %v6987 = vmul.f32 %v6971, %v1675
        %v6988 = vmul.f32 %v6972, %v1676
        %v6989 = vmul.f32 %v6973, %v1677
        %v6990 = vmul.f32 %v6974, %v1678
        %v6991 = vmul.f32 %v6975, %v1679
        %v6992 = vmul.f32 %v6976, %v1672
        %v6993 = vmul.f32 %v6977, %v1673
        %v6994 = vmul.f32 %v6978, %v1674
        %v6995 = vmul.f32 %v6979, %v1675
        %v6996 = vmul.f32 %v6980, %v1676
        %v6997 = vmul.f32 %v6981, %v1677
        %v6998 = vmul.f32 %v6982, %v1678
        %v6999 = vmul.f32 %v6983, %v1679
        %v7000 = vpack.c.bf16 %v6985, %v6984
        %v7001 = vpack.c.bf16 %v6987, %v6986
        %v7002 = vpack.c.bf16 %v6989, %v6988
        %v7003 = vpack.c.bf16 %v6991, %v6990
        %v7004 = vpack.c.bf16 %v6993, %v6992
        %v7005 = vpack.c.bf16 %v6995, %v6994
        %v7006 = vpack.c.bf16 %v6997, %v6996
        %v7007 = vpack.c.bf16 %v6999, %v6998
        %v7016 = vunpack.c.l.b16 %v7000
        %v7017 = vunpack.c.h.b16 %v7000
        %v7018 = vunpack.c.l.b16 %v7001
        %v7019 = vunpack.c.h.b16 %v7001
        %v7020 = vunpack.c.l.b16 %v7002
        %v7021 = vunpack.c.h.b16 %v7002
        %v7022 = vunpack.c.l.b16 %v7003
        %v7023 = vunpack.c.h.b16 %v7003
        %v7024 = vunpack.c.l.b16 %v7004
        %v7025 = vunpack.c.h.b16 %v7004
        %v7026 = vunpack.c.l.b16 %v7005
        %v7027 = vunpack.c.h.b16 %v7005
        %v7028 = vunpack.c.l.b16 %v7006
        %v7029 = vunpack.c.h.b16 %v7006
        %v7030 = vunpack.c.l.b16 %v7007
        %v7031 = vunpack.c.h.b16 %v7007
        %v7032 = vpack.c.b16 %v7024, %v7016
        %v7033 = vpack.c.b16 %v7025, %v7017
        %v7034 = vpack.c.b16 %v7026, %v7018
        %v7035 = vpack.c.b16 %v7027, %v7019
        %v7036 = vpack.c.b16 %v7028, %v7020
        %v7037 = vpack.c.b16 %v7029, %v7021
        %v7038 = vpack.c.b16 %v7030, %v7022
        %v7039 = vpack.c.b16 %v7031, %v7023
        %7040 = vrot.lane.b32.xlu0 %v7032, 127
        %v7041 = vpop.permute.xlu0 %7040
        %7042 = vrot.lane.b32.xlu0 %v7033, 127
        %v7043 = vpop.permute.xlu0 %7042
        %7044 = vrot.lane.b32.xlu0 %v7034, 127
        %v7045 = vpop.permute.xlu0 %7044
        %7046 = vrot.lane.b32.xlu0 %v7035, 127
        %v7047 = vpop.permute.xlu0 %7046
        %7048 = vrot.lane.b32.xlu0 %v7036, 127
        %v7049 = vpop.permute.xlu0 %7048
        %7050 = vrot.lane.b32.xlu0 %v7037, 127
        %v7051 = vpop.permute.xlu0 %7050
        %7052 = vrot.lane.b32.xlu0 %v7038, 127
        %v7053 = vpop.permute.xlu0 %7052
        %7054 = vrot.lane.b32.xlu0 %v7039, 127
        %v7055 = vpop.permute.xlu0 %7054
        %v7056 = vsel %vm1763, %v1746, %v7041
        %v7057 = vsel %vm1763, %v7041, %v7043
        %v7058 = vsel %vm1763, %v7043, %v7045
        %v7059 = vsel %vm1763, %v7045, %v7047
        %v7060 = vsel %vm1763, %v7047, %v7049
        %v7061 = vsel %vm1763, %v7049, %v7051
        %v7062 = vsel %vm1763, %v7051, %v7053
        %v7063 = vsel %vm1763, %v7053, %v7055
        %7064 = vrot.lane.b32.xlu0 %v7032, 126
        %v7065 = vpop.permute.xlu0 %7064
        %7066 = vrot.lane.b32.xlu0 %v7033, 126
        %v7067 = vpop.permute.xlu0 %7066
        %7068 = vrot.lane.b32.xlu0 %v7034, 126
        %v7069 = vpop.permute.xlu0 %7068
        %7070 = vrot.lane.b32.xlu0 %v7035, 126
        %v7071 = vpop.permute.xlu0 %7070
        %7072 = vrot.lane.b32.xlu0 %v7036, 126
        %v7073 = vpop.permute.xlu0 %7072
        %7074 = vrot.lane.b32.xlu0 %v7037, 126
        %v7075 = vpop.permute.xlu0 %7074
        %7076 = vrot.lane.b32.xlu0 %v7038, 126
        %v7077 = vpop.permute.xlu0 %7076
        %7078 = vrot.lane.b32.xlu0 %v7039, 126
        %v7079 = vpop.permute.xlu0 %7078
        %v7080 = vsel %vm1790, %v1773, %v7065
        %v7081 = vsel %vm1790, %v7065, %v7067
        %v7082 = vsel %vm1790, %v7067, %v7069
        %v7083 = vsel %vm1790, %v7069, %v7071
        %v7084 = vsel %vm1790, %v7071, %v7073
        %v7085 = vsel %vm1790, %v7073, %v7075
        %v7086 = vsel %vm1790, %v7075, %v7077
        %v7087 = vsel %vm1790, %v7077, %v7079
        %7088 = vrot.lane.b32.xlu0 %v7032, 98
        %v7089 = vpop.permute.xlu0 %7088
        %7090 = vrot.lane.b32.xlu0 %v7033, 98
        %v7091 = vpop.permute.xlu0 %7090
        %7092 = vrot.lane.b32.xlu0 %v7034, 98
        %v7093 = vpop.permute.xlu0 %7092
        %7094 = vrot.lane.b32.xlu0 %v7035, 98
        %v7095 = vpop.permute.xlu0 %7094
        %7096 = vrot.lane.b32.xlu0 %v7036, 98
        %v7097 = vpop.permute.xlu0 %7096
        %7098 = vrot.lane.b32.xlu0 %v7037, 98
        %v7099 = vpop.permute.xlu0 %7098
        %7100 = vrot.lane.b32.xlu0 %v7038, 98
        %v7101 = vpop.permute.xlu0 %7100
        %7102 = vrot.lane.b32.xlu0 %v7039, 98
        %v7103 = vpop.permute.xlu0 %7102
        %v7104 = vsel %vm1817, %v1800, %v7089
        %v7105 = vsel %vm1817, %v7089, %v7091
        %v7106 = vsel %vm1817, %v7091, %v7093
        %v7107 = vsel %vm1817, %v7093, %v7095
        %v7108 = vsel %vm1817, %v7095, %v7097
        %v7109 = vsel %vm1817, %v7097, %v7099
        %v7110 = vsel %vm1817, %v7099, %v7101
        %v7111 = vsel %vm1817, %v7101, %v7103
        %7112 = vrot.lane.b32.xlu0 %v7032, 97
        %v7113 = vpop.permute.xlu0 %7112
        %7114 = vrot.lane.b32.xlu0 %v7033, 97
        %v7115 = vpop.permute.xlu0 %7114
        %7116 = vrot.lane.b32.xlu0 %v7034, 97
        %v7117 = vpop.permute.xlu0 %7116
        %7118 = vrot.lane.b32.xlu0 %v7035, 97
        %v7119 = vpop.permute.xlu0 %7118
        %7120 = vrot.lane.b32.xlu0 %v7036, 97
        %v7121 = vpop.permute.xlu0 %7120
        %7122 = vrot.lane.b32.xlu0 %v7037, 97
        %v7123 = vpop.permute.xlu0 %7122
        %7124 = vrot.lane.b32.xlu0 %v7038, 97
        %v7125 = vpop.permute.xlu0 %7124
        %7126 = vrot.lane.b32.xlu0 %v7039, 97
        %v7127 = vpop.permute.xlu0 %7126
        %v7128 = vsel %vm1842, %v7113, %v7115
        %v7129 = vsel %vm1842, %v7115, %v7117
        %v7130 = vsel %vm1842, %v7117, %v7119
        %v7131 = vsel %vm1842, %v7119, %v7121
        %v7132 = vsel %vm1842, %v7121, %v7123
        %v7133 = vsel %vm1842, %v7123, %v7125
        %v7134 = vsel %vm1842, %v7125, %v7127
        %7135 = vrot.lane.b32.xlu0 %v7032, 96
        %v7136 = vpop.permute.xlu0 %7135
        %7137 = vrot.lane.b32.xlu0 %v7033, 96
        %v7138 = vpop.permute.xlu0 %7137
        %7139 = vrot.lane.b32.xlu0 %v7034, 96
        %v7140 = vpop.permute.xlu0 %7139
        %7141 = vrot.lane.b32.xlu0 %v7035, 96
        %v7142 = vpop.permute.xlu0 %7141
        %7143 = vrot.lane.b32.xlu0 %v7036, 96
        %v7144 = vpop.permute.xlu0 %7143
        %7145 = vrot.lane.b32.xlu0 %v7037, 96
        %v7146 = vpop.permute.xlu0 %7145
        %7147 = vrot.lane.b32.xlu0 %v7038, 96
        %v7148 = vpop.permute.xlu0 %7147
        %7149 = vrot.lane.b32.xlu0 %v7039, 96
        %v7150 = vpop.permute.xlu0 %7149
        %v7151 = vsel %vm1868, %v7136, %v7138
        %v7152 = vsel %vm1868, %v7138, %v7140
        %v7153 = vsel %vm1868, %v7140, %v7142
        %v7154 = vsel %vm1868, %v7142, %v7144
        %v7155 = vsel %vm1868, %v7144, %v7146
        %v7156 = vsel %vm1868, %v7146, %v7148
        %v7157 = vsel %vm1868, %v7148, %v7150
        %v7158 = vsel %vm1868, %v7150, %v1867
        %7159 = vrot.lane.b32.xlu0 %v7032, 68
        %v7160 = vpop.permute.xlu0 %7159
        %7161 = vrot.lane.b32.xlu0 %v7033, 68
        %v7162 = vpop.permute.xlu0 %7161
        %7163 = vrot.lane.b32.xlu0 %v7034, 68
        %v7164 = vpop.permute.xlu0 %7163
        %7165 = vrot.lane.b32.xlu0 %v7035, 68
        %v7166 = vpop.permute.xlu0 %7165
        %7167 = vrot.lane.b32.xlu0 %v7036, 68
        %v7168 = vpop.permute.xlu0 %7167
        %7169 = vrot.lane.b32.xlu0 %v7037, 68
        %v7170 = vpop.permute.xlu0 %7169
        %7171 = vrot.lane.b32.xlu0 %v7038, 68
        %v7172 = vpop.permute.xlu0 %7171
        %7173 = vrot.lane.b32.xlu0 %v7039, 68
        %v7174 = vpop.permute.xlu0 %7173
        %v7175 = vsel %vm1895, %v7160, %v7162
        %v7176 = vsel %vm1895, %v7162, %v7164
        %v7177 = vsel %vm1895, %v7164, %v7166
        %v7178 = vsel %vm1895, %v7166, %v7168
        %v7179 = vsel %vm1895, %v7168, %v7170
        %v7180 = vsel %vm1895, %v7170, %v7172
        %v7181 = vsel %vm1895, %v7172, %v7174
        %v7182 = vsel %vm1895, %v7174, %v1894
        %7183 = vrot.lane.b32.xlu0 %v7032, 67
        %v7184 = vpop.permute.xlu0 %7183
        %7185 = vrot.lane.b32.xlu0 %v7033, 67
        %v7186 = vpop.permute.xlu0 %7185
        %7187 = vrot.lane.b32.xlu0 %v7034, 67
        %v7188 = vpop.permute.xlu0 %7187
        %7189 = vrot.lane.b32.xlu0 %v7035, 67
        %v7190 = vpop.permute.xlu0 %7189
        %7191 = vrot.lane.b32.xlu0 %v7036, 67
        %v7192 = vpop.permute.xlu0 %7191
        %7193 = vrot.lane.b32.xlu0 %v7037, 67
        %v7194 = vpop.permute.xlu0 %7193
        %7195 = vrot.lane.b32.xlu0 %v7038, 67
        %v7196 = vpop.permute.xlu0 %7195
        %7197 = vrot.lane.b32.xlu0 %v7039, 67
        %v7198 = vpop.permute.xlu0 %7197
        %v7199 = vsel %vm1922, %v7184, %v7186
        %v7200 = vsel %vm1922, %v7186, %v7188
        %v7201 = vsel %vm1922, %v7188, %v7190
        %v7202 = vsel %vm1922, %v7190, %v7192
        %v7203 = vsel %vm1922, %v7192, %v7194
        %v7204 = vsel %vm1922, %v7194, %v7196
        %v7205 = vsel %vm1922, %v7196, %v7198
        %v7206 = vsel %vm1922, %v7198, %v1921
        %7207 = vrot.lane.b32.xlu0 %v7032, 66
        %v7208 = vpop.permute.xlu0 %7207
        %7209 = vrot.lane.b32.xlu0 %v7033, 66
        %v7210 = vpop.permute.xlu0 %7209
        %7211 = vrot.lane.b32.xlu0 %v7034, 66
        %v7212 = vpop.permute.xlu0 %7211
        %7213 = vrot.lane.b32.xlu0 %v7035, 66
        %v7214 = vpop.permute.xlu0 %7213
        %7215 = vrot.lane.b32.xlu0 %v7036, 66
        %v7216 = vpop.permute.xlu0 %7215
        %7217 = vrot.lane.b32.xlu0 %v7037, 66
        %v7218 = vpop.permute.xlu0 %7217
        %7219 = vrot.lane.b32.xlu0 %v7038, 66
        %v7220 = vpop.permute.xlu0 %7219
        %7221 = vrot.lane.b32.xlu0 %v7039, 66
        %v7222 = vpop.permute.xlu0 %7221
        %v7223 = vsel %vm1949, %v7208, %v7210
        %v7224 = vsel %vm1949, %v7210, %v7212
        %v7225 = vsel %vm1949, %v7212, %v7214
        %v7226 = vsel %vm1949, %v7214, %v7216
        %v7227 = vsel %vm1949, %v7216, %v7218
        %v7228 = vsel %vm1949, %v7218, %v7220
        %v7229 = vsel %vm1949, %v7220, %v7222
        %v7230 = vsel %vm1949, %v7222, %v1948
        %7231 = vrot.lane.b32.xlu0 %v7032, 31
        %v7232 = vpop.permute.xlu0 %7231
        %7233 = vrot.lane.b32.xlu0 %v7033, 31
        %v7234 = vpop.permute.xlu0 %7233
        %7235 = vrot.lane.b32.xlu0 %v7034, 31
        %v7236 = vpop.permute.xlu0 %7235
        %7237 = vrot.lane.b32.xlu0 %v7035, 31
        %v7238 = vpop.permute.xlu0 %7237
        %7239 = vrot.lane.b32.xlu0 %v7036, 31
        %v7240 = vpop.permute.xlu0 %7239
        %7241 = vrot.lane.b32.xlu0 %v7037, 31
        %v7242 = vpop.permute.xlu0 %7241
        %7243 = vrot.lane.b32.xlu0 %v7038, 31
        %v7244 = vpop.permute.xlu0 %7243
        %7245 = vrot.lane.b32.xlu0 %v7039, 31
        %v7246 = vpop.permute.xlu0 %7245
        %7247 = vrot.lane.b32.xlu0 %v7056, 31
        %v7248 = vpop.permute.xlu0 %7247
        %7249 = vrot.lane.b32.xlu0 %v7057, 31
        %v7250 = vpop.permute.xlu0 %7249
        %7251 = vrot.lane.b32.xlu0 %v7058, 31
        %v7252 = vpop.permute.xlu0 %7251
        %7253 = vrot.lane.b32.xlu0 %v7059, 31
        %v7254 = vpop.permute.xlu0 %7253
        %7255 = vrot.lane.b32.xlu0 %v7060, 31
        %v7256 = vpop.permute.xlu0 %7255
        %7257 = vrot.lane.b32.xlu0 %v7061, 31
        %v7258 = vpop.permute.xlu0 %7257
        %7259 = vrot.lane.b32.xlu0 %v7062, 31
        %v7260 = vpop.permute.xlu0 %7259
        %7261 = vrot.lane.b32.xlu0 %v7063, 31
        %v7262 = vpop.permute.xlu0 %7261
        %7263 = vrot.lane.b32.xlu0 %v7055, 31
        %v7264 = vpop.permute.xlu0 %7263
        %7265 = vrot.lane.b32.xlu0 %v7080, 31
        %v7266 = vpop.permute.xlu0 %7265
        %7267 = vrot.lane.b32.xlu0 %v7081, 31
        %v7268 = vpop.permute.xlu0 %7267
        %7269 = vrot.lane.b32.xlu0 %v7082, 31
        %v7270 = vpop.permute.xlu0 %7269
        %7271 = vrot.lane.b32.xlu0 %v7083, 31
        %v7272 = vpop.permute.xlu0 %7271
        %7273 = vrot.lane.b32.xlu0 %v7084, 31
        %v7274 = vpop.permute.xlu0 %7273
        %7275 = vrot.lane.b32.xlu0 %v7085, 31
        %v7276 = vpop.permute.xlu0 %7275
        %7277 = vrot.lane.b32.xlu0 %v7086, 31
        %v7278 = vpop.permute.xlu0 %7277
        %7279 = vrot.lane.b32.xlu0 %v7087, 31
        %v7280 = vpop.permute.xlu0 %7279
        %7281 = vrot.lane.b32.xlu0 %v7079, 31
        %v7282 = vpop.permute.xlu0 %7281
        %7283 = vrot.lane.b32.xlu0 %v7104, 31
        %v7284 = vpop.permute.xlu0 %7283
        %7285 = vrot.lane.b32.xlu0 %v7105, 31
        %v7286 = vpop.permute.xlu0 %7285
        %7287 = vrot.lane.b32.xlu0 %v7106, 31
        %v7288 = vpop.permute.xlu0 %7287
        %7289 = vrot.lane.b32.xlu0 %v7107, 31
        %v7290 = vpop.permute.xlu0 %7289
        %7291 = vrot.lane.b32.xlu0 %v7108, 31
        %v7292 = vpop.permute.xlu0 %7291
        %7293 = vrot.lane.b32.xlu0 %v7109, 31
        %v7294 = vpop.permute.xlu0 %7293
        %7295 = vrot.lane.b32.xlu0 %v7110, 31
        %v7296 = vpop.permute.xlu0 %7295
        %7297 = vrot.lane.b32.xlu0 %v7111, 31
        %v7298 = vpop.permute.xlu0 %7297
        %7299 = vrot.lane.b32.xlu0 %v7103, 31
        %v7300 = vpop.permute.xlu0 %7299
        %7301 = vrot.lane.b32.xlu0 %v7113, 31
        %v7302 = vpop.permute.xlu0 %7301
        %7303 = vrot.lane.b32.xlu0 %v7128, 31
        %v7304 = vpop.permute.xlu0 %7303
        %7305 = vrot.lane.b32.xlu0 %v7129, 31
        %v7306 = vpop.permute.xlu0 %7305
        %7307 = vrot.lane.b32.xlu0 %v7130, 31
        %v7308 = vpop.permute.xlu0 %7307
        %7309 = vrot.lane.b32.xlu0 %v7131, 31
        %v7310 = vpop.permute.xlu0 %7309
        %7311 = vrot.lane.b32.xlu0 %v7132, 31
        %v7312 = vpop.permute.xlu0 %7311
        %7313 = vrot.lane.b32.xlu0 %v7133, 31
        %v7314 = vpop.permute.xlu0 %7313
        %7315 = vrot.lane.b32.xlu0 %v7134, 31
        %v7316 = vpop.permute.xlu0 %7315
        %7317 = vrot.lane.b32.xlu0 %v7127, 31
        %v7318 = vpop.permute.xlu0 %7317
        %7319 = vrot.lane.b32.xlu0 %v7136, 31
        %v7320 = vpop.permute.xlu0 %7319
        %7321 = vrot.lane.b32.xlu0 %v7151, 31
        %v7322 = vpop.permute.xlu0 %7321
        %7323 = vrot.lane.b32.xlu0 %v7152, 31
        %v7324 = vpop.permute.xlu0 %7323
        %7325 = vrot.lane.b32.xlu0 %v7153, 31
        %v7326 = vpop.permute.xlu0 %7325
        %7327 = vrot.lane.b32.xlu0 %v7154, 31
        %v7328 = vpop.permute.xlu0 %7327
        %7329 = vrot.lane.b32.xlu0 %v7155, 31
        %v7330 = vpop.permute.xlu0 %7329
        %7331 = vrot.lane.b32.xlu0 %v7156, 31
        %v7332 = vpop.permute.xlu0 %7331
        %7333 = vrot.lane.b32.xlu0 %v7157, 31
        %v7334 = vpop.permute.xlu0 %7333
        %7335 = vrot.lane.b32.xlu0 %v7158, 31
        %v7336 = vpop.permute.xlu0 %7335
        %7337 = vrot.lane.b32.xlu0 %v7160, 31
        %v7338 = vpop.permute.xlu0 %7337
        %7339 = vrot.lane.b32.xlu0 %v7175, 31
        %v7340 = vpop.permute.xlu0 %7339
        %7341 = vrot.lane.b32.xlu0 %v7176, 31
        %v7342 = vpop.permute.xlu0 %7341
        %7343 = vrot.lane.b32.xlu0 %v7177, 31
        %v7344 = vpop.permute.xlu0 %7343
        %7345 = vrot.lane.b32.xlu0 %v7178, 31
        %v7346 = vpop.permute.xlu0 %7345
        %7347 = vrot.lane.b32.xlu0 %v7179, 31
        %v7348 = vpop.permute.xlu0 %7347
        %7349 = vrot.lane.b32.xlu0 %v7180, 31
        %v7350 = vpop.permute.xlu0 %7349
        %7351 = vrot.lane.b32.xlu0 %v7181, 31
        %v7352 = vpop.permute.xlu0 %7351
        %7353 = vrot.lane.b32.xlu0 %v7182, 31
        %v7354 = vpop.permute.xlu0 %7353
        %7355 = vrot.lane.b32.xlu0 %v7184, 31
        %v7356 = vpop.permute.xlu0 %7355
        %7357 = vrot.lane.b32.xlu0 %v7199, 31
        %v7358 = vpop.permute.xlu0 %7357
        %7359 = vrot.lane.b32.xlu0 %v7200, 31
        %v7360 = vpop.permute.xlu0 %7359
        %7361 = vrot.lane.b32.xlu0 %v7201, 31
        %v7362 = vpop.permute.xlu0 %7361
        %7363 = vrot.lane.b32.xlu0 %v7202, 31
        %v7364 = vpop.permute.xlu0 %7363
        %7365 = vrot.lane.b32.xlu0 %v7203, 31
        %v7366 = vpop.permute.xlu0 %7365
        %7367 = vrot.lane.b32.xlu0 %v7204, 31
        %v7368 = vpop.permute.xlu0 %7367
        %7369 = vrot.lane.b32.xlu0 %v7205, 31
        %v7370 = vpop.permute.xlu0 %7369
        %7371 = vrot.lane.b32.xlu0 %v7206, 31
        %v7372 = vpop.permute.xlu0 %7371
        %7373 = vrot.lane.b32.xlu0 %v7208, 31
        %v7374 = vpop.permute.xlu0 %7373
        %7375 = vrot.lane.b32.xlu0 %v7223, 31
        %v7376 = vpop.permute.xlu0 %7375
        %7377 = vrot.lane.b32.xlu0 %v7224, 31
        %v7378 = vpop.permute.xlu0 %7377
        %7379 = vrot.lane.b32.xlu0 %v7225, 31
        %v7380 = vpop.permute.xlu0 %7379
        %7381 = vrot.lane.b32.xlu0 %v7226, 31
        %v7382 = vpop.permute.xlu0 %7381
        %7383 = vrot.lane.b32.xlu0 %v7227, 31
        %v7384 = vpop.permute.xlu0 %7383
        %7385 = vrot.lane.b32.xlu0 %v7228, 31
        %v7386 = vpop.permute.xlu0 %7385
        %7387 = vrot.lane.b32.xlu0 %v7229, 31
        %v7388 = vpop.permute.xlu0 %7387
        %7389 = vrot.lane.b32.xlu0 %v7230, 31
        %v7390 = vpop.permute.xlu0 %7389
        %v7391 = vsel %vm2150, %v1989, %v7232
        %v7392 = vsel %vm2150, %v7232, %v7234
        %v7393 = vsel %vm2150, %v7234, %v7236
        %v7394 = vsel %vm2150, %v7236, %v7238
        %v7395 = vsel %vm2150, %v7238, %v7240
        %v7396 = vsel %vm2150, %v7240, %v7242
        %v7397 = vsel %vm2150, %v7242, %v7244
        %v7398 = vsel %vm2150, %v7244, %v7246
        %v7399 = vsel %vm2150, %v7248, %v7250
        %v7400 = vsel %vm2150, %v7250, %v7252
        %v7401 = vsel %vm2150, %v7252, %v7254
        %v7402 = vsel %vm2150, %v7254, %v7256
        %v7403 = vsel %vm2150, %v7256, %v7258
        %v7404 = vsel %vm2150, %v7258, %v7260
        %v7405 = vsel %vm2150, %v7260, %v7262
        %v7406 = vsel %vm2150, %v7262, %v7264
        %v7407 = vsel %vm2150, %v7266, %v7268
        %v7408 = vsel %vm2150, %v7268, %v7270
        %v7409 = vsel %vm2150, %v7270, %v7272
        %v7410 = vsel %vm2150, %v7272, %v7274
        %v7411 = vsel %vm2150, %v7274, %v7276
        %v7412 = vsel %vm2150, %v7276, %v7278
        %v7413 = vsel %vm2150, %v7278, %v7280
        %v7414 = vsel %vm2150, %v7280, %v7282
        %v7415 = vsel %vm2150, %v7284, %v7286
        %v7416 = vsel %vm2150, %v7286, %v7288
        %v7417 = vsel %vm2150, %v7288, %v7290
        %v7418 = vsel %vm2150, %v7290, %v7292
        %v7419 = vsel %vm2150, %v7292, %v7294
        %v7420 = vsel %vm2150, %v7294, %v7296
        %v7421 = vsel %vm2150, %v7296, %v7298
        %v7422 = vsel %vm2150, %v7298, %v7300
        %v7423 = vsel %vm2150, %v7302, %v7304
        %v7424 = vsel %vm2150, %v7304, %v7306
        %v7425 = vsel %vm2150, %v7306, %v7308
        %v7426 = vsel %vm2150, %v7308, %v7310
        %v7427 = vsel %vm2150, %v7310, %v7312
        %v7428 = vsel %vm2150, %v7312, %v7314
        %v7429 = vsel %vm2150, %v7314, %v7316
        %v7430 = vsel %vm2150, %v7316, %v7318
        %v7431 = vsel %vm2150, %v7320, %v7322
        %v7432 = vsel %vm2150, %v7322, %v7324
        %v7433 = vsel %vm2150, %v7324, %v7326
        %v7434 = vsel %vm2150, %v7326, %v7328
        %v7435 = vsel %vm2150, %v7328, %v7330
        %v7436 = vsel %vm2150, %v7330, %v7332
        %v7437 = vsel %vm2150, %v7332, %v7334
        %v7438 = vsel %vm2150, %v7334, %v7336
        %v7439 = vsel %vm2150, %v7338, %v7340
        %v7440 = vsel %vm2150, %v7340, %v7342
        %v7441 = vsel %vm2150, %v7342, %v7344
        %v7442 = vsel %vm2150, %v7344, %v7346
        %v7443 = vsel %vm2150, %v7346, %v7348
        %v7444 = vsel %vm2150, %v7348, %v7350
        %v7445 = vsel %vm2150, %v7350, %v7352
        %v7446 = vsel %vm2150, %v7352, %v7354
        %v7447 = vsel %vm2150, %v7356, %v7358
        %v7448 = vsel %vm2150, %v7358, %v7360
        %v7449 = vsel %vm2150, %v7360, %v7362
        %v7450 = vsel %vm2150, %v7362, %v7364
        %v7451 = vsel %vm2150, %v7364, %v7366
        %v7452 = vsel %vm2150, %v7366, %v7368
        %v7453 = vsel %vm2150, %v7368, %v7370
        %v7454 = vsel %vm2150, %v7370, %v7372
        %v7455 = vsel %vm2150, %v7374, %v7376
        %v7456 = vsel %vm2150, %v7376, %v7378
        %v7457 = vsel %vm2150, %v7378, %v7380
        %v7458 = vsel %vm2150, %v7380, %v7382
        %v7459 = vsel %vm2150, %v7382, %v7384
        %v7460 = vsel %vm2150, %v7384, %v7386
        %v7461 = vsel %vm2150, %v7386, %v7388
        %v7462 = vsel %vm2150, %v7388, %v7390
        %7535 = vmatpush.bf16.msra.mxu0 %v7447
        %7536 = vmatpush.bf16.msra.mxu0 %v7439
        %7537 = vmatpush.bf16.msra.mxu0 %v7431
        %7538 = vmatpush.bf16.msra.mxu0 %v7423
        %7539 = vmatpush.bf16.msra.mxu0 %v7415
        %7540 = vmatpush.bf16.msra.mxu0 %v7407
        %7541 = vmatpush.bf16.msra.mxu0 %v7399
        %7542 = vmatpush.bf16.msra.mxu0 %v7391
        %7543 = vmatmul.bf16.gmra.mxu0 %v1982
        %v7544 = vpop.f32.mrf.mxu0
        %v7545 = vadd.f32 %v1961, %v7544
        %v7546 = vpop.f32.mrf.mxu0
        %v7547 = vadd.f32 %v1966, %v7546
        %7548 = vmatmul.bf16.gmra.mxu0 %v1984
        %v7549 = vpop.f32.mrf.mxu0
        %v7550 = vadd.f32 %v1971, %v7549
        %v7551 = vpop.f32.mrf.mxu0
        %7552 = vdwg.mxu0
        %7553 = vmatpush.bf16.msra.mxu0 0
        %7554 = vmatpush.bf16.msra.mxu0 0
        %7555 = vmatpush.bf16.msra.mxu0 0
        %7556 = vmatpush.bf16.msra.mxu0 0
        %7557 = vmatpush.bf16.msra.mxu0 0
        %7558 = vmatpush.bf16.msra.mxu0 0
        %7559 = vmatpush.bf16.msra.mxu0 0
        %7560 = vmatpush.bf16.msra.mxu0 %v7455
        %7561 = vmatmul.bf16.gmra.mxu0 %v2297
        %v7562 = vpop.f32.mrf.mxu0
        %v7563 = vadd.f32 %v7545, %v7562
        %v7564 = vpop.f32.mrf.mxu0
        %v7565 = vadd.f32 %v7547, %v7564
        %7566 = vmatmul.bf16.gmra.mxu0 %v2300
        %v7567 = vpop.f32.mrf.mxu0
        %v7568 = vadd.f32 %v7550, %v7567
        %v7569 = vpop.f32.mrf.mxu0
        %7570 = vdwg.mxu0
        %7571 = vmatpush.bf16.msra.mxu0 %v7448
        %7572 = vmatpush.bf16.msra.mxu0 %v7440
        %7573 = vmatpush.bf16.msra.mxu0 %v7432
        %7574 = vmatpush.bf16.msra.mxu0 %v7424
        %7575 = vmatpush.bf16.msra.mxu0 %v7416
        %7576 = vmatpush.bf16.msra.mxu0 %v7408
        %7577 = vmatpush.bf16.msra.mxu0 %v7400
        %7578 = vmatpush.bf16.msra.mxu0 %v7392
        %7579 = vmatmul.bf16.gmra.mxu0 %v1982
        %v7580 = vpop.f32.mrf.mxu0
        %v7581 = vadd.f32 %v1961, %v7580
        %v7582 = vpop.f32.mrf.mxu0
        %v7583 = vadd.f32 %v1966, %v7582
        %7584 = vmatmul.bf16.gmra.mxu0 %v1984
        %v7585 = vpop.f32.mrf.mxu0
        %v7586 = vadd.f32 %v1971, %v7585
        %v7587 = vpop.f32.mrf.mxu0
        %7588 = vdwg.mxu0
        %7589 = vmatpush.bf16.msra.mxu0 0
        %7590 = vmatpush.bf16.msra.mxu0 0
        %7591 = vmatpush.bf16.msra.mxu0 0
        %7592 = vmatpush.bf16.msra.mxu0 0
        %7593 = vmatpush.bf16.msra.mxu0 0
        %7594 = vmatpush.bf16.msra.mxu0 0
        %7595 = vmatpush.bf16.msra.mxu0 0
        %7596 = vmatpush.bf16.msra.mxu0 %v7456
        %7597 = vmatmul.bf16.gmra.mxu0 %v2297
        %v7598 = vpop.f32.mrf.mxu0
        %v7599 = vadd.f32 %v7581, %v7598
        %v7600 = vpop.f32.mrf.mxu0
        %v7601 = vadd.f32 %v7583, %v7600
        %7602 = vmatmul.bf16.gmra.mxu0 %v2300
        %v7603 = vpop.f32.mrf.mxu0
        %v7604 = vadd.f32 %v7586, %v7603
        %v7605 = vpop.f32.mrf.mxu0
        %7606 = vdwg.mxu0
        %7607 = vmatpush.bf16.msra.mxu0 %v7449
        %7608 = vmatpush.bf16.msra.mxu0 %v7441
        %7609 = vmatpush.bf16.msra.mxu0 %v7433
        %7610 = vmatpush.bf16.msra.mxu0 %v7425
        %7611 = vmatpush.bf16.msra.mxu0 %v7417
        %7612 = vmatpush.bf16.msra.mxu0 %v7409
        %7613 = vmatpush.bf16.msra.mxu0 %v7401
        %7614 = vmatpush.bf16.msra.mxu0 %v7393
        %7615 = vmatmul.bf16.gmra.mxu0 %v1982
        %v7616 = vpop.f32.mrf.mxu0
        %v7617 = vadd.f32 %v1961, %v7616
        %v7618 = vpop.f32.mrf.mxu0
        %v7619 = vadd.f32 %v1966, %v7618
        %7620 = vmatmul.bf16.gmra.mxu0 %v1984
        %v7621 = vpop.f32.mrf.mxu0
        %v7622 = vadd.f32 %v1971, %v7621
        %v7623 = vpop.f32.mrf.mxu0
        %7624 = vdwg.mxu0
        %7625 = vmatpush.bf16.msra.mxu0 0
        %7626 = vmatpush.bf16.msra.mxu0 0
        %7627 = vmatpush.bf16.msra.mxu0 0
        %7628 = vmatpush.bf16.msra.mxu0 0
        %7629 = vmatpush.bf16.msra.mxu0 0
        %7630 = vmatpush.bf16.msra.mxu0 0
        %7631 = vmatpush.bf16.msra.mxu0 0
        %7632 = vmatpush.bf16.msra.mxu0 %v7457
        %7633 = vmatmul.bf16.gmra.mxu0 %v2297
        %v7634 = vpop.f32.mrf.mxu0
        %v7635 = vadd.f32 %v7617, %v7634
        %v7636 = vpop.f32.mrf.mxu0
        %v7637 = vadd.f32 %v7619, %v7636
        %7638 = vmatmul.bf16.gmra.mxu0 %v2300
        %v7639 = vpop.f32.mrf.mxu0
        %v7640 = vadd.f32 %v7622, %v7639
        %v7641 = vpop.f32.mrf.mxu0
        %7642 = vdwg.mxu0
        %7643 = vmatpush.bf16.msra.mxu0 %v7450
        %7644 = vmatpush.bf16.msra.mxu0 %v7442
        %7645 = vmatpush.bf16.msra.mxu0 %v7434
        %7646 = vmatpush.bf16.msra.mxu0 %v7426
        %7647 = vmatpush.bf16.msra.mxu0 %v7418
        %7648 = vmatpush.bf16.msra.mxu0 %v7410
        %7649 = vmatpush.bf16.msra.mxu0 %v7402
        %7650 = vmatpush.bf16.msra.mxu0 %v7394
        %7651 = vmatmul.bf16.gmra.mxu0 %v1982
        %v7652 = vpop.f32.mrf.mxu0
        %v7653 = vadd.f32 %v1961, %v7652
        %v7654 = vpop.f32.mrf.mxu0
        %v7655 = vadd.f32 %v1966, %v7654
        %7656 = vmatmul.bf16.gmra.mxu0 %v1984
        %v7657 = vpop.f32.mrf.mxu0
        %v7658 = vadd.f32 %v1971, %v7657
        %v7659 = vpop.f32.mrf.mxu0
        %7660 = vdwg.mxu0
        %7661 = vmatpush.bf16.msra.mxu0 0
        %7662 = vmatpush.bf16.msra.mxu0 0
        %7663 = vmatpush.bf16.msra.mxu0 0
        %7664 = vmatpush.bf16.msra.mxu0 0
        %7665 = vmatpush.bf16.msra.mxu0 0
        %7666 = vmatpush.bf16.msra.mxu0 0
        %7667 = vmatpush.bf16.msra.mxu0 0
        %7668 = vmatpush.bf16.msra.mxu0 %v7458
        %7669 = vmatmul.bf16.gmra.mxu0 %v2297
        %v7670 = vpop.f32.mrf.mxu0
        %v7671 = vadd.f32 %v7653, %v7670
        %v7672 = vpop.f32.mrf.mxu0
        %v7673 = vadd.f32 %v7655, %v7672
        %7674 = vmatmul.bf16.gmra.mxu0 %v2300
        %v7675 = vpop.f32.mrf.mxu0
        %v7676 = vadd.f32 %v7658, %v7675
        %v7677 = vpop.f32.mrf.mxu0
        %7678 = vdwg.mxu0
        %7679 = vmatpush.bf16.msra.mxu0 %v7451
        %7680 = vmatpush.bf16.msra.mxu0 %v7443
        %7681 = vmatpush.bf16.msra.mxu0 %v7435
        %7682 = vmatpush.bf16.msra.mxu0 %v7427
        %7683 = vmatpush.bf16.msra.mxu0 %v7419
        %7684 = vmatpush.bf16.msra.mxu0 %v7411
        %7685 = vmatpush.bf16.msra.mxu0 %v7403
        %7686 = vmatpush.bf16.msra.mxu0 %v7395
        %7687 = vmatmul.bf16.gmra.mxu0 %v1982
        %v7688 = vpop.f32.mrf.mxu0
        %v7689 = vadd.f32 %v1961, %v7688
        %v7690 = vpop.f32.mrf.mxu0
        %v7691 = vadd.f32 %v1966, %v7690
        %7692 = vmatmul.bf16.gmra.mxu0 %v1984
        %v7693 = vpop.f32.mrf.mxu0
        %v7694 = vadd.f32 %v1971, %v7693
        %v7695 = vpop.f32.mrf.mxu0
        %7696 = vdwg.mxu0
        %7697 = vmatpush.bf16.msra.mxu0 0
        %7698 = vmatpush.bf16.msra.mxu0 0
        %7699 = vmatpush.bf16.msra.mxu0 0
        %7700 = vmatpush.bf16.msra.mxu0 0
        %7701 = vmatpush.bf16.msra.mxu0 0
        %7702 = vmatpush.bf16.msra.mxu0 0
        %7703 = vmatpush.bf16.msra.mxu0 0
        %7704 = vmatpush.bf16.msra.mxu0 %v7459
        %7705 = vmatmul.bf16.gmra.mxu0 %v2297
        %v7706 = vpop.f32.mrf.mxu0
        %v7707 = vadd.f32 %v7689, %v7706
        %v7708 = vpop.f32.mrf.mxu0
        %v7709 = vadd.f32 %v7691, %v7708
        %7710 = vmatmul.bf16.gmra.mxu0 %v2300
        %v7711 = vpop.f32.mrf.mxu0
        %v7712 = vadd.f32 %v7694, %v7711
        %v7713 = vpop.f32.mrf.mxu0
        %7714 = vdwg.mxu0
        %7715 = vmatpush.bf16.msra.mxu0 %v7452
        %7716 = vmatpush.bf16.msra.mxu0 %v7444
        %7717 = vmatpush.bf16.msra.mxu0 %v7436
        %7718 = vmatpush.bf16.msra.mxu0 %v7428
        %7719 = vmatpush.bf16.msra.mxu0 %v7420
        %7720 = vmatpush.bf16.msra.mxu0 %v7412
        %7721 = vmatpush.bf16.msra.mxu0 %v7404
        %7722 = vmatpush.bf16.msra.mxu0 %v7396
        %7723 = vmatmul.bf16.gmra.mxu0 %v1982
        %v7724 = vpop.f32.mrf.mxu0
        %v7725 = vadd.f32 %v1961, %v7724
        %v7726 = vpop.f32.mrf.mxu0
        %v7727 = vadd.f32 %v1966, %v7726
        %7728 = vmatmul.bf16.gmra.mxu0 %v1984
        %v7729 = vpop.f32.mrf.mxu0
        %v7730 = vadd.f32 %v1971, %v7729
        %v7731 = vpop.f32.mrf.mxu0
        %7732 = vdwg.mxu0
        %7733 = vmatpush.bf16.msra.mxu0 0
        %7734 = vmatpush.bf16.msra.mxu0 0
        %7735 = vmatpush.bf16.msra.mxu0 0
        %7736 = vmatpush.bf16.msra.mxu0 0
        %7737 = vmatpush.bf16.msra.mxu0 0
        %7738 = vmatpush.bf16.msra.mxu0 0
        %7739 = vmatpush.bf16.msra.mxu0 0
        %7740 = vmatpush.bf16.msra.mxu0 %v7460
        %7741 = vmatmul.bf16.gmra.mxu0 %v2297
        %v7742 = vpop.f32.mrf.mxu0
        %v7743 = vadd.f32 %v7725, %v7742
        %v7744 = vpop.f32.mrf.mxu0
        %v7745 = vadd.f32 %v7727, %v7744
        %7746 = vmatmul.bf16.gmra.mxu0 %v2300
        %v7747 = vpop.f32.mrf.mxu0
        %v7748 = vadd.f32 %v7730, %v7747
        %v7749 = vpop.f32.mrf.mxu0
        %7750 = vdwg.mxu0
        %7751 = vmatpush.bf16.msra.mxu0 %v7453
        %7752 = vmatpush.bf16.msra.mxu0 %v7445
        %7753 = vmatpush.bf16.msra.mxu0 %v7437
        %7754 = vmatpush.bf16.msra.mxu0 %v7429
        %7755 = vmatpush.bf16.msra.mxu0 %v7421
        %7756 = vmatpush.bf16.msra.mxu0 %v7413
        %7757 = vmatpush.bf16.msra.mxu0 %v7405
        %7758 = vmatpush.bf16.msra.mxu0 %v7397
        %7759 = vmatmul.bf16.gmra.mxu0 %v1982
        %v7760 = vpop.f32.mrf.mxu0
        %v7761 = vadd.f32 %v1961, %v7760
        %v7762 = vpop.f32.mrf.mxu0
        %v7763 = vadd.f32 %v1966, %v7762
        %7764 = vmatmul.bf16.gmra.mxu0 %v1984
        %v7765 = vpop.f32.mrf.mxu0
        %v7766 = vadd.f32 %v1971, %v7765
        %v7767 = vpop.f32.mrf.mxu0
        %7768 = vdwg.mxu0
        %7769 = vmatpush.bf16.msra.mxu0 0
        %7770 = vmatpush.bf16.msra.mxu0 0
        %7771 = vmatpush.bf16.msra.mxu0 0
        %7772 = vmatpush.bf16.msra.mxu0 0
        %7773 = vmatpush.bf16.msra.mxu0 0
        %7774 = vmatpush.bf16.msra.mxu0 0
        %7775 = vmatpush.bf16.msra.mxu0 0
        %7776 = vmatpush.bf16.msra.mxu0 %v7461
        %7777 = vmatmul.bf16.gmra.mxu0 %v2297
        %v7778 = vpop.f32.mrf.mxu0
        %v7779 = vadd.f32 %v7761, %v7778
        %v7780 = vpop.f32.mrf.mxu0
        %v7781 = vadd.f32 %v7763, %v7780
        %7782 = vmatmul.bf16.gmra.mxu0 %v2300
        %v7783 = vpop.f32.mrf.mxu0
        %v7784 = vadd.f32 %v7766, %v7783
        %v7785 = vpop.f32.mrf.mxu0
        %7786 = vdwg.mxu0
        %7787 = vmatpush.bf16.msra.mxu0 %v7454
        %7788 = vmatpush.bf16.msra.mxu0 %v7446
        %7789 = vmatpush.bf16.msra.mxu0 %v7438
        %7790 = vmatpush.bf16.msra.mxu0 %v7430
        %7791 = vmatpush.bf16.msra.mxu0 %v7422
        %7792 = vmatpush.bf16.msra.mxu0 %v7414
        %7793 = vmatpush.bf16.msra.mxu0 %v7406
        %7794 = vmatpush.bf16.msra.mxu0 %v7398
        %7795 = vmatmul.bf16.gmra.mxu0 %v1982
        %v7796 = vpop.f32.mrf.mxu0
        %v7797 = vadd.f32 %v1961, %v7796
        %v7798 = vpop.f32.mrf.mxu0
        %v7799 = vadd.f32 %v1966, %v7798
        %7800 = vmatmul.bf16.gmra.mxu0 %v1984
        %v7801 = vpop.f32.mrf.mxu0
        %v7802 = vadd.f32 %v1971, %v7801
        %v7803 = vpop.f32.mrf.mxu0
        %7804 = vdwg.mxu0
        %7805 = vmatpush.bf16.msra.mxu0 0
        %7806 = vmatpush.bf16.msra.mxu0 0
        %7807 = vmatpush.bf16.msra.mxu0 0
        %7808 = vmatpush.bf16.msra.mxu0 0
        %7809 = vmatpush.bf16.msra.mxu0 0
        %7810 = vmatpush.bf16.msra.mxu0 0
        %7811 = vmatpush.bf16.msra.mxu0 0
        %7812 = vmatpush.bf16.msra.mxu0 %v7462
        %7813 = vmatmul.bf16.gmra.mxu0 %v2297
        %v7814 = vpop.f32.mrf.mxu0
        %v7815 = vadd.f32 %v7797, %v7814
        %v7816 = vpop.f32.mrf.mxu0
        %v7817 = vadd.f32 %v7799, %v7816
        %7818 = vmatmul.bf16.gmra.mxu0 %v2300
        %v7819 = vpop.f32.mrf.mxu0
        %v7820 = vadd.f32 %v7802, %v7819
        %v7821 = vpop.f32.mrf.mxu0
        %7822 = vdwg.mxu0
        %v7823 = vmax.f32 %v7563, 0.0
        %v7824 = vmax.f32 %v7599, 0.0
        %v7825 = vmax.f32 %v7635, 0.0
        %v7826 = vmax.f32 %v7671, 0.0
        %v7827 = vmax.f32 %v7707, 0.0
        %v7828 = vmax.f32 %v7743, 0.0
        %v7829 = vmax.f32 %v7779, 0.0
        %v7830 = vmax.f32 %v7815, 0.0
        %v7831 = vmax.f32 %v7565, 0.0
        %v7832 = vmax.f32 %v7601, 0.0
        %v7833 = vmax.f32 %v7637, 0.0
        %v7834 = vmax.f32 %v7673, 0.0
        %v7835 = vmax.f32 %v7709, 0.0
        %v7836 = vmax.f32 %v7745, 0.0
        %v7837 = vmax.f32 %v7781, 0.0
        %v7838 = vmax.f32 %v7817, 0.0
        %v7839 = vmax.f32 %v7568, 0.0
        %v7840 = vmax.f32 %v7604, 0.0
        %v7841 = vmax.f32 %v7640, 0.0
        %v7842 = vmax.f32 %v7676, 0.0
        %v7843 = vmax.f32 %v7712, 0.0
        %v7844 = vmax.f32 %v7748, 0.0
        %v7845 = vmax.f32 %v7784, 0.0
        %v7846 = vmax.f32 %v7820, 0.0
        %v7847 = vpack.c.bf16 %v7831, %v7823
        %v7848 = vpack.c.bf16 %v7832, %v7824
        %v7849 = vpack.c.bf16 %v7833, %v7825
        %v7850 = vpack.c.bf16 %v7834, %v7826
        %v7851 = vpack.c.bf16 %v7835, %v7827
        %v7852 = vpack.c.bf16 %v7836, %v7828
        %v7853 = vpack.c.bf16 %v7837, %v7829
        %v7854 = vpack.c.bf16 %v7838, %v7830
        %v7855 = vpack.c.bf16 %v7839, %v7839
        %v7856 = vpack.c.bf16 %v7840, %v7840
        %v7857 = vpack.c.bf16 %v7841, %v7841
        %v7858 = vpack.c.bf16 %v7842, %v7842
        %v7859 = vpack.c.bf16 %v7843, %v7843
        %v7860 = vpack.c.bf16 %v7844, %v7844
        %v7861 = vpack.c.bf16 %v7845, %v7845
        %v7862 = vpack.c.bf16 %v7846, %v7846
        %7863 = vmatpush.bf16.msra.mxu0 %v3028
        %7864 = vmatpush.bf16.msra.mxu0 %v3026
        %7865 = vmatpush.bf16.msra.mxu0 %v3024
        %7866 = vmatpush.bf16.msra.mxu0 %v3022
        %7867 = vmatpush.bf16.msra.mxu0 %v3020
        %7868 = vmatpush.bf16.msra.mxu0 %v3018
        %7869 = vmatpush.bf16.msra.mxu0 %v3016
        %7870 = vmatpush.bf16.msra.mxu0 %v3014
        %7871 = vmatmul.bf16.gmra.mxu0 %v7847
        %v7872 = vpop.f32.mrf.mxu0
        %v7873 = vadd.f32 0.0, %v7872
        %v7874 = vpop.f32.mrf.mxu0
        %v7875 = vadd.f32 0.0, %v7874
        %7876 = vmatmul.bf16.gmra.mxu0 %v7855
        %v7877 = vpop.f32.mrf.mxu0
        %v7878 = vadd.f32 0.0, %v7877
        %v7879 = vpop.f32.mrf.mxu0
        %7880 = vdwg.mxu0
        %7881 = vmatpush.bf16.msra.mxu0 %v3044
        %7882 = vmatpush.bf16.msra.mxu0 %v3042
        %7883 = vmatpush.bf16.msra.mxu0 %v3040
        %7884 = vmatpush.bf16.msra.mxu0 %v3038
        %7885 = vmatpush.bf16.msra.mxu0 %v3036
        %7886 = vmatpush.bf16.msra.mxu0 %v3034
        %7887 = vmatpush.bf16.msra.mxu0 %v3032
        %7888 = vmatpush.bf16.msra.mxu0 %v3030
        %7889 = vmatmul.bf16.gmra.mxu0 %v7848
        %v7890 = vpop.f32.mrf.mxu0
        %v7891 = vadd.f32 %v7873, %v7890
        %v7892 = vpop.f32.mrf.mxu0
        %v7893 = vadd.f32 %v7875, %v7892
        %7894 = vmatmul.bf16.gmra.mxu0 %v7856
        %v7895 = vpop.f32.mrf.mxu0
        %v7896 = vadd.f32 %v7878, %v7895
        %v7897 = vpop.f32.mrf.mxu0
        %7898 = vdwg.mxu0
        %7899 = vmatpush.bf16.msra.mxu0 %v3060
        %7900 = vmatpush.bf16.msra.mxu0 %v3058
        %7901 = vmatpush.bf16.msra.mxu0 %v3056
        %7902 = vmatpush.bf16.msra.mxu0 %v3054
        %7903 = vmatpush.bf16.msra.mxu0 %v3052
        %7904 = vmatpush.bf16.msra.mxu0 %v3050
        %7905 = vmatpush.bf16.msra.mxu0 %v3048
        %7906 = vmatpush.bf16.msra.mxu0 %v3046
        %7907 = vmatmul.bf16.gmra.mxu0 %v7849
        %v7908 = vpop.f32.mrf.mxu0
        %v7909 = vadd.f32 %v7891, %v7908
        %v7910 = vpop.f32.mrf.mxu0
        %v7911 = vadd.f32 %v7893, %v7910
        %7912 = vmatmul.bf16.gmra.mxu0 %v7857
        %v7913 = vpop.f32.mrf.mxu0
        %v7914 = vadd.f32 %v7896, %v7913
        %v7915 = vpop.f32.mrf.mxu0
        %7916 = vdwg.mxu0
        %7917 = vmatpush.bf16.msra.mxu0 %v3076
        %7918 = vmatpush.bf16.msra.mxu0 %v3074
        %7919 = vmatpush.bf16.msra.mxu0 %v3072
        %7920 = vmatpush.bf16.msra.mxu0 %v3070
        %7921 = vmatpush.bf16.msra.mxu0 %v3068
        %7922 = vmatpush.bf16.msra.mxu0 %v3066
        %7923 = vmatpush.bf16.msra.mxu0 %v3064
        %7924 = vmatpush.bf16.msra.mxu0 %v3062
        %7925 = vmatmul.bf16.gmra.mxu0 %v7850
        %v7926 = vpop.f32.mrf.mxu0
        %v7927 = vadd.f32 %v7909, %v7926
        %v7928 = vpop.f32.mrf.mxu0
        %v7929 = vadd.f32 %v7911, %v7928
        %7930 = vmatmul.bf16.gmra.mxu0 %v7858
        %v7931 = vpop.f32.mrf.mxu0
        %v7932 = vadd.f32 %v7914, %v7931
        %v7933 = vpop.f32.mrf.mxu0
        %7934 = vdwg.mxu0
        %7935 = vmatpush.bf16.msra.mxu0 %v3092
        %7936 = vmatpush.bf16.msra.mxu0 %v3090
        %7937 = vmatpush.bf16.msra.mxu0 %v3088
        %7938 = vmatpush.bf16.msra.mxu0 %v3086
        %7939 = vmatpush.bf16.msra.mxu0 %v3084
        %7940 = vmatpush.bf16.msra.mxu0 %v3082
        %7941 = vmatpush.bf16.msra.mxu0 %v3080
        %7942 = vmatpush.bf16.msra.mxu0 %v3078
        %7943 = vmatmul.bf16.gmra.mxu0 %v7851
        %v7944 = vpop.f32.mrf.mxu0
        %v7945 = vadd.f32 %v7927, %v7944
        %v7946 = vpop.f32.mrf.mxu0
        %v7947 = vadd.f32 %v7929, %v7946
        %7948 = vmatmul.bf16.gmra.mxu0 %v7859
        %v7949 = vpop.f32.mrf.mxu0
        %v7950 = vadd.f32 %v7932, %v7949
        %v7951 = vpop.f32.mrf.mxu0
        %7952 = vdwg.mxu0
        %7953 = vmatpush.bf16.msra.mxu0 %v3108
        %7954 = vmatpush.bf16.msra.mxu0 %v3106
        %7955 = vmatpush.bf16.msra.mxu0 %v3104
        %7956 = vmatpush.bf16.msra.mxu0 %v3102
        %7957 = vmatpush.bf16.msra.mxu0 %v3100
        %7958 = vmatpush.bf16.msra.mxu0 %v3098
        %7959 = vmatpush.bf16.msra.mxu0 %v3096
        %7960 = vmatpush.bf16.msra.mxu0 %v3094
        %7961 = vmatmul.bf16.gmra.mxu0 %v7852
        %v7962 = vpop.f32.mrf.mxu0
        %v7963 = vadd.f32 %v7945, %v7962
        %v7964 = vpop.f32.mrf.mxu0
        %v7965 = vadd.f32 %v7947, %v7964
        %7966 = vmatmul.bf16.gmra.mxu0 %v7860
        %v7967 = vpop.f32.mrf.mxu0
        %v7968 = vadd.f32 %v7950, %v7967
        %v7969 = vpop.f32.mrf.mxu0
        %7970 = vdwg.mxu0
        %7971 = vmatpush.bf16.msra.mxu0 %v3124
        %7972 = vmatpush.bf16.msra.mxu0 %v3122
        %7973 = vmatpush.bf16.msra.mxu0 %v3120
        %7974 = vmatpush.bf16.msra.mxu0 %v3118
        %7975 = vmatpush.bf16.msra.mxu0 %v3116
        %7976 = vmatpush.bf16.msra.mxu0 %v3114
        %7977 = vmatpush.bf16.msra.mxu0 %v3112
        %7978 = vmatpush.bf16.msra.mxu0 %v3110
        %7979 = vmatmul.bf16.gmra.mxu0 %v7853
        %v7980 = vpop.f32.mrf.mxu0
        %v7981 = vadd.f32 %v7963, %v7980
        %v7982 = vpop.f32.mrf.mxu0
        %v7983 = vadd.f32 %v7965, %v7982
        %7984 = vmatmul.bf16.gmra.mxu0 %v7861
        %v7985 = vpop.f32.mrf.mxu0
        %v7986 = vadd.f32 %v7968, %v7985
        %v7987 = vpop.f32.mrf.mxu0
        %7988 = vdwg.mxu0
        %7989 = vmatpush.bf16.msra.mxu0 %v3140
        %7990 = vmatpush.bf16.msra.mxu0 %v3138
        %7991 = vmatpush.bf16.msra.mxu0 %v3136
        %7992 = vmatpush.bf16.msra.mxu0 %v3134
        %7993 = vmatpush.bf16.msra.mxu0 %v3132
        %7994 = vmatpush.bf16.msra.mxu0 %v3130
        %7995 = vmatpush.bf16.msra.mxu0 %v3128
        %7996 = vmatpush.bf16.msra.mxu0 %v3126
        %7997 = vmatmul.bf16.gmra.mxu0 %v7854
        %v7998 = vpop.f32.mrf.mxu0
        %v7999 = vadd.f32 %v7981, %v7998
        %v8000 = vpop.f32.mrf.mxu0
        %v8001 = vadd.f32 %v7983, %v8000
        %8002 = vmatmul.bf16.gmra.mxu0 %v7862
        %v8003 = vpop.f32.mrf.mxu0
        %v8004 = vadd.f32 %v7986, %v8003
        %v8005 = vpop.f32.mrf.mxu0
        %8006 = vdwg.mxu0
        %8007 = vmatpush.bf16.msra.mxu0 %v3029
        %8008 = vmatpush.bf16.msra.mxu0 %v3027
        %8009 = vmatpush.bf16.msra.mxu0 %v3025
        %8010 = vmatpush.bf16.msra.mxu0 %v3023
        %8011 = vmatpush.bf16.msra.mxu0 %v3021
        %8012 = vmatpush.bf16.msra.mxu0 %v3019
        %8013 = vmatpush.bf16.msra.mxu0 %v3017
        %8014 = vmatpush.bf16.msra.mxu0 %v3015
        %8015 = vmatmul.bf16.gmra.mxu0 %v7847
        %v8016 = vpop.f32.mrf.mxu0
        %v8017 = vadd.f32 0.0, %v8016
        %v8018 = vpop.f32.mrf.mxu0
        %v8019 = vadd.f32 0.0, %v8018
        %8020 = vmatmul.bf16.gmra.mxu0 %v7855
        %v8021 = vpop.f32.mrf.mxu0
        %v8022 = vadd.f32 0.0, %v8021
        %v8023 = vpop.f32.mrf.mxu0
        %8024 = vdwg.mxu0
        %8025 = vmatpush.bf16.msra.mxu0 %v3045
        %8026 = vmatpush.bf16.msra.mxu0 %v3043
        %8027 = vmatpush.bf16.msra.mxu0 %v3041
        %8028 = vmatpush.bf16.msra.mxu0 %v3039
        %8029 = vmatpush.bf16.msra.mxu0 %v3037
        %8030 = vmatpush.bf16.msra.mxu0 %v3035
        %8031 = vmatpush.bf16.msra.mxu0 %v3033
        %8032 = vmatpush.bf16.msra.mxu0 %v3031
        %8033 = vmatmul.bf16.gmra.mxu0 %v7848
        %v8034 = vpop.f32.mrf.mxu0
        %v8035 = vadd.f32 %v8017, %v8034
        %v8036 = vpop.f32.mrf.mxu0
        %v8037 = vadd.f32 %v8019, %v8036
        %8038 = vmatmul.bf16.gmra.mxu0 %v7856
        %v8039 = vpop.f32.mrf.mxu0
        %v8040 = vadd.f32 %v8022, %v8039
        %v8041 = vpop.f32.mrf.mxu0
        %8042 = vdwg.mxu0
        %8043 = vmatpush.bf16.msra.mxu0 %v3061
        %8044 = vmatpush.bf16.msra.mxu0 %v3059
        %8045 = vmatpush.bf16.msra.mxu0 %v3057
        %8046 = vmatpush.bf16.msra.mxu0 %v3055
        %8047 = vmatpush.bf16.msra.mxu0 %v3053
        %8048 = vmatpush.bf16.msra.mxu0 %v3051
        %8049 = vmatpush.bf16.msra.mxu0 %v3049
        %8050 = vmatpush.bf16.msra.mxu0 %v3047
        %8051 = vmatmul.bf16.gmra.mxu0 %v7849
        %v8052 = vpop.f32.mrf.mxu0
        %v8053 = vadd.f32 %v8035, %v8052
        %v8054 = vpop.f32.mrf.mxu0
        %v8055 = vadd.f32 %v8037, %v8054
        %8056 = vmatmul.bf16.gmra.mxu0 %v7857
        %v8057 = vpop.f32.mrf.mxu0
        %v8058 = vadd.f32 %v8040, %v8057
        %v8059 = vpop.f32.mrf.mxu0
        %8060 = vdwg.mxu0
        %8061 = vmatpush.bf16.msra.mxu0 %v3077
        %8062 = vmatpush.bf16.msra.mxu0 %v3075
        %8063 = vmatpush.bf16.msra.mxu0 %v3073
        %8064 = vmatpush.bf16.msra.mxu0 %v3071
        %8065 = vmatpush.bf16.msra.mxu0 %v3069
        %8066 = vmatpush.bf16.msra.mxu0 %v3067
        %8067 = vmatpush.bf16.msra.mxu0 %v3065
        %8068 = vmatpush.bf16.msra.mxu0 %v3063
        %8069 = vmatmul.bf16.gmra.mxu0 %v7850
        %v8070 = vpop.f32.mrf.mxu0
        %v8071 = vadd.f32 %v8053, %v8070
        %v8072 = vpop.f32.mrf.mxu0
        %v8073 = vadd.f32 %v8055, %v8072
        %8074 = vmatmul.bf16.gmra.mxu0 %v7858
        %v8075 = vpop.f32.mrf.mxu0
        %v8076 = vadd.f32 %v8058, %v8075
        %v8077 = vpop.f32.mrf.mxu0
        %8078 = vdwg.mxu0
        %8079 = vmatpush.bf16.msra.mxu0 %v3093
        %8080 = vmatpush.bf16.msra.mxu0 %v3091
        %8081 = vmatpush.bf16.msra.mxu0 %v3089
        %8082 = vmatpush.bf16.msra.mxu0 %v3087
        %8083 = vmatpush.bf16.msra.mxu0 %v3085
        %8084 = vmatpush.bf16.msra.mxu0 %v3083
        %8085 = vmatpush.bf16.msra.mxu0 %v3081
        %8086 = vmatpush.bf16.msra.mxu0 %v3079
        %8087 = vmatmul.bf16.gmra.mxu0 %v7851
        %v8088 = vpop.f32.mrf.mxu0
        %v8089 = vadd.f32 %v8071, %v8088
        %v8090 = vpop.f32.mrf.mxu0
        %v8091 = vadd.f32 %v8073, %v8090
        %8092 = vmatmul.bf16.gmra.mxu0 %v7859
        %v8093 = vpop.f32.mrf.mxu0
        %v8094 = vadd.f32 %v8076, %v8093
        %v8095 = vpop.f32.mrf.mxu0
        %8096 = vdwg.mxu0
        %8097 = vmatpush.bf16.msra.mxu0 %v3109
        %8098 = vmatpush.bf16.msra.mxu0 %v3107
        %8099 = vmatpush.bf16.msra.mxu0 %v3105
        %8100 = vmatpush.bf16.msra.mxu0 %v3103
        %8101 = vmatpush.bf16.msra.mxu0 %v3101
        %8102 = vmatpush.bf16.msra.mxu0 %v3099
        %8103 = vmatpush.bf16.msra.mxu0 %v3097
        %8104 = vmatpush.bf16.msra.mxu0 %v3095
        %8105 = vmatmul.bf16.gmra.mxu0 %v7852
        %v8106 = vpop.f32.mrf.mxu0
        %v8107 = vadd.f32 %v8089, %v8106
        %v8108 = vpop.f32.mrf.mxu0
        %v8109 = vadd.f32 %v8091, %v8108
        %8110 = vmatmul.bf16.gmra.mxu0 %v7860
        %v8111 = vpop.f32.mrf.mxu0
        %v8112 = vadd.f32 %v8094, %v8111
        %v8113 = vpop.f32.mrf.mxu0
        %8114 = vdwg.mxu0
        %8115 = vmatpush.bf16.msra.mxu0 %v3125
        %8116 = vmatpush.bf16.msra.mxu0 %v3123
        %8117 = vmatpush.bf16.msra.mxu0 %v3121
        %8118 = vmatpush.bf16.msra.mxu0 %v3119
        %8119 = vmatpush.bf16.msra.mxu0 %v3117
        %8120 = vmatpush.bf16.msra.mxu0 %v3115
        %8121 = vmatpush.bf16.msra.mxu0 %v3113
        %8122 = vmatpush.bf16.msra.mxu0 %v3111
        %8123 = vmatmul.bf16.gmra.mxu0 %v7853
        %v8124 = vpop.f32.mrf.mxu0
        %v8125 = vadd.f32 %v8107, %v8124
        %v8126 = vpop.f32.mrf.mxu0
        %v8127 = vadd.f32 %v8109, %v8126
        %8128 = vmatmul.bf16.gmra.mxu0 %v7861
        %v8129 = vpop.f32.mrf.mxu0
        %v8130 = vadd.f32 %v8112, %v8129
        %v8131 = vpop.f32.mrf.mxu0
        %8132 = vdwg.mxu0
        %8133 = vmatpush.bf16.msra.mxu0 %v3141
        %8134 = vmatpush.bf16.msra.mxu0 %v3139
        %8135 = vmatpush.bf16.msra.mxu0 %v3137
        %8136 = vmatpush.bf16.msra.mxu0 %v3135
        %8137 = vmatpush.bf16.msra.mxu0 %v3133
        %8138 = vmatpush.bf16.msra.mxu0 %v3131
        %8139 = vmatpush.bf16.msra.mxu0 %v3129
        %8140 = vmatpush.bf16.msra.mxu0 %v3127
        %8141 = vmatmul.bf16.gmra.mxu0 %v7854
        %v8142 = vpop.f32.mrf.mxu0
        %v8143 = vadd.f32 %v8125, %v8142
        %v8144 = vpop.f32.mrf.mxu0
        %v8145 = vadd.f32 %v8127, %v8144
        %8146 = vmatmul.bf16.gmra.mxu0 %v7862
        %v8147 = vpop.f32.mrf.mxu0
        %v8148 = vadd.f32 %v8130, %v8147
        %v8149 = vpop.f32.mrf.mxu0
        %8150 = vdwg.mxu0
        %v8151 = vmul.f32 %v7999, %v501
        %v8152 = vmul.f32 %v8143, %v502
        %v8153 = vmul.f32 %v8001, %v503
        %v8154 = vmul.f32 %v8145, %v504
        %v8155 = vmul.f32 %v8004, %v505
        %v8156 = vmul.f32 %v8148, %v506
        %v8158 = vsel %vm3564, %v8152, 0
        %v8161 = vsel %vm3564, %v8154, 0
        %v8164 = vsel %vm3564, %v8156, 0
        %8166 = vmatpush.msra.mxu0 %v522
        %8167 = vmatpush.msra.mxu0 %v521
        %8168 = vmatpush.msra.mxu0 %v520
        %8169 = vmatpush.msra.mxu0 %v519
        %8170 = vmatpush.msra.mxu0 %v518
        %8171 = vmatpush.msra.mxu0 %v517
        %8172 = vmatpush.msra.mxu0 %v516
        %8173 = vmatpush.msra.mxu0 %v515
        %8174 = vmatpush.msra.mxu0 %v514
        %8175 = vmatpush.msra.mxu0 %v513
        %8176 = vmatpush.msra.mxu0 %v512
        %8177 = vmatpush.msra.mxu0 %v511
        %8178 = vmatpush.msra.mxu0 %v510
        %8179 = vmatpush.msra.mxu0 %v509
        %8180 = vmatpush.msra.mxu0 %v508
        %8181 = vmatpush.msra.mxu0 %v507
        %8182 = vmatmul.f32.gmra.mxu0 %v8151
        %v8183 = vpop.f32.mrf.mxu0
        %v8184 = vadd.f32 0.0, %v8183
        %8185 = vmatmul.f32.gmra.mxu0 %v8153
        %v8186 = vpop.f32.mrf.mxu0
        %v8187 = vadd.f32 0.0, %v8186
        %8188 = vmatmul.f32.gmra.mxu0 %v8155
        %v8189 = vpop.f32.mrf.mxu0
        %v8190 = vadd.f32 0.0, %v8189
        %8191 = vdwg.mxu0
        %8192 = vmatpush.msra.mxu0 0.0
        %8193 = vmatpush.msra.mxu0 0.0
        %8194 = vmatpush.msra.mxu0 0.0
        %8195 = vmatpush.msra.mxu0 0.0
        %8196 = vmatpush.msra.mxu0 0.0
        %8197 = vmatpush.msra.mxu0 0.0
        %8198 = vmatpush.msra.mxu0 0.0
        %8199 = vmatpush.msra.mxu0 %v531
        %8200 = vmatpush.msra.mxu0 %v530
        %8201 = vmatpush.msra.mxu0 %v529
        %8202 = vmatpush.msra.mxu0 %v528
        %8203 = vmatpush.msra.mxu0 %v527
        %8204 = vmatpush.msra.mxu0 %v526
        %8205 = vmatpush.msra.mxu0 %v525
        %8206 = vmatpush.msra.mxu0 %v524
        %8207 = vmatpush.msra.mxu0 %v523
        %8208 = vmatmul.f32.gmra.mxu0 %v8158
        %v8209 = vpop.f32.mrf.mxu0
        %v8210 = vadd.f32 %v8184, %v8209
        %8211 = vmatmul.f32.gmra.mxu0 %v8161
        %v8212 = vpop.f32.mrf.mxu0
        %v8213 = vadd.f32 %v8187, %v8212
        %8214 = vmatmul.f32.gmra.mxu0 %v8164
        %v8215 = vpop.f32.mrf.mxu0
        %v8216 = vadd.f32 %v8190, %v8215
        %8217 = vdwg.mxu0
        %v8218 = vsel %vm3626, %v8210, 0.0
        %v8219 = vsel %vm3626, %v8213, 0.0
        %v8220 = vadd.f32 %v8218, %v8219
        %v8221 = vsel %vm3630, %v8216, 0.0
        %v8222 = vadd.f32 %v8220, %v8221
        %v8223 = vrot.slane %v8222, 4
        %v8224 = vadd.f32 %v8222, %v8223
        %v8225 = vrot.slane %v8224, 2
        %v8226 = vadd.f32 %v8224, %v8225
        %v8227 = vrot.slane %v8226, 1
        %v8228 = vadd.f32 %v8226, %v8227
        %v8229 = vadd.f32 %v8228, %v532
        %s8230 = scalar_lea.vmem %s353, 2 [#allocation2]
        %8231 = vst.msk [vmem:[%s8230] sm:$0x1] %vm3640, %v8229
        %s8232 = scalar_lea.vmem %s358, 27
        %v8233 = vld [vmem:[%s8232] sm:$0xff]
        %v8234 = vld [vmem:[%s8232 + $0x8] sm:$0x1]
        %v8236 = vperm.slane %v8233, 0
        %v8237 = vperm.slane %v8233, 1
        %v8238 = vperm.slane %v8233, 2
        %v8239 = vperm.slane %v8233, 3
        %v8240 = vperm.slane %v8233, 4
        %v8241 = vperm.slane %v8233, 5
        %v8242 = vperm.slane %v8233, 6
        %v8243 = vperm.slane %v8233, 7
        %v8252 = vmul.f32 %v8236, %v555
        %v8253 = vmul.f32 %v8237, %v555
        %v8254 = vmul.f32 %v8238, %v555
        %v8255 = vmul.f32 %v8239, %v555
        %v8256 = vmul.f32 %v8240, %v555
        %v8257 = vmul.f32 %v8241, %v555
        %v8258 = vmul.f32 %v8242, %v555
        %v8259 = vmul.f32 %v8243, %v555
        %v8260 = vmul.f32 %v8236, %v560
        %v8261 = vmul.f32 %v8237, %v560
        %v8262 = vmul.f32 %v8238, %v560
        %v8263 = vmul.f32 %v8239, %v560
        %v8264 = vmul.f32 %v8240, %v560
        %v8265 = vmul.f32 %v8241, %v560
        %v8266 = vmul.f32 %v8242, %v560
        %v8267 = vmul.f32 %v8243, %v560
        %v8268 = vadd.f32 %v8252, 0.0
        %v8269 = vadd.f32 %v8253, 0.0
        %v8270 = vadd.f32 %v8254, 0.0
        %v8271 = vadd.f32 %v8255, 0.0
        %v8272 = vadd.f32 %v8256, 0.0
        %v8273 = vadd.f32 %v8257, 0.0
        %v8274 = vadd.f32 %v8258, 0.0
        %v8275 = vadd.f32 %v8259, 0.0
        %v8276 = vadd.f32 %v8260, 0.0
        %v8277 = vadd.f32 %v8261, 0.0
        %v8278 = vadd.f32 %v8262, 0.0
        %v8279 = vadd.f32 %v8263, 0.0
        %v8280 = vadd.f32 %v8264, 0.0
        %v8281 = vadd.f32 %v8265, 0.0
        %v8282 = vadd.f32 %v8266, 0.0
        %v8283 = vadd.f32 %v8267, 0.0
        %v8285 = vperm.slane %v8234, 0
        %v8287 = vmul.f32 %v8236, %v599
        %v8288 = vmul.f32 %v8237, %v599
        %v8289 = vmul.f32 %v8238, %v599
        %v8290 = vmul.f32 %v8239, %v599
        %v8291 = vmul.f32 %v8240, %v599
        %v8292 = vmul.f32 %v8241, %v599
        %v8293 = vmul.f32 %v8242, %v599
        %v8294 = vmul.f32 %v8243, %v599
        %v8295 = vmul.f32 %v8285, %v599
        %v8296 = vmul.f32 %v8236, %v603
        %v8297 = vmul.f32 %v8237, %v603
        %v8298 = vmul.f32 %v8238, %v603
        %v8299 = vmul.f32 %v8239, %v603
        %v8300 = vmul.f32 %v8240, %v603
        %v8301 = vmul.f32 %v8241, %v603
        %v8302 = vmul.f32 %v8242, %v603
        %v8303 = vmul.f32 %v8243, %v603
        %v8304 = vmul.f32 %v8285, %v603
        %8323 = vrot.lane.b32.xlu0 %v8287, 127
        %v8324 = vpop.permute.xlu0 %8323
        %8325 = vrot.lane.b32.xlu0 %v8288, 127
        %v8326 = vpop.permute.xlu0 %8325
        %8327 = vrot.lane.b32.xlu0 %v8289, 127
        %v8328 = vpop.permute.xlu0 %8327
        %8329 = vrot.lane.b32.xlu0 %v8290, 127
        %v8330 = vpop.permute.xlu0 %8329
        %8331 = vrot.lane.b32.xlu0 %v8291, 127
        %v8332 = vpop.permute.xlu0 %8331
        %8333 = vrot.lane.b32.xlu0 %v8292, 127
        %v8334 = vpop.permute.xlu0 %8333
        %8335 = vrot.lane.b32.xlu0 %v8293, 127
        %v8336 = vpop.permute.xlu0 %8335
        %8337 = vrot.lane.b32.xlu0 %v8294, 127
        %v8338 = vpop.permute.xlu0 %8337
        %8339 = vrot.lane.b32.xlu0 %v8295, 127
        %v8340 = vpop.permute.xlu0 %8339
        %8341 = vrot.lane.b32.xlu0 %v8296, 127
        %v8342 = vpop.permute.xlu0 %8341
        %8343 = vrot.lane.b32.xlu0 %v8297, 127
        %v8344 = vpop.permute.xlu0 %8343
        %8345 = vrot.lane.b32.xlu0 %v8298, 127
        %v8346 = vpop.permute.xlu0 %8345
        %8347 = vrot.lane.b32.xlu0 %v8299, 127
        %v8348 = vpop.permute.xlu0 %8347
        %8349 = vrot.lane.b32.xlu0 %v8300, 127
        %v8350 = vpop.permute.xlu0 %8349
        %8351 = vrot.lane.b32.xlu0 %v8301, 127
        %v8352 = vpop.permute.xlu0 %8351
        %8353 = vrot.lane.b32.xlu0 %v8302, 127
        %v8354 = vpop.permute.xlu0 %8353
        %8355 = vrot.lane.b32.xlu0 %v8303, 127
        %v8356 = vpop.permute.xlu0 %8355
        %8357 = vrot.lane.b32.xlu0 %v8304, 127
        %v8358 = vpop.permute.xlu0 %8357
        %v8359 = vsel %vm677, %v8324, %v8326
        %v8360 = vsel %vm677, %v8326, %v8328
        %v8361 = vsel %vm677, %v8328, %v8330
        %v8362 = vsel %vm677, %v8330, %v8332
        %v8363 = vsel %vm677, %v8332, %v8334
        %v8364 = vsel %vm677, %v8334, %v8336
        %v8365 = vsel %vm677, %v8336, %v8338
        %v8366 = vsel %vm677, %v8338, %v8340
        %v8367 = vsel %vm677, %v8342, %v8344
        %v8368 = vsel %vm677, %v8344, %v8346
        %v8369 = vsel %vm677, %v8346, %v8348
        %v8370 = vsel %vm677, %v8348, %v8350
        %v8371 = vsel %vm677, %v8350, %v8352
        %v8372 = vsel %vm677, %v8352, %v8354
        %v8373 = vsel %vm677, %v8354, %v8356
        %v8374 = vsel %vm677, %v8356, %v8358
        %v8391 = vadd.f32 %v8268, %v8359
        %v8392 = vadd.f32 %v8269, %v8360
        %v8393 = vadd.f32 %v8270, %v8361
        %v8394 = vadd.f32 %v8271, %v8362
        %v8395 = vadd.f32 %v8272, %v8363
        %v8396 = vadd.f32 %v8273, %v8364
        %v8397 = vadd.f32 %v8274, %v8365
        %v8398 = vadd.f32 %v8275, %v8366
        %v8399 = vadd.f32 %v8276, %v8367
        %v8400 = vadd.f32 %v8277, %v8368
        %v8401 = vadd.f32 %v8278, %v8369
        %v8402 = vadd.f32 %v8279, %v8370
        %v8403 = vadd.f32 %v8280, %v8371
        %v8404 = vadd.f32 %v8281, %v8372
        %v8405 = vadd.f32 %v8282, %v8373
        %v8406 = vadd.f32 %v8283, %v8374
        %v8407 = vmul.f32 %v8236, %v728
        %v8408 = vmul.f32 %v8237, %v728
        %v8409 = vmul.f32 %v8238, %v728
        %v8410 = vmul.f32 %v8239, %v728
        %v8411 = vmul.f32 %v8240, %v728
        %v8412 = vmul.f32 %v8241, %v728
        %v8413 = vmul.f32 %v8242, %v728
        %v8414 = vmul.f32 %v8243, %v728
        %v8415 = vmul.f32 %v8285, %v728
        %v8416 = vmul.f32 %v8236, %v732
        %v8417 = vmul.f32 %v8237, %v732
        %v8418 = vmul.f32 %v8238, %v732
        %v8419 = vmul.f32 %v8239, %v732
        %v8420 = vmul.f32 %v8240, %v732
        %v8421 = vmul.f32 %v8241, %v732
        %v8422 = vmul.f32 %v8242, %v732
        %v8423 = vmul.f32 %v8243, %v732
        %v8424 = vmul.f32 %v8285, %v732
        %8443 = vrot.lane.b32.xlu0 %v8407, 126
        %v8444 = vpop.permute.xlu0 %8443
        %8445 = vrot.lane.b32.xlu0 %v8408, 126
        %v8446 = vpop.permute.xlu0 %8445
        %8447 = vrot.lane.b32.xlu0 %v8409, 126
        %v8448 = vpop.permute.xlu0 %8447
        %8449 = vrot.lane.b32.xlu0 %v8410, 126
        %v8450 = vpop.permute.xlu0 %8449
        %8451 = vrot.lane.b32.xlu0 %v8411, 126
        %v8452 = vpop.permute.xlu0 %8451
        %8453 = vrot.lane.b32.xlu0 %v8412, 126
        %v8454 = vpop.permute.xlu0 %8453
        %8455 = vrot.lane.b32.xlu0 %v8413, 126
        %v8456 = vpop.permute.xlu0 %8455
        %8457 = vrot.lane.b32.xlu0 %v8414, 126
        %v8458 = vpop.permute.xlu0 %8457
        %8459 = vrot.lane.b32.xlu0 %v8415, 126
        %v8460 = vpop.permute.xlu0 %8459
        %8461 = vrot.lane.b32.xlu0 %v8416, 126
        %v8462 = vpop.permute.xlu0 %8461
        %8463 = vrot.lane.b32.xlu0 %v8417, 126
        %v8464 = vpop.permute.xlu0 %8463
        %8465 = vrot.lane.b32.xlu0 %v8418, 126
        %v8466 = vpop.permute.xlu0 %8465
        %8467 = vrot.lane.b32.xlu0 %v8419, 126
        %v8468 = vpop.permute.xlu0 %8467
        %8469 = vrot.lane.b32.xlu0 %v8420, 126
        %v8470 = vpop.permute.xlu0 %8469
        %8471 = vrot.lane.b32.xlu0 %v8421, 126
        %v8472 = vpop.permute.xlu0 %8471
        %8473 = vrot.lane.b32.xlu0 %v8422, 126
        %v8474 = vpop.permute.xlu0 %8473
        %8475 = vrot.lane.b32.xlu0 %v8423, 126
        %v8476 = vpop.permute.xlu0 %8475
        %8477 = vrot.lane.b32.xlu0 %v8424, 126
        %v8478 = vpop.permute.xlu0 %8477
        %v8479 = vsel %vm806, %v8444, %v8446
        %v8480 = vsel %vm806, %v8446, %v8448
        %v8481 = vsel %vm806, %v8448, %v8450
        %v8482 = vsel %vm806, %v8450, %v8452
        %v8483 = vsel %vm806, %v8452, %v8454
        %v8484 = vsel %vm806, %v8454, %v8456
        %v8485 = vsel %vm806, %v8456, %v8458
        %v8486 = vsel %vm806, %v8458, %v8460
        %v8487 = vsel %vm806, %v8462, %v8464
        %v8488 = vsel %vm806, %v8464, %v8466
        %v8489 = vsel %vm806, %v8466, %v8468
        %v8490 = vsel %vm806, %v8468, %v8470
        %v8491 = vsel %vm806, %v8470, %v8472
        %v8492 = vsel %vm806, %v8472, %v8474
        %v8493 = vsel %vm806, %v8474, %v8476
        %v8494 = vsel %vm806, %v8476, %v8478
        %v8511 = vadd.f32 %v8391, %v8479
        %v8512 = vadd.f32 %v8392, %v8480
        %v8513 = vadd.f32 %v8393, %v8481
        %v8514 = vadd.f32 %v8394, %v8482
        %v8515 = vadd.f32 %v8395, %v8483
        %v8516 = vadd.f32 %v8396, %v8484
        %v8517 = vadd.f32 %v8397, %v8485
        %v8518 = vadd.f32 %v8398, %v8486
        %v8519 = vadd.f32 %v8399, %v8487
        %v8520 = vadd.f32 %v8400, %v8488
        %v8521 = vadd.f32 %v8401, %v8489
        %v8522 = vadd.f32 %v8402, %v8490
        %v8523 = vadd.f32 %v8403, %v8491
        %v8524 = vadd.f32 %v8404, %v8492
        %v8525 = vadd.f32 %v8405, %v8493
        %v8526 = vadd.f32 %v8406, %v8494
        %v8527 = vmul.f32 %v8236, %v857
        %v8528 = vmul.f32 %v8237, %v857
        %v8529 = vmul.f32 %v8238, %v857
        %v8530 = vmul.f32 %v8239, %v857
        %v8531 = vmul.f32 %v8240, %v857
        %v8532 = vmul.f32 %v8241, %v857
        %v8533 = vmul.f32 %v8242, %v857
        %v8534 = vmul.f32 %v8243, %v857
        %v8535 = vmul.f32 %v8285, %v857
        %v8536 = vmul.f32 %v8236, %v861
        %v8537 = vmul.f32 %v8237, %v861
        %v8538 = vmul.f32 %v8238, %v861
        %v8539 = vmul.f32 %v8239, %v861
        %v8540 = vmul.f32 %v8240, %v861
        %v8541 = vmul.f32 %v8241, %v861
        %v8542 = vmul.f32 %v8242, %v861
        %v8543 = vmul.f32 %v8243, %v861
        %v8544 = vmul.f32 %v8285, %v861
        %8563 = vrot.lane.b32.xlu0 %v8527, 98
        %v8564 = vpop.permute.xlu0 %8563
        %8565 = vrot.lane.b32.xlu0 %v8528, 98
        %v8566 = vpop.permute.xlu0 %8565
        %8567 = vrot.lane.b32.xlu0 %v8529, 98
        %v8568 = vpop.permute.xlu0 %8567
        %8569 = vrot.lane.b32.xlu0 %v8530, 98
        %v8570 = vpop.permute.xlu0 %8569
        %8571 = vrot.lane.b32.xlu0 %v8531, 98
        %v8572 = vpop.permute.xlu0 %8571
        %8573 = vrot.lane.b32.xlu0 %v8532, 98
        %v8574 = vpop.permute.xlu0 %8573
        %8575 = vrot.lane.b32.xlu0 %v8533, 98
        %v8576 = vpop.permute.xlu0 %8575
        %8577 = vrot.lane.b32.xlu0 %v8534, 98
        %v8578 = vpop.permute.xlu0 %8577
        %8579 = vrot.lane.b32.xlu0 %v8535, 98
        %v8580 = vpop.permute.xlu0 %8579
        %8581 = vrot.lane.b32.xlu0 %v8536, 98
        %v8582 = vpop.permute.xlu0 %8581
        %8583 = vrot.lane.b32.xlu0 %v8537, 98
        %v8584 = vpop.permute.xlu0 %8583
        %8585 = vrot.lane.b32.xlu0 %v8538, 98
        %v8586 = vpop.permute.xlu0 %8585
        %8587 = vrot.lane.b32.xlu0 %v8539, 98
        %v8588 = vpop.permute.xlu0 %8587
        %8589 = vrot.lane.b32.xlu0 %v8540, 98
        %v8590 = vpop.permute.xlu0 %8589
        %8591 = vrot.lane.b32.xlu0 %v8541, 98
        %v8592 = vpop.permute.xlu0 %8591
        %8593 = vrot.lane.b32.xlu0 %v8542, 98
        %v8594 = vpop.permute.xlu0 %8593
        %8595 = vrot.lane.b32.xlu0 %v8543, 98
        %v8596 = vpop.permute.xlu0 %8595
        %8597 = vrot.lane.b32.xlu0 %v8544, 98
        %v8598 = vpop.permute.xlu0 %8597
        %v8599 = vsel %vm935, %v8564, %v8566
        %v8600 = vsel %vm935, %v8566, %v8568
        %v8601 = vsel %vm935, %v8568, %v8570
        %v8602 = vsel %vm935, %v8570, %v8572
        %v8603 = vsel %vm935, %v8572, %v8574
        %v8604 = vsel %vm935, %v8574, %v8576
        %v8605 = vsel %vm935, %v8576, %v8578
        %v8606 = vsel %vm935, %v8578, %v8580
        %v8607 = vsel %vm935, %v8582, %v8584
        %v8608 = vsel %vm935, %v8584, %v8586
        %v8609 = vsel %vm935, %v8586, %v8588
        %v8610 = vsel %vm935, %v8588, %v8590
        %v8611 = vsel %vm935, %v8590, %v8592
        %v8612 = vsel %vm935, %v8592, %v8594
        %v8613 = vsel %vm935, %v8594, %v8596
        %v8614 = vsel %vm935, %v8596, %v8598
        %v8631 = vadd.f32 %v8511, %v8599
        %v8632 = vadd.f32 %v8512, %v8600
        %v8633 = vadd.f32 %v8513, %v8601
        %v8634 = vadd.f32 %v8514, %v8602
        %v8635 = vadd.f32 %v8515, %v8603
        %v8636 = vadd.f32 %v8516, %v8604
        %v8637 = vadd.f32 %v8517, %v8605
        %v8638 = vadd.f32 %v8518, %v8606
        %v8639 = vadd.f32 %v8519, %v8607
        %v8640 = vadd.f32 %v8520, %v8608
        %v8641 = vadd.f32 %v8521, %v8609
        %v8642 = vadd.f32 %v8522, %v8610
        %v8643 = vadd.f32 %v8523, %v8611
        %v8644 = vadd.f32 %v8524, %v8612
        %v8645 = vadd.f32 %v8525, %v8613
        %v8646 = vadd.f32 %v8526, %v8614
        %v8647 = vmul.f32 %v8236, %v986
        %v8648 = vmul.f32 %v8237, %v986
        %v8649 = vmul.f32 %v8238, %v986
        %v8650 = vmul.f32 %v8239, %v986
        %v8651 = vmul.f32 %v8240, %v986
        %v8652 = vmul.f32 %v8241, %v986
        %v8653 = vmul.f32 %v8242, %v986
        %v8654 = vmul.f32 %v8243, %v986
        %v8655 = vmul.f32 %v8285, %v986
        %v8656 = vmul.f32 %v8236, %v990
        %v8657 = vmul.f32 %v8237, %v990
        %v8658 = vmul.f32 %v8238, %v990
        %v8659 = vmul.f32 %v8239, %v990
        %v8660 = vmul.f32 %v8240, %v990
        %v8661 = vmul.f32 %v8241, %v990
        %v8662 = vmul.f32 %v8242, %v990
        %v8663 = vmul.f32 %v8243, %v990
        %v8664 = vmul.f32 %v8285, %v990
        %8683 = vrot.lane.b32.xlu0 %v8647, 97
        %v8684 = vpop.permute.xlu0 %8683
        %8685 = vrot.lane.b32.xlu0 %v8648, 97
        %v8686 = vpop.permute.xlu0 %8685
        %8687 = vrot.lane.b32.xlu0 %v8649, 97
        %v8688 = vpop.permute.xlu0 %8687
        %8689 = vrot.lane.b32.xlu0 %v8650, 97
        %v8690 = vpop.permute.xlu0 %8689
        %8691 = vrot.lane.b32.xlu0 %v8651, 97
        %v8692 = vpop.permute.xlu0 %8691
        %8693 = vrot.lane.b32.xlu0 %v8652, 97
        %v8694 = vpop.permute.xlu0 %8693
        %8695 = vrot.lane.b32.xlu0 %v8653, 97
        %v8696 = vpop.permute.xlu0 %8695
        %8697 = vrot.lane.b32.xlu0 %v8654, 97
        %v8698 = vpop.permute.xlu0 %8697
        %8699 = vrot.lane.b32.xlu0 %v8655, 97
        %v8700 = vpop.permute.xlu0 %8699
        %8701 = vrot.lane.b32.xlu0 %v8656, 97
        %v8702 = vpop.permute.xlu0 %8701
        %8703 = vrot.lane.b32.xlu0 %v8657, 97
        %v8704 = vpop.permute.xlu0 %8703
        %8705 = vrot.lane.b32.xlu0 %v8658, 97
        %v8706 = vpop.permute.xlu0 %8705
        %8707 = vrot.lane.b32.xlu0 %v8659, 97
        %v8708 = vpop.permute.xlu0 %8707
        %8709 = vrot.lane.b32.xlu0 %v8660, 97
        %v8710 = vpop.permute.xlu0 %8709
        %8711 = vrot.lane.b32.xlu0 %v8661, 97
        %v8712 = vpop.permute.xlu0 %8711
        %8713 = vrot.lane.b32.xlu0 %v8662, 97
        %v8714 = vpop.permute.xlu0 %8713
        %8715 = vrot.lane.b32.xlu0 %v8663, 97
        %v8716 = vpop.permute.xlu0 %8715
        %8717 = vrot.lane.b32.xlu0 %v8664, 97
        %v8718 = vpop.permute.xlu0 %8717
        %v8719 = vsel %vm1064, %v8684, %v8686
        %v8720 = vsel %vm1064, %v8686, %v8688
        %v8721 = vsel %vm1064, %v8688, %v8690
        %v8722 = vsel %vm1064, %v8690, %v8692
        %v8723 = vsel %vm1064, %v8692, %v8694
        %v8724 = vsel %vm1064, %v8694, %v8696
        %v8725 = vsel %vm1064, %v8696, %v8698
        %v8726 = vsel %vm1064, %v8698, %v8700
        %v8727 = vsel %vm1064, %v8702, %v8704
        %v8728 = vsel %vm1064, %v8704, %v8706
        %v8729 = vsel %vm1064, %v8706, %v8708
        %v8730 = vsel %vm1064, %v8708, %v8710
        %v8731 = vsel %vm1064, %v8710, %v8712
        %v8732 = vsel %vm1064, %v8712, %v8714
        %v8733 = vsel %vm1064, %v8714, %v8716
        %v8734 = vsel %vm1064, %v8716, %v8718
        %v8751 = vadd.f32 %v8631, %v8719
        %v8752 = vadd.f32 %v8632, %v8720
        %v8753 = vadd.f32 %v8633, %v8721
        %v8754 = vadd.f32 %v8634, %v8722
        %v8755 = vadd.f32 %v8635, %v8723
        %v8756 = vadd.f32 %v8636, %v8724
        %v8757 = vadd.f32 %v8637, %v8725
        %v8758 = vadd.f32 %v8638, %v8726
        %v8759 = vadd.f32 %v8639, %v8727
        %v8760 = vadd.f32 %v8640, %v8728
        %v8761 = vadd.f32 %v8641, %v8729
        %v8762 = vadd.f32 %v8642, %v8730
        %v8763 = vadd.f32 %v8643, %v8731
        %v8764 = vadd.f32 %v8644, %v8732
        %v8765 = vadd.f32 %v8645, %v8733
        %v8766 = vadd.f32 %v8646, %v8734
        %v8767 = vmul.f32 %v8236, %v1115
        %v8768 = vmul.f32 %v8237, %v1115
        %v8769 = vmul.f32 %v8238, %v1115
        %v8770 = vmul.f32 %v8239, %v1115
        %v8771 = vmul.f32 %v8240, %v1115
        %v8772 = vmul.f32 %v8241, %v1115
        %v8773 = vmul.f32 %v8242, %v1115
        %v8774 = vmul.f32 %v8243, %v1115
        %v8775 = vmul.f32 %v8285, %v1115
        %v8776 = vmul.f32 %v8236, %v1119
        %v8777 = vmul.f32 %v8237, %v1119
        %v8778 = vmul.f32 %v8238, %v1119
        %v8779 = vmul.f32 %v8239, %v1119
        %v8780 = vmul.f32 %v8240, %v1119
        %v8781 = vmul.f32 %v8241, %v1119
        %v8782 = vmul.f32 %v8242, %v1119
        %v8783 = vmul.f32 %v8243, %v1119
        %v8784 = vmul.f32 %v8285, %v1119
        %8803 = vrot.lane.b32.xlu0 %v8767, 96
        %v8804 = vpop.permute.xlu0 %8803
        %8805 = vrot.lane.b32.xlu0 %v8768, 96
        %v8806 = vpop.permute.xlu0 %8805
        %8807 = vrot.lane.b32.xlu0 %v8769, 96
        %v8808 = vpop.permute.xlu0 %8807
        %8809 = vrot.lane.b32.xlu0 %v8770, 96
        %v8810 = vpop.permute.xlu0 %8809
        %8811 = vrot.lane.b32.xlu0 %v8771, 96
        %v8812 = vpop.permute.xlu0 %8811
        %8813 = vrot.lane.b32.xlu0 %v8772, 96
        %v8814 = vpop.permute.xlu0 %8813
        %8815 = vrot.lane.b32.xlu0 %v8773, 96
        %v8816 = vpop.permute.xlu0 %8815
        %8817 = vrot.lane.b32.xlu0 %v8774, 96
        %v8818 = vpop.permute.xlu0 %8817
        %8819 = vrot.lane.b32.xlu0 %v8775, 96
        %v8820 = vpop.permute.xlu0 %8819
        %8821 = vrot.lane.b32.xlu0 %v8776, 96
        %v8822 = vpop.permute.xlu0 %8821
        %8823 = vrot.lane.b32.xlu0 %v8777, 96
        %v8824 = vpop.permute.xlu0 %8823
        %8825 = vrot.lane.b32.xlu0 %v8778, 96
        %v8826 = vpop.permute.xlu0 %8825
        %8827 = vrot.lane.b32.xlu0 %v8779, 96
        %v8828 = vpop.permute.xlu0 %8827
        %8829 = vrot.lane.b32.xlu0 %v8780, 96
        %v8830 = vpop.permute.xlu0 %8829
        %8831 = vrot.lane.b32.xlu0 %v8781, 96
        %v8832 = vpop.permute.xlu0 %8831
        %8833 = vrot.lane.b32.xlu0 %v8782, 96
        %v8834 = vpop.permute.xlu0 %8833
        %8835 = vrot.lane.b32.xlu0 %v8783, 96
        %v8836 = vpop.permute.xlu0 %8835
        %8837 = vrot.lane.b32.xlu0 %v8784, 96
        %v8838 = vpop.permute.xlu0 %8837
        %v8839 = vsel %vm1193, %v8804, %v8806
        %v8840 = vsel %vm1193, %v8806, %v8808
        %v8841 = vsel %vm1193, %v8808, %v8810
        %v8842 = vsel %vm1193, %v8810, %v8812
        %v8843 = vsel %vm1193, %v8812, %v8814
        %v8844 = vsel %vm1193, %v8814, %v8816
        %v8845 = vsel %vm1193, %v8816, %v8818
        %v8846 = vsel %vm1193, %v8818, %v8820
        %v8847 = vsel %vm1193, %v8822, %v8824
        %v8848 = vsel %vm1193, %v8824, %v8826
        %v8849 = vsel %vm1193, %v8826, %v8828
        %v8850 = vsel %vm1193, %v8828, %v8830
        %v8851 = vsel %vm1193, %v8830, %v8832
        %v8852 = vsel %vm1193, %v8832, %v8834
        %v8853 = vsel %vm1193, %v8834, %v8836
        %v8854 = vsel %vm1193, %v8836, %v8838
        %v8871 = vadd.f32 %v8751, %v8839
        %v8872 = vadd.f32 %v8752, %v8840
        %v8873 = vadd.f32 %v8753, %v8841
        %v8874 = vadd.f32 %v8754, %v8842
        %v8875 = vadd.f32 %v8755, %v8843
        %v8876 = vadd.f32 %v8756, %v8844
        %v8877 = vadd.f32 %v8757, %v8845
        %v8878 = vadd.f32 %v8758, %v8846
        %v8879 = vadd.f32 %v8759, %v8847
        %v8880 = vadd.f32 %v8760, %v8848
        %v8881 = vadd.f32 %v8761, %v8849
        %v8882 = vadd.f32 %v8762, %v8850
        %v8883 = vadd.f32 %v8763, %v8851
        %v8884 = vadd.f32 %v8764, %v8852
        %v8885 = vadd.f32 %v8765, %v8853
        %v8886 = vadd.f32 %v8766, %v8854
        %v8887 = vmul.f32 %v8236, %v1244
        %v8888 = vmul.f32 %v8237, %v1244
        %v8889 = vmul.f32 %v8238, %v1244
        %v8890 = vmul.f32 %v8239, %v1244
        %v8891 = vmul.f32 %v8240, %v1244
        %v8892 = vmul.f32 %v8241, %v1244
        %v8893 = vmul.f32 %v8242, %v1244
        %v8894 = vmul.f32 %v8243, %v1244
        %v8895 = vmul.f32 %v8285, %v1244
        %v8896 = vmul.f32 %v8236, %v1248
        %v8897 = vmul.f32 %v8237, %v1248
        %v8898 = vmul.f32 %v8238, %v1248
        %v8899 = vmul.f32 %v8239, %v1248
        %v8900 = vmul.f32 %v8240, %v1248
        %v8901 = vmul.f32 %v8241, %v1248
        %v8902 = vmul.f32 %v8242, %v1248
        %v8903 = vmul.f32 %v8243, %v1248
        %v8904 = vmul.f32 %v8285, %v1248
        %8923 = vrot.lane.b32.xlu0 %v8887, 68
        %v8924 = vpop.permute.xlu0 %8923
        %8925 = vrot.lane.b32.xlu0 %v8888, 68
        %v8926 = vpop.permute.xlu0 %8925
        %8927 = vrot.lane.b32.xlu0 %v8889, 68
        %v8928 = vpop.permute.xlu0 %8927
        %8929 = vrot.lane.b32.xlu0 %v8890, 68
        %v8930 = vpop.permute.xlu0 %8929
        %8931 = vrot.lane.b32.xlu0 %v8891, 68
        %v8932 = vpop.permute.xlu0 %8931
        %8933 = vrot.lane.b32.xlu0 %v8892, 68
        %v8934 = vpop.permute.xlu0 %8933
        %8935 = vrot.lane.b32.xlu0 %v8893, 68
        %v8936 = vpop.permute.xlu0 %8935
        %8937 = vrot.lane.b32.xlu0 %v8894, 68
        %v8938 = vpop.permute.xlu0 %8937
        %8939 = vrot.lane.b32.xlu0 %v8895, 68
        %v8940 = vpop.permute.xlu0 %8939
        %8941 = vrot.lane.b32.xlu0 %v8896, 68
        %v8942 = vpop.permute.xlu0 %8941
        %8943 = vrot.lane.b32.xlu0 %v8897, 68
        %v8944 = vpop.permute.xlu0 %8943
        %8945 = vrot.lane.b32.xlu0 %v8898, 68
        %v8946 = vpop.permute.xlu0 %8945
        %8947 = vrot.lane.b32.xlu0 %v8899, 68
        %v8948 = vpop.permute.xlu0 %8947
        %8949 = vrot.lane.b32.xlu0 %v8900, 68
        %v8950 = vpop.permute.xlu0 %8949
        %8951 = vrot.lane.b32.xlu0 %v8901, 68
        %v8952 = vpop.permute.xlu0 %8951
        %8953 = vrot.lane.b32.xlu0 %v8902, 68
        %v8954 = vpop.permute.xlu0 %8953
        %8955 = vrot.lane.b32.xlu0 %v8903, 68
        %v8956 = vpop.permute.xlu0 %8955
        %8957 = vrot.lane.b32.xlu0 %v8904, 68
        %v8958 = vpop.permute.xlu0 %8957
        %v8959 = vsel %vm1322, %v8924, %v8926
        %v8960 = vsel %vm1322, %v8926, %v8928
        %v8961 = vsel %vm1322, %v8928, %v8930
        %v8962 = vsel %vm1322, %v8930, %v8932
        %v8963 = vsel %vm1322, %v8932, %v8934
        %v8964 = vsel %vm1322, %v8934, %v8936
        %v8965 = vsel %vm1322, %v8936, %v8938
        %v8966 = vsel %vm1322, %v8938, %v8940
        %v8967 = vsel %vm1322, %v8942, %v8944
        %v8968 = vsel %vm1322, %v8944, %v8946
        %v8969 = vsel %vm1322, %v8946, %v8948
        %v8970 = vsel %vm1322, %v8948, %v8950
        %v8971 = vsel %vm1322, %v8950, %v8952
        %v8972 = vsel %vm1322, %v8952, %v8954
        %v8973 = vsel %vm1322, %v8954, %v8956
        %v8974 = vsel %vm1322, %v8956, %v8958
        %v8991 = vadd.f32 %v8871, %v8959
        %v8992 = vadd.f32 %v8872, %v8960
        %v8993 = vadd.f32 %v8873, %v8961
        %v8994 = vadd.f32 %v8874, %v8962
        %v8995 = vadd.f32 %v8875, %v8963
        %v8996 = vadd.f32 %v8876, %v8964
        %v8997 = vadd.f32 %v8877, %v8965
        %v8998 = vadd.f32 %v8878, %v8966
        %v8999 = vadd.f32 %v8879, %v8967
        %v9000 = vadd.f32 %v8880, %v8968
        %v9001 = vadd.f32 %v8881, %v8969
        %v9002 = vadd.f32 %v8882, %v8970
        %v9003 = vadd.f32 %v8883, %v8971
        %v9004 = vadd.f32 %v8884, %v8972
        %v9005 = vadd.f32 %v8885, %v8973
        %v9006 = vadd.f32 %v8886, %v8974
        %v9007 = vmul.f32 %v8236, %v1373
        %v9008 = vmul.f32 %v8237, %v1373
        %v9009 = vmul.f32 %v8238, %v1373
        %v9010 = vmul.f32 %v8239, %v1373
        %v9011 = vmul.f32 %v8240, %v1373
        %v9012 = vmul.f32 %v8241, %v1373
        %v9013 = vmul.f32 %v8242, %v1373
        %v9014 = vmul.f32 %v8243, %v1373
        %v9015 = vmul.f32 %v8285, %v1373
        %v9016 = vmul.f32 %v8236, %v1377
        %v9017 = vmul.f32 %v8237, %v1377
        %v9018 = vmul.f32 %v8238, %v1377
        %v9019 = vmul.f32 %v8239, %v1377
        %v9020 = vmul.f32 %v8240, %v1377
        %v9021 = vmul.f32 %v8241, %v1377
        %v9022 = vmul.f32 %v8242, %v1377
        %v9023 = vmul.f32 %v8243, %v1377
        %v9024 = vmul.f32 %v8285, %v1377
        %9043 = vrot.lane.b32.xlu0 %v9007, 67
        %v9044 = vpop.permute.xlu0 %9043
        %9045 = vrot.lane.b32.xlu0 %v9008, 67
        %v9046 = vpop.permute.xlu0 %9045
        %9047 = vrot.lane.b32.xlu0 %v9009, 67
        %v9048 = vpop.permute.xlu0 %9047
        %9049 = vrot.lane.b32.xlu0 %v9010, 67
        %v9050 = vpop.permute.xlu0 %9049
        %9051 = vrot.lane.b32.xlu0 %v9011, 67
        %v9052 = vpop.permute.xlu0 %9051
        %9053 = vrot.lane.b32.xlu0 %v9012, 67
        %v9054 = vpop.permute.xlu0 %9053
        %9055 = vrot.lane.b32.xlu0 %v9013, 67
        %v9056 = vpop.permute.xlu0 %9055
        %9057 = vrot.lane.b32.xlu0 %v9014, 67
        %v9058 = vpop.permute.xlu0 %9057
        %9059 = vrot.lane.b32.xlu0 %v9015, 67
        %v9060 = vpop.permute.xlu0 %9059
        %9061 = vrot.lane.b32.xlu0 %v9016, 67
        %v9062 = vpop.permute.xlu0 %9061
        %9063 = vrot.lane.b32.xlu0 %v9017, 67
        %v9064 = vpop.permute.xlu0 %9063
        %9065 = vrot.lane.b32.xlu0 %v9018, 67
        %v9066 = vpop.permute.xlu0 %9065
        %9067 = vrot.lane.b32.xlu0 %v9019, 67
        %v9068 = vpop.permute.xlu0 %9067
        %9069 = vrot.lane.b32.xlu0 %v9020, 67
        %v9070 = vpop.permute.xlu0 %9069
        %9071 = vrot.lane.b32.xlu0 %v9021, 67
        %v9072 = vpop.permute.xlu0 %9071
        %9073 = vrot.lane.b32.xlu0 %v9022, 67
        %v9074 = vpop.permute.xlu0 %9073
        %9075 = vrot.lane.b32.xlu0 %v9023, 67
        %v9076 = vpop.permute.xlu0 %9075
        %9077 = vrot.lane.b32.xlu0 %v9024, 67
        %v9078 = vpop.permute.xlu0 %9077
        %v9079 = vsel %vm1451, %v9044, %v9046
        %v9080 = vsel %vm1451, %v9046, %v9048
        %v9081 = vsel %vm1451, %v9048, %v9050
        %v9082 = vsel %vm1451, %v9050, %v9052
        %v9083 = vsel %vm1451, %v9052, %v9054
        %v9084 = vsel %vm1451, %v9054, %v9056
        %v9085 = vsel %vm1451, %v9056, %v9058
        %v9086 = vsel %vm1451, %v9058, %v9060
        %v9087 = vsel %vm1451, %v9062, %v9064
        %v9088 = vsel %vm1451, %v9064, %v9066
        %v9089 = vsel %vm1451, %v9066, %v9068
        %v9090 = vsel %vm1451, %v9068, %v9070
        %v9091 = vsel %vm1451, %v9070, %v9072
        %v9092 = vsel %vm1451, %v9072, %v9074
        %v9093 = vsel %vm1451, %v9074, %v9076
        %v9094 = vsel %vm1451, %v9076, %v9078
        %v9111 = vadd.f32 %v8991, %v9079
        %v9112 = vadd.f32 %v8992, %v9080
        %v9113 = vadd.f32 %v8993, %v9081
        %v9114 = vadd.f32 %v8994, %v9082
        %v9115 = vadd.f32 %v8995, %v9083
        %v9116 = vadd.f32 %v8996, %v9084
        %v9117 = vadd.f32 %v8997, %v9085
        %v9118 = vadd.f32 %v8998, %v9086
        %v9119 = vadd.f32 %v8999, %v9087
        %v9120 = vadd.f32 %v9000, %v9088
        %v9121 = vadd.f32 %v9001, %v9089
        %v9122 = vadd.f32 %v9002, %v9090
        %v9123 = vadd.f32 %v9003, %v9091
        %v9124 = vadd.f32 %v9004, %v9092
        %v9125 = vadd.f32 %v9005, %v9093
        %v9126 = vadd.f32 %v9006, %v9094
        %v9127 = vmul.f32 %v8236, %v1502
        %v9128 = vmul.f32 %v8237, %v1502
        %v9129 = vmul.f32 %v8238, %v1502
        %v9130 = vmul.f32 %v8239, %v1502
        %v9131 = vmul.f32 %v8240, %v1502
        %v9132 = vmul.f32 %v8241, %v1502
        %v9133 = vmul.f32 %v8242, %v1502
        %v9134 = vmul.f32 %v8243, %v1502
        %v9135 = vmul.f32 %v8285, %v1502
        %v9136 = vmul.f32 %v8236, %v1506
        %v9137 = vmul.f32 %v8237, %v1506
        %v9138 = vmul.f32 %v8238, %v1506
        %v9139 = vmul.f32 %v8239, %v1506
        %v9140 = vmul.f32 %v8240, %v1506
        %v9141 = vmul.f32 %v8241, %v1506
        %v9142 = vmul.f32 %v8242, %v1506
        %v9143 = vmul.f32 %v8243, %v1506
        %v9144 = vmul.f32 %v8285, %v1506
        %9163 = vrot.lane.b32.xlu0 %v9127, 66
        %v9164 = vpop.permute.xlu0 %9163
        %9165 = vrot.lane.b32.xlu0 %v9128, 66
        %v9166 = vpop.permute.xlu0 %9165
        %9167 = vrot.lane.b32.xlu0 %v9129, 66
        %v9168 = vpop.permute.xlu0 %9167
        %9169 = vrot.lane.b32.xlu0 %v9130, 66
        %v9170 = vpop.permute.xlu0 %9169
        %9171 = vrot.lane.b32.xlu0 %v9131, 66
        %v9172 = vpop.permute.xlu0 %9171
        %9173 = vrot.lane.b32.xlu0 %v9132, 66
        %v9174 = vpop.permute.xlu0 %9173
        %9175 = vrot.lane.b32.xlu0 %v9133, 66
        %v9176 = vpop.permute.xlu0 %9175
        %9177 = vrot.lane.b32.xlu0 %v9134, 66
        %v9178 = vpop.permute.xlu0 %9177
        %9179 = vrot.lane.b32.xlu0 %v9135, 66
        %v9180 = vpop.permute.xlu0 %9179
        %9181 = vrot.lane.b32.xlu0 %v9136, 66
        %v9182 = vpop.permute.xlu0 %9181
        %9183 = vrot.lane.b32.xlu0 %v9137, 66
        %v9184 = vpop.permute.xlu0 %9183
        %9185 = vrot.lane.b32.xlu0 %v9138, 66
        %v9186 = vpop.permute.xlu0 %9185
        %9187 = vrot.lane.b32.xlu0 %v9139, 66
        %v9188 = vpop.permute.xlu0 %9187
        %9189 = vrot.lane.b32.xlu0 %v9140, 66
        %v9190 = vpop.permute.xlu0 %9189
        %9191 = vrot.lane.b32.xlu0 %v9141, 66
        %v9192 = vpop.permute.xlu0 %9191
        %9193 = vrot.lane.b32.xlu0 %v9142, 66
        %v9194 = vpop.permute.xlu0 %9193
        %9195 = vrot.lane.b32.xlu0 %v9143, 66
        %v9196 = vpop.permute.xlu0 %9195
        %9197 = vrot.lane.b32.xlu0 %v9144, 66
        %v9198 = vpop.permute.xlu0 %9197
        %v9199 = vsel %vm1580, %v9164, %v9166
        %v9200 = vsel %vm1580, %v9166, %v9168
        %v9201 = vsel %vm1580, %v9168, %v9170
        %v9202 = vsel %vm1580, %v9170, %v9172
        %v9203 = vsel %vm1580, %v9172, %v9174
        %v9204 = vsel %vm1580, %v9174, %v9176
        %v9205 = vsel %vm1580, %v9176, %v9178
        %v9206 = vsel %vm1580, %v9178, %v9180
        %v9207 = vsel %vm1580, %v9182, %v9184
        %v9208 = vsel %vm1580, %v9184, %v9186
        %v9209 = vsel %vm1580, %v9186, %v9188
        %v9210 = vsel %vm1580, %v9188, %v9190
        %v9211 = vsel %vm1580, %v9190, %v9192
        %v9212 = vsel %vm1580, %v9192, %v9194
        %v9213 = vsel %vm1580, %v9194, %v9196
        %v9214 = vsel %vm1580, %v9196, %v9198
        %v9231 = vadd.f32 %v9111, %v9199
        %v9232 = vadd.f32 %v9112, %v9200
        %v9233 = vadd.f32 %v9113, %v9201
        %v9234 = vadd.f32 %v9114, %v9202
        %v9235 = vadd.f32 %v9115, %v9203
        %v9236 = vadd.f32 %v9116, %v9204
        %v9237 = vadd.f32 %v9117, %v9205
        %v9238 = vadd.f32 %v9118, %v9206
        %v9239 = vadd.f32 %v9119, %v9207
        %v9240 = vadd.f32 %v9120, %v9208
        %v9241 = vadd.f32 %v9121, %v9209
        %v9242 = vadd.f32 %v9122, %v9210
        %v9243 = vadd.f32 %v9123, %v9211
        %v9244 = vadd.f32 %v9124, %v9212
        %v9245 = vadd.f32 %v9125, %v9213
        %v9246 = vadd.f32 %v9126, %v9214
        %v9247 = vadd.f32 %v9231, %v1632
        %v9248 = vadd.f32 %v9232, %v1632
        %v9249 = vadd.f32 %v9233, %v1632
        %v9250 = vadd.f32 %v9234, %v1632
        %v9251 = vadd.f32 %v9235, %v1632
        %v9252 = vadd.f32 %v9236, %v1632
        %v9253 = vadd.f32 %v9237, %v1632
        %v9254 = vadd.f32 %v9238, %v1632
        %v9255 = vadd.f32 %v9239, %v1637
        %v9256 = vadd.f32 %v9240, %v1637
        %v9257 = vadd.f32 %v9241, %v1637
        %v9258 = vadd.f32 %v9242, %v1637
        %v9259 = vadd.f32 %v9243, %v1637
        %v9260 = vadd.f32 %v9244, %v1637
        %v9261 = vadd.f32 %v9245, %v1637
        %v9262 = vadd.f32 %v9246, %v1637
        %v9263 = vmax.f32 %v9247, 0.0
        %v9264 = vmax.f32 %v9248, 0.0
        %v9265 = vmax.f32 %v9249, 0.0
        %v9266 = vmax.f32 %v9250, 0.0
        %v9267 = vmax.f32 %v9251, 0.0
        %v9268 = vmax.f32 %v9252, 0.0
        %v9269 = vmax.f32 %v9253, 0.0
        %v9270 = vmax.f32 %v9254, 0.0
        %v9271 = vmax.f32 %v9255, 0.0
        %v9272 = vmax.f32 %v9256, 0.0
        %v9273 = vmax.f32 %v9257, 0.0
        %v9274 = vmax.f32 %v9258, 0.0
        %v9275 = vmax.f32 %v9259, 0.0
        %v9276 = vmax.f32 %v9260, 0.0
        %v9277 = vmax.f32 %v9261, 0.0
        %v9278 = vmax.f32 %v9262, 0.0
        %v9279 = vmul.f32 %v9263, %v1672
        %v9280 = vmul.f32 %v9264, %v1673
        %v9281 = vmul.f32 %v9265, %v1674
        %v9282 = vmul.f32 %v9266, %v1675
        %v9283 = vmul.f32 %v9267, %v1676
        %v9284 = vmul.f32 %v9268, %v1677
        %v9285 = vmul.f32 %v9269, %v1678
        %v9286 = vmul.f32 %v9270, %v1679
        %v9287 = vmul.f32 %v9271, %v1672
        %v9288 = vmul.f32 %v9272, %v1673
        %v9289 = vmul.f32 %v9273, %v1674
        %v9290 = vmul.f32 %v9274, %v1675
        %v9291 = vmul.f32 %v9275, %v1676
        %v9292 = vmul.f32 %v9276, %v1677
        %v9293 = vmul.f32 %v9277, %v1678
        %v9294 = vmul.f32 %v9278, %v1679
        %v9295 = vpack.c.bf16 %v9280, %v9279
        %v9296 = vpack.c.bf16 %v9282, %v9281
        %v9297 = vpack.c.bf16 %v9284, %v9283
        %v9298 = vpack.c.bf16 %v9286, %v9285
        %v9299 = vpack.c.bf16 %v9288, %v9287
        %v9300 = vpack.c.bf16 %v9290, %v9289
        %v9301 = vpack.c.bf16 %v9292, %v9291
        %v9302 = vpack.c.bf16 %v9294, %v9293
        %v9311 = vunpack.c.l.b16 %v9295
        %v9312 = vunpack.c.h.b16 %v9295
        %v9313 = vunpack.c.l.b16 %v9296
        %v9314 = vunpack.c.h.b16 %v9296
        %v9315 = vunpack.c.l.b16 %v9297
        %v9316 = vunpack.c.h.b16 %v9297
        %v9317 = vunpack.c.l.b16 %v9298
        %v9318 = vunpack.c.h.b16 %v9298
        %v9319 = vunpack.c.l.b16 %v9299
        %v9320 = vunpack.c.h.b16 %v9299
        %v9321 = vunpack.c.l.b16 %v9300
        %v9322 = vunpack.c.h.b16 %v9300
        %v9323 = vunpack.c.l.b16 %v9301
        %v9324 = vunpack.c.h.b16 %v9301
        %v9325 = vunpack.c.l.b16 %v9302
        %v9326 = vunpack.c.h.b16 %v9302
        %v9327 = vpack.c.b16 %v9319, %v9311
        %v9328 = vpack.c.b16 %v9320, %v9312
        %v9329 = vpack.c.b16 %v9321, %v9313
        %v9330 = vpack.c.b16 %v9322, %v9314
        %v9331 = vpack.c.b16 %v9323, %v9315
        %v9332 = vpack.c.b16 %v9324, %v9316
        %v9333 = vpack.c.b16 %v9325, %v9317
        %v9334 = vpack.c.b16 %v9326, %v9318
        %9335 = vrot.lane.b32.xlu0 %v9327, 127
        %v9336 = vpop.permute.xlu0 %9335
        %9337 = vrot.lane.b32.xlu0 %v9328, 127
        %v9338 = vpop.permute.xlu0 %9337
        %9339 = vrot.lane.b32.xlu0 %v9329, 127
        %v9340 = vpop.permute.xlu0 %9339
        %9341 = vrot.lane.b32.xlu0 %v9330, 127
        %v9342 = vpop.permute.xlu0 %9341
        %9343 = vrot.lane.b32.xlu0 %v9331, 127
        %v9344 = vpop.permute.xlu0 %9343
        %9345 = vrot.lane.b32.xlu0 %v9332, 127
        %v9346 = vpop.permute.xlu0 %9345
        %9347 = vrot.lane.b32.xlu0 %v9333, 127
        %v9348 = vpop.permute.xlu0 %9347
        %9349 = vrot.lane.b32.xlu0 %v9334, 127
        %v9350 = vpop.permute.xlu0 %9349
        %v9351 = vsel %vm1763, %v1746, %v9336
        %v9352 = vsel %vm1763, %v9336, %v9338
        %v9353 = vsel %vm1763, %v9338, %v9340
        %v9354 = vsel %vm1763, %v9340, %v9342
        %v9355 = vsel %vm1763, %v9342, %v9344
        %v9356 = vsel %vm1763, %v9344, %v9346
        %v9357 = vsel %vm1763, %v9346, %v9348
        %v9358 = vsel %vm1763, %v9348, %v9350
        %9359 = vrot.lane.b32.xlu0 %v9327, 126
        %v9360 = vpop.permute.xlu0 %9359
        %9361 = vrot.lane.b32.xlu0 %v9328, 126
        %v9362 = vpop.permute.xlu0 %9361
        %9363 = vrot.lane.b32.xlu0 %v9329, 126
        %v9364 = vpop.permute.xlu0 %9363
        %9365 = vrot.lane.b32.xlu0 %v9330, 126
        %v9366 = vpop.permute.xlu0 %9365
        %9367 = vrot.lane.b32.xlu0 %v9331, 126
        %v9368 = vpop.permute.xlu0 %9367
        %9369 = vrot.lane.b32.xlu0 %v9332, 126
        %v9370 = vpop.permute.xlu0 %9369
        %9371 = vrot.lane.b32.xlu0 %v9333, 126
        %v9372 = vpop.permute.xlu0 %9371
        %9373 = vrot.lane.b32.xlu0 %v9334, 126
        %v9374 = vpop.permute.xlu0 %9373
        %v9375 = vsel %vm1790, %v1773, %v9360
        %v9376 = vsel %vm1790, %v9360, %v9362
        %v9377 = vsel %vm1790, %v9362, %v9364
        %v9378 = vsel %vm1790, %v9364, %v9366
        %v9379 = vsel %vm1790, %v9366, %v9368
        %v9380 = vsel %vm1790, %v9368, %v9370
        %v9381 = vsel %vm1790, %v9370, %v9372
        %v9382 = vsel %vm1790, %v9372, %v9374
        %9383 = vrot.lane.b32.xlu0 %v9327, 98
        %v9384 = vpop.permute.xlu0 %9383
        %9385 = vrot.lane.b32.xlu0 %v9328, 98
        %v9386 = vpop.permute.xlu0 %9385
        %9387 = vrot.lane.b32.xlu0 %v9329, 98
        %v9388 = vpop.permute.xlu0 %9387
        %9389 = vrot.lane.b32.xlu0 %v9330, 98
        %v9390 = vpop.permute.xlu0 %9389
        %9391 = vrot.lane.b32.xlu0 %v9331, 98
        %v9392 = vpop.permute.xlu0 %9391
        %9393 = vrot.lane.b32.xlu0 %v9332, 98
        %v9394 = vpop.permute.xlu0 %9393
        %9395 = vrot.lane.b32.xlu0 %v9333, 98
        %v9396 = vpop.permute.xlu0 %9395
        %9397 = vrot.lane.b32.xlu0 %v9334, 98
        %v9398 = vpop.permute.xlu0 %9397
        %v9399 = vsel %vm1817, %v1800, %v9384
        %v9400 = vsel %vm1817, %v9384, %v9386
        %v9401 = vsel %vm1817, %v9386, %v9388
        %v9402 = vsel %vm1817, %v9388, %v9390
        %v9403 = vsel %vm1817, %v9390, %v9392
        %v9404 = vsel %vm1817, %v9392, %v9394
        %v9405 = vsel %vm1817, %v9394, %v9396
        %v9406 = vsel %vm1817, %v9396, %v9398
        %9407 = vrot.lane.b32.xlu0 %v9327, 97
        %v9408 = vpop.permute.xlu0 %9407
        %9409 = vrot.lane.b32.xlu0 %v9328, 97
        %v9410 = vpop.permute.xlu0 %9409
        %9411 = vrot.lane.b32.xlu0 %v9329, 97
        %v9412 = vpop.permute.xlu0 %9411
        %9413 = vrot.lane.b32.xlu0 %v9330, 97
        %v9414 = vpop.permute.xlu0 %9413
        %9415 = vrot.lane.b32.xlu0 %v9331, 97
        %v9416 = vpop.permute.xlu0 %9415
        %9417 = vrot.lane.b32.xlu0 %v9332, 97
        %v9418 = vpop.permute.xlu0 %9417
        %9419 = vrot.lane.b32.xlu0 %v9333, 97
        %v9420 = vpop.permute.xlu0 %9419
        %9421 = vrot.lane.b32.xlu0 %v9334, 97
        %v9422 = vpop.permute.xlu0 %9421
        %v9423 = vsel %vm1842, %v9408, %v9410
        %v9424 = vsel %vm1842, %v9410, %v9412
        %v9425 = vsel %vm1842, %v9412, %v9414
        %v9426 = vsel %vm1842, %v9414, %v9416
        %v9427 = vsel %vm1842, %v9416, %v9418
        %v9428 = vsel %vm1842, %v9418, %v9420
        %v9429 = vsel %vm1842, %v9420, %v9422
        %9430 = vrot.lane.b32.xlu0 %v9327, 96
        %v9431 = vpop.permute.xlu0 %9430
        %9432 = vrot.lane.b32.xlu0 %v9328, 96
        %v9433 = vpop.permute.xlu0 %9432
        %9434 = vrot.lane.b32.xlu0 %v9329, 96
        %v9435 = vpop.permute.xlu0 %9434
        %9436 = vrot.lane.b32.xlu0 %v9330, 96
        %v9437 = vpop.permute.xlu0 %9436
        %9438 = vrot.lane.b32.xlu0 %v9331, 96
        %v9439 = vpop.permute.xlu0 %9438
        %9440 = vrot.lane.b32.xlu0 %v9332, 96
        %v9441 = vpop.permute.xlu0 %9440
        %9442 = vrot.lane.b32.xlu0 %v9333, 96
        %v9443 = vpop.permute.xlu0 %9442
        %9444 = vrot.lane.b32.xlu0 %v9334, 96
        %v9445 = vpop.permute.xlu0 %9444
        %v9446 = vsel %vm1868, %v9431, %v9433
        %v9447 = vsel %vm1868, %v9433, %v9435
        %v9448 = vsel %vm1868, %v9435, %v9437
        %v9449 = vsel %vm1868, %v9437, %v9439
        %v9450 = vsel %vm1868, %v9439, %v9441
        %v9451 = vsel %vm1868, %v9441, %v9443
        %v9452 = vsel %vm1868, %v9443, %v9445
        %v9453 = vsel %vm1868, %v9445, %v1867
        %9454 = vrot.lane.b32.xlu0 %v9327, 68
        %v9455 = vpop.permute.xlu0 %9454
        %9456 = vrot.lane.b32.xlu0 %v9328, 68
        %v9457 = vpop.permute.xlu0 %9456
        %9458 = vrot.lane.b32.xlu0 %v9329, 68
        %v9459 = vpop.permute.xlu0 %9458
        %9460 = vrot.lane.b32.xlu0 %v9330, 68
        %v9461 = vpop.permute.xlu0 %9460
        %9462 = vrot.lane.b32.xlu0 %v9331, 68
        %v9463 = vpop.permute.xlu0 %9462
        %9464 = vrot.lane.b32.xlu0 %v9332, 68
        %v9465 = vpop.permute.xlu0 %9464
        %9466 = vrot.lane.b32.xlu0 %v9333, 68
        %v9467 = vpop.permute.xlu0 %9466
        %9468 = vrot.lane.b32.xlu0 %v9334, 68
        %v9469 = vpop.permute.xlu0 %9468
        %v9470 = vsel %vm1895, %v9455, %v9457
        %v9471 = vsel %vm1895, %v9457, %v9459
        %v9472 = vsel %vm1895, %v9459, %v9461
        %v9473 = vsel %vm1895, %v9461, %v9463
        %v9474 = vsel %vm1895, %v9463, %v9465
        %v9475 = vsel %vm1895, %v9465, %v9467
        %v9476 = vsel %vm1895, %v9467, %v9469
        %v9477 = vsel %vm1895, %v9469, %v1894
        %9478 = vrot.lane.b32.xlu0 %v9327, 67
        %v9479 = vpop.permute.xlu0 %9478
        %9480 = vrot.lane.b32.xlu0 %v9328, 67
        %v9481 = vpop.permute.xlu0 %9480
        %9482 = vrot.lane.b32.xlu0 %v9329, 67
        %v9483 = vpop.permute.xlu0 %9482
        %9484 = vrot.lane.b32.xlu0 %v9330, 67
        %v9485 = vpop.permute.xlu0 %9484
        %9486 = vrot.lane.b32.xlu0 %v9331, 67
        %v9487 = vpop.permute.xlu0 %9486
        %9488 = vrot.lane.b32.xlu0 %v9332, 67
        %v9489 = vpop.permute.xlu0 %9488
        %9490 = vrot.lane.b32.xlu0 %v9333, 67
        %v9491 = vpop.permute.xlu0 %9490
        %9492 = vrot.lane.b32.xlu0 %v9334, 67
        %v9493 = vpop.permute.xlu0 %9492
        %v9494 = vsel %vm1922, %v9479, %v9481
        %v9495 = vsel %vm1922, %v9481, %v9483
        %v9496 = vsel %vm1922, %v9483, %v9485
        %v9497 = vsel %vm1922, %v9485, %v9487
        %v9498 = vsel %vm1922, %v9487, %v9489
        %v9499 = vsel %vm1922, %v9489, %v9491
        %v9500 = vsel %vm1922, %v9491, %v9493
        %v9501 = vsel %vm1922, %v9493, %v1921
        %9502 = vrot.lane.b32.xlu0 %v9327, 66
        %v9503 = vpop.permute.xlu0 %9502
        %9504 = vrot.lane.b32.xlu0 %v9328, 66
        %v9505 = vpop.permute.xlu0 %9504
        %9506 = vrot.lane.b32.xlu0 %v9329, 66
        %v9507 = vpop.permute.xlu0 %9506
        %9508 = vrot.lane.b32.xlu0 %v9330, 66
        %v9509 = vpop.permute.xlu0 %9508
        %9510 = vrot.lane.b32.xlu0 %v9331, 66
        %v9511 = vpop.permute.xlu0 %9510
        %9512 = vrot.lane.b32.xlu0 %v9332, 66
        %v9513 = vpop.permute.xlu0 %9512
        %9514 = vrot.lane.b32.xlu0 %v9333, 66
        %v9515 = vpop.permute.xlu0 %9514
        %9516 = vrot.lane.b32.xlu0 %v9334, 66
        %v9517 = vpop.permute.xlu0 %9516
        %v9518 = vsel %vm1949, %v9503, %v9505
        %v9519 = vsel %vm1949, %v9505, %v9507
        %v9520 = vsel %vm1949, %v9507, %v9509
        %v9521 = vsel %vm1949, %v9509, %v9511
        %v9522 = vsel %vm1949, %v9511, %v9513
        %v9523 = vsel %vm1949, %v9513, %v9515
        %v9524 = vsel %vm1949, %v9515, %v9517
        %v9525 = vsel %vm1949, %v9517, %v1948
        %9526 = vrot.lane.b32.xlu0 %v9327, 31
        %v9527 = vpop.permute.xlu0 %9526
        %9528 = vrot.lane.b32.xlu0 %v9328, 31
        %v9529 = vpop.permute.xlu0 %9528
        %9530 = vrot.lane.b32.xlu0 %v9329, 31
        %v9531 = vpop.permute.xlu0 %9530
        %9532 = vrot.lane.b32.xlu0 %v9330, 31
        %v9533 = vpop.permute.xlu0 %9532
        %9534 = vrot.lane.b32.xlu0 %v9331, 31
        %v9535 = vpop.permute.xlu0 %9534
        %9536 = vrot.lane.b32.xlu0 %v9332, 31
        %v9537 = vpop.permute.xlu0 %9536
        %9538 = vrot.lane.b32.xlu0 %v9333, 31
        %v9539 = vpop.permute.xlu0 %9538
        %9540 = vrot.lane.b32.xlu0 %v9334, 31
        %v9541 = vpop.permute.xlu0 %9540
        %9542 = vrot.lane.b32.xlu0 %v9351, 31
        %v9543 = vpop.permute.xlu0 %9542
        %9544 = vrot.lane.b32.xlu0 %v9352, 31
        %v9545 = vpop.permute.xlu0 %9544
        %9546 = vrot.lane.b32.xlu0 %v9353, 31
        %v9547 = vpop.permute.xlu0 %9546
        %9548 = vrot.lane.b32.xlu0 %v9354, 31
        %v9549 = vpop.permute.xlu0 %9548
        %9550 = vrot.lane.b32.xlu0 %v9355, 31
        %v9551 = vpop.permute.xlu0 %9550
        %9552 = vrot.lane.b32.xlu0 %v9356, 31
        %v9553 = vpop.permute.xlu0 %9552
        %9554 = vrot.lane.b32.xlu0 %v9357, 31
        %v9555 = vpop.permute.xlu0 %9554
        %9556 = vrot.lane.b32.xlu0 %v9358, 31
        %v9557 = vpop.permute.xlu0 %9556
        %9558 = vrot.lane.b32.xlu0 %v9350, 31
        %v9559 = vpop.permute.xlu0 %9558
        %9560 = vrot.lane.b32.xlu0 %v9375, 31
        %v9561 = vpop.permute.xlu0 %9560
        %9562 = vrot.lane.b32.xlu0 %v9376, 31
        %v9563 = vpop.permute.xlu0 %9562
        %9564 = vrot.lane.b32.xlu0 %v9377, 31
        %v9565 = vpop.permute.xlu0 %9564
        %9566 = vrot.lane.b32.xlu0 %v9378, 31
        %v9567 = vpop.permute.xlu0 %9566
        %9568 = vrot.lane.b32.xlu0 %v9379, 31
        %v9569 = vpop.permute.xlu0 %9568
        %9570 = vrot.lane.b32.xlu0 %v9380, 31
        %v9571 = vpop.permute.xlu0 %9570
        %9572 = vrot.lane.b32.xlu0 %v9381, 31
        %v9573 = vpop.permute.xlu0 %9572
        %9574 = vrot.lane.b32.xlu0 %v9382, 31
        %v9575 = vpop.permute.xlu0 %9574
        %9576 = vrot.lane.b32.xlu0 %v9374, 31
        %v9577 = vpop.permute.xlu0 %9576
        %9578 = vrot.lane.b32.xlu0 %v9399, 31
        %v9579 = vpop.permute.xlu0 %9578
        %9580 = vrot.lane.b32.xlu0 %v9400, 31
        %v9581 = vpop.permute.xlu0 %9580
        %9582 = vrot.lane.b32.xlu0 %v9401, 31
        %v9583 = vpop.permute.xlu0 %9582
        %9584 = vrot.lane.b32.xlu0 %v9402, 31
        %v9585 = vpop.permute.xlu0 %9584
        %9586 = vrot.lane.b32.xlu0 %v9403, 31
        %v9587 = vpop.permute.xlu0 %9586
        %9588 = vrot.lane.b32.xlu0 %v9404, 31
        %v9589 = vpop.permute.xlu0 %9588
        %9590 = vrot.lane.b32.xlu0 %v9405, 31
        %v9591 = vpop.permute.xlu0 %9590
        %9592 = vrot.lane.b32.xlu0 %v9406, 31
        %v9593 = vpop.permute.xlu0 %9592
        %9594 = vrot.lane.b32.xlu0 %v9398, 31
        %v9595 = vpop.permute.xlu0 %9594
        %9596 = vrot.lane.b32.xlu0 %v9408, 31
        %v9597 = vpop.permute.xlu0 %9596
        %9598 = vrot.lane.b32.xlu0 %v9423, 31
        %v9599 = vpop.permute.xlu0 %9598
        %9600 = vrot.lane.b32.xlu0 %v9424, 31
        %v9601 = vpop.permute.xlu0 %9600
        %9602 = vrot.lane.b32.xlu0 %v9425, 31
        %v9603 = vpop.permute.xlu0 %9602
        %9604 = vrot.lane.b32.xlu0 %v9426, 31
        %v9605 = vpop.permute.xlu0 %9604
        %9606 = vrot.lane.b32.xlu0 %v9427, 31
        %v9607 = vpop.permute.xlu0 %9606
        %9608 = vrot.lane.b32.xlu0 %v9428, 31
        %v9609 = vpop.permute.xlu0 %9608
        %9610 = vrot.lane.b32.xlu0 %v9429, 31
        %v9611 = vpop.permute.xlu0 %9610
        %9612 = vrot.lane.b32.xlu0 %v9422, 31
        %v9613 = vpop.permute.xlu0 %9612
        %9614 = vrot.lane.b32.xlu0 %v9431, 31
        %v9615 = vpop.permute.xlu0 %9614
        %9616 = vrot.lane.b32.xlu0 %v9446, 31
        %v9617 = vpop.permute.xlu0 %9616
        %9618 = vrot.lane.b32.xlu0 %v9447, 31
        %v9619 = vpop.permute.xlu0 %9618
        %9620 = vrot.lane.b32.xlu0 %v9448, 31
        %v9621 = vpop.permute.xlu0 %9620
        %9622 = vrot.lane.b32.xlu0 %v9449, 31
        %v9623 = vpop.permute.xlu0 %9622
        %9624 = vrot.lane.b32.xlu0 %v9450, 31
        %v9625 = vpop.permute.xlu0 %9624
        %9626 = vrot.lane.b32.xlu0 %v9451, 31
        %v9627 = vpop.permute.xlu0 %9626
        %9628 = vrot.lane.b32.xlu0 %v9452, 31
        %v9629 = vpop.permute.xlu0 %9628
        %9630 = vrot.lane.b32.xlu0 %v9453, 31
        %v9631 = vpop.permute.xlu0 %9630
        %9632 = vrot.lane.b32.xlu0 %v9455, 31
        %v9633 = vpop.permute.xlu0 %9632
        %9634 = vrot.lane.b32.xlu0 %v9470, 31
        %v9635 = vpop.permute.xlu0 %9634
        %9636 = vrot.lane.b32.xlu0 %v9471, 31
        %v9637 = vpop.permute.xlu0 %9636
        %9638 = vrot.lane.b32.xlu0 %v9472, 31
        %v9639 = vpop.permute.xlu0 %9638
        %9640 = vrot.lane.b32.xlu0 %v9473, 31
        %v9641 = vpop.permute.xlu0 %9640
        %9642 = vrot.lane.b32.xlu0 %v9474, 31
        %v9643 = vpop.permute.xlu0 %9642
        %9644 = vrot.lane.b32.xlu0 %v9475, 31
        %v9645 = vpop.permute.xlu0 %9644
        %9646 = vrot.lane.b32.xlu0 %v9476, 31
        %v9647 = vpop.permute.xlu0 %9646
        %9648 = vrot.lane.b32.xlu0 %v9477, 31
        %v9649 = vpop.permute.xlu0 %9648
        %9650 = vrot.lane.b32.xlu0 %v9479, 31
        %v9651 = vpop.permute.xlu0 %9650
        %9652 = vrot.lane.b32.xlu0 %v9494, 31
        %v9653 = vpop.permute.xlu0 %9652
        %9654 = vrot.lane.b32.xlu0 %v9495, 31
        %v9655 = vpop.permute.xlu0 %9654
        %9656 = vrot.lane.b32.xlu0 %v9496, 31
        %v9657 = vpop.permute.xlu0 %9656
        %9658 = vrot.lane.b32.xlu0 %v9497, 31
        %v9659 = vpop.permute.xlu0 %9658
        %9660 = vrot.lane.b32.xlu0 %v9498, 31
        %v9661 = vpop.permute.xlu0 %9660
        %9662 = vrot.lane.b32.xlu0 %v9499, 31
        %v9663 = vpop.permute.xlu0 %9662
        %9664 = vrot.lane.b32.xlu0 %v9500, 31
        %v9665 = vpop.permute.xlu0 %9664
        %9666 = vrot.lane.b32.xlu0 %v9501, 31
        %v9667 = vpop.permute.xlu0 %9666
        %9668 = vrot.lane.b32.xlu0 %v9503, 31
        %v9669 = vpop.permute.xlu0 %9668
        %9670 = vrot.lane.b32.xlu0 %v9518, 31
        %v9671 = vpop.permute.xlu0 %9670
        %9672 = vrot.lane.b32.xlu0 %v9519, 31
        %v9673 = vpop.permute.xlu0 %9672
        %9674 = vrot.lane.b32.xlu0 %v9520, 31
        %v9675 = vpop.permute.xlu0 %9674
        %9676 = vrot.lane.b32.xlu0 %v9521, 31
        %v9677 = vpop.permute.xlu0 %9676
        %9678 = vrot.lane.b32.xlu0 %v9522, 31
        %v9679 = vpop.permute.xlu0 %9678
        %9680 = vrot.lane.b32.xlu0 %v9523, 31
        %v9681 = vpop.permute.xlu0 %9680
        %9682 = vrot.lane.b32.xlu0 %v9524, 31
        %v9683 = vpop.permute.xlu0 %9682
        %9684 = vrot.lane.b32.xlu0 %v9525, 31
        %v9685 = vpop.permute.xlu0 %9684
        %v9686 = vsel %vm2150, %v1989, %v9527
        %v9687 = vsel %vm2150, %v9527, %v9529
        %v9688 = vsel %vm2150, %v9529, %v9531
        %v9689 = vsel %vm2150, %v9531, %v9533
        %v9690 = vsel %vm2150, %v9533, %v9535
        %v9691 = vsel %vm2150, %v9535, %v9537
        %v9692 = vsel %vm2150, %v9537, %v9539
        %v9693 = vsel %vm2150, %v9539, %v9541
        %v9694 = vsel %vm2150, %v9543, %v9545
        %v9695 = vsel %vm2150, %v9545, %v9547
        %v9696 = vsel %vm2150, %v9547, %v9549
        %v9697 = vsel %vm2150, %v9549, %v9551
        %v9698 = vsel %vm2150, %v9551, %v9553
        %v9699 = vsel %vm2150, %v9553, %v9555
        %v9700 = vsel %vm2150, %v9555, %v9557
        %v9701 = vsel %vm2150, %v9557, %v9559
        %v9702 = vsel %vm2150, %v9561, %v9563
        %v9703 = vsel %vm2150, %v9563, %v9565
        %v9704 = vsel %vm2150, %v9565, %v9567
        %v9705 = vsel %vm2150, %v9567, %v9569
        %v9706 = vsel %vm2150, %v9569, %v9571
        %v9707 = vsel %vm2150, %v9571, %v9573
        %v9708 = vsel %vm2150, %v9573, %v9575
        %v9709 = vsel %vm2150, %v9575, %v9577
        %v9710 = vsel %vm2150, %v9579, %v9581
        %v9711 = vsel %vm2150, %v9581, %v9583
        %v9712 = vsel %vm2150, %v9583, %v9585
        %v9713 = vsel %vm2150, %v9585, %v9587
        %v9714 = vsel %vm2150, %v9587, %v9589
        %v9715 = vsel %vm2150, %v9589, %v9591
        %v9716 = vsel %vm2150, %v9591, %v9593
        %v9717 = vsel %vm2150, %v9593, %v9595
        %v9718 = vsel %vm2150, %v9597, %v9599
        %v9719 = vsel %vm2150, %v9599, %v9601
        %v9720 = vsel %vm2150, %v9601, %v9603
        %v9721 = vsel %vm2150, %v9603, %v9605
        %v9722 = vsel %vm2150, %v9605, %v9607
        %v9723 = vsel %vm2150, %v9607, %v9609
        %v9724 = vsel %vm2150, %v9609, %v9611
        %v9725 = vsel %vm2150, %v9611, %v9613
        %v9726 = vsel %vm2150, %v9615, %v9617
        %v9727 = vsel %vm2150, %v9617, %v9619
        %v9728 = vsel %vm2150, %v9619, %v9621
        %v9729 = vsel %vm2150, %v9621, %v9623
        %v9730 = vsel %vm2150, %v9623, %v9625
        %v9731 = vsel %vm2150, %v9625, %v9627
        %v9732 = vsel %vm2150, %v9627, %v9629
        %v9733 = vsel %vm2150, %v9629, %v9631
        %v9734 = vsel %vm2150, %v9633, %v9635
        %v9735 = vsel %vm2150, %v9635, %v9637
        %v9736 = vsel %vm2150, %v9637, %v9639
        %v9737 = vsel %vm2150, %v9639, %v9641
        %v9738 = vsel %vm2150, %v9641, %v9643
        %v9739 = vsel %vm2150, %v9643, %v9645
        %v9740 = vsel %vm2150, %v9645, %v9647
        %v9741 = vsel %vm2150, %v9647, %v9649
        %v9742 = vsel %vm2150, %v9651, %v9653
        %v9743 = vsel %vm2150, %v9653, %v9655
        %v9744 = vsel %vm2150, %v9655, %v9657
        %v9745 = vsel %vm2150, %v9657, %v9659
        %v9746 = vsel %vm2150, %v9659, %v9661
        %v9747 = vsel %vm2150, %v9661, %v9663
        %v9748 = vsel %vm2150, %v9663, %v9665
        %v9749 = vsel %vm2150, %v9665, %v9667
        %v9750 = vsel %vm2150, %v9669, %v9671
        %v9751 = vsel %vm2150, %v9671, %v9673
        %v9752 = vsel %vm2150, %v9673, %v9675
        %v9753 = vsel %vm2150, %v9675, %v9677
        %v9754 = vsel %vm2150, %v9677, %v9679
        %v9755 = vsel %vm2150, %v9679, %v9681
        %v9756 = vsel %vm2150, %v9681, %v9683
        %v9757 = vsel %vm2150, %v9683, %v9685
        %9830 = vmatpush.bf16.msra.mxu0 %v9742
        %9831 = vmatpush.bf16.msra.mxu0 %v9734
        %9832 = vmatpush.bf16.msra.mxu0 %v9726
        %9833 = vmatpush.bf16.msra.mxu0 %v9718
        %9834 = vmatpush.bf16.msra.mxu0 %v9710
        %9835 = vmatpush.bf16.msra.mxu0 %v9702
        %9836 = vmatpush.bf16.msra.mxu0 %v9694
        %9837 = vmatpush.bf16.msra.mxu0 %v9686
        %9838 = vmatmul.bf16.gmra.mxu0 %v1982
        %v9839 = vpop.f32.mrf.mxu0
        %v9840 = vadd.f32 %v1961, %v9839
        %v9841 = vpop.f32.mrf.mxu0
        %v9842 = vadd.f32 %v1966, %v9841
        %9843 = vmatmul.bf16.gmra.mxu0 %v1984
        %v9844 = vpop.f32.mrf.mxu0
        %v9845 = vadd.f32 %v1971, %v9844
        %v9846 = vpop.f32.mrf.mxu0
        %9847 = vdwg.mxu0
        %9848 = vmatpush.bf16.msra.mxu0 0
        %9849 = vmatpush.bf16.msra.mxu0 0
        %9850 = vmatpush.bf16.msra.mxu0 0
        %9851 = vmatpush.bf16.msra.mxu0 0
        %9852 = vmatpush.bf16.msra.mxu0 0
        %9853 = vmatpush.bf16.msra.mxu0 0
        %9854 = vmatpush.bf16.msra.mxu0 0
        %9855 = vmatpush.bf16.msra.mxu0 %v9750
        %9856 = vmatmul.bf16.gmra.mxu0 %v2297
        %v9857 = vpop.f32.mrf.mxu0
        %v9858 = vadd.f32 %v9840, %v9857
        %v9859 = vpop.f32.mrf.mxu0
        %v9860 = vadd.f32 %v9842, %v9859
        %9861 = vmatmul.bf16.gmra.mxu0 %v2300
        %v9862 = vpop.f32.mrf.mxu0
        %v9863 = vadd.f32 %v9845, %v9862
        %v9864 = vpop.f32.mrf.mxu0
        %9865 = vdwg.mxu0
        %9866 = vmatpush.bf16.msra.mxu0 %v9743
        %9867 = vmatpush.bf16.msra.mxu0 %v9735
        %9868 = vmatpush.bf16.msra.mxu0 %v9727
        %9869 = vmatpush.bf16.msra.mxu0 %v9719
        %9870 = vmatpush.bf16.msra.mxu0 %v9711
        %9871 = vmatpush.bf16.msra.mxu0 %v9703
        %9872 = vmatpush.bf16.msra.mxu0 %v9695
        %9873 = vmatpush.bf16.msra.mxu0 %v9687
        %9874 = vmatmul.bf16.gmra.mxu0 %v1982
        %v9875 = vpop.f32.mrf.mxu0
        %v9876 = vadd.f32 %v1961, %v9875
        %v9877 = vpop.f32.mrf.mxu0
        %v9878 = vadd.f32 %v1966, %v9877
        %9879 = vmatmul.bf16.gmra.mxu0 %v1984
        %v9880 = vpop.f32.mrf.mxu0
        %v9881 = vadd.f32 %v1971, %v9880
        %v9882 = vpop.f32.mrf.mxu0
        %9883 = vdwg.mxu0
        %9884 = vmatpush.bf16.msra.mxu0 0
        %9885 = vmatpush.bf16.msra.mxu0 0
        %9886 = vmatpush.bf16.msra.mxu0 0
        %9887 = vmatpush.bf16.msra.mxu0 0
        %9888 = vmatpush.bf16.msra.mxu0 0
        %9889 = vmatpush.bf16.msra.mxu0 0
        %9890 = vmatpush.bf16.msra.mxu0 0
        %9891 = vmatpush.bf16.msra.mxu0 %v9751
        %9892 = vmatmul.bf16.gmra.mxu0 %v2297
        %v9893 = vpop.f32.mrf.mxu0
        %v9894 = vadd.f32 %v9876, %v9893
        %v9895 = vpop.f32.mrf.mxu0
        %v9896 = vadd.f32 %v9878, %v9895
        %9897 = vmatmul.bf16.gmra.mxu0 %v2300
        %v9898 = vpop.f32.mrf.mxu0
        %v9899 = vadd.f32 %v9881, %v9898
        %v9900 = vpop.f32.mrf.mxu0
        %9901 = vdwg.mxu0
        %9902 = vmatpush.bf16.msra.mxu0 %v9744
        %9903 = vmatpush.bf16.msra.mxu0 %v9736
        %9904 = vmatpush.bf16.msra.mxu0 %v9728
        %9905 = vmatpush.bf16.msra.mxu0 %v9720
        %9906 = vmatpush.bf16.msra.mxu0 %v9712
        %9907 = vmatpush.bf16.msra.mxu0 %v9704
        %9908 = vmatpush.bf16.msra.mxu0 %v9696
        %9909 = vmatpush.bf16.msra.mxu0 %v9688
        %9910 = vmatmul.bf16.gmra.mxu0 %v1982
        %v9911 = vpop.f32.mrf.mxu0
        %v9912 = vadd.f32 %v1961, %v9911
        %v9913 = vpop.f32.mrf.mxu0
        %v9914 = vadd.f32 %v1966, %v9913
        %9915 = vmatmul.bf16.gmra.mxu0 %v1984
        %v9916 = vpop.f32.mrf.mxu0
        %v9917 = vadd.f32 %v1971, %v9916
        %v9918 = vpop.f32.mrf.mxu0
        %9919 = vdwg.mxu0
        %9920 = vmatpush.bf16.msra.mxu0 0
        %9921 = vmatpush.bf16.msra.mxu0 0
        %9922 = vmatpush.bf16.msra.mxu0 0
        %9923 = vmatpush.bf16.msra.mxu0 0
        %9924 = vmatpush.bf16.msra.mxu0 0
        %9925 = vmatpush.bf16.msra.mxu0 0
        %9926 = vmatpush.bf16.msra.mxu0 0
        %9927 = vmatpush.bf16.msra.mxu0 %v9752
        %9928 = vmatmul.bf16.gmra.mxu0 %v2297
        %v9929 = vpop.f32.mrf.mxu0
        %v9930 = vadd.f32 %v9912, %v9929
        %v9931 = vpop.f32.mrf.mxu0
        %v9932 = vadd.f32 %v9914, %v9931
        %9933 = vmatmul.bf16.gmra.mxu0 %v2300
        %v9934 = vpop.f32.mrf.mxu0
        %v9935 = vadd.f32 %v9917, %v9934
        %v9936 = vpop.f32.mrf.mxu0
        %9937 = vdwg.mxu0
        %9938 = vmatpush.bf16.msra.mxu0 %v9745
        %9939 = vmatpush.bf16.msra.mxu0 %v9737
        %9940 = vmatpush.bf16.msra.mxu0 %v9729
        %9941 = vmatpush.bf16.msra.mxu0 %v9721
        %9942 = vmatpush.bf16.msra.mxu0 %v9713
        %9943 = vmatpush.bf16.msra.mxu0 %v9705
        %9944 = vmatpush.bf16.msra.mxu0 %v9697
        %9945 = vmatpush.bf16.msra.mxu0 %v9689
        %9946 = vmatmul.bf16.gmra.mxu0 %v1982
        %v9947 = vpop.f32.mrf.mxu0
        %v9948 = vadd.f32 %v1961, %v9947
        %v9949 = vpop.f32.mrf.mxu0
        %v9950 = vadd.f32 %v1966, %v9949
        %9951 = vmatmul.bf16.gmra.mxu0 %v1984
        %v9952 = vpop.f32.mrf.mxu0
        %v9953 = vadd.f32 %v1971, %v9952
        %v9954 = vpop.f32.mrf.mxu0
        %9955 = vdwg.mxu0
        %9956 = vmatpush.bf16.msra.mxu0 0
        %9957 = vmatpush.bf16.msra.mxu0 0
        %9958 = vmatpush.bf16.msra.mxu0 0
        %9959 = vmatpush.bf16.msra.mxu0 0
        %9960 = vmatpush.bf16.msra.mxu0 0
        %9961 = vmatpush.bf16.msra.mxu0 0
        %9962 = vmatpush.bf16.msra.mxu0 0
        %9963 = vmatpush.bf16.msra.mxu0 %v9753
        %9964 = vmatmul.bf16.gmra.mxu0 %v2297
        %v9965 = vpop.f32.mrf.mxu0
        %v9966 = vadd.f32 %v9948, %v9965
        %v9967 = vpop.f32.mrf.mxu0
        %v9968 = vadd.f32 %v9950, %v9967
        %9969 = vmatmul.bf16.gmra.mxu0 %v2300
        %v9970 = vpop.f32.mrf.mxu0
        %v9971 = vadd.f32 %v9953, %v9970
        %v9972 = vpop.f32.mrf.mxu0
        %9973 = vdwg.mxu0
        %9974 = vmatpush.bf16.msra.mxu0 %v9746
        %9975 = vmatpush.bf16.msra.mxu0 %v9738
        %9976 = vmatpush.bf16.msra.mxu0 %v9730
        %9977 = vmatpush.bf16.msra.mxu0 %v9722
        %9978 = vmatpush.bf16.msra.mxu0 %v9714
        %9979 = vmatpush.bf16.msra.mxu0 %v9706
        %9980 = vmatpush.bf16.msra.mxu0 %v9698
        %9981 = vmatpush.bf16.msra.mxu0 %v9690
        %9982 = vmatmul.bf16.gmra.mxu0 %v1982
        %v9983 = vpop.f32.mrf.mxu0
        %v9984 = vadd.f32 %v1961, %v9983
        %v9985 = vpop.f32.mrf.mxu0
        %v9986 = vadd.f32 %v1966, %v9985
        %9987 = vmatmul.bf16.gmra.mxu0 %v1984
        %v9988 = vpop.f32.mrf.mxu0
        %v9989 = vadd.f32 %v1971, %v9988
        %v9990 = vpop.f32.mrf.mxu0
        %9991 = vdwg.mxu0
        %9992 = vmatpush.bf16.msra.mxu0 0
        %9993 = vmatpush.bf16.msra.mxu0 0
        %9994 = vmatpush.bf16.msra.mxu0 0
        %9995 = vmatpush.bf16.msra.mxu0 0
        %9996 = vmatpush.bf16.msra.mxu0 0
        %9997 = vmatpush.bf16.msra.mxu0 0
        %9998 = vmatpush.bf16.msra.mxu0 0
        %9999 = vmatpush.bf16.msra.mxu0 %v9754
        %10000 = vmatmul.bf16.gmra.mxu0 %v2297
        %v10001 = vpop.f32.mrf.mxu0
        %v10002 = vadd.f32 %v9984, %v10001
        %v10003 = vpop.f32.mrf.mxu0
        %v10004 = vadd.f32 %v9986, %v10003
        %10005 = vmatmul.bf16.gmra.mxu0 %v2300
        %v10006 = vpop.f32.mrf.mxu0
        %v10007 = vadd.f32 %v9989, %v10006
        %v10008 = vpop.f32.mrf.mxu0
        %10009 = vdwg.mxu0
        %10010 = vmatpush.bf16.msra.mxu0 %v9747
        %10011 = vmatpush.bf16.msra.mxu0 %v9739
        %10012 = vmatpush.bf16.msra.mxu0 %v9731
        %10013 = vmatpush.bf16.msra.mxu0 %v9723
        %10014 = vmatpush.bf16.msra.mxu0 %v9715
        %10015 = vmatpush.bf16.msra.mxu0 %v9707
        %10016 = vmatpush.bf16.msra.mxu0 %v9699
        %10017 = vmatpush.bf16.msra.mxu0 %v9691
        %10018 = vmatmul.bf16.gmra.mxu0 %v1982
        %v10019 = vpop.f32.mrf.mxu0
        %v10020 = vadd.f32 %v1961, %v10019
        %v10021 = vpop.f32.mrf.mxu0
        %v10022 = vadd.f32 %v1966, %v10021
        %10023 = vmatmul.bf16.gmra.mxu0 %v1984
        %v10024 = vpop.f32.mrf.mxu0
        %v10025 = vadd.f32 %v1971, %v10024
        %v10026 = vpop.f32.mrf.mxu0
        %10027 = vdwg.mxu0
        %10028 = vmatpush.bf16.msra.mxu0 0
        %10029 = vmatpush.bf16.msra.mxu0 0
        %10030 = vmatpush.bf16.msra.mxu0 0
        %10031 = vmatpush.bf16.msra.mxu0 0
        %10032 = vmatpush.bf16.msra.mxu0 0
        %10033 = vmatpush.bf16.msra.mxu0 0
        %10034 = vmatpush.bf16.msra.mxu0 0
        %10035 = vmatpush.bf16.msra.mxu0 %v9755
        %10036 = vmatmul.bf16.gmra.mxu0 %v2297
        %v10037 = vpop.f32.mrf.mxu0
        %v10038 = vadd.f32 %v10020, %v10037
        %v10039 = vpop.f32.mrf.mxu0
        %v10040 = vadd.f32 %v10022, %v10039
        %10041 = vmatmul.bf16.gmra.mxu0 %v2300
        %v10042 = vpop.f32.mrf.mxu0
        %v10043 = vadd.f32 %v10025, %v10042
        %v10044 = vpop.f32.mrf.mxu0
        %10045 = vdwg.mxu0
        %10046 = vmatpush.bf16.msra.mxu0 %v9748
        %10047 = vmatpush.bf16.msra.mxu0 %v9740
        %10048 = vmatpush.bf16.msra.mxu0 %v9732
        %10049 = vmatpush.bf16.msra.mxu0 %v9724
        %10050 = vmatpush.bf16.msra.mxu0 %v9716
        %10051 = vmatpush.bf16.msra.mxu0 %v9708
        %10052 = vmatpush.bf16.msra.mxu0 %v9700
        %10053 = vmatpush.bf16.msra.mxu0 %v9692
        %10054 = vmatmul.bf16.gmra.mxu0 %v1982
        %v10055 = vpop.f32.mrf.mxu0
        %v10056 = vadd.f32 %v1961, %v10055
        %v10057 = vpop.f32.mrf.mxu0
        %v10058 = vadd.f32 %v1966, %v10057
        %10059 = vmatmul.bf16.gmra.mxu0 %v1984
        %v10060 = vpop.f32.mrf.mxu0
        %v10061 = vadd.f32 %v1971, %v10060
        %v10062 = vpop.f32.mrf.mxu0
        %10063 = vdwg.mxu0
        %10064 = vmatpush.bf16.msra.mxu0 0
        %10065 = vmatpush.bf16.msra.mxu0 0
        %10066 = vmatpush.bf16.msra.mxu0 0
        %10067 = vmatpush.bf16.msra.mxu0 0
        %10068 = vmatpush.bf16.msra.mxu0 0
        %10069 = vmatpush.bf16.msra.mxu0 0
        %10070 = vmatpush.bf16.msra.mxu0 0
        %10071 = vmatpush.bf16.msra.mxu0 %v9756
        %10072 = vmatmul.bf16.gmra.mxu0 %v2297
        %v10073 = vpop.f32.mrf.mxu0
        %v10074 = vadd.f32 %v10056, %v10073
        %v10075 = vpop.f32.mrf.mxu0
        %v10076 = vadd.f32 %v10058, %v10075
        %10077 = vmatmul.bf16.gmra.mxu0 %v2300
        %v10078 = vpop.f32.mrf.mxu0
        %v10079 = vadd.f32 %v10061, %v10078
        %v10080 = vpop.f32.mrf.mxu0
        %10081 = vdwg.mxu0
        %10082 = vmatpush.bf16.msra.mxu0 %v9749
        %10083 = vmatpush.bf16.msra.mxu0 %v9741
        %10084 = vmatpush.bf16.msra.mxu0 %v9733
        %10085 = vmatpush.bf16.msra.mxu0 %v9725
        %10086 = vmatpush.bf16.msra.mxu0 %v9717
        %10087 = vmatpush.bf16.msra.mxu0 %v9709
        %10088 = vmatpush.bf16.msra.mxu0 %v9701
        %10089 = vmatpush.bf16.msra.mxu0 %v9693
        %10090 = vmatmul.bf16.gmra.mxu0 %v1982
        %v10091 = vpop.f32.mrf.mxu0
        %v10092 = vadd.f32 %v1961, %v10091
        %v10093 = vpop.f32.mrf.mxu0
        %v10094 = vadd.f32 %v1966, %v10093
        %10095 = vmatmul.bf16.gmra.mxu0 %v1984
        %v10096 = vpop.f32.mrf.mxu0
        %v10097 = vadd.f32 %v1971, %v10096
        %v10098 = vpop.f32.mrf.mxu0
        %10099 = vdwg.mxu0
        %10100 = vmatpush.bf16.msra.mxu0 0
        %10101 = vmatpush.bf16.msra.mxu0 0
        %10102 = vmatpush.bf16.msra.mxu0 0
        %10103 = vmatpush.bf16.msra.mxu0 0
        %10104 = vmatpush.bf16.msra.mxu0 0
        %10105 = vmatpush.bf16.msra.mxu0 0
        %10106 = vmatpush.bf16.msra.mxu0 0
        %10107 = vmatpush.bf16.msra.mxu0 %v9757
        %10108 = vmatmul.bf16.gmra.mxu0 %v2297
        %v10109 = vpop.f32.mrf.mxu0
        %v10110 = vadd.f32 %v10092, %v10109
        %v10111 = vpop.f32.mrf.mxu0
        %v10112 = vadd.f32 %v10094, %v10111
        %10113 = vmatmul.bf16.gmra.mxu0 %v2300
        %v10114 = vpop.f32.mrf.mxu0
        %v10115 = vadd.f32 %v10097, %v10114
        %v10116 = vpop.f32.mrf.mxu0
        %10117 = vdwg.mxu0
        %v10118 = vmax.f32 %v9858, 0.0
        %v10119 = vmax.f32 %v9894, 0.0
        %v10120 = vmax.f32 %v9930, 0.0
        %v10121 = vmax.f32 %v9966, 0.0
        %v10122 = vmax.f32 %v10002, 0.0
        %v10123 = vmax.f32 %v10038, 0.0
        %v10124 = vmax.f32 %v10074, 0.0
        %v10125 = vmax.f32 %v10110, 0.0
        %v10126 = vmax.f32 %v9860, 0.0
        %v10127 = vmax.f32 %v9896, 0.0
        %v10128 = vmax.f32 %v9932, 0.0
        %v10129 = vmax.f32 %v9968, 0.0
        %v10130 = vmax.f32 %v10004, 0.0
        %v10131 = vmax.f32 %v10040, 0.0
        %v10132 = vmax.f32 %v10076, 0.0
        %v10133 = vmax.f32 %v10112, 0.0
        %v10134 = vmax.f32 %v9863, 0.0
        %v10135 = vmax.f32 %v9899, 0.0
        %v10136 = vmax.f32 %v9935, 0.0
        %v10137 = vmax.f32 %v9971, 0.0
        %v10138 = vmax.f32 %v10007, 0.0
        %v10139 = vmax.f32 %v10043, 0.0
        %v10140 = vmax.f32 %v10079, 0.0
        %v10141 = vmax.f32 %v10115, 0.0
        %v10142 = vpack.c.bf16 %v10126, %v10118
        %v10143 = vpack.c.bf16 %v10127, %v10119
        %v10144 = vpack.c.bf16 %v10128, %v10120
        %v10145 = vpack.c.bf16 %v10129, %v10121
        %v10146 = vpack.c.bf16 %v10130, %v10122
        %v10147 = vpack.c.bf16 %v10131, %v10123
        %v10148 = vpack.c.bf16 %v10132, %v10124
        %v10149 = vpack.c.bf16 %v10133, %v10125
        %v10150 = vpack.c.bf16 %v10134, %v10134
        %v10151 = vpack.c.bf16 %v10135, %v10135
        %v10152 = vpack.c.bf16 %v10136, %v10136
        %v10153 = vpack.c.bf16 %v10137, %v10137
        %v10154 = vpack.c.bf16 %v10138, %v10138
        %v10155 = vpack.c.bf16 %v10139, %v10139
        %v10156 = vpack.c.bf16 %v10140, %v10140
        %v10157 = vpack.c.bf16 %v10141, %v10141
        %10158 = vmatpush.bf16.msra.mxu0 %v3028
        %10159 = vmatpush.bf16.msra.mxu0 %v3026
        %10160 = vmatpush.bf16.msra.mxu0 %v3024
        %10161 = vmatpush.bf16.msra.mxu0 %v3022
        %10162 = vmatpush.bf16.msra.mxu0 %v3020
        %10163 = vmatpush.bf16.msra.mxu0 %v3018
        %10164 = vmatpush.bf16.msra.mxu0 %v3016
        %10165 = vmatpush.bf16.msra.mxu0 %v3014
        %10166 = vmatmul.bf16.gmra.mxu0 %v10142
        %v10167 = vpop.f32.mrf.mxu0
        %v10168 = vadd.f32 0.0, %v10167
        %v10169 = vpop.f32.mrf.mxu0
        %v10170 = vadd.f32 0.0, %v10169
        %10171 = vmatmul.bf16.gmra.mxu0 %v10150
        %v10172 = vpop.f32.mrf.mxu0
        %v10173 = vadd.f32 0.0, %v10172
        %v10174 = vpop.f32.mrf.mxu0
        %10175 = vdwg.mxu0
        %10176 = vmatpush.bf16.msra.mxu0 %v3044
        %10177 = vmatpush.bf16.msra.mxu0 %v3042
        %10178 = vmatpush.bf16.msra.mxu0 %v3040
        %10179 = vmatpush.bf16.msra.mxu0 %v3038
        %10180 = vmatpush.bf16.msra.mxu0 %v3036
        %10181 = vmatpush.bf16.msra.mxu0 %v3034
        %10182 = vmatpush.bf16.msra.mxu0 %v3032
        %10183 = vmatpush.bf16.msra.mxu0 %v3030
        %10184 = vmatmul.bf16.gmra.mxu0 %v10143
        %v10185 = vpop.f32.mrf.mxu0
        %v10186 = vadd.f32 %v10168, %v10185
        %v10187 = vpop.f32.mrf.mxu0
        %v10188 = vadd.f32 %v10170, %v10187
        %10189 = vmatmul.bf16.gmra.mxu0 %v10151
        %v10190 = vpop.f32.mrf.mxu0
        %v10191 = vadd.f32 %v10173, %v10190
        %v10192 = vpop.f32.mrf.mxu0
        %10193 = vdwg.mxu0
        %10194 = vmatpush.bf16.msra.mxu0 %v3060
        %10195 = vmatpush.bf16.msra.mxu0 %v3058
        %10196 = vmatpush.bf16.msra.mxu0 %v3056
        %10197 = vmatpush.bf16.msra.mxu0 %v3054
        %10198 = vmatpush.bf16.msra.mxu0 %v3052
        %10199 = vmatpush.bf16.msra.mxu0 %v3050
        %10200 = vmatpush.bf16.msra.mxu0 %v3048
        %10201 = vmatpush.bf16.msra.mxu0 %v3046
        %10202 = vmatmul.bf16.gmra.mxu0 %v10144
        %v10203 = vpop.f32.mrf.mxu0
        %v10204 = vadd.f32 %v10186, %v10203
        %v10205 = vpop.f32.mrf.mxu0
        %v10206 = vadd.f32 %v10188, %v10205
        %10207 = vmatmul.bf16.gmra.mxu0 %v10152
        %v10208 = vpop.f32.mrf.mxu0
        %v10209 = vadd.f32 %v10191, %v10208
        %v10210 = vpop.f32.mrf.mxu0
        %10211 = vdwg.mxu0
        %10212 = vmatpush.bf16.msra.mxu0 %v3076
        %10213 = vmatpush.bf16.msra.mxu0 %v3074
        %10214 = vmatpush.bf16.msra.mxu0 %v3072
        %10215 = vmatpush.bf16.msra.mxu0 %v3070
        %10216 = vmatpush.bf16.msra.mxu0 %v3068
        %10217 = vmatpush.bf16.msra.mxu0 %v3066
        %10218 = vmatpush.bf16.msra.mxu0 %v3064
        %10219 = vmatpush.bf16.msra.mxu0 %v3062
        %10220 = vmatmul.bf16.gmra.mxu0 %v10145
        %v10221 = vpop.f32.mrf.mxu0
        %v10222 = vadd.f32 %v10204, %v10221
        %v10223 = vpop.f32.mrf.mxu0
        %v10224 = vadd.f32 %v10206, %v10223
        %10225 = vmatmul.bf16.gmra.mxu0 %v10153
        %v10226 = vpop.f32.mrf.mxu0
        %v10227 = vadd.f32 %v10209, %v10226
        %v10228 = vpop.f32.mrf.mxu0
        %10229 = vdwg.mxu0
        %10230 = vmatpush.bf16.msra.mxu0 %v3092
        %10231 = vmatpush.bf16.msra.mxu0 %v3090
        %10232 = vmatpush.bf16.msra.mxu0 %v3088
        %10233 = vmatpush.bf16.msra.mxu0 %v3086
        %10234 = vmatpush.bf16.msra.mxu0 %v3084
        %10235 = vmatpush.bf16.msra.mxu0 %v3082
        %10236 = vmatpush.bf16.msra.mxu0 %v3080
        %10237 = vmatpush.bf16.msra.mxu0 %v3078
        %10238 = vmatmul.bf16.gmra.mxu0 %v10146
        %v10239 = vpop.f32.mrf.mxu0
        %v10240 = vadd.f32 %v10222, %v10239
        %v10241 = vpop.f32.mrf.mxu0
        %v10242 = vadd.f32 %v10224, %v10241
        %10243 = vmatmul.bf16.gmra.mxu0 %v10154
        %v10244 = vpop.f32.mrf.mxu0
        %v10245 = vadd.f32 %v10227, %v10244
        %v10246 = vpop.f32.mrf.mxu0
        %10247 = vdwg.mxu0
        %10248 = vmatpush.bf16.msra.mxu0 %v3108
        %10249 = vmatpush.bf16.msra.mxu0 %v3106
        %10250 = vmatpush.bf16.msra.mxu0 %v3104
        %10251 = vmatpush.bf16.msra.mxu0 %v3102
        %10252 = vmatpush.bf16.msra.mxu0 %v3100
        %10253 = vmatpush.bf16.msra.mxu0 %v3098
        %10254 = vmatpush.bf16.msra.mxu0 %v3096
        %10255 = vmatpush.bf16.msra.mxu0 %v3094
        %10256 = vmatmul.bf16.gmra.mxu0 %v10147
        %v10257 = vpop.f32.mrf.mxu0
        %v10258 = vadd.f32 %v10240, %v10257
        %v10259 = vpop.f32.mrf.mxu0
        %v10260 = vadd.f32 %v10242, %v10259
        %10261 = vmatmul.bf16.gmra.mxu0 %v10155
        %v10262 = vpop.f32.mrf.mxu0
        %v10263 = vadd.f32 %v10245, %v10262
        %v10264 = vpop.f32.mrf.mxu0
        %10265 = vdwg.mxu0
        %10266 = vmatpush.bf16.msra.mxu0 %v3124
        %10267 = vmatpush.bf16.msra.mxu0 %v3122
        %10268 = vmatpush.bf16.msra.mxu0 %v3120
        %10269 = vmatpush.bf16.msra.mxu0 %v3118
        %10270 = vmatpush.bf16.msra.mxu0 %v3116
        %10271 = vmatpush.bf16.msra.mxu0 %v3114
        %10272 = vmatpush.bf16.msra.mxu0 %v3112
        %10273 = vmatpush.bf16.msra.mxu0 %v3110
        %10274 = vmatmul.bf16.gmra.mxu0 %v10148
        %v10275 = vpop.f32.mrf.mxu0
        %v10276 = vadd.f32 %v10258, %v10275
        %v10277 = vpop.f32.mrf.mxu0
        %v10278 = vadd.f32 %v10260, %v10277
        %10279 = vmatmul.bf16.gmra.mxu0 %v10156
        %v10280 = vpop.f32.mrf.mxu0
        %v10281 = vadd.f32 %v10263, %v10280
        %v10282 = vpop.f32.mrf.mxu0
        %10283 = vdwg.mxu0
        %10284 = vmatpush.bf16.msra.mxu0 %v3140
        %10285 = vmatpush.bf16.msra.mxu0 %v3138
        %10286 = vmatpush.bf16.msra.mxu0 %v3136
        %10287 = vmatpush.bf16.msra.mxu0 %v3134
        %10288 = vmatpush.bf16.msra.mxu0 %v3132
        %10289 = vmatpush.bf16.msra.mxu0 %v3130
        %10290 = vmatpush.bf16.msra.mxu0 %v3128
        %10291 = vmatpush.bf16.msra.mxu0 %v3126
        %10292 = vmatmul.bf16.gmra.mxu0 %v10149
        %v10293 = vpop.f32.mrf.mxu0
        %v10294 = vadd.f32 %v10276, %v10293
        %v10295 = vpop.f32.mrf.mxu0
        %v10296 = vadd.f32 %v10278, %v10295
        %10297 = vmatmul.bf16.gmra.mxu0 %v10157
        %v10298 = vpop.f32.mrf.mxu0
        %v10299 = vadd.f32 %v10281, %v10298
        %v10300 = vpop.f32.mrf.mxu0
        %10301 = vdwg.mxu0
        %10302 = vmatpush.bf16.msra.mxu0 %v3029
        %10303 = vmatpush.bf16.msra.mxu0 %v3027
        %10304 = vmatpush.bf16.msra.mxu0 %v3025
        %10305 = vmatpush.bf16.msra.mxu0 %v3023
        %10306 = vmatpush.bf16.msra.mxu0 %v3021
        %10307 = vmatpush.bf16.msra.mxu0 %v3019
        %10308 = vmatpush.bf16.msra.mxu0 %v3017
        %10309 = vmatpush.bf16.msra.mxu0 %v3015
        %10310 = vmatmul.bf16.gmra.mxu0 %v10142
        %v10311 = vpop.f32.mrf.mxu0
        %v10312 = vadd.f32 0.0, %v10311
        %v10313 = vpop.f32.mrf.mxu0
        %v10314 = vadd.f32 0.0, %v10313
        %10315 = vmatmul.bf16.gmra.mxu0 %v10150
        %v10316 = vpop.f32.mrf.mxu0
        %v10317 = vadd.f32 0.0, %v10316
        %v10318 = vpop.f32.mrf.mxu0
        %10319 = vdwg.mxu0
        %10320 = vmatpush.bf16.msra.mxu0 %v3045
        %10321 = vmatpush.bf16.msra.mxu0 %v3043
        %10322 = vmatpush.bf16.msra.mxu0 %v3041
        %10323 = vmatpush.bf16.msra.mxu0 %v3039
        %10324 = vmatpush.bf16.msra.mxu0 %v3037
        %10325 = vmatpush.bf16.msra.mxu0 %v3035
        %10326 = vmatpush.bf16.msra.mxu0 %v3033
        %10327 = vmatpush.bf16.msra.mxu0 %v3031
        %10328 = vmatmul.bf16.gmra.mxu0 %v10143
        %v10329 = vpop.f32.mrf.mxu0
        %v10330 = vadd.f32 %v10312, %v10329
        %v10331 = vpop.f32.mrf.mxu0
        %v10332 = vadd.f32 %v10314, %v10331
        %10333 = vmatmul.bf16.gmra.mxu0 %v10151
        %v10334 = vpop.f32.mrf.mxu0
        %v10335 = vadd.f32 %v10317, %v10334
        %v10336 = vpop.f32.mrf.mxu0
        %10337 = vdwg.mxu0
        %10338 = vmatpush.bf16.msra.mxu0 %v3061
        %10339 = vmatpush.bf16.msra.mxu0 %v3059
        %10340 = vmatpush.bf16.msra.mxu0 %v3057
        %10341 = vmatpush.bf16.msra.mxu0 %v3055
        %10342 = vmatpush.bf16.msra.mxu0 %v3053
        %10343 = vmatpush.bf16.msra.mxu0 %v3051
        %10344 = vmatpush.bf16.msra.mxu0 %v3049
        %10345 = vmatpush.bf16.msra.mxu0 %v3047
        %10346 = vmatmul.bf16.gmra.mxu0 %v10144
        %v10347 = vpop.f32.mrf.mxu0
        %v10348 = vadd.f32 %v10330, %v10347
        %v10349 = vpop.f32.mrf.mxu0
        %v10350 = vadd.f32 %v10332, %v10349
        %10351 = vmatmul.bf16.gmra.mxu0 %v10152
        %v10352 = vpop.f32.mrf.mxu0
        %v10353 = vadd.f32 %v10335, %v10352
        %v10354 = vpop.f32.mrf.mxu0
        %10355 = vdwg.mxu0
        %10356 = vmatpush.bf16.msra.mxu0 %v3077
        %10357 = vmatpush.bf16.msra.mxu0 %v3075
        %10358 = vmatpush.bf16.msra.mxu0 %v3073
        %10359 = vmatpush.bf16.msra.mxu0 %v3071
        %10360 = vmatpush.bf16.msra.mxu0 %v3069
        %10361 = vmatpush.bf16.msra.mxu0 %v3067
        %10362 = vmatpush.bf16.msra.mxu0 %v3065
        %10363 = vmatpush.bf16.msra.mxu0 %v3063
        %10364 = vmatmul.bf16.gmra.mxu0 %v10145
        %v10365 = vpop.f32.mrf.mxu0
        %v10366 = vadd.f32 %v10348, %v10365
        %v10367 = vpop.f32.mrf.mxu0
        %v10368 = vadd.f32 %v10350, %v10367
        %10369 = vmatmul.bf16.gmra.mxu0 %v10153
        %v10370 = vpop.f32.mrf.mxu0
        %v10371 = vadd.f32 %v10353, %v10370
        %v10372 = vpop.f32.mrf.mxu0
        %10373 = vdwg.mxu0
        %10374 = vmatpush.bf16.msra.mxu0 %v3093
        %10375 = vmatpush.bf16.msra.mxu0 %v3091
        %10376 = vmatpush.bf16.msra.mxu0 %v3089
        %10377 = vmatpush.bf16.msra.mxu0 %v3087
        %10378 = vmatpush.bf16.msra.mxu0 %v3085
        %10379 = vmatpush.bf16.msra.mxu0 %v3083
        %10380 = vmatpush.bf16.msra.mxu0 %v3081
        %10381 = vmatpush.bf16.msra.mxu0 %v3079
        %10382 = vmatmul.bf16.gmra.mxu0 %v10146
        %v10383 = vpop.f32.mrf.mxu0
        %v10384 = vadd.f32 %v10366, %v10383
        %v10385 = vpop.f32.mrf.mxu0
        %v10386 = vadd.f32 %v10368, %v10385
        %10387 = vmatmul.bf16.gmra.mxu0 %v10154
        %v10388 = vpop.f32.mrf.mxu0
        %v10389 = vadd.f32 %v10371, %v10388
        %v10390 = vpop.f32.mrf.mxu0
        %10391 = vdwg.mxu0
        %10392 = vmatpush.bf16.msra.mxu0 %v3109
        %10393 = vmatpush.bf16.msra.mxu0 %v3107
        %10394 = vmatpush.bf16.msra.mxu0 %v3105
        %10395 = vmatpush.bf16.msra.mxu0 %v3103
        %10396 = vmatpush.bf16.msra.mxu0 %v3101
        %10397 = vmatpush.bf16.msra.mxu0 %v3099
        %10398 = vmatpush.bf16.msra.mxu0 %v3097
        %10399 = vmatpush.bf16.msra.mxu0 %v3095
        %10400 = vmatmul.bf16.gmra.mxu0 %v10147
        %v10401 = vpop.f32.mrf.mxu0
        %v10402 = vadd.f32 %v10384, %v10401
        %v10403 = vpop.f32.mrf.mxu0
        %v10404 = vadd.f32 %v10386, %v10403
        %10405 = vmatmul.bf16.gmra.mxu0 %v10155
        %v10406 = vpop.f32.mrf.mxu0
        %v10407 = vadd.f32 %v10389, %v10406
        %v10408 = vpop.f32.mrf.mxu0
        %10409 = vdwg.mxu0
        %10410 = vmatpush.bf16.msra.mxu0 %v3125
        %10411 = vmatpush.bf16.msra.mxu0 %v3123
        %10412 = vmatpush.bf16.msra.mxu0 %v3121
        %10413 = vmatpush.bf16.msra.mxu0 %v3119
        %10414 = vmatpush.bf16.msra.mxu0 %v3117
        %10415 = vmatpush.bf16.msra.mxu0 %v3115
        %10416 = vmatpush.bf16.msra.mxu0 %v3113
        %10417 = vmatpush.bf16.msra.mxu0 %v3111
        %10418 = vmatmul.bf16.gmra.mxu0 %v10148
        %v10419 = vpop.f32.mrf.mxu0
        %v10420 = vadd.f32 %v10402, %v10419
        %v10421 = vpop.f32.mrf.mxu0
        %v10422 = vadd.f32 %v10404, %v10421
        %10423 = vmatmul.bf16.gmra.mxu0 %v10156
        %v10424 = vpop.f32.mrf.mxu0
        %v10425 = vadd.f32 %v10407, %v10424
        %v10426 = vpop.f32.mrf.mxu0
        %10427 = vdwg.mxu0
        %10428 = vmatpush.bf16.msra.mxu0 %v3141
        %10429 = vmatpush.bf16.msra.mxu0 %v3139
        %10430 = vmatpush.bf16.msra.mxu0 %v3137
        %10431 = vmatpush.bf16.msra.mxu0 %v3135
        %10432 = vmatpush.bf16.msra.mxu0 %v3133
        %10433 = vmatpush.bf16.msra.mxu0 %v3131
        %10434 = vmatpush.bf16.msra.mxu0 %v3129
        %10435 = vmatpush.bf16.msra.mxu0 %v3127
        %10436 = vmatmul.bf16.gmra.mxu0 %v10149
        %v10437 = vpop.f32.mrf.mxu0
        %v10438 = vadd.f32 %v10420, %v10437
        %v10439 = vpop.f32.mrf.mxu0
        %v10440 = vadd.f32 %v10422, %v10439
        %10441 = vmatmul.bf16.gmra.mxu0 %v10157
        %v10442 = vpop.f32.mrf.mxu0
        %v10443 = vadd.f32 %v10425, %v10442
        %v10444 = vpop.f32.mrf.mxu0
        %10445 = vdwg.mxu0
        %v10446 = vmul.f32 %v10294, %v501
        %v10447 = vmul.f32 %v10438, %v502
        %v10448 = vmul.f32 %v10296, %v503
        %v10449 = vmul.f32 %v10440, %v504
        %v10450 = vmul.f32 %v10299, %v505
        %v10451 = vmul.f32 %v10443, %v506
        %v10453 = vsel %vm3564, %v10447, 0
        %v10456 = vsel %vm3564, %v10449, 0
        %v10459 = vsel %vm3564, %v10451, 0
        %10461 = vmatpush.msra.mxu0 %v522
        %10462 = vmatpush.msra.mxu0 %v521
        %10463 = vmatpush.msra.mxu0 %v520
        %10464 = vmatpush.msra.mxu0 %v519
        %10465 = vmatpush.msra.mxu0 %v518
        %10466 = vmatpush.msra.mxu0 %v517
        %10467 = vmatpush.msra.mxu0 %v516
        %10468 = vmatpush.msra.mxu0 %v515
        %10469 = vmatpush.msra.mxu0 %v514
        %10470 = vmatpush.msra.mxu0 %v513
        %10471 = vmatpush.msra.mxu0 %v512
        %10472 = vmatpush.msra.mxu0 %v511
        %10473 = vmatpush.msra.mxu0 %v510
        %10474 = vmatpush.msra.mxu0 %v509
        %10475 = vmatpush.msra.mxu0 %v508
        %10476 = vmatpush.msra.mxu0 %v507
        %10477 = vmatmul.f32.gmra.mxu0 %v10446
        %v10478 = vpop.f32.mrf.mxu0
        %v10479 = vadd.f32 0.0, %v10478
        %10480 = vmatmul.f32.gmra.mxu0 %v10448
        %v10481 = vpop.f32.mrf.mxu0
        %v10482 = vadd.f32 0.0, %v10481
        %10483 = vmatmul.f32.gmra.mxu0 %v10450
        %v10484 = vpop.f32.mrf.mxu0
        %v10485 = vadd.f32 0.0, %v10484
        %10486 = vdwg.mxu0
        %10487 = vmatpush.msra.mxu0 0.0
        %10488 = vmatpush.msra.mxu0 0.0
        %10489 = vmatpush.msra.mxu0 0.0
        %10490 = vmatpush.msra.mxu0 0.0
        %10491 = vmatpush.msra.mxu0 0.0
        %10492 = vmatpush.msra.mxu0 0.0
        %10493 = vmatpush.msra.mxu0 0.0
        %10494 = vmatpush.msra.mxu0 %v531
        %10495 = vmatpush.msra.mxu0 %v530
        %10496 = vmatpush.msra.mxu0 %v529
        %10497 = vmatpush.msra.mxu0 %v528
        %10498 = vmatpush.msra.mxu0 %v527
        %10499 = vmatpush.msra.mxu0 %v526
        %10500 = vmatpush.msra.mxu0 %v525
        %10501 = vmatpush.msra.mxu0 %v524
        %10502 = vmatpush.msra.mxu0 %v523
        %10503 = vmatmul.f32.gmra.mxu0 %v10453
        %v10504 = vpop.f32.mrf.mxu0
        %v10505 = vadd.f32 %v10479, %v10504
        %10506 = vmatmul.f32.gmra.mxu0 %v10456
        %v10507 = vpop.f32.mrf.mxu0
        %v10508 = vadd.f32 %v10482, %v10507
        %10509 = vmatmul.f32.gmra.mxu0 %v10459
        %v10510 = vpop.f32.mrf.mxu0
        %v10511 = vadd.f32 %v10485, %v10510
        %10512 = vdwg.mxu0
        %v10513 = vsel %vm3626, %v10505, 0.0
        %v10514 = vsel %vm3626, %v10508, 0.0
        %v10515 = vadd.f32 %v10513, %v10514
        %v10516 = vsel %vm3630, %v10511, 0.0
        %v10517 = vadd.f32 %v10515, %v10516
        %v10518 = vrot.slane %v10517, 4
        %v10519 = vadd.f32 %v10517, %v10518
        %v10520 = vrot.slane %v10519, 2
        %v10521 = vadd.f32 %v10519, %v10520
        %v10522 = vrot.slane %v10521, 1
        %v10523 = vadd.f32 %v10521, %v10522
        %v10524 = vadd.f32 %v10523, %v532
        %s10525 = scalar_lea.vmem %s353, 3 [#allocation2]
        %10526 = vst.msk [vmem:[%s10525] sm:$0x1] %vm3640, %v10524
        %s10527 = sand.u32 %s247, 1
        %s10528 = scalar_lea.sflag [#allocation3], %s10527
        %s10529 = sand.u32 %s247, 1
        %s10530 = smul.addr %s10529, 4
        %s10531 = scalar_lea.vmem [#allocation2], %s10530
        // Predicated region
        $region61: #{mnist_forward.1} parent=59 // pred_check
          %p10532 = pneg %p257
        $region62: #{mnist_forward.1} parent=59 // pred_check_branch
          %10534 = sbr.rel (%p10532) target = $region64
        $region63: #{mnist_forward.1} parent=59 // pred_region
          %s10535 = smul.u32 4, %s24
          %10537 = vsyncadd %s10528, 0
          %s10538 = scalar_lea.hbm %s10, %s10535
          %s10539 = sshll.u32 %s10531, 4
          %s10540 = int_to_ptr.vmem [resolvable:$true] %s10539
          %s10541 = sshll.u32 %s10538, 4
          %s10542 = int_to_ptr.hbm [resolvable:$true] %s10541
          %10547 = dma.vmem_to_hbm [thread:$0]  %s10540, 64, %s10542, %s10528, 16, 16, 1
        $region64: #{mnist_forward.1} parent=59 // pred_fallthru
          _
      $region60: #{mnist_forward.1} parent=5 // pred_fallthru
        _
      %p10548 = scmp.le.s32.totalorder 2, %s19
      // Predicated region
      $region65: #{mnist_forward.1} parent=5 // pred_check
        %p10549 = pneg %p10548
      $region66: #{mnist_forward.1} parent=5 // pred_check_branch
        %10551 = sbr.rel (%p10549) target = $region68
      $region67: #{mnist_forward.1} parent=5 // pred_region
        %s10552 = ssub.s32 %s19, 2
        // Predicated region
        $region69: #{mnist_forward.1} parent=67 // pred_check
          %p10553 = pneg %p263
        $region70: #{mnist_forward.1} parent=67 // pred_check_branch
          %10555 = sbr.rel (%p10553) target = $region72
        $region71: #{mnist_forward.1} parent=67 // pred_region
          %s10556 = sand.u32 %s248, 1
          %s10557 = scalar_lea.sflag [#allocation3], %s10556
          %s10558 = sand.u32 %s248, 1
          %s10559 = smul.addr %s10558, 4
          %s10560 = scalar_lea.vmem [#allocation2], %s10559
          %10562 = dma.done %s10557, 64
        $region72: #{mnist_forward.1} parent=67 // pred_fallthru
          _
      $region68: #{mnist_forward.1} parent=5 // pred_fallthru
        _
    $region6: #{mnist_forward.1} parent=1 // loop_footer
      %s23 = sadd.s32 1, %s19
    $region7: #{mnist_forward.1} parent=1 // loop_footer_branch
      %18 = sbr.rel target = $region3
    $region8: #{mnist_forward.1} parent=1 // loop_exit
      _
    %10563 = vsyncpa [#allocation3], 1
    %s10564 = scalar_lea.sflag [#allocation3], 1
    %10565 = vsyncpa %s10564, 1

</llo_original>
